<compile_context>
chip_gen: v5e
topology: v5e:2x2
jax: 0.10.0
libtpu: 0.0.40
codegen_flags: <defaults>
</compile_context>

<pallas_src>
import functools

import jax
import jax.numpy as jnp
import numpy as np
from jax.experimental import pallas as pl
from jax.experimental.pallas import tpu as pltpu

_EPS = 1e-5
_LANE = 128

_PARALLEL_1D = pltpu.CompilerParams(dimension_semantics=("parallel",))


# ----------------------------------------------------------------------------
# Small helpers
# ----------------------------------------------------------------------------
def _ceil_to(x, m):
    return (x + m - 1) // m * m


def _row_tile(rows, cap=256):
    """Largest multiple-of-8 divisor of `rows` that is <= cap (else all rows)."""
    best = rows
    t = 8
    while t <= min(rows, cap):
        if rows % t == 0:
            best = t
        t += 8
    return best


def _pad_last(a, c_pad):
    c = a.shape[-1]
    if c == c_pad:
        return a
    widths = [(0, 0)] * (a.ndim - 1) + [(0, c_pad - c)]
    return jnp.pad(a, widths)


def _pack_w3x3(w, c_in_p, c_out_p):
    """(3,3,Cin,Cout) -> (9*Cin_p, Cout_p) bf16, tap-major (kh, kw, ci) order."""
    kh, kw, cin, cout = w.shape
    wp = jnp.zeros((kh, kw, c_in_p, c_out_p), jnp.float32)
    wp = wp.at[:, :, :cin, :cout].set(w)
    return wp.reshape(kh * kw * c_in_p, c_out_p).astype(jnp.bfloat16)


def _pack_w1x1(w, c_in_p, c_out_p):
    cin, cout = w.shape
    wp = jnp.zeros((c_in_p, c_out_p), jnp.float32)
    wp = wp.at[:cin, :cout].set(w)
    return wp.astype(jnp.bfloat16)


# ----------------------------------------------------------------------------
# Kernels
# ----------------------------------------------------------------------------
def _conv3x3_s1_kernel(x_ref, w_ref, scale_ref, shift_ref, y_ref, stats_ref,
                       xp_ref, *, prenorm_relu):
    """3x3, stride-1, pad-1 conv over one batch tile.

    Optionally applies relu(x*scale + shift) (the previous layer's BN) to the
    input window before convolving.  Also emits per-tile per-channel
    (sum, sum_sq) of the raw conv output for batch-norm statistics.
    """
    nb, H, W, Cin = x_ref.shape
    _, Ho, Wo, Cout = y_ref.shape

    # Build the zero-padded (halo) window in VMEM.  Zeroing first and writing
    # the interior afterwards keeps the border exactly zero, i.e. the conv's
    # zero padding is applied *after* the fused pre-normalization.
    xp_ref[...] = jnp.zeros_like(xp_ref)
    if prenorm_relu:
        xv = x_ref[...].astype(jnp.float32)
        xv = jnp.maximum(xv * scale_ref[...] + shift_ref[...], 0.0)
        xp_ref[:, 1:H + 1, 1:W + 1, :] = xv.astype(xp_ref.dtype)
    else:
        xp_ref[:, 1:H + 1, 1:W + 1, :] = x_ref[...].astype(xp_ref.dtype)

    # im2col: 9 shifted windows packed along channels -> one bf16 MXU matmul
    # with K = 9*Cin and f32 accumulation.
    taps = [xp_ref[:, kh:kh + Ho, kw:kw + Wo, :]
            for kh in range(3) for kw in range(3)]
    cols = jnp.concatenate(taps, axis=-1).reshape(nb * Ho * Wo, 9 * Cin)
    acc = jnp.dot(cols, w_ref[...], preferred_element_type=jnp.float32)

    y_ref[...] = acc.reshape(nb, Ho, Wo, Cout).astype(y_ref.dtype)
    ssum = jnp.sum(acc, axis=0, keepdims=True)
    ssq = jnp.sum(acc * acc, axis=0, keepdims=True)
    stats_ref[...] = jnp.concatenate([ssum, ssq], axis=0).reshape(1, 2, Cout)


def _matmul_stats_kernel(x_ref, w_ref, y_ref, stats_ref):
    """(rows, K) @ (K, Cout) in bf16 with f32 accumulation + channel stats."""
    acc = jnp.dot(x_ref[...], w_ref[...], preferred_element_type=jnp.float32)
    y_ref[...] = acc.astype(y_ref.dtype)
    ssum = jnp.sum(acc, axis=0, keepdims=True)
    ssq = jnp.sum(acc * acc, axis=0, keepdims=True)
    cout = y_ref.shape[-1]
    stats_ref[...] = jnp.concatenate([ssum, ssq], axis=0).reshape(1, 2, cout)


def _finalize_kernel(y_ref, sc_ref, s2_ref, h2_ref, ss_ref, hs_ref, out_ref):
    """out = relu(bn2(conv2_raw) + bn_s(shortcut_raw)) on one row tile."""
    y = y_ref[...].astype(jnp.float32) * s2_ref[...] + h2_ref[...]
    s = sc_ref[...].astype(jnp.float32) * ss_ref[...] + hs_ref[...]
    out_ref[...] = jnp.maximum(y + s, 0.0).astype(out_ref.dtype)


# ----------------------------------------------------------------------------
# pallas_call wrappers
# ----------------------------------------------------------------------------
def conv3x3_s1_stats(x, w2d, scale, shift, *, prenorm_relu):
    """Stride-1 3x3 conv over NHWC `x` (channels already lane-padded)."""
    N, H, W, Cin = x.shape
    Cout = w2d.shape[1]
    nb = 1                      # one image per grid step (megacore-splittable)
    grid = (N // nb,)
    kernel = functools.partial(_conv3x3_s1_kernel, prenorm_relu=prenorm_relu)
    return pl.pallas_call(
        kernel,
        grid=grid,
        in_specs=[
            pl.BlockSpec((nb, H, W, Cin), lambda i: (i, 0, 0, 0)),
            pl.BlockSpec((9 * Cin, Cout), lambda i: (0, 0)),
            pl.BlockSpec((1, Cin), lambda i: (0, 0)),
            pl.BlockSpec((1, Cin), lambda i: (0, 0)),
        ],
        out_specs=(
            pl.BlockSpec((nb, H, W, Cout), lambda i: (i, 0, 0, 0)),
            pl.BlockSpec((1, 2, Cout), lambda i: (i, 0, 0)),
        ),
        out_shape=(
            jax.ShapeDtypeStruct((N, H, W, Cout), jnp.bfloat16),
            jax.ShapeDtypeStruct((N // nb, 2, Cout), jnp.float32),
        ),
        scratch_shapes=[pltpu.VMEM((nb, H + 2, W + 2, Cin), jnp.bfloat16)],
        compiler_params=_PARALLEL_1D,
    )(x, w2d, scale, shift)


def matmul_stats(x2d, w2d):
    rows, K = x2d.shape
    Cout = w2d.shape[1]
    rt = _row_tile(rows)
    grid = (rows // rt,)
    return pl.pallas_call(
        _matmul_stats_kernel,
        grid=grid,
        in_specs=[
            pl.BlockSpec((rt, K), lambda i: (i, 0)),
            pl.BlockSpec((K, Cout), lambda i: (0, 0)),
        ],
        out_specs=(
            pl.BlockSpec((rt, Cout), lambda i: (i, 0)),
            pl.BlockSpec((1, 2, Cout), lambda i: (i, 0, 0)),
        ),
        out_shape=(
            jax.ShapeDtypeStruct((rows, Cout), jnp.bfloat16),
            jax.ShapeDtypeStruct((rows // rt, 2, Cout), jnp.float32),
        ),
        compiler_params=_PARALLEL_1D,
    )(x2d, w2d)


def finalize_add_relu(y2d, sc2d, scale2, shift2, scale_s, shift_s, out_dtype):
    rows, C = y2d.shape
    rt = _row_tile(rows)
    grid = (rows // rt,)
    vec = pl.BlockSpec((1, C), lambda i: (0, 0))
    return pl.pallas_call(
        _finalize_kernel,
        grid=grid,
        in_specs=[
            pl.BlockSpec((rt, C), lambda i: (i, 0)),
            pl.BlockSpec((rt, C), lambda i: (i, 0)),
            vec, vec, vec, vec,
        ],
        out_specs=pl.BlockSpec((rt, C), lambda i: (i, 0)),
        out_shape=jax.ShapeDtypeStruct((rows, C), out_dtype),
        compiler_params=_PARALLEL_1D,
    )(y2d, sc2d, scale2, shift2, scale_s, shift_s)


# ----------------------------------------------------------------------------
# BatchNorm helpers (tiny wrapper-side glue on (tiles, 2, C) stats)
# ----------------------------------------------------------------------------
def _bn_scale_shift(stats, count, gamma_p, beta_p):
    tot = jnp.sum(stats, axis=0)                                # (2, C)
    mean = tot[0] / count
    var = jnp.maximum(tot[1] / count - mean * mean, 0.0)        # biased var
    scale = gamma_p * jax.lax.rsqrt(var + _EPS)
    shift = beta_p - mean * scale
    return scale.reshape(1, -1), shift.reshape(1, -1)


def _im2col_strided(x_p, stride, Ho, Wo):
    """Wrapper-side per-tap subsampling for stride > 1 (plain XLA slices)."""
    N, H, W, C = x_p.shape
    xpad = jnp.pad(x_p, ((0, 0), (1, 1), (1, 1), (0, 0)))
    taps = [xpad[:, kh:kh + stride * (Ho - 1) + 1:stride,
                 kw:kw + stride * (Wo - 1) + 1:stride, :]
            for kh in range(3) for kw in range(3)]
    cols = jnp.concatenate(taps, axis=-1)                       # (N,Ho,Wo,9C)
    return cols.reshape(N * Ho * Wo, 9 * C).astype(jnp.bfloat16)


# ----------------------------------------------------------------------------
# BasicBlock: parameters + forward
# ----------------------------------------------------------------------------
def init_basic_block_params(key, in_planes, planes, stride=1):
    k1, k2, k3 = jax.random.split(key, 3)

    def conv_init(k, kh, kw, cin, cout):
        fan_in = kh * kw * cin
        return (jax.random.normal(k, (kh, kw, cin, cout), jnp.float32)
                * np.sqrt(2.0 / fan_in))

    params = {
        "w1": conv_init(k1, 3, 3, in_planes, planes),
        "g1": jnp.ones((planes,), jnp.float32),
        "b1": jnp.zeros((planes,), jnp.float32),
        "w2": conv_init(k2, 3, 3, planes, planes),
        "g2": jnp.ones((planes,), jnp.float32),
        "b2": jnp.zeros((planes,), jnp.float32),
    }
    if stride != 1 or in_planes != planes:  # expansion == 1
        params["ws"] = conv_init(k3, 1, 1, in_planes, planes)[0, 0]  # (Cin,Cout)
        params["gs"] = jnp.ones((planes,), jnp.float32)
        params["bs"] = jnp.zeros((planes,), jnp.float32)
    return params


@functools.partial(jax.jit, static_argnames=("stride",))
def basic_block_forward(x_nchw, params, stride=1):
    N, Cin, H, W = x_nchw.shape
    planes = params["w1"].shape[-1]
    c_in_p = _ceil_to(Cin, _LANE)
    c_out_p = _ceil_to(planes, _LANE)
    Ho = (H - 1) // stride + 1
    Wo = (W - 1) // stride + 1
    count = N * Ho * Wo

    x = jnp.transpose(x_nchw, (0, 2, 3, 1))          # NCHW -> NHWC
    x_p = _pad_last(x, c_in_p)

    w1 = _pack_w3x3(params["w1"], c_in_p, c_out_p)
    w2 = _pack_w3x3(params["w2"], c_out_p, c_out_p)
    g1 = _pad_last(params["g1"], c_out_p)
    b1 = _pad_last(params["b1"], c_out_p)
    g2 = _pad_last(params["g2"], c_out_p)
    b2 = _pad_last(params["b2"], c_out_p)

    # ---- conv1: 3x3, stride s, pad 1 (raw output + batch-stat partials) ----
    if stride == 1:
        ones_in = jnp.ones((1, c_in_p), jnp.float32)
        zeros_in = jnp.zeros((1, c_in_p), jnp.float32)
        y1, st1 = conv3x3_s1_stats(x_p, w1, ones_in, zeros_in,
                                   prenorm_relu=False)
    else:
        cols = _im2col_strided(x_p, stride, Ho, Wo)
        y1_2d, st1 = matmul_stats(cols, w1)
        y1 = y1_2d.reshape(N, Ho, Wo, c_out_p)
    scale1, shift1 = _bn_scale_shift(st1, count, g1, b1)

    # ---- conv2: 3x3, stride 1; bn1 + relu fused as pre-normalization ----
    y2, st2 = conv3x3_s1_stats(y1, w2, scale1, shift1, prenorm_relu=True)
    scale2, shift2 = _bn_scale_shift(st2, count, g2, b2)

    # ---- shortcut ----
    if "ws" in params:   # 1x1 projection (stride handled by subsampling)
        ws = _pack_w1x1(params["ws"], c_in_p, c_out_p)
        gs = _pad_last(params["gs"], c_out_p)
        bs = _pad_last(params["bs"], c_out_p)
        xs = x_p[:, ::stride, ::stride, :].reshape(count, c_in_p)
        sc2d, sts = matmul_stats(xs.astype(jnp.bfloat16), ws)
        scale_s, shift_s = _bn_scale_shift(sts, count, gs, bs)
    else:                # identity (stride==1 and in_planes==planes)
        sc2d = x_p.reshape(count, c_out_p)
        scale_s = jnp.ones((1, c_out_p), jnp.float32)
        shift_s = jnp.zeros((1, c_out_p), jnp.float32)

    # ---- bn2 + shortcut-BN + residual add + relu ----
    out2d = finalize_add_relu(y2.reshape(count, c_out_p), sc2d,
                              scale2, shift2, scale_s, shift_s, x_nchw.dtype)
    out = out2d.reshape(N, Ho, Wo, c_out_p)[..., :planes]
    return jnp.transpose(out, (0, 3, 1, 2))          # NHWC -> NCHW


# ----------------------------------------------------------------------------
# Pure-JAX reference (for correctness check)
# ----------------------------------------------------------------------------
def _ref_forward(x_nchw, params, stride=1):
    x = jnp.transpose(x_nchw, (0, 2, 3, 1))

    def conv(z, w, s, pad):
        return jax.lax.conv_general_dilated(
            z, w, (s, s), [(pad, pad), (pad, pad)],
            dimension_numbers=("NHWC", "HWIO", "NHWC"))

    def bn(y, g, b):
        mean = y.mean(axis=(0, 1, 2), keepdims=True)
        var = ((y - mean) ** 2).mean(axis=(0, 1, 2), keepdims=True)
        return (y - mean) * jax.lax.rsqrt(var + _EPS) * g + b

    o = jax.nn.relu(bn(conv(x, params["w1"], stride, 1),
                       params["g1"], params["b1"]))
    o = bn(conv(o, params["w2"], 1, 1), params["g2"], params["b2"])
    if "ws" in params:
        sc = bn(conv(x, params["ws"][None, None], stride, 0),
                params["gs"], params["bs"])
    else:
        sc = x
    o = jax.nn.relu(o + sc)
    return jnp.transpose(o, (0, 3, 1, 2))


if __name__ == "__main__":
    root = jax.random.PRNGKey(0)
    # (in_planes, planes, stride):
    #   stride-1 projection shortcut, identity shortcut, stride-2 downsample.
    configs = [(4, 8, 1), (8, 8, 1), (8, 16, 2)]
    for idx, (cin, planes, stride) in enumerate(configs):
        kx, kp = jax.random.split(jax.random.fold_in(root, idx))
        x = jax.random.normal(kx, (2, cin, 16, 16), jnp.float32)
        params = init_basic_block_params(kp, cin, planes, stride)

        out = jax.block_until_ready(
            basic_block_forward(x, params, stride=stride))
        ref = jax.block_until_ready(_ref_forward(x, params, stride=stride))

        ho = (16 - 1) // stride + 1
        assert out.shape == (2, planes, ho, ho), out.shape
        # bf16 MXU operands vs f32 reference -> slightly looser tolerance.
        if not np.allclose(np.asarray(out), np.asarray(ref),
                           rtol=5e-2, atol=5e-2):
            raise AssertionError(
                f"Pallas BasicBlock mismatch vs reference for config "
                f"(in={cin}, planes={planes}, stride={stride})")
    print("KERNEL_OK")
</pallas_src>

<mosaic_0001>
module attributes {stable_mosaic.version = 11 : i64} {
  func.func @_conv3x3_s1_kernel(%arg0: i32, %arg1: memref<1x16x16x128xbf16, #tpu.memory_space<vmem>>, %arg2: memref<1152x128xbf16, #tpu.memory_space<vmem>>, %arg3: memref<1x128xf32, #tpu.memory_space<vmem>>, %arg4: memref<1x128xf32, #tpu.memory_space<vmem>>, %arg5: memref<1x16x16x128xbf16, #tpu.memory_space<vmem>>, %arg6: memref<1x2x128xf32, #tpu.memory_space<vmem>>, %arg7: memref<1x18x18x128xbf16, #tpu.memory_space<vmem>>) attributes {dimension_semantics = [#tpu.dimension_semantics<parallel>], iteration_bounds = array<i64: 2>, scalar_prefetch = 0 : i64, scratch_operands = 1 : i64, tpu.core_type = #tpu.core_type<tc>, window_params = [{transform_indices = @transform_0, window_bounds = array<i64: 1, 16, 16, 128>}, {pipeline_mode = #tpu.pipeline_mode<synchronous>, transform_indices = @transform_1, window_bounds = array<i64: 1152, 128>}, {pipeline_mode = #tpu.pipeline_mode<synchronous>, transform_indices = @transform_2, window_bounds = array<i64: 1, 128>}, {pipeline_mode = #tpu.pipeline_mode<synchronous>, transform_indices = @transform_3, window_bounds = array<i64: 1, 128>}, {transform_indices = @transform_4, window_bounds = array<i64: 1, 16, 16, 128>}, {transform_indices = @transform_5, window_bounds = array<i64: 1, 2, 128>}]} {
    %cst = arith.constant 0.000000e+00 : bf16
    %0 = vector.broadcast %cst : bf16 to vector<1x18x18x128xbf16>
    %c0 = arith.constant 0 : index
    %c0_0 = arith.constant 0 : index
    %c0_1 = arith.constant 0 : index
    %c0_2 = arith.constant 0 : index
    %1 = vector.load %arg7[%c0, %c0_0, %c0_1, %c0_2] : memref<1x18x18x128xbf16, #tpu.memory_space<vmem>>, vector<1x18x18x128xbf16>
    tpu.vector_store %arg7[%c0, %c0_0, %c0_1, %c0_2], %0 {strides = array<i32>} : memref<1x18x18x128xbf16, #tpu.memory_space<vmem>>, vector<1x18x18x128xbf16>,
    %c0_3 = arith.constant 0 : index
    %c0_4 = arith.constant 0 : index
    %c0_5 = arith.constant 0 : index
    %c0_6 = arith.constant 0 : index
    %2 = vector.load %arg1[%c0_3, %c0_4, %c0_5, %c0_6] : memref<1x16x16x128xbf16, #tpu.memory_space<vmem>>, vector<1x16x16x128xbf16>
    %3 = arith.extf %2 : vector<1x16x16x128xbf16> to vector<1x16x16x128xf32>
    %c0_7 = arith.constant 0 : index
    %c0_8 = arith.constant 0 : index
    %4 = vector.load %arg3[%c0_7, %c0_8] : memref<1x128xf32, #tpu.memory_space<vmem>>, vector<1x128xf32>
    %5 = vector.shape_cast %4 : vector<1x128xf32> to vector<1x1x1x128xf32>
    %6 = vector.broadcast %5 : vector<1x1x1x128xf32> to vector<1x16x16x128xf32>
    %7 = arith.mulf %3, %6 : vector<1x16x16x128xf32>
    %c0_9 = arith.constant 0 : index
    %c0_10 = arith.constant 0 : index
    %8 = vector.load %arg4[%c0_9, %c0_10] : memref<1x128xf32, #tpu.memory_space<vmem>>, vector<1x128xf32>
    %9 = vector.shape_cast %8 : vector<1x128xf32> to vector<1x1x1x128xf32>
    %10 = vector.broadcast %9 : vector<1x1x1x128xf32> to vector<1x16x16x128xf32>
    %11 = arith.addf %7, %10 : vector<1x16x16x128xf32>
    %cst_11 = arith.constant 0.000000e+00 : f32
    %12 = vector.broadcast %cst_11 : f32 to vector<1x16x16x128xf32>
    %13 = arith.maximumf %11, %12 : vector<1x16x16x128xf32>
    %14 = arith.truncf %13 : vector<1x16x16x128xf32> to vector<1x16x16x128xbf16>
    %c0_12 = arith.constant 0 : index
    %c1 = arith.constant 1 : index
    %c1_13 = arith.constant 1 : index
    %c0_14 = arith.constant 0 : index
    %15 = vector.load %arg7[%c0_12, %c1, %c1_13, %c0_14] : memref<1x18x18x128xbf16, #tpu.memory_space<vmem>>, vector<1x16x16x128xbf16>
    tpu.vector_store %arg7[%c0_12, %c1, %c1_13, %c0_14], %14 {strides = array<i32>} : memref<1x18x18x128xbf16, #tpu.memory_space<vmem>>, vector<1x16x16x128xbf16>,
    %c0_15 = arith.constant 0 : index
    %c0_16 = arith.constant 0 : index
    %c0_17 = arith.constant 0 : index
    %c0_18 = arith.constant 0 : index
    %16 = vector.load %arg7[%c0_15, %c0_16, %c0_17, %c0_18] : memref<1x18x18x128xbf16, #tpu.memory_space<vmem>>, vector<1x16x16x128xbf16>
    %c0_19 = arith.constant 0 : index
    %c0_20 = arith.constant 0 : index
    %c1_21 = arith.constant 1 : index
    %c0_22 = arith.constant 0 : index
    %17 = vector.load %arg7[%c0_19, %c0_20, %c1_21, %c0_22] : memref<1x18x18x128xbf16, #tpu.memory_space<vmem>>, vector<1x16x16x128xbf16>
    %c0_23 = arith.constant 0 : index
    %c0_24 = arith.constant 0 : index
    %c2 = arith.constant 2 : index
    %c0_25 = arith.constant 0 : index
    %18 = vector.load %arg7[%c0_23, %c0_24, %c2, %c0_25] : memref<1x18x18x128xbf16, #tpu.memory_space<vmem>>, vector<1x16x16x128xbf16>
    %c0_26 = arith.constant 0 : index
    %c1_27 = arith.constant 1 : index
    %c0_28 = arith.constant 0 : index
    %c0_29 = arith.constant 0 : index
    %19 = vector.load %arg7[%c0_26, %c1_27, %c0_28, %c0_29] : memref<1x18x18x128xbf16, #tpu.memory_space<vmem>>, vector<1x16x16x128xbf16>
    %c0_30 = arith.constant 0 : index
    %c1_31 = arith.constant 1 : index
    %c1_32 = arith.constant 1 : index
    %c0_33 = arith.constant 0 : index
    %20 = vector.load %arg7[%c0_30, %c1_31, %c1_32, %c0_33] : memref<1x18x18x128xbf16, #tpu.memory_space<vmem>>, vector<1x16x16x128xbf16>
    %c0_34 = arith.constant 0 : index
    %c1_35 = arith.constant 1 : index
    %c2_36 = arith.constant 2 : index
    %c0_37 = arith.constant 0 : index
    %21 = vector.load %arg7[%c0_34, %c1_35, %c2_36, %c0_37] : memref<1x18x18x128xbf16, #tpu.memory_space<vmem>>, vector<1x16x16x128xbf16>
    %c0_38 = arith.constant 0 : index
    %c2_39 = arith.constant 2 : index
    %c0_40 = arith.constant 0 : index
    %c0_41 = arith.constant 0 : index
    %22 = vector.load %arg7[%c0_38, %c2_39, %c0_40, %c0_41] : memref<1x18x18x128xbf16, #tpu.memory_space<vmem>>, vector<1x16x16x128xbf16>
    %c0_42 = arith.constant 0 : index
    %c2_43 = arith.constant 2 : index
    %c1_44 = arith.constant 1 : index
    %c0_45 = arith.constant 0 : index
    %23 = vector.load %arg7[%c0_42, %c2_43, %c1_44, %c0_45] : memref<1x18x18x128xbf16, #tpu.memory_space<vmem>>, vector<1x16x16x128xbf16>
    %c0_46 = arith.constant 0 : index
    %c2_47 = arith.constant 2 : index
    %c2_48 = arith.constant 2 : index
    %c0_49 = arith.constant 0 : index
    %24 = vector.load %arg7[%c0_46, %c2_47, %c2_48, %c0_49] : memref<1x18x18x128xbf16, #tpu.memory_space<vmem>>, vector<1x16x16x128xbf16>
    %25 = tpu.concatenate %16, %17, %18, %19, %20, %21, %22, %23, %24 in 3 : vector<1x16x16x128xbf16>, vector<1x16x16x128xbf16>, vector<1x16x16x128xbf16>, vector<1x16x16x128xbf16>, vector<1x16x16x128xbf16>, vector<1x16x16x128xbf16>, vector<1x16x16x128xbf16>, vector<1x16x16x128xbf16>, vector<1x16x16x128xbf16> -> vector<1x16x16x1152xbf16>
    %26 = vector.shape_cast %25 : vector<1x16x16x1152xbf16> to vector<256x1152xbf16>
    %c0_50 = arith.constant 0 : index
    %c0_51 = arith.constant 0 : index
    %27 = vector.load %arg2[%c0_50, %c0_51] : memref<1152x128xbf16, #tpu.memory_space<vmem>>, vector<1152x128xbf16>
    %cst_52 = arith.constant dense<0.000000e+00> : vector<256x128xf32>
    %28 = tpu.matmul %26, %27, %cst_52 {dimension_numbers = #tpu.dot_dimension_numbers<[1], [0], [0], [1], [0, 0, 1, 1], [], []>} : vector<256x1152xbf16>, vector<1152x128xbf16>, vector<256x128xf32> -> vector<256x128xf32>
    %29 = vector.shape_cast %28 : vector<256x128xf32> to vector<1x16x16x128xf32>
    %30 = arith.truncf %29 : vector<1x16x16x128xf32> to vector<1x16x16x128xbf16>
    %c0_53 = arith.constant 0 : index
    %c0_54 = arith.constant 0 : index
    %c0_55 = arith.constant 0 : index
    %c0_56 = arith.constant 0 : index
    %31 = vector.load %arg5[%c0_53, %c0_54, %c0_55, %c0_56] : memref<1x16x16x128xbf16, #tpu.memory_space<vmem>>, vector<1x16x16x128xbf16>
    tpu.vector_store %arg5[%c0_53, %c0_54, %c0_55, %c0_56], %30 {strides = array<i32>} : memref<1x16x16x128xbf16, #tpu.memory_space<vmem>>, vector<1x16x16x128xbf16>,
    %cst_57 = arith.constant dense<0.000000e+00> : vector<128xf32>
    %32 = vector.multi_reduction <add>, %28, %cst_57 [0] : vector<256x128xf32> to vector<128xf32>
    %33 = vector.shape_cast %32 : vector<128xf32> to vector<1x128xf32>
    %34 = arith.mulf %28, %28 : vector<256x128xf32>
    %cst_58 = arith.constant dense<0.000000e+00> : vector<128xf32>
    %35 = vector.multi_reduction <add>, %34, %cst_58 [0] : vector<256x128xf32> to vector<128xf32>
    %36 = vector.shape_cast %35 : vector<128xf32> to vector<1x128xf32>
    %37 = tpu.concatenate %33, %36 in 0 : vector<1x128xf32>, vector<1x128xf32> -> vector<2x128xf32>
    %38 = vector.shape_cast %37 : vector<2x128xf32> to vector<1x2x128xf32>
    %c0_59 = arith.constant 0 : index
    %c0_60 = arith.constant 0 : index
    %c0_61 = arith.constant 0 : index
    %39 = vector.load %arg6[%c0_59, %c0_60, %c0_61] : memref<1x2x128xf32, #tpu.memory_space<vmem>>, vector<1x2x128xf32>
    tpu.vector_store %arg6[%c0_59, %c0_60, %c0_61], %38 {strides = array<i32>} : memref<1x2x128xf32, #tpu.memory_space<vmem>>, vector<1x2x128xf32>,
    return
  }
  func.func @transform_0(%arg0: i32) -> (i32, i32, i32, i32) {
    %c0_i32 = arith.constant 0 : i32
    %c0_i32_0 = arith.constant 0 : i32
    %c0_i32_1 = arith.constant 0 : i32
    %c0_i32_2 = arith.constant 0 : i32
    return %arg0, %c0_i32, %c0_i32_0, %c0_i32_1 : i32, i32, i32, i32
  }
  func.func @transform_1(%arg0: i32) -> (i32, i32) {
    %c0_i32 = arith.constant 0 : i32
    %c0_i32_0 = arith.constant 0 : i32
    %c0_i32_1 = arith.constant 0 : i32
    return %c0_i32, %c0_i32_0 : i32, i32
  }
  func.func @transform_2(%arg0: i32) -> (i32, i32) {
    %c0_i32 = arith.constant 0 : i32
    %c0_i32_0 = arith.constant 0 : i32
    %c0_i32_1 = arith.constant 0 : i32
    return %c0_i32, %c0_i32_0 : i32, i32
  }
  func.func @transform_3(%arg0: i32) -> (i32, i32) {
    %c0_i32 = arith.constant 0 : i32
    %c0_i32_0 = arith.constant 0 : i32
    %c0_i32_1 = arith.constant 0 : i32
    return %c0_i32, %c0_i32_0 : i32, i32
  }
  func.func @transform_4(%arg0: i32) -> (i32, i32, i32, i32) {
    %c0_i32 = arith.constant 0 : i32
    %c0_i32_0 = arith.constant 0 : i32
    %c0_i32_1 = arith.constant 0 : i32
    %c0_i32_2 = arith.constant 0 : i32
    return %arg0, %c0_i32, %c0_i32_0, %c0_i32_1 : i32, i32, i32, i32
  }
  func.func @transform_5(%arg0: i32) -> (i32, i32, i32) {
    %c0_i32 = arith.constant 0 : i32
    %c0_i32_0 = arith.constant 0 : i32
    %c0_i32_1 = arith.constant 0 : i32
    return %arg0, %c0_i32, %c0_i32_0 : i32, i32, i32
  }
}

module attributes {stable_mosaic.version = 11 : i64} {
  func.func @_conv3x3_s1_kernel(%arg0: i32, %arg1: memref<1x16x16x128xf32, #tpu.memory_space<vmem>>, %arg2: memref<1152x128xbf16, #tpu.memory_space<vmem>>, %arg3: memref<1x128xf32, #tpu.memory_space<vmem>>, %arg4: memref<1x128xf32, #tpu.memory_space<vmem>>, %arg5: memref<1x16x16x128xbf16, #tpu.memory_space<vmem>>, %arg6: memref<1x2x128xf32, #tpu.memory_space<vmem>>, %arg7: memref<1x18x18x128xbf16, #tpu.memory_space<vmem>>) attributes {dimension_semantics = [#tpu.dimension_semantics<parallel>], iteration_bounds = array<i64: 2>, scalar_prefetch = 0 : i64, scratch_operands = 1 : i64, tpu.core_type = #tpu.core_type<tc>, window_params = [{transform_indices = @transform_0, window_bounds = array<i64: 1, 16, 16, 128>}, {pipeline_mode = #tpu.pipeline_mode<synchronous>, transform_indices = @transform_1, window_bounds = array<i64: 1152, 128>}, {pipeline_mode = #tpu.pipeline_mode<synchronous>, transform_indices = @transform_2, window_bounds = array<i64: 1, 128>}, {pipeline_mode = #tpu.pipeline_mode<synchronous>, transform_indices = @transform_3, window_bounds = array<i64: 1, 128>}, {transform_indices = @transform_4, window_bounds = array<i64: 1, 16, 16, 128>}, {transform_indices = @transform_5, window_bounds = array<i64: 1, 2, 128>}]} {
    %cst = arith.constant 0.000000e+00 : bf16
    %0 = vector.broadcast %cst : bf16 to vector<1x18x18x128xbf16>
    %c0 = arith.constant 0 : index
    %c0_0 = arith.constant 0 : index
    %c0_1 = arith.constant 0 : index
    %c0_2 = arith.constant 0 : index
    %1 = vector.load %arg7[%c0, %c0_0, %c0_1, %c0_2] : memref<1x18x18x128xbf16, #tpu.memory_space<vmem>>, vector<1x18x18x128xbf16>
    tpu.vector_store %arg7[%c0, %c0_0, %c0_1, %c0_2], %0 {strides = array<i32>} : memref<1x18x18x128xbf16, #tpu.memory_space<vmem>>, vector<1x18x18x128xbf16>,
    %c0_3 = arith.constant 0 : index
    %c0_4 = arith.constant 0 : index
    %c0_5 = arith.constant 0 : index
    %c0_6 = arith.constant 0 : index
    %2 = vector.load %arg1[%c0_3, %c0_4, %c0_5, %c0_6] : memref<1x16x16x128xf32, #tpu.memory_space<vmem>>, vector<1x16x16x128xf32>
    %3 = arith.truncf %2 : vector<1x16x16x128xf32> to vector<1x16x16x128xbf16>
    %c0_7 = arith.constant 0 : index
    %c1 = arith.constant 1 : index
    %c1_8 = arith.constant 1 : index
    %c0_9 = arith.constant 0 : index
    %4 = vector.load %arg7[%c0_7, %c1, %c1_8, %c0_9] : memref<1x18x18x128xbf16, #tpu.memory_space<vmem>>, vector<1x16x16x128xbf16>
    tpu.vector_store %arg7[%c0_7, %c1, %c1_8, %c0_9], %3 {strides = array<i32>} : memref<1x18x18x128xbf16, #tpu.memory_space<vmem>>, vector<1x16x16x128xbf16>,
    %c0_10 = arith.constant 0 : index
    %c0_11 = arith.constant 0 : index
    %c0_12 = arith.constant 0 : index
    %c0_13 = arith.constant 0 : index
    %5 = vector.load %arg7[%c0_10, %c0_11, %c0_12, %c0_13] : memref<1x18x18x128xbf16, #tpu.memory_space<vmem>>, vector<1x16x16x128xbf16>
    %c0_14 = arith.constant 0 : index
    %c0_15 = arith.constant 0 : index
    %c1_16 = arith.constant 1 : index
    %c0_17 = arith.constant 0 : index
    %6 = vector.load %arg7[%c0_14, %c0_15, %c1_16, %c0_17] : memref<1x18x18x128xbf16, #tpu.memory_space<vmem>>, vector<1x16x16x128xbf16>
    %c0_18 = arith.constant 0 : index
    %c0_19 = arith.constant 0 : index
    %c2 = arith.constant 2 : index
    %c0_20 = arith.constant 0 : index
    %7 = vector.load %arg7[%c0_18, %c0_19, %c2, %c0_20] : memref<1x18x18x128xbf16, #tpu.memory_space<vmem>>, vector<1x16x16x128xbf16>
    %c0_21 = arith.constant 0 : index
    %c1_22 = arith.constant 1 : index
    %c0_23 = arith.constant 0 : index
    %c0_24 = arith.constant 0 : index
    %8 = vector.load %arg7[%c0_21, %c1_22, %c0_23, %c0_24] : memref<1x18x18x128xbf16, #tpu.memory_space<vmem>>, vector<1x16x16x128xbf16>
    %c0_25 = arith.constant 0 : index
    %c1_26 = arith.constant 1 : index
    %c1_27 = arith.constant 1 : index
    %c0_28 = arith.constant 0 : index
    %9 = vector.load %arg7[%c0_25, %c1_26, %c1_27, %c0_28] : memref<1x18x18x128xbf16, #tpu.memory_space<vmem>>, vector<1x16x16x128xbf16>
    %c0_29 = arith.constant 0 : index
    %c1_30 = arith.constant 1 : index
    %c2_31 = arith.constant 2 : index
    %c0_32 = arith.constant 0 : index
    %10 = vector.load %arg7[%c0_29, %c1_30, %c2_31, %c0_32] : memref<1x18x18x128xbf16, #tpu.memory_space<vmem>>, vector<1x16x16x128xbf16>
    %c0_33 = arith.constant 0 : index
    %c2_34 = arith.constant 2 : index
    %c0_35 = arith.constant 0 : index
    %c0_36 = arith.constant 0 : index
    %11 = vector.load %arg7[%c0_33, %c2_34, %c0_35, %c0_36] : memref<1x18x18x128xbf16, #tpu.memory_space<vmem>>, vector<1x16x16x128xbf16>
    %c0_37 = arith.constant 0 : index
    %c2_38 = arith.constant 2 : index
    %c1_39 = arith.constant 1 : index
    %c0_40 = arith.constant 0 : index
    %12 = vector.load %arg7[%c0_37, %c2_38, %c1_39, %c0_40] : memref<1x18x18x128xbf16, #tpu.memory_space<vmem>>, vector<1x16x16x128xbf16>
    %c0_41 = arith.constant 0 : index
    %c2_42 = arith.constant 2 : index
    %c2_43 = arith.constant 2 : index
    %c0_44 = arith.constant 0 : index
    %13 = vector.load %arg7[%c0_41, %c2_42, %c2_43, %c0_44] : memref<1x18x18x128xbf16, #tpu.memory_space<vmem>>, vector<1x16x16x128xbf16>
    %14 = tpu.concatenate %5, %6, %7, %8, %9, %10, %11, %12, %13 in 3 : vector<1x16x16x128xbf16>, vector<1x16x16x128xbf16>, vector<1x16x16x128xbf16>, vector<1x16x16x128xbf16>, vector<1x16x16x128xbf16>, vector<1x16x16x128xbf16>, vector<1x16x16x128xbf16>, vector<1x16x16x128xbf16>, vector<1x16x16x128xbf16> -> vector<1x16x16x1152xbf16>
    %15 = vector.shape_cast %14 : vector<1x16x16x1152xbf16> to vector<256x1152xbf16>
    %c0_45 = arith.constant 0 : index
    %c0_46 = arith.constant 0 : index
    %16 = vector.load %arg2[%c0_45, %c0_46] : memref<1152x128xbf16, #tpu.memory_space<vmem>>, vector<1152x128xbf16>
    %cst_47 = arith.constant dense<0.000000e+00> : vector<256x128xf32>
    %17 = tpu.matmul %15, %16, %cst_47 {dimension_numbers = #tpu.dot_dimension_numbers<[1], [0], [0], [1], [0, 0, 1, 1], [], []>} : vector<256x1152xbf16>, vector<1152x128xbf16>, vector<256x128xf32> -> vector<256x128xf32>
    %18 = vector.shape_cast %17 : vector<256x128xf32> to vector<1x16x16x128xf32>
    %19 = arith.truncf %18 : vector<1x16x16x128xf32> to vector<1x16x16x128xbf16>
    %c0_48 = arith.constant 0 : index
    %c0_49 = arith.constant 0 : index
    %c0_50 = arith.constant 0 : index
    %c0_51 = arith.constant 0 : index
    %20 = vector.load %arg5[%c0_48, %c0_49, %c0_50, %c0_51] : memref<1x16x16x128xbf16, #tpu.memory_space<vmem>>, vector<1x16x16x128xbf16>
    tpu.vector_store %arg5[%c0_48, %c0_49, %c0_50, %c0_51], %19 {strides = array<i32>} : memref<1x16x16x128xbf16, #tpu.memory_space<vmem>>, vector<1x16x16x128xbf16>,
    %cst_52 = arith.constant dense<0.000000e+00> : vector<128xf32>
    %21 = vector.multi_reduction <add>, %17, %cst_52 [0] : vector<256x128xf32> to vector<128xf32>
    %22 = vector.shape_cast %21 : vector<128xf32> to vector<1x128xf32>
    %23 = arith.mulf %17, %17 : vector<256x128xf32>
    %cst_53 = arith.constant dense<0.000000e+00> : vector<128xf32>
    %24 = vector.multi_reduction <add>, %23, %cst_53 [0] : vector<256x128xf32> to vector<128xf32>
    %25 = vector.shape_cast %24 : vector<128xf32> to vector<1x128xf32>
    %26 = tpu.concatenate %22, %25 in 0 : vector<1x128xf32>, vector<1x128xf32> -> vector<2x128xf32>
    %27 = vector.shape_cast %26 : vector<2x128xf32> to vector<1x2x128xf32>
    %c0_54 = arith.constant 0 : index
    %c0_55 = arith.constant 0 : index
    %c0_56 = arith.constant 0 : index
    %28 = vector.load %arg6[%c0_54, %c0_55, %c0_56] : memref<1x2x128xf32, #tpu.memory_space<vmem>>, vector<1x2x128xf32>
    tpu.vector_store %arg6[%c0_54, %c0_55, %c0_56], %27 {strides = array<i32>} : memref<1x2x128xf32, #tpu.memory_space<vmem>>, vector<1x2x128xf32>,
    return
  }
  func.func @transform_0(%arg0: i32) -> (i32, i32, i32, i32) {
    %c0_i32 = arith.constant 0 : i32
    %c0_i32_0 = arith.constant 0 : i32
    %c0_i32_1 = arith.constant 0 : i32
    %c0_i32_2 = arith.constant 0 : i32
    return %arg0, %c0_i32, %c0_i32_0, %c0_i32_1 : i32, i32, i32, i32
  }
  func.func @transform_1(%arg0: i32) -> (i32, i32) {
    %c0_i32 = arith.constant 0 : i32
    %c0_i32_0 = arith.constant 0 : i32
    %c0_i32_1 = arith.constant 0 : i32
    return %c0_i32, %c0_i32_0 : i32, i32
  }
  func.func @transform_2(%arg0: i32) -> (i32, i32) {
    %c0_i32 = arith.constant 0 : i32
    %c0_i32_0 = arith.constant 0 : i32
    %c0_i32_1 = arith.constant 0 : i32
    return %c0_i32, %c0_i32_0 : i32, i32
  }
  func.func @transform_3(%arg0: i32) -> (i32, i32) {
    %c0_i32 = arith.constant 0 : i32
    %c0_i32_0 = arith.constant 0 : i32
    %c0_i32_1 = arith.constant 0 : i32
    return %c0_i32, %c0_i32_0 : i32, i32
  }
  func.func @transform_4(%arg0: i32) -> (i32, i32, i32, i32) {
    %c0_i32 = arith.constant 0 : i32
    %c0_i32_0 = arith.constant 0 : i32
    %c0_i32_1 = arith.constant 0 : i32
    %c0_i32_2 = arith.constant 0 : i32
    return %arg0, %c0_i32, %c0_i32_0, %c0_i32_1 : i32, i32, i32, i32
  }
  func.func @transform_5(%arg0: i32) -> (i32, i32, i32) {
    %c0_i32 = arith.constant 0 : i32
    %c0_i32_0 = arith.constant 0 : i32
    %c0_i32_1 = arith.constant 0 : i32
    return %arg0, %c0_i32, %c0_i32_0 : i32, i32, i32
  }
}

module attributes {stable_mosaic.version = 11 : i64} {
  func.func @_matmul_stats_kernel(%arg0: i32, %arg1: memref<256x128xbf16, #tpu.memory_space<vmem>>, %arg2: memref<128x128xbf16, #tpu.memory_space<vmem>>, %arg3: memref<256x128xbf16, #tpu.memory_space<vmem>>, %arg4: memref<1x2x128xf32, #tpu.memory_space<vmem>>) attributes {dimension_semantics = [#tpu.dimension_semantics<parallel>], iteration_bounds = array<i64: 2>, scalar_prefetch = 0 : i64, scratch_operands = 0 : i64, tpu.core_type = #tpu.core_type<tc>, window_params = [{transform_indices = @transform_0, window_bounds = array<i64: 256, 128>}, {pipeline_mode = #tpu.pipeline_mode<synchronous>, transform_indices = @transform_1, window_bounds = array<i64: 128, 128>}, {transform_indices = @transform_2, window_bounds = array<i64: 256, 128>}, {transform_indices = @transform_3, window_bounds = array<i64: 1, 2, 128>}]} {
    %c0 = arith.constant 0 : index
    %c0_0 = arith.constant 0 : index
    %0 = vector.load %arg1[%c0, %c0_0] : memref<256x128xbf16, #tpu.memory_space<vmem>>, vector<256x128xbf16>
    %c0_1 = arith.constant 0 : index
    %c0_2 = arith.constant 0 : index
    %1 = vector.load %arg2[%c0_1, %c0_2] : memref<128x128xbf16, #tpu.memory_space<vmem>>, vector<128x128xbf16>
    %cst = arith.constant dense<0.000000e+00> : vector<256x128xf32>
    %2 = tpu.matmul %0, %1, %cst {dimension_numbers = #tpu.dot_dimension_numbers<[1], [0], [0], [1], [0, 0, 1, 1], [], []>} : vector<256x128xbf16>, vector<128x128xbf16>, vector<256x128xf32> -> vector<256x128xf32>
    %3 = arith.truncf %2 : vector<256x128xf32> to vector<256x128xbf16>
    %c0_3 = arith.constant 0 : index
    %c0_4 = arith.constant 0 : index
    %4 = vector.load %arg3[%c0_3, %c0_4] : memref<256x128xbf16, #tpu.memory_space<vmem>>, vector<256x128xbf16>
    tpu.vector_store %arg3[%c0_3, %c0_4], %3 {strides = array<i32>} : memref<256x128xbf16, #tpu.memory_space<vmem>>, vector<256x128xbf16>,
    %cst_5 = arith.constant dense<0.000000e+00> : vector<128xf32>
    %5 = vector.multi_reduction <add>, %2, %cst_5 [0] : vector<256x128xf32> to vector<128xf32>
    %6 = vector.shape_cast %5 : vector<128xf32> to vector<1x128xf32>
    %7 = arith.mulf %2, %2 : vector<256x128xf32>
    %cst_6 = arith.constant dense<0.000000e+00> : vector<128xf32>
    %8 = vector.multi_reduction <add>, %7, %cst_6 [0] : vector<256x128xf32> to vector<128xf32>
    %9 = vector.shape_cast %8 : vector<128xf32> to vector<1x128xf32>
    %10 = tpu.concatenate %6, %9 in 0 : vector<1x128xf32>, vector<1x128xf32> -> vector<2x128xf32>
    %11 = vector.shape_cast %10 : vector<2x128xf32> to vector<1x2x128xf32>
    %c0_7 = arith.constant 0 : index
    %c0_8 = arith.constant 0 : index
    %c0_9 = arith.constant 0 : index
    %12 = vector.load %arg4[%c0_7, %c0_8, %c0_9] : memref<1x2x128xf32, #tpu.memory_space<vmem>>, vector<1x2x128xf32>
    tpu.vector_store %arg4[%c0_7, %c0_8, %c0_9], %11 {strides = array<i32>} : memref<1x2x128xf32, #tpu.memory_space<vmem>>, vector<1x2x128xf32>,
    return
  }
  func.func @transform_0(%arg0: i32) -> (i32, i32) {
    %c0_i32 = arith.constant 0 : i32
    %c0_i32_0 = arith.constant 0 : i32
    return %arg0, %c0_i32 : i32, i32
  }
  func.func @transform_1(%arg0: i32) -> (i32, i32) {
    %c0_i32 = arith.constant 0 : i32
    %c0_i32_0 = arith.constant 0 : i32
    %c0_i32_1 = arith.constant 0 : i32
    return %c0_i32, %c0_i32_0 : i32, i32
  }
  func.func @transform_2(%arg0: i32) -> (i32, i32) {
    %c0_i32 = arith.constant 0 : i32
    %c0_i32_0 = arith.constant 0 : i32
    return %arg0, %c0_i32 : i32, i32
  }
  func.func @transform_3(%arg0: i32) -> (i32, i32, i32) {
    %c0_i32 = arith.constant 0 : i32
    %c0_i32_0 = arith.constant 0 : i32
    %c0_i32_1 = arith.constant 0 : i32
    return %arg0, %c0_i32, %c0_i32_0 : i32, i32, i32
  }
}

module attributes {stable_mosaic.version = 11 : i64} {
  func.func @_finalize_kernel(%arg0: i32, %arg1: memref<256x128xbf16, #tpu.memory_space<vmem>>, %arg2: memref<256x128xbf16, #tpu.memory_space<vmem>>, %arg3: memref<1x128xf32, #tpu.memory_space<vmem>>, %arg4: memref<1x128xf32, #tpu.memory_space<vmem>>, %arg5: memref<1x128xf32, #tpu.memory_space<vmem>>, %arg6: memref<1x128xf32, #tpu.memory_space<vmem>>, %arg7: memref<256x128xf32, #tpu.memory_space<vmem>>) attributes {dimension_semantics = [#tpu.dimension_semantics<parallel>], iteration_bounds = array<i64: 2>, scalar_prefetch = 0 : i64, scratch_operands = 0 : i64, tpu.core_type = #tpu.core_type<tc>, window_params = [{transform_indices = @transform_0, window_bounds = array<i64: 256, 128>}, {transform_indices = @transform_1, window_bounds = array<i64: 256, 128>}, {pipeline_mode = #tpu.pipeline_mode<synchronous>, transform_indices = @transform_2, window_bounds = array<i64: 1, 128>}, {pipeline_mode = #tpu.pipeline_mode<synchronous>, transform_indices = @transform_3, window_bounds = array<i64: 1, 128>}, {pipeline_mode = #tpu.pipeline_mode<synchronous>, transform_indices = @transform_4, window_bounds = array<i64: 1, 128>}, {pipeline_mode = #tpu.pipeline_mode<synchronous>, transform_indices = @transform_5, window_bounds = array<i64: 1, 128>}, {transform_indices = @transform_6, window_bounds = array<i64: 256, 128>}]} {
    %c0 = arith.constant 0 : index
    %c0_0 = arith.constant 0 : index
    %0 = vector.load %arg1[%c0, %c0_0] : memref<256x128xbf16, #tpu.memory_space<vmem>>, vector<256x128xbf16>
    %1 = arith.extf %0 : vector<256x128xbf16> to vector<256x128xf32>
    %c0_1 = arith.constant 0 : index
    %c0_2 = arith.constant 0 : index
    %2 = vector.load %arg3[%c0_1, %c0_2] : memref<1x128xf32, #tpu.memory_space<vmem>>, vector<1x128xf32>
    %3 = vector.broadcast %2 : vector<1x128xf32> to vector<256x128xf32>
    %4 = arith.mulf %1, %3 : vector<256x128xf32>
    %c0_3 = arith.constant 0 : index
    %c0_4 = arith.constant 0 : index
    %5 = vector.load %arg4[%c0_3, %c0_4] : memref<1x128xf32, #tpu.memory_space<vmem>>, vector<1x128xf32>
    %6 = vector.broadcast %5 : vector<1x128xf32> to vector<256x128xf32>
    %7 = arith.addf %4, %6 : vector<256x128xf32>
    %c0_5 = arith.constant 0 : index
    %c0_6 = arith.constant 0 : index
    %8 = vector.load %arg2[%c0_5, %c0_6] : memref<256x128xbf16, #tpu.memory_space<vmem>>, vector<256x128xbf16>
    %9 = arith.extf %8 : vector<256x128xbf16> to vector<256x128xf32>
    %c0_7 = arith.constant 0 : index
    %c0_8 = arith.constant 0 : index
    %10 = vector.load %arg5[%c0_7, %c0_8] : memref<1x128xf32, #tpu.memory_space<vmem>>, vector<1x128xf32>
    %11 = vector.broadcast %10 : vector<1x128xf32> to vector<256x128xf32>
    %12 = arith.mulf %9, %11 : vector<256x128xf32>
    %c0_9 = arith.constant 0 : index
    %c0_10 = arith.constant 0 : index
    %13 = vector.load %arg6[%c0_9, %c0_10] : memref<1x128xf32, #tpu.memory_space<vmem>>, vector<1x128xf32>
    %14 = vector.broadcast %13 : vector<1x128xf32> to vector<256x128xf32>
    %15 = arith.addf %12, %14 : vector<256x128xf32>
    %16 = arith.addf %7, %15 : vector<256x128xf32>
    %cst = arith.constant 0.000000e+00 : f32
    %17 = vector.broadcast %cst : f32 to vector<256x128xf32>
    %18 = arith.maximumf %16, %17 : vector<256x128xf32>
    %c0_11 = arith.constant 0 : index
    %c0_12 = arith.constant 0 : index
    %19 = vector.load %arg7[%c0_11, %c0_12] : memref<256x128xf32, #tpu.memory_space<vmem>>, vector<256x128xf32>
    tpu.vector_store %arg7[%c0_11, %c0_12], %18 {strides = array<i32>} : memref<256x128xf32, #tpu.memory_space<vmem>>, vector<256x128xf32>,
    return
  }
  func.func @transform_0(%arg0: i32) -> (i32, i32) {
    %c0_i32 = arith.constant 0 : i32
    %c0_i32_0 = arith.constant 0 : i32
    return %arg0, %c0_i32 : i32, i32
  }
  func.func @transform_1(%arg0: i32) -> (i32, i32) {
    %c0_i32 = arith.constant 0 : i32
    %c0_i32_0 = arith.constant 0 : i32
    return %arg0, %c0_i32 : i32, i32
  }
  func.func @transform_2(%arg0: i32) -> (i32, i32) {
    %c0_i32 = arith.constant 0 : i32
    %c0_i32_0 = arith.constant 0 : i32
    %c0_i32_1 = arith.constant 0 : i32
    return %c0_i32, %c0_i32_0 : i32, i32
  }
  func.func @transform_3(%arg0: i32) -> (i32, i32) {
    %c0_i32 = arith.constant 0 : i32
    %c0_i32_0 = arith.constant 0 : i32
    %c0_i32_1 = arith.constant 0 : i32
    return %c0_i32, %c0_i32_0 : i32, i32
  }
  func.func @transform_4(%arg0: i32) -> (i32, i32) {
    %c0_i32 = arith.constant 0 : i32
    %c0_i32_0 = arith.constant 0 : i32
    %c0_i32_1 = arith.constant 0 : i32
    return %c0_i32, %c0_i32_0 : i32, i32
  }
  func.func @transform_5(%arg0: i32) -> (i32, i32) {
    %c0_i32 = arith.constant 0 : i32
    %c0_i32_0 = arith.constant 0 : i32
    %c0_i32_1 = arith.constant 0 : i32
    return %c0_i32, %c0_i32_0 : i32, i32
  }
  func.func @transform_6(%arg0: i32) -> (i32, i32) {
    %c0_i32 = arith.constant 0 : i32
    %c0_i32_0 = arith.constant 0 : i32
    return %arg0, %c0_i32 : i32, i32
  }
}

</mosaic_0001>

<llo_original>
// kernel: basic_block_forward.6
$region0: #{basic_block_forward.6}
  #allocation0 [shape = 'u32[]', space=smem, size = 0x4, offset = 0x4, fixed_abs, tag = 'smem constant byte address 0x4 - core index']
  #allocation1 [shape = 'u32[72,128]{1,0:T(1,128)}', space=vmem, size = 0x9000, scoped, tag = 'internal scratch']
  %s0 = inlined_call_operand.vmem [shape: bf16[512,128], index: 0, kind: input, shape index: {}]
  %s1 = inlined_call_operand.vmem [shape: bf16[128,128], index: 1, kind: input, shape index: {}]
  %s2 = inlined_call_operand.vmem [shape: bf16[512,128], index: 2, kind: output, shape index: {0}]
  %s3 = inlined_call_operand.vmem [shape: f32[2,2,128], index: 3, kind: output, shape index: {1}]
  %4 = xla_tuple %s2, %s3
  %s5 = sld [smem:[#allocation0]]
  $region49: #{basic_block_forward.6} parent=0
    _
  %s7 = ssub.s32 1, %s5
  %s8 = scalar_select 0, %s7, %s5
  loop: start=0, step=1, limit=4
  $region2: #{basic_block_forward.6} parent=0 // loop_pre_header
    _
  $region3: #{basic_block_forward.6} parent=0 // loop_header
    %s10 = sphi 0, %s14
    %p11 = scmp.ge.s32.totalorder %s10, 4
    %s20 = sphi 0, %s22
    %s23 = sphi 0, %s20
    %s24 = sphi 0, %s23
    %s40 = sphi 0, %s24
    %s44 = sphi 0, %s44
    %s46 = sphi 0, %s44
    %s47 = sphi 0, %s46
    %s61 = sphi 0, %s47
    %s67 = sphi 0, %s69
    %s70 = sphi 0, %s67
    %s71 = sphi 0, %s70
    %s87 = sphi 0, %s71
    %s93 = sphi 0, %s95
    %s96 = sphi 0, %s93
    %s97 = sphi 0, %s96
    %s113 = sphi 0, %s97
  $region4: #{basic_block_forward.6} parent=0 // loop_header_branch
    %13 = sbr.rel (%p11) target = $region8
  $region5: #{basic_block_forward.6} parent=0 // loop_body
    %s15 = ssub.s32 %s10, 1
    %s16 = ssub.s32 %s10, 2
    %s17 = sadd.s32 %s10, 1
    %s18 = ssub.s32 %s10, %s17
    %p19 = scmp.eq.s32.totalorder %s18, 0
    %s21 = sadd.s32 %s20, 1
    %s22 = scalar_select %p19, %s20, %s21
    %p25 = pneg %p19
    %p26 = scmp.eq.s32.totalorder %s10, 1
    %p27 = por %p25, %p26
    %p28 = scmp.ne.s32.totalorder %s20, %s23
    %p29 = scmp.eq.s32.totalorder %s10, 0
    %p30 = por %p28, %p29
    %p31 = scmp.ne.s32.totalorder %s20, %s23
    %p32 = scmp.eq.s32.totalorder %s15, 1
    %p33 = por %p31, %p32
    %p34 = scmp.ne.s32.totalorder %s23, %s24
    %p35 = scmp.eq.s32.totalorder %s15, 0
    %p36 = por %p34, %p35
    %p37 = scmp.ne.s32.totalorder %s23, %s24
    %p38 = scmp.eq.s32.totalorder %s16, 1
    %p39 = por %p37, %p38
    %p41 = scmp.ne.s32.totalorder %s24, %s40
    %p42 = scmp.eq.s32.totalorder %s16, 0
    %p43 = por %p41, %p42
    %s45 = sadd.s32 %s44, 1
    %p48 = scmp.eq.s32.totalorder %s10, 1
    %p49 = scmp.ne.s32.totalorder %s44, %s46
    %p50 = scmp.eq.s32.totalorder %s10, 0
    %p51 = por %p49, %p50
    %p52 = scmp.ne.s32.totalorder %s44, %s46
    %p53 = scmp.eq.s32.totalorder %s15, 1
    %p54 = por %p52, %p53
    %p55 = scmp.ne.s32.totalorder %s46, %s47
    %p56 = scmp.eq.s32.totalorder %s15, 0
    %p57 = por %p55, %p56
    %p58 = scmp.ne.s32.totalorder %s46, %s47
    %p59 = scmp.eq.s32.totalorder %s16, 1
    %p60 = por %p58, %p59
    %p62 = scmp.ne.s32.totalorder %s47, %s61
    %p63 = scmp.eq.s32.totalorder %s16, 0
    %p64 = por %p62, %p63
    %s65 = ssub.s32 %s10, %s17
    %p66 = scmp.eq.s32.totalorder %s65, 0
    %s68 = sadd.s32 %s67, 1
    %s69 = scalar_select %p66, %s67, %s68
    %p72 = pneg %p66
    %p73 = scmp.eq.s32.totalorder %s10, 1
    %p74 = por %p72, %p73
    %p75 = scmp.ne.s32.totalorder %s67, %s70
    %p76 = scmp.eq.s32.totalorder %s10, 0
    %p77 = por %p75, %p76
    %p78 = scmp.ne.s32.totalorder %s67, %s70
    %p79 = scmp.eq.s32.totalorder %s15, 1
    %p80 = por %p78, %p79
    %p81 = scmp.ne.s32.totalorder %s70, %s71
    %p82 = scmp.eq.s32.totalorder %s15, 0
    %p83 = por %p81, %p82
    %p84 = scmp.ne.s32.totalorder %s70, %s71
    %p85 = scmp.eq.s32.totalorder %s16, 1
    %p86 = por %p84, %p85
    %p88 = scmp.ne.s32.totalorder %s71, %s87
    %p89 = scmp.eq.s32.totalorder %s16, 0
    %p90 = por %p88, %p89
    %s91 = ssub.s32 %s10, %s17
    %p92 = scmp.eq.s32.totalorder %s91, 0
    %s94 = sadd.s32 %s93, 1
    %s95 = scalar_select %p92, %s93, %s94
    %p98 = pneg %p92
    %p99 = scmp.eq.s32.totalorder %s10, 1
    %p100 = por %p98, %p99
    %p101 = scmp.ne.s32.totalorder %s93, %s96
    %p102 = scmp.eq.s32.totalorder %s10, 0
    %p103 = por %p101, %p102
    %p104 = scmp.ne.s32.totalorder %s93, %s96
    %p105 = scmp.eq.s32.totalorder %s15, 1
    %p106 = por %p104, %p105
    %p107 = scmp.ne.s32.totalorder %s96, %s97
    %p108 = scmp.eq.s32.totalorder %s15, 0
    %p109 = por %p107, %p108
    %p110 = scmp.ne.s32.totalorder %s96, %s97
    %p111 = scmp.eq.s32.totalorder %s16, 1
    %p112 = por %p110, %p111
    %p114 = scmp.ne.s32.totalorder %s97, %s113
    %p115 = scmp.eq.s32.totalorder %s16, 0
    %p116 = por %p114, %p115
    %p117 = scmp.le.s32.totalorder 1, %s10
    %p118 = scmp.lt.s32.totalorder %s10, 3
    %p119 = pnand %p117, %p118
    %p120 = pneg %p119
    // Predicated region
    $region9: #{basic_block_forward.6} parent=5 // pred_check
      _
    $region10: #{basic_block_forward.6} parent=5 // pred_check_branch
      %122 = sbr.rel (%p119) target = $region12
    $region11: #{basic_block_forward.6} parent=5 // pred_region
      %s123 = ssub.s32 %s10, 1
      // Predicated region
      $region13: #{basic_block_forward.6} parent=11 // pred_check
        %p124 = pneg %p57
      $region14: #{basic_block_forward.6} parent=11 // pred_check_branch
        %126 = sbr.rel (%p124) target = $region16
      $region15: #{basic_block_forward.6} parent=11 // pred_region
        _
      $region16: #{basic_block_forward.6} parent=11 // pred_fallthru
        _
    $region12: #{basic_block_forward.6} parent=5 // pred_fallthru
      _
    %p127 = scmp.lt.s32.totalorder %s10, 2
    // Predicated region
    $region17: #{basic_block_forward.6} parent=5 // pred_check
      %p128 = pneg %p127
    $region18: #{basic_block_forward.6} parent=5 // pred_check_branch
      %130 = sbr.rel (%p128) target = $region20
    $region19: #{basic_block_forward.6} parent=5 // pred_region
      // Predicated region
      $region21: #{basic_block_forward.6} parent=19 // pred_check
        %p131 = pneg %p30
      $region22: #{basic_block_forward.6} parent=19 // pred_check_branch
        %133 = sbr.rel (%p131) target = $region24
      $region23: #{basic_block_forward.6} parent=19 // pred_region
        %s134 = smul.u32 32, %s10
        %p135 = scmp.lt.s32.totalorder %s134, 63
        %s136 = scalar_select %p135, %s134, 63
        %s137 = smul.addr %s136, 4
        %s138 = scalar_lea.vmem %s0, %s137
        %s139 = smul.u32 32, %s10
      $region24: #{basic_block_forward.6} parent=19 // pred_fallthru
        _
    $region20: #{basic_block_forward.6} parent=5 // pred_fallthru
      _
    %p140 = scmp.le.s32.totalorder 1, %s10
    %p141 = scmp.lt.s32.totalorder %s10, 3
    %p142 = pnand %p140, %p141
    %p143 = pneg %p142
    // Predicated region
    $region25: #{basic_block_forward.6} parent=5 // pred_check
      _
    $region26: #{basic_block_forward.6} parent=5 // pred_check_branch
      %145 = sbr.rel (%p142) target = $region28
    $region27: #{basic_block_forward.6} parent=5 // pred_region
      %s146 = ssub.s32 %s10, 1
      %s147 = smul.u32 32, %s15
      %p148 = scmp.lt.s32.totalorder %s147, 63
      %s149 = scalar_select %p148, %s147, 63
      %s150 = smul.addr %s149, 4
      %s151 = scalar_lea.vmem %s0, %s150
      %p152 = pneg %p36
      %p153 = pneg %p33
      %p154 = pneg %p57
      %p155 = pneg %p54
      %p156 = pneg %p83
      %p157 = pneg %p80
      %s158 = smul.u32 32, %s15
      %p159 = scmp.lt.s32.totalorder %s158, 63
      %s160 = scalar_select %p159, %s158, 63
      %s161 = smul.addr %s160, 4
      %s162 = scalar_lea.vmem %s2, %s161
      %p163 = pneg %p109
      %p164 = pneg %p106
      %p165 = scmp.lt.s32.totalorder %s15, 1
      %s166 = scalar_select %p165, %s15, 1
      %s167 = smul.addr %s166, 2
      %s168 = scalar_lea.vmem %s3, %s167
      %s169 = smul.u32 32, %s15
      %p170 = scmp.lt.s32.totalorder %s169, 63
      %s171 = scalar_select %p170, %s169, 63
      %s172 = smul.addr %s171, 4
      %s173 = scalar_lea.vmem %s0, %s172
      %s174 = smul.u32 32, %s15
      %s175 = smul.u32 32, %s15
      %p176 = scmp.lt.s32.totalorder %s175, 63
      %s177 = scalar_select %p176, %s175, 63
      %s178 = smul.addr %s177, 4
      %s179 = scalar_lea.vmem %s2, %s178
      %s180 = smul.u32 32, %s15
      %p181 = scmp.lt.s32.totalorder %s15, 1
      %s182 = scalar_select %p181, %s15, 1
      %s183 = smul.addr %s182, 2
      %s184 = scalar_lea.vmem %s3, %s183
      %v185 = vld [vmem:[%s173] sm:$0xf]
      %v186 = vld [vmem:[%s173 + $0x4] sm:$0xf]
      %v187 = vld [vmem:[%s173 + $0x8] sm:$0xf]
      %v188 = vld [vmem:[%s173 + $0xc] sm:$0xf]
      %v189 = vld [vmem:[%s173 + $0x10] sm:$0xf]
      %v190 = vld [vmem:[%s173 + $0x14] sm:$0xf]
      %v191 = vld [vmem:[%s173 + $0x18] sm:$0xf]
      %v192 = vld [vmem:[%s173 + $0x1c] sm:$0xf]
      %v193 = vld [vmem:[%s173 + $0x20] sm:$0xf]
      %v194 = vld [vmem:[%s173 + $0x24] sm:$0xf]
      %v195 = vld [vmem:[%s173 + $0x28] sm:$0xf]
      %v196 = vld [vmem:[%s173 + $0x2c] sm:$0xf]
      %v197 = vld [vmem:[%s173 + $0x30] sm:$0xf]
      %v198 = vld [vmem:[%s173 + $0x34] sm:$0xf]
      %v199 = vld [vmem:[%s173 + $0x38] sm:$0xf]
      %v200 = vld [vmem:[%s173 + $0x3c] sm:$0xf]
      %v201 = vld [vmem:[%s173 + $0x40] sm:$0xf]
      %v202 = vld [vmem:[%s173 + $0x44] sm:$0xf]
      %v203 = vld [vmem:[%s173 + $0x48] sm:$0xf]
      %v204 = vld [vmem:[%s173 + $0x4c] sm:$0xf]
      %v205 = vld [vmem:[%s173 + $0x50] sm:$0xf]
      %v206 = vld [vmem:[%s173 + $0x54] sm:$0xf]
      %v207 = vld [vmem:[%s173 + $0x58] sm:$0xf]
      %v208 = vld [vmem:[%s173 + $0x5c] sm:$0xf]
      %v209 = vld [vmem:[%s173 + $0x60] sm:$0xf]
      %v210 = vld [vmem:[%s173 + $0x64] sm:$0xf]
      %v211 = vld [vmem:[%s173 + $0x68] sm:$0xf]
      %v212 = vld [vmem:[%s173 + $0x6c] sm:$0xf]
      %v213 = vld [vmem:[%s173 + $0x70] sm:$0xf]
      %v214 = vld [vmem:[%s173 + $0x74] sm:$0xf]
      %v215 = vld [vmem:[%s173 + $0x78] sm:$0xf]
      %v216 = vld [vmem:[%s173 + $0x7c] sm:$0xf]
      %v217 = vld [vmem:[%s1] sm:$0xf]
      %v218 = vld [vmem:[%s1 + $0x4] sm:$0xf]
      %v219 = vld [vmem:[%s1 + $0x8] sm:$0xf]
      %v220 = vld [vmem:[%s1 + $0xc] sm:$0xf]
      %v221 = vld [vmem:[%s1 + $0x10] sm:$0xf]
      %v222 = vld [vmem:[%s1 + $0x14] sm:$0xf]
      %v223 = vld [vmem:[%s1 + $0x18] sm:$0xf]
      %v224 = vld [vmem:[%s1 + $0x1c] sm:$0xf]
      %v225 = vld [vmem:[%s1 + $0x20] sm:$0xf]
      %v226 = vld [vmem:[%s1 + $0x24] sm:$0xf]
      %v227 = vld [vmem:[%s1 + $0x28] sm:$0xf]
      %v228 = vld [vmem:[%s1 + $0x2c] sm:$0xf]
      %v229 = vld [vmem:[%s1 + $0x30] sm:$0xf]
      %v230 = vld [vmem:[%s1 + $0x34] sm:$0xf]
      %v231 = vld [vmem:[%s1 + $0x38] sm:$0xf]
      %v232 = vld [vmem:[%s1 + $0x3c] sm:$0xf]
      %v265 = vunpack.c.l.b16 %v185
      %v266 = vunpack.c.l.b16 %v186
      %v267 = vunpack.c.l.b16 %v187
      %v268 = vunpack.c.l.b16 %v188
      %v269 = vunpack.c.l.b16 %v189
      %v270 = vunpack.c.l.b16 %v190
      %v271 = vunpack.c.l.b16 %v191
      %v272 = vunpack.c.l.b16 %v192
      %v273 = vunpack.c.l.b16 %v193
      %v274 = vunpack.c.l.b16 %v194
      %v275 = vunpack.c.l.b16 %v195
      %v276 = vunpack.c.l.b16 %v196
      %v277 = vunpack.c.l.b16 %v197
      %v278 = vunpack.c.l.b16 %v198
      %v279 = vunpack.c.l.b16 %v199
      %v280 = vunpack.c.l.b16 %v200
      %v281 = vunpack.c.l.b16 %v201
      %v282 = vunpack.c.l.b16 %v202
      %v283 = vunpack.c.l.b16 %v203
      %v284 = vunpack.c.l.b16 %v204
      %v285 = vunpack.c.l.b16 %v205
      %v286 = vunpack.c.l.b16 %v206
      %v287 = vunpack.c.l.b16 %v207
      %v288 = vunpack.c.l.b16 %v208
      %v289 = vunpack.c.l.b16 %v209
      %v290 = vunpack.c.l.b16 %v210
      %v291 = vunpack.c.l.b16 %v211
      %v292 = vunpack.c.l.b16 %v212
      %v293 = vunpack.c.l.b16 %v213
      %v294 = vunpack.c.l.b16 %v214
      %v295 = vunpack.c.l.b16 %v215
      %v296 = vunpack.c.l.b16 %v216
      %v297 = vpack.c.b16 %v266, %v265
      %v298 = vpack.c.b16 %v268, %v267
      %v299 = vpack.c.b16 %v270, %v269
      %v300 = vpack.c.b16 %v272, %v271
      %v301 = vpack.c.b16 %v274, %v273
      %v302 = vpack.c.b16 %v276, %v275
      %v303 = vpack.c.b16 %v278, %v277
      %v304 = vpack.c.b16 %v280, %v279
      %v305 = vpack.c.b16 %v282, %v281
      %v306 = vpack.c.b16 %v284, %v283
      %v307 = vpack.c.b16 %v286, %v285
      %v308 = vpack.c.b16 %v288, %v287
      %v309 = vpack.c.b16 %v290, %v289
      %v310 = vpack.c.b16 %v292, %v291
      %v311 = vpack.c.b16 %v294, %v293
      %v312 = vpack.c.b16 %v296, %v295
      %v345 = vunpack.c.l.b16 %v217
      %v346 = vunpack.c.l.b16 %v218
      %v347 = vunpack.c.l.b16 %v219
      %v348 = vunpack.c.l.b16 %v220
      %v349 = vunpack.c.l.b16 %v221
      %v350 = vunpack.c.l.b16 %v222
      %v351 = vunpack.c.l.b16 %v223
      %v352 = vunpack.c.l.b16 %v224
      %v353 = vunpack.c.l.b16 %v225
      %v354 = vunpack.c.l.b16 %v226
      %v355 = vunpack.c.l.b16 %v227
      %v356 = vunpack.c.l.b16 %v228
      %v357 = vunpack.c.l.b16 %v229
      %v358 = vunpack.c.l.b16 %v230
      %v359 = vunpack.c.l.b16 %v231
      %v360 = vunpack.c.l.b16 %v232
      %v361 = vpack.c.b16 %v346, %v345
      %v362 = vpack.c.b16 %v348, %v347
      %v363 = vpack.c.b16 %v350, %v349
      %v364 = vpack.c.b16 %v352, %v351
      %v365 = vpack.c.b16 %v354, %v353
      %v366 = vpack.c.b16 %v356, %v355
      %v367 = vpack.c.b16 %v358, %v357
      %v368 = vpack.c.b16 %v360, %v359
      %377 = vmatpush.bf16.msra.mxu0 %v368
      %378 = vmatpush.bf16.msra.mxu0 %v367
      %379 = vmatpush.bf16.msra.mxu0 %v366
      %380 = vmatpush.bf16.msra.mxu0 %v365
      %381 = vmatpush.bf16.msra.mxu0 %v364
      %382 = vmatpush.bf16.msra.mxu0 %v363
      %383 = vmatpush.bf16.msra.mxu0 %v362
      %384 = vmatpush.bf16.msra.mxu0 %v361
      %385 = vmatmul.bf16.gmra.mxu0 %v297
      %v386 = vpop.f32.mrf.mxu0
      %v387 = vadd.f32 0.0, %v386
      %v388 = vpop.f32.mrf.mxu0
      %v389 = vadd.f32 0.0, %v388
      %390 = vmatmul.bf16.gmra.mxu0 %v298
      %v391 = vpop.f32.mrf.mxu0
      %v392 = vadd.f32 0.0, %v391
      %v393 = vpop.f32.mrf.mxu0
      %v394 = vadd.f32 0.0, %v393
      %395 = vmatmul.bf16.gmra.mxu0 %v299
      %v396 = vpop.f32.mrf.mxu0
      %v397 = vadd.f32 0.0, %v396
      %v398 = vpop.f32.mrf.mxu0
      %v399 = vadd.f32 0.0, %v398
      %400 = vmatmul.bf16.gmra.mxu0 %v300
      %v401 = vpop.f32.mrf.mxu0
      %v402 = vadd.f32 0.0, %v401
      %v403 = vpop.f32.mrf.mxu0
      %v404 = vadd.f32 0.0, %v403
      %405 = vmatmul.bf16.gmra.mxu0 %v301
      %v406 = vpop.f32.mrf.mxu0
      %v407 = vadd.f32 0.0, %v406
      %v408 = vpop.f32.mrf.mxu0
      %v409 = vadd.f32 0.0, %v408
      %410 = vmatmul.bf16.gmra.mxu0 %v302
      %v411 = vpop.f32.mrf.mxu0
      %v412 = vadd.f32 0.0, %v411
      %v413 = vpop.f32.mrf.mxu0
      %v414 = vadd.f32 0.0, %v413
      %415 = vmatmul.bf16.gmra.mxu0 %v303
      %v416 = vpop.f32.mrf.mxu0
      %v417 = vadd.f32 0.0, %v416
      %v418 = vpop.f32.mrf.mxu0
      %v419 = vadd.f32 0.0, %v418
      %420 = vmatmul.bf16.gmra.mxu0 %v304
      %v421 = vpop.f32.mrf.mxu0
      %v422 = vadd.f32 0.0, %v421
      %v423 = vpop.f32.mrf.mxu0
      %v424 = vadd.f32 0.0, %v423
      %425 = vmatmul.bf16.gmra.mxu0 %v305
      %v426 = vpop.f32.mrf.mxu0
      %v427 = vadd.f32 0.0, %v426
      %v428 = vpop.f32.mrf.mxu0
      %v429 = vadd.f32 0.0, %v428
      %430 = vmatmul.bf16.gmra.mxu0 %v306
      %v431 = vpop.f32.mrf.mxu0
      %v432 = vadd.f32 0.0, %v431
      %v433 = vpop.f32.mrf.mxu0
      %v434 = vadd.f32 0.0, %v433
      %435 = vmatmul.bf16.gmra.mxu0 %v307
      %v436 = vpop.f32.mrf.mxu0
      %v437 = vadd.f32 0.0, %v436
      %v438 = vpop.f32.mrf.mxu0
      %v439 = vadd.f32 0.0, %v438
      %440 = vmatmul.bf16.gmra.mxu0 %v308
      %v441 = vpop.f32.mrf.mxu0
      %v442 = vadd.f32 0.0, %v441
      %v443 = vpop.f32.mrf.mxu0
      %v444 = vadd.f32 0.0, %v443
      %445 = vmatmul.bf16.gmra.mxu0 %v309
      %v446 = vpop.f32.mrf.mxu0
      %v447 = vadd.f32 0.0, %v446
      %v448 = vpop.f32.mrf.mxu0
      %v449 = vadd.f32 0.0, %v448
      %450 = vmatmul.bf16.gmra.mxu0 %v310
      %v451 = vpop.f32.mrf.mxu0
      %v452 = vadd.f32 0.0, %v451
      %v453 = vpop.f32.mrf.mxu0
      %v454 = vadd.f32 0.0, %v453
      %455 = vmatmul.bf16.gmra.mxu0 %v311
      %v456 = vpop.f32.mrf.mxu0
      %v457 = vadd.f32 0.0, %v456
      %v458 = vpop.f32.mrf.mxu0
      %v459 = vadd.f32 0.0, %v458
      %460 = vmatmul.bf16.gmra.mxu0 %v312
      %v461 = vpop.f32.mrf.mxu0
      %v462 = vadd.f32 0.0, %v461
      %v463 = vpop.f32.mrf.mxu0
      %v464 = vadd.f32 0.0, %v463
      %465 = vdwg.mxu0
      %v466 = vpack.c.bf16 %v387, %v387
      %v467 = vpack.c.bf16 %v389, %v389
      %v468 = vpack.c.bf16 %v392, %v392
      %v469 = vpack.c.bf16 %v394, %v394
      %v470 = vpack.c.bf16 %v397, %v397
      %v471 = vpack.c.bf16 %v399, %v399
      %v472 = vpack.c.bf16 %v402, %v402
      %v473 = vpack.c.bf16 %v404, %v404
      %v474 = vpack.c.bf16 %v407, %v407
      %v475 = vpack.c.bf16 %v409, %v409
      %v476 = vpack.c.bf16 %v412, %v412
      %v477 = vpack.c.bf16 %v414, %v414
      %v478 = vpack.c.bf16 %v417, %v417
      %v479 = vpack.c.bf16 %v419, %v419
      %v480 = vpack.c.bf16 %v422, %v422
      %v481 = vpack.c.bf16 %v424, %v424
      %v482 = vpack.c.bf16 %v427, %v427
      %v483 = vpack.c.bf16 %v429, %v429
      %v484 = vpack.c.bf16 %v432, %v432
      %v485 = vpack.c.bf16 %v434, %v434
      %v486 = vpack.c.bf16 %v437, %v437
      %v487 = vpack.c.bf16 %v439, %v439
      %v488 = vpack.c.bf16 %v442, %v442
      %v489 = vpack.c.bf16 %v444, %v444
      %v490 = vpack.c.bf16 %v447, %v447
      %v491 = vpack.c.bf16 %v449, %v449
      %v492 = vpack.c.bf16 %v452, %v452
      %v493 = vpack.c.bf16 %v454, %v454
      %v494 = vpack.c.bf16 %v457, %v457
      %v495 = vpack.c.bf16 %v459, %v459
      %v496 = vpack.c.bf16 %v462, %v462
      %v497 = vpack.c.bf16 %v464, %v464
      %498 = vst [vmem:[%s179] sm:$0xf] %v466
      %499 = vst [vmem:[%s179 + $0x4] sm:$0xf] %v467
      %500 = vst [vmem:[%s179 + $0x8] sm:$0xf] %v468
      %501 = vst [vmem:[%s179 + $0xc] sm:$0xf] %v469
      %502 = vst [vmem:[%s179 + $0x10] sm:$0xf] %v470
      %503 = vst [vmem:[%s179 + $0x14] sm:$0xf] %v471
      %504 = vst [vmem:[%s179 + $0x18] sm:$0xf] %v472
      %505 = vst [vmem:[%s179 + $0x1c] sm:$0xf] %v473
      %506 = vst [vmem:[%s179 + $0x20] sm:$0xf] %v474
      %507 = vst [vmem:[%s179 + $0x24] sm:$0xf] %v475
      %508 = vst [vmem:[%s179 + $0x28] sm:$0xf] %v476
      %509 = vst [vmem:[%s179 + $0x2c] sm:$0xf] %v477
      %510 = vst [vmem:[%s179 + $0x30] sm:$0xf] %v478
      %511 = vst [vmem:[%s179 + $0x34] sm:$0xf] %v479
      %512 = vst [vmem:[%s179 + $0x38] sm:$0xf] %v480
      %513 = vst [vmem:[%s179 + $0x3c] sm:$0xf] %v481
      %514 = vst [vmem:[%s179 + $0x40] sm:$0xf] %v482
      %515 = vst [vmem:[%s179 + $0x44] sm:$0xf] %v483
      %516 = vst [vmem:[%s179 + $0x48] sm:$0xf] %v484
      %517 = vst [vmem:[%s179 + $0x4c] sm:$0xf] %v485
      %518 = vst [vmem:[%s179 + $0x50] sm:$0xf] %v486
      %519 = vst [vmem:[%s179 + $0x54] sm:$0xf] %v487
      %520 = vst [vmem:[%s179 + $0x58] sm:$0xf] %v488
      %521 = vst [vmem:[%s179 + $0x5c] sm:$0xf] %v489
      %522 = vst [vmem:[%s179 + $0x60] sm:$0xf] %v490
      %523 = vst [vmem:[%s179 + $0x64] sm:$0xf] %v491
      %524 = vst [vmem:[%s179 + $0x68] sm:$0xf] %v492
      %525 = vst [vmem:[%s179 + $0x6c] sm:$0xf] %v493
      %526 = vst [vmem:[%s179 + $0x70] sm:$0xf] %v494
      %527 = vst [vmem:[%s179 + $0x74] sm:$0xf] %v495
      %528 = vst [vmem:[%s179 + $0x78] sm:$0xf] %v496
      %529 = vst [vmem:[%s179 + $0x7c] sm:$0xf] %v497
      %v530 = vadd.f32 %v387, %v389
      %v531 = vadd.f32 %v530, %v392
      %v532 = vadd.f32 %v531, %v394
      %v533 = vadd.f32 %v532, %v397
      %v534 = vadd.f32 %v533, %v399
      %v535 = vadd.f32 %v534, %v402
      %v536 = vadd.f32 %v535, %v404
      %v537 = vadd.f32 %v536, %v407
      %v538 = vadd.f32 %v537, %v409
      %v539 = vadd.f32 %v538, %v412
      %v540 = vadd.f32 %v539, %v414
      %v541 = vadd.f32 %v540, %v417
      %v542 = vadd.f32 %v541, %v419
      %v543 = vadd.f32 %v542, %v422
      %v544 = vadd.f32 %v543, %v424
      %v545 = vadd.f32 %v544, %v427
      %v546 = vadd.f32 %v545, %v429
      %v547 = vadd.f32 %v546, %v432
      %v548 = vadd.f32 %v547, %v434
      %v549 = vadd.f32 %v548, %v437
      %v550 = vadd.f32 %v549, %v439
      %v551 = vadd.f32 %v550, %v442
      %v552 = vadd.f32 %v551, %v444
      %v553 = vadd.f32 %v552, %v447
      %v554 = vadd.f32 %v553, %v449
      %v555 = vadd.f32 %v554, %v452
      %v556 = vadd.f32 %v555, %v454
      %v557 = vadd.f32 %v556, %v457
      %v558 = vadd.f32 %v557, %v459
      %v559 = vadd.f32 %v558, %v462
      %v560 = vadd.f32 %v559, %v464
      %v561 = vrot.slane %v560, 4
      %v562 = vadd.f32 %v560, %v561
      %v563 = vrot.slane %v562, 2
      %v564 = vadd.f32 %v562, %v563
      %v565 = vrot.slane %v564, 1
      %v566 = vadd.f32 %v564, %v565
      %v567 = vmul.f32 %v387, %v387
      %v568 = vmul.f32 %v389, %v389
      %v569 = vmul.f32 %v392, %v392
      %v570 = vmul.f32 %v394, %v394
      %v571 = vmul.f32 %v397, %v397
      %v572 = vmul.f32 %v399, %v399
      %v573 = vmul.f32 %v402, %v402
      %v574 = vmul.f32 %v404, %v404
      %v575 = vmul.f32 %v407, %v407
      %v576 = vmul.f32 %v409, %v409
      %v577 = vmul.f32 %v412, %v412
      %v578 = vmul.f32 %v414, %v414
      %v579 = vmul.f32 %v417, %v417
      %v580 = vmul.f32 %v419, %v419
      %v581 = vmul.f32 %v422, %v422
      %v582 = vmul.f32 %v424, %v424
      %v583 = vmul.f32 %v427, %v427
      %v584 = vmul.f32 %v429, %v429
      %v585 = vmul.f32 %v432, %v432
      %v586 = vmul.f32 %v434, %v434
      %v587 = vmul.f32 %v437, %v437
      %v588 = vmul.f32 %v439, %v439
      %v589 = vmul.f32 %v442, %v442
      %v590 = vmul.f32 %v444, %v444
      %v591 = vmul.f32 %v447, %v447
      %v592 = vmul.f32 %v449, %v449
      %v593 = vmul.f32 %v452, %v452
      %v594 = vmul.f32 %v454, %v454
      %v595 = vmul.f32 %v457, %v457
      %v596 = vmul.f32 %v459, %v459
      %v597 = vmul.f32 %v462, %v462
      %v598 = vmul.f32 %v464, %v464
      %v599 = vadd.f32 %v567, %v568
      %v600 = vadd.f32 %v599, %v569
      %v601 = vadd.f32 %v600, %v570
      %v602 = vadd.f32 %v601, %v571
      %v603 = vadd.f32 %v602, %v572
      %v604 = vadd.f32 %v603, %v573
      %v605 = vadd.f32 %v604, %v574
      %v606 = vadd.f32 %v605, %v575
      %v607 = vadd.f32 %v606, %v576
      %v608 = vadd.f32 %v607, %v577
      %v609 = vadd.f32 %v608, %v578
      %v610 = vadd.f32 %v609, %v579
      %v611 = vadd.f32 %v610, %v580
      %v612 = vadd.f32 %v611, %v581
      %v613 = vadd.f32 %v612, %v582
      %v614 = vadd.f32 %v613, %v583
      %v615 = vadd.f32 %v614, %v584
      %v616 = vadd.f32 %v615, %v585
      %v617 = vadd.f32 %v616, %v586
      %v618 = vadd.f32 %v617, %v587
      %v619 = vadd.f32 %v618, %v588
      %v620 = vadd.f32 %v619, %v589
      %v621 = vadd.f32 %v620, %v590
      %v622 = vadd.f32 %v621, %v591
      %v623 = vadd.f32 %v622, %v592
      %v624 = vadd.f32 %v623, %v593
      %v625 = vadd.f32 %v624, %v594
      %v626 = vadd.f32 %v625, %v595
      %v627 = vadd.f32 %v626, %v596
      %v628 = vadd.f32 %v627, %v597
      %v629 = vadd.f32 %v628, %v598
      %v630 = vrot.slane %v629, 4
      %v631 = vadd.f32 %v629, %v630
      %v632 = vrot.slane %v631, 2
      %v633 = vadd.f32 %v631, %v632
      %v634 = vrot.slane %v633, 1
      %v635 = vadd.f32 %v633, %v634
      %vm636 = vcmask 1040384
      %v637 = vsel %vm636, %v566, %v635
      %638 = vst [vmem:[%s184] sm:$0x3] %v637
      %s639 = smul.u32 32, %s15
      %p640 = scmp.lt.s32.totalorder %s639, 63
      %s641 = scalar_select %p640, %s639, 63
      %s642 = smul.addr %s641, 4
      %s643 = scalar_lea.vmem %s2, %s642
      %p644 = scmp.lt.s32.totalorder %s15, 1
      %s645 = scalar_select %p644, %s15, 1
      %s646 = smul.addr %s645, 2
      %s647 = scalar_lea.vmem %s3, %s646
      // Predicated region
      $region29: #{basic_block_forward.6} parent=27 // pred_check
        %p648 = pneg %p80
      $region30: #{basic_block_forward.6} parent=27 // pred_check_branch
        %650 = sbr.rel (%p648) target = $region32
      $region31: #{basic_block_forward.6} parent=27 // pred_region
        %s651 = smul.u32 32, %s15
      $region32: #{basic_block_forward.6} parent=27 // pred_fallthru
        _
      // Predicated region
      $region33: #{basic_block_forward.6} parent=27 // pred_check
        %p652 = pneg %p106
      $region34: #{basic_block_forward.6} parent=27 // pred_check_branch
        %654 = sbr.rel (%p652) target = $region36
      $region35: #{basic_block_forward.6} parent=27 // pred_region
        _
      $region36: #{basic_block_forward.6} parent=27 // pred_fallthru
        _
    $region28: #{basic_block_forward.6} parent=5 // pred_fallthru
      _
    %p655 = scmp.le.s32.totalorder 2, %s10
    // Predicated region
    $region37: #{basic_block_forward.6} parent=5 // pred_check
      %p656 = pneg %p655
    $region38: #{basic_block_forward.6} parent=5 // pred_check_branch
      %658 = sbr.rel (%p656) target = $region40
    $region39: #{basic_block_forward.6} parent=5 // pred_region
      %s659 = ssub.s32 %s10, 2
      // Predicated region
      $region41: #{basic_block_forward.6} parent=39 // pred_check
        %p660 = pneg %p86
      $region42: #{basic_block_forward.6} parent=39 // pred_check_branch
        %662 = sbr.rel (%p660) target = $region44
      $region43: #{basic_block_forward.6} parent=39 // pred_region
        %s663 = smul.u32 32, %s16
        %p664 = scmp.lt.s32.totalorder %s663, 63
        %s665 = scalar_select %p664, %s663, 63
        %s666 = smul.addr %s665, 4
        %s667 = scalar_lea.vmem %s2, %s666
      $region44: #{basic_block_forward.6} parent=39 // pred_fallthru
        _
      // Predicated region
      $region45: #{basic_block_forward.6} parent=39 // pred_check
        %p668 = pneg %p112
      $region46: #{basic_block_forward.6} parent=39 // pred_check_branch
        %670 = sbr.rel (%p668) target = $region48
      $region47: #{basic_block_forward.6} parent=39 // pred_region
        %p671 = scmp.lt.s32.totalorder %s16, 1
        %s672 = scalar_select %p671, %s16, 1
        %s673 = smul.addr %s672, 2
        %s674 = scalar_lea.vmem %s3, %s673
      $region48: #{basic_block_forward.6} parent=39 // pred_fallthru
        _
    $region40: #{basic_block_forward.6} parent=5 // pred_fallthru
      _
  $region6: #{basic_block_forward.6} parent=0 // loop_footer
    %s14 = sadd.s32 1, %s10
  $region7: #{basic_block_forward.6} parent=0 // loop_footer_branch
    %9 = sbr.rel target = $region3
  $region8: #{basic_block_forward.6} parent=0 // loop_exit
    _

// kernel: basic_block_forward.7
$region0: #{basic_block_forward.7}
  #allocation0 [shape = 'u32[]', space=smem, size = 0x4, offset = 0x4, fixed_abs, tag = 'smem constant byte address 0x4 - core index']
  #allocation1 [shape = 'u32[72,128]{1,0:T(1,128)}', space=vmem, size = 0x9000, scoped, tag = 'internal scratch']
  %s0 = inlined_call_operand.vmem [shape: bf16[512,128], index: 0, kind: input, shape index: {}]
  %s1 = inlined_call_operand.vmem [shape: bf16[512,128], index: 1, kind: input, shape index: {}]
  %s2 = inlined_call_operand.vmem [shape: f32[1,128], index: 2, kind: input, shape index: {}]
  %s3 = inlined_call_operand.vmem [shape: f32[1,128], index: 3, kind: input, shape index: {}]
  %s4 = inlined_call_operand.vmem [shape: f32[1,128], index: 4, kind: input, shape index: {}]
  %s5 = inlined_call_operand.vmem [shape: f32[1,128], index: 5, kind: input, shape index: {}]
  %s6 = inlined_call_operand.vmem [shape: f32[512,128], index: 6, kind: output, shape index: {}]
  %s7 = sld [smem:[#allocation0]]
  $region57: #{basic_block_forward.7} parent=0
    _
  %s9 = ssub.s32 1, %s7
  %s10 = scalar_select 0, %s9, %s7
  loop: start=0, step=1, limit=4
  $region2: #{basic_block_forward.7} parent=0 // loop_pre_header
    _
  $region3: #{basic_block_forward.7} parent=0 // loop_header
    %s12 = sphi 0, %s16
    %p13 = scmp.ge.s32.totalorder %s12, 4
    %s22 = sphi 0, %s24
    %s25 = sphi 0, %s22
    %s26 = sphi 0, %s25
    %s42 = sphi 0, %s26
    %s48 = sphi 0, %s50
    %s51 = sphi 0, %s48
    %s52 = sphi 0, %s51
    %s68 = sphi 0, %s52
    %s72 = sphi 0, %s72
    %s74 = sphi 0, %s72
    %s75 = sphi 0, %s74
    %s89 = sphi 0, %s75
    %s93 = sphi 0, %s93
    %s95 = sphi 0, %s93
    %s96 = sphi 0, %s95
    %s110 = sphi 0, %s96
    %s114 = sphi 0, %s114
    %s116 = sphi 0, %s114
    %s117 = sphi 0, %s116
    %s131 = sphi 0, %s117
    %s135 = sphi 0, %s135
    %s137 = sphi 0, %s135
    %s138 = sphi 0, %s137
    %s152 = sphi 0, %s138
    %s158 = sphi 0, %s160
    %s161 = sphi 0, %s158
    %s162 = sphi 0, %s161
    %s178 = sphi 0, %s162
  $region4: #{basic_block_forward.7} parent=0 // loop_header_branch
    %15 = sbr.rel (%p13) target = $region8
  $region5: #{basic_block_forward.7} parent=0 // loop_body
    %s17 = ssub.s32 %s12, 1
    %s18 = ssub.s32 %s12, 2
    %s19 = sadd.s32 %s12, 1
    %s20 = ssub.s32 %s12, %s19
    %p21 = scmp.eq.s32.totalorder %s20, 0
    %s23 = sadd.s32 %s22, 1
    %s24 = scalar_select %p21, %s22, %s23
    %p27 = pneg %p21
    %p28 = scmp.eq.s32.totalorder %s12, 1
    %p29 = por %p27, %p28
    %p30 = scmp.ne.s32.totalorder %s22, %s25
    %p31 = scmp.eq.s32.totalorder %s12, 0
    %p32 = por %p30, %p31
    %p33 = scmp.ne.s32.totalorder %s22, %s25
    %p34 = scmp.eq.s32.totalorder %s17, 1
    %p35 = por %p33, %p34
    %p36 = scmp.ne.s32.totalorder %s25, %s26
    %p37 = scmp.eq.s32.totalorder %s17, 0
    %p38 = por %p36, %p37
    %p39 = scmp.ne.s32.totalorder %s25, %s26
    %p40 = scmp.eq.s32.totalorder %s18, 1
    %p41 = por %p39, %p40
    %p43 = scmp.ne.s32.totalorder %s26, %s42
    %p44 = scmp.eq.s32.totalorder %s18, 0
    %p45 = por %p43, %p44
    %s46 = ssub.s32 %s12, %s19
    %p47 = scmp.eq.s32.totalorder %s46, 0
    %s49 = sadd.s32 %s48, 1
    %s50 = scalar_select %p47, %s48, %s49
    %p53 = pneg %p47
    %p54 = scmp.eq.s32.totalorder %s12, 1
    %p55 = por %p53, %p54
    %p56 = scmp.ne.s32.totalorder %s48, %s51
    %p57 = scmp.eq.s32.totalorder %s12, 0
    %p58 = por %p56, %p57
    %p59 = scmp.ne.s32.totalorder %s48, %s51
    %p60 = scmp.eq.s32.totalorder %s17, 1
    %p61 = por %p59, %p60
    %p62 = scmp.ne.s32.totalorder %s51, %s52
    %p63 = scmp.eq.s32.totalorder %s17, 0
    %p64 = por %p62, %p63
    %p65 = scmp.ne.s32.totalorder %s51, %s52
    %p66 = scmp.eq.s32.totalorder %s18, 1
    %p67 = por %p65, %p66
    %p69 = scmp.ne.s32.totalorder %s52, %s68
    %p70 = scmp.eq.s32.totalorder %s18, 0
    %p71 = por %p69, %p70
    %s73 = sadd.s32 %s72, 1
    %p76 = scmp.eq.s32.totalorder %s12, 1
    %p77 = scmp.ne.s32.totalorder %s72, %s74
    %p78 = scmp.eq.s32.totalorder %s12, 0
    %p79 = por %p77, %p78
    %p80 = scmp.ne.s32.totalorder %s72, %s74
    %p81 = scmp.eq.s32.totalorder %s17, 1
    %p82 = por %p80, %p81
    %p83 = scmp.ne.s32.totalorder %s74, %s75
    %p84 = scmp.eq.s32.totalorder %s17, 0
    %p85 = por %p83, %p84
    %p86 = scmp.ne.s32.totalorder %s74, %s75
    %p87 = scmp.eq.s32.totalorder %s18, 1
    %p88 = por %p86, %p87
    %p90 = scmp.ne.s32.totalorder %s75, %s89
    %p91 = scmp.eq.s32.totalorder %s18, 0
    %p92 = por %p90, %p91
    %s94 = sadd.s32 %s93, 1
    %p97 = scmp.eq.s32.totalorder %s12, 1
    %p98 = scmp.ne.s32.totalorder %s93, %s95
    %p99 = scmp.eq.s32.totalorder %s12, 0
    %p100 = por %p98, %p99
    %p101 = scmp.ne.s32.totalorder %s93, %s95
    %p102 = scmp.eq.s32.totalorder %s17, 1
    %p103 = por %p101, %p102
    %p104 = scmp.ne.s32.totalorder %s95, %s96
    %p105 = scmp.eq.s32.totalorder %s17, 0
    %p106 = por %p104, %p105
    %p107 = scmp.ne.s32.totalorder %s95, %s96
    %p108 = scmp.eq.s32.totalorder %s18, 1
    %p109 = por %p107, %p108
    %p111 = scmp.ne.s32.totalorder %s96, %s110
    %p112 = scmp.eq.s32.totalorder %s18, 0
    %p113 = por %p111, %p112
    %s115 = sadd.s32 %s114, 1
    %p118 = scmp.eq.s32.totalorder %s12, 1
    %p119 = scmp.ne.s32.totalorder %s114, %s116
    %p120 = scmp.eq.s32.totalorder %s12, 0
    %p121 = por %p119, %p120
    %p122 = scmp.ne.s32.totalorder %s114, %s116
    %p123 = scmp.eq.s32.totalorder %s17, 1
    %p124 = por %p122, %p123
    %p125 = scmp.ne.s32.totalorder %s116, %s117
    %p126 = scmp.eq.s32.totalorder %s17, 0
    %p127 = por %p125, %p126
    %p128 = scmp.ne.s32.totalorder %s116, %s117
    %p129 = scmp.eq.s32.totalorder %s18, 1
    %p130 = por %p128, %p129
    %p132 = scmp.ne.s32.totalorder %s117, %s131
    %p133 = scmp.eq.s32.totalorder %s18, 0
    %p134 = por %p132, %p133
    %s136 = sadd.s32 %s135, 1
    %p139 = scmp.eq.s32.totalorder %s12, 1
    %p140 = scmp.ne.s32.totalorder %s135, %s137
    %p141 = scmp.eq.s32.totalorder %s12, 0
    %p142 = por %p140, %p141
    %p143 = scmp.ne.s32.totalorder %s135, %s137
    %p144 = scmp.eq.s32.totalorder %s17, 1
    %p145 = por %p143, %p144
    %p146 = scmp.ne.s32.totalorder %s137, %s138
    %p147 = scmp.eq.s32.totalorder %s17, 0
    %p148 = por %p146, %p147
    %p149 = scmp.ne.s32.totalorder %s137, %s138
    %p150 = scmp.eq.s32.totalorder %s18, 1
    %p151 = por %p149, %p150
    %p153 = scmp.ne.s32.totalorder %s138, %s152
    %p154 = scmp.eq.s32.totalorder %s18, 0
    %p155 = por %p153, %p154
    %s156 = ssub.s32 %s12, %s19
    %p157 = scmp.eq.s32.totalorder %s156, 0
    %s159 = sadd.s32 %s158, 1
    %s160 = scalar_select %p157, %s158, %s159
    %p163 = pneg %p157
    %p164 = scmp.eq.s32.totalorder %s12, 1
    %p165 = por %p163, %p164
    %p166 = scmp.ne.s32.totalorder %s158, %s161
    %p167 = scmp.eq.s32.totalorder %s12, 0
    %p168 = por %p166, %p167
    %p169 = scmp.ne.s32.totalorder %s158, %s161
    %p170 = scmp.eq.s32.totalorder %s17, 1
    %p171 = por %p169, %p170
    %p172 = scmp.ne.s32.totalorder %s161, %s162
    %p173 = scmp.eq.s32.totalorder %s17, 0
    %p174 = por %p172, %p173
    %p175 = scmp.ne.s32.totalorder %s161, %s162
    %p176 = scmp.eq.s32.totalorder %s18, 1
    %p177 = por %p175, %p176
    %p179 = scmp.ne.s32.totalorder %s162, %s178
    %p180 = scmp.eq.s32.totalorder %s18, 0
    %p181 = por %p179, %p180
    %p182 = scmp.le.s32.totalorder 1, %s12
    %p183 = scmp.lt.s32.totalorder %s12, 3
    %p184 = pnand %p182, %p183
    %p185 = pneg %p184
    // Predicated region
    $region9: #{basic_block_forward.7} parent=5 // pred_check
      _
    $region10: #{basic_block_forward.7} parent=5 // pred_check_branch
      %187 = sbr.rel (%p184) target = $region12
    $region11: #{basic_block_forward.7} parent=5 // pred_region
      %s188 = ssub.s32 %s12, 1
      // Predicated region
      $region13: #{basic_block_forward.7} parent=11 // pred_check
        %p189 = pneg %p85
      $region14: #{basic_block_forward.7} parent=11 // pred_check_branch
        %191 = sbr.rel (%p189) target = $region16
      $region15: #{basic_block_forward.7} parent=11 // pred_region
        _
      $region16: #{basic_block_forward.7} parent=11 // pred_fallthru
        _
      // Predicated region
      $region17: #{basic_block_forward.7} parent=11 // pred_check
        %p192 = pneg %p106
      $region18: #{basic_block_forward.7} parent=11 // pred_check_branch
        %194 = sbr.rel (%p192) target = $region20
      $region19: #{basic_block_forward.7} parent=11 // pred_region
        _
      $region20: #{basic_block_forward.7} parent=11 // pred_fallthru
        _
      // Predicated region
      $region21: #{basic_block_forward.7} parent=11 // pred_check
        %p195 = pneg %p127
      $region22: #{basic_block_forward.7} parent=11 // pred_check_branch
        %197 = sbr.rel (%p195) target = $region24
      $region23: #{basic_block_forward.7} parent=11 // pred_region
        _
      $region24: #{basic_block_forward.7} parent=11 // pred_fallthru
        _
      // Predicated region
      $region25: #{basic_block_forward.7} parent=11 // pred_check
        %p198 = pneg %p148
      $region26: #{basic_block_forward.7} parent=11 // pred_check_branch
        %200 = sbr.rel (%p198) target = $region28
      $region27: #{basic_block_forward.7} parent=11 // pred_region
        _
      $region28: #{basic_block_forward.7} parent=11 // pred_fallthru
        _
    $region12: #{basic_block_forward.7} parent=5 // pred_fallthru
      _
    %p201 = scmp.lt.s32.totalorder %s12, 2
    // Predicated region
    $region29: #{basic_block_forward.7} parent=5 // pred_check
      %p202 = pneg %p201
    $region30: #{basic_block_forward.7} parent=5 // pred_check_branch
      %204 = sbr.rel (%p202) target = $region32
    $region31: #{basic_block_forward.7} parent=5 // pred_region
      // Predicated region
      $region33: #{basic_block_forward.7} parent=31 // pred_check
        %p205 = pneg %p32
      $region34: #{basic_block_forward.7} parent=31 // pred_check_branch
        %207 = sbr.rel (%p205) target = $region36
      $region35: #{basic_block_forward.7} parent=31 // pred_region
        %s208 = smul.u32 32, %s12
        %p209 = scmp.lt.s32.totalorder %s208, 63
        %s210 = scalar_select %p209, %s208, 63
        %s211 = smul.addr %s210, 4
        %s212 = scalar_lea.vmem %s0, %s211
        %s213 = smul.u32 32, %s12
      $region36: #{basic_block_forward.7} parent=31 // pred_fallthru
        _
      // Predicated region
      $region37: #{basic_block_forward.7} parent=31 // pred_check
        %p214 = pneg %p58
      $region38: #{basic_block_forward.7} parent=31 // pred_check_branch
        %216 = sbr.rel (%p214) target = $region40
      $region39: #{basic_block_forward.7} parent=31 // pred_region
        %s217 = smul.u32 32, %s12
        %p218 = scmp.lt.s32.totalorder %s217, 63
        %s219 = scalar_select %p218, %s217, 63
        %s220 = smul.addr %s219, 4
        %s221 = scalar_lea.vmem %s1, %s220
        %s222 = smul.u32 32, %s12
      $region40: #{basic_block_forward.7} parent=31 // pred_fallthru
        _
    $region32: #{basic_block_forward.7} parent=5 // pred_fallthru
      _
    %p223 = scmp.le.s32.totalorder 1, %s12
    %p224 = scmp.lt.s32.totalorder %s12, 3
    %p225 = pnand %p223, %p224
    %p226 = pneg %p225
    // Predicated region
    $region41: #{basic_block_forward.7} parent=5 // pred_check
      _
    $region42: #{basic_block_forward.7} parent=5 // pred_check_branch
      %228 = sbr.rel (%p225) target = $region44
    $region43: #{basic_block_forward.7} parent=5 // pred_region
      %s229 = ssub.s32 %s12, 1
      %s230 = smul.u32 32, %s17
      %p231 = scmp.lt.s32.totalorder %s230, 63
      %s232 = scalar_select %p231, %s230, 63
      %s233 = smul.addr %s232, 4
      %s234 = scalar_lea.vmem %s0, %s233
      %p235 = pneg %p38
      %p236 = pneg %p35
      %s237 = smul.u32 32, %s17
      %p238 = scmp.lt.s32.totalorder %s237, 63
      %s239 = scalar_select %p238, %s237, 63
      %s240 = smul.addr %s239, 4
      %s241 = scalar_lea.vmem %s1, %s240
      %p242 = pneg %p64
      %p243 = pneg %p61
      %p244 = pneg %p85
      %p245 = pneg %p82
      %p246 = pneg %p106
      %p247 = pneg %p103
      %p248 = pneg %p127
      %p249 = pneg %p124
      %p250 = pneg %p148
      %p251 = pneg %p145
      %p252 = pneg %p174
      %p253 = pneg %p171
      %s254 = smul.u32 32, %s17
      %p255 = scmp.lt.s32.totalorder %s254, 63
      %s256 = scalar_select %p255, %s254, 63
      %s257 = smul.addr %s256, 8
      %s258 = scalar_lea.vmem %s6, %s257
      %s259 = smul.u32 32, %s17
      %p260 = scmp.lt.s32.totalorder %s259, 63
      %s261 = scalar_select %p260, %s259, 63
      %s262 = smul.addr %s261, 4
      %s263 = scalar_lea.vmem %s0, %s262
      %s264 = smul.u32 32, %s17
      %s265 = smul.u32 32, %s17
      %p266 = scmp.lt.s32.totalorder %s265, 63
      %s267 = scalar_select %p266, %s265, 63
      %s268 = smul.addr %s267, 4
      %s269 = scalar_lea.vmem %s1, %s268
      %s270 = smul.u32 32, %s17
      %s271 = smul.u32 32, %s17
      %p272 = scmp.lt.s32.totalorder %s271, 63
      %s273 = scalar_select %p272, %s271, 63
      %s274 = smul.addr %s273, 8
      %s275 = scalar_lea.vmem %s6, %s274
      %s276 = smul.u32 32, %s17
      %v277 = vld [vmem:[%s263] sm:$0xf]
      %v278 = vld [vmem:[%s263 + $0x4] sm:$0xf]
      %v279 = vld [vmem:[%s263 + $0x8] sm:$0xf]
      %v280 = vld [vmem:[%s263 + $0xc] sm:$0xf]
      %v281 = vld [vmem:[%s263 + $0x10] sm:$0xf]
      %v282 = vld [vmem:[%s263 + $0x14] sm:$0xf]
      %v283 = vld [vmem:[%s263 + $0x18] sm:$0xf]
      %v284 = vld [vmem:[%s263 + $0x1c] sm:$0xf]
      %v285 = vld [vmem:[%s263 + $0x20] sm:$0xf]
      %v286 = vld [vmem:[%s263 + $0x24] sm:$0xf]
      %v287 = vld [vmem:[%s263 + $0x28] sm:$0xf]
      %v288 = vld [vmem:[%s263 + $0x2c] sm:$0xf]
      %v289 = vld [vmem:[%s263 + $0x30] sm:$0xf]
      %v290 = vld [vmem:[%s263 + $0x34] sm:$0xf]
      %v291 = vld [vmem:[%s263 + $0x38] sm:$0xf]
      %v292 = vld [vmem:[%s263 + $0x3c] sm:$0xf]
      %v293 = vld [vmem:[%s263 + $0x40] sm:$0xf]
      %v294 = vld [vmem:[%s263 + $0x44] sm:$0xf]
      %v295 = vld [vmem:[%s263 + $0x48] sm:$0xf]
      %v296 = vld [vmem:[%s263 + $0x4c] sm:$0xf]
      %v297 = vld [vmem:[%s263 + $0x50] sm:$0xf]
      %v298 = vld [vmem:[%s263 + $0x54] sm:$0xf]
      %v299 = vld [vmem:[%s263 + $0x58] sm:$0xf]
      %v300 = vld [vmem:[%s263 + $0x5c] sm:$0xf]
      %v301 = vld [vmem:[%s263 + $0x60] sm:$0xf]
      %v302 = vld [vmem:[%s263 + $0x64] sm:$0xf]
      %v303 = vld [vmem:[%s263 + $0x68] sm:$0xf]
      %v304 = vld [vmem:[%s263 + $0x6c] sm:$0xf]
      %v305 = vld [vmem:[%s263 + $0x70] sm:$0xf]
      %v306 = vld [vmem:[%s263 + $0x74] sm:$0xf]
      %v307 = vld [vmem:[%s263 + $0x78] sm:$0xf]
      %v308 = vld [vmem:[%s263 + $0x7c] sm:$0xf]
      %v309 = vunpack.c.l.bf16 %v277
      %v310 = vunpack.c.l.bf16 %v278
      %v311 = vunpack.c.l.bf16 %v279
      %v312 = vunpack.c.l.bf16 %v280
      %v313 = vunpack.c.l.bf16 %v281
      %v314 = vunpack.c.l.bf16 %v282
      %v315 = vunpack.c.l.bf16 %v283
      %v316 = vunpack.c.l.bf16 %v284
      %v317 = vunpack.c.l.bf16 %v285
      %v318 = vunpack.c.l.bf16 %v286
      %v319 = vunpack.c.l.bf16 %v287
      %v320 = vunpack.c.l.bf16 %v288
      %v321 = vunpack.c.l.bf16 %v289
      %v322 = vunpack.c.l.bf16 %v290
      %v323 = vunpack.c.l.bf16 %v291
      %v324 = vunpack.c.l.bf16 %v292
      %v325 = vunpack.c.l.bf16 %v293
      %v326 = vunpack.c.l.bf16 %v294
      %v327 = vunpack.c.l.bf16 %v295
      %v328 = vunpack.c.l.bf16 %v296
      %v329 = vunpack.c.l.bf16 %v297
      %v330 = vunpack.c.l.bf16 %v298
      %v331 = vunpack.c.l.bf16 %v299
      %v332 = vunpack.c.l.bf16 %v300
      %v333 = vunpack.c.l.bf16 %v301
      %v334 = vunpack.c.l.bf16 %v302
      %v335 = vunpack.c.l.bf16 %v303
      %v336 = vunpack.c.l.bf16 %v304
      %v337 = vunpack.c.l.bf16 %v305
      %v338 = vunpack.c.l.bf16 %v306
      %v339 = vunpack.c.l.bf16 %v307
      %v340 = vunpack.c.l.bf16 %v308
      %v341 = vld [vmem:[%s2] sm:$0x1]
      %v343 = vperm.slane %v341, 0
      %v345 = vmul.f32 %v309, %v343
      %v346 = vmul.f32 %v310, %v343
      %v347 = vmul.f32 %v311, %v343
      %v348 = vmul.f32 %v312, %v343
      %v349 = vmul.f32 %v313, %v343
      %v350 = vmul.f32 %v314, %v343
      %v351 = vmul.f32 %v315, %v343
      %v352 = vmul.f32 %v316, %v343
      %v353 = vmul.f32 %v317, %v343
      %v354 = vmul.f32 %v318, %v343
      %v355 = vmul.f32 %v319, %v343
      %v356 = vmul.f32 %v320, %v343
      %v357 = vmul.f32 %v321, %v343
      %v358 = vmul.f32 %v322, %v343
      %v359 = vmul.f32 %v323, %v343
      %v360 = vmul.f32 %v324, %v343
      %v361 = vmul.f32 %v325, %v343
      %v362 = vmul.f32 %v326, %v343
      %v363 = vmul.f32 %v327, %v343
      %v364 = vmul.f32 %v328, %v343
      %v365 = vmul.f32 %v329, %v343
      %v366 = vmul.f32 %v330, %v343
      %v367 = vmul.f32 %v331, %v343
      %v368 = vmul.f32 %v332, %v343
      %v369 = vmul.f32 %v333, %v343
      %v370 = vmul.f32 %v334, %v343
      %v371 = vmul.f32 %v335, %v343
      %v372 = vmul.f32 %v336, %v343
      %v373 = vmul.f32 %v337, %v343
      %v374 = vmul.f32 %v338, %v343
      %v375 = vmul.f32 %v339, %v343
      %v376 = vmul.f32 %v340, %v343
      %v377 = vld [vmem:[%s3] sm:$0x1]
      %v379 = vperm.slane %v377, 0
      %v381 = vadd.f32 %v345, %v379
      %v382 = vadd.f32 %v346, %v379
      %v383 = vadd.f32 %v347, %v379
      %v384 = vadd.f32 %v348, %v379
      %v385 = vadd.f32 %v349, %v379
      %v386 = vadd.f32 %v350, %v379
      %v387 = vadd.f32 %v351, %v379
      %v388 = vadd.f32 %v352, %v379
      %v389 = vadd.f32 %v353, %v379
      %v390 = vadd.f32 %v354, %v379
      %v391 = vadd.f32 %v355, %v379
      %v392 = vadd.f32 %v356, %v379
      %v393 = vadd.f32 %v357, %v379
      %v394 = vadd.f32 %v358, %v379
      %v395 = vadd.f32 %v359, %v379
      %v396 = vadd.f32 %v360, %v379
      %v397 = vadd.f32 %v361, %v379
      %v398 = vadd.f32 %v362, %v379
      %v399 = vadd.f32 %v363, %v379
      %v400 = vadd.f32 %v364, %v379
      %v401 = vadd.f32 %v365, %v379
      %v402 = vadd.f32 %v366, %v379
      %v403 = vadd.f32 %v367, %v379
      %v404 = vadd.f32 %v368, %v379
      %v405 = vadd.f32 %v369, %v379
      %v406 = vadd.f32 %v370, %v379
      %v407 = vadd.f32 %v371, %v379
      %v408 = vadd.f32 %v372, %v379
      %v409 = vadd.f32 %v373, %v379
      %v410 = vadd.f32 %v374, %v379
      %v411 = vadd.f32 %v375, %v379
      %v412 = vadd.f32 %v376, %v379
      %v413 = vld [vmem:[%s269] sm:$0xf]
      %v414 = vld [vmem:[%s269 + $0x4] sm:$0xf]
      %v415 = vld [vmem:[%s269 + $0x8] sm:$0xf]
      %v416 = vld [vmem:[%s269 + $0xc] sm:$0xf]
      %v417 = vld [vmem:[%s269 + $0x10] sm:$0xf]
      %v418 = vld [vmem:[%s269 + $0x14] sm:$0xf]
      %v419 = vld [vmem:[%s269 + $0x18] sm:$0xf]
      %v420 = vld [vmem:[%s269 + $0x1c] sm:$0xf]
      %v421 = vld [vmem:[%s269 + $0x20] sm:$0xf]
      %v422 = vld [vmem:[%s269 + $0x24] sm:$0xf]
      %v423 = vld [vmem:[%s269 + $0x28] sm:$0xf]
      %v424 = vld [vmem:[%s269 + $0x2c] sm:$0xf]
      %v425 = vld [vmem:[%s269 + $0x30] sm:$0xf]
      %v426 = vld [vmem:[%s269 + $0x34] sm:$0xf]
      %v427 = vld [vmem:[%s269 + $0x38] sm:$0xf]
      %v428 = vld [vmem:[%s269 + $0x3c] sm:$0xf]
      %v429 = vld [vmem:[%s269 + $0x40] sm:$0xf]
      %v430 = vld [vmem:[%s269 + $0x44] sm:$0xf]
      %v431 = vld [vmem:[%s269 + $0x48] sm:$0xf]
      %v432 = vld [vmem:[%s269 + $0x4c] sm:$0xf]
      %v433 = vld [vmem:[%s269 + $0x50] sm:$0xf]
      %v434 = vld [vmem:[%s269 + $0x54] sm:$0xf]
      %v435 = vld [vmem:[%s269 + $0x58] sm:$0xf]
      %v436 = vld [vmem:[%s269 + $0x5c] sm:$0xf]
      %v437 = vld [vmem:[%s269 + $0x60] sm:$0xf]
      %v438 = vld [vmem:[%s269 + $0x64] sm:$0xf]
      %v439 = vld [vmem:[%s269 + $0x68] sm:$0xf]
      %v440 = vld [vmem:[%s269 + $0x6c] sm:$0xf]
      %v441 = vld [vmem:[%s269 + $0x70] sm:$0xf]
      %v442 = vld [vmem:[%s269 + $0x74] sm:$0xf]
      %v443 = vld [vmem:[%s269 + $0x78] sm:$0xf]
      %v444 = vld [vmem:[%s269 + $0x7c] sm:$0xf]
      %v445 = vunpack.c.l.bf16 %v413
      %v446 = vunpack.c.l.bf16 %v414
      %v447 = vunpack.c.l.bf16 %v415
      %v448 = vunpack.c.l.bf16 %v416
      %v449 = vunpack.c.l.bf16 %v417
      %v450 = vunpack.c.l.bf16 %v418
      %v451 = vunpack.c.l.bf16 %v419
      %v452 = vunpack.c.l.bf16 %v420
      %v453 = vunpack.c.l.bf16 %v421
      %v454 = vunpack.c.l.bf16 %v422
      %v455 = vunpack.c.l.bf16 %v423
      %v456 = vunpack.c.l.bf16 %v424
      %v457 = vunpack.c.l.bf16 %v425
      %v458 = vunpack.c.l.bf16 %v426
      %v459 = vunpack.c.l.bf16 %v427
      %v460 = vunpack.c.l.bf16 %v428
      %v461 = vunpack.c.l.bf16 %v429
      %v462 = vunpack.c.l.bf16 %v430
      %v463 = vunpack.c.l.bf16 %v431
      %v464 = vunpack.c.l.bf16 %v432
      %v465 = vunpack.c.l.bf16 %v433
      %v466 = vunpack.c.l.bf16 %v434
      %v467 = vunpack.c.l.bf16 %v435
      %v468 = vunpack.c.l.bf16 %v436
      %v469 = vunpack.c.l.bf16 %v437
      %v470 = vunpack.c.l.bf16 %v438
      %v471 = vunpack.c.l.bf16 %v439
      %v472 = vunpack.c.l.bf16 %v440
      %v473 = vunpack.c.l.bf16 %v441
      %v474 = vunpack.c.l.bf16 %v442
      %v475 = vunpack.c.l.bf16 %v443
      %v476 = vunpack.c.l.bf16 %v444
      %v477 = vld [vmem:[%s4] sm:$0x1]
      %v479 = vperm.slane %v477, 0
      %v481 = vmul.f32 %v445, %v479
      %v482 = vmul.f32 %v446, %v479
      %v483 = vmul.f32 %v447, %v479
      %v484 = vmul.f32 %v448, %v479
      %v485 = vmul.f32 %v449, %v479
      %v486 = vmul.f32 %v450, %v479
      %v487 = vmul.f32 %v451, %v479
      %v488 = vmul.f32 %v452, %v479
      %v489 = vmul.f32 %v453, %v479
      %v490 = vmul.f32 %v454, %v479
      %v491 = vmul.f32 %v455, %v479
      %v492 = vmul.f32 %v456, %v479
      %v493 = vmul.f32 %v457, %v479
      %v494 = vmul.f32 %v458, %v479
      %v495 = vmul.f32 %v459, %v479
      %v496 = vmul.f32 %v460, %v479
      %v497 = vmul.f32 %v461, %v479
      %v498 = vmul.f32 %v462, %v479
      %v499 = vmul.f32 %v463, %v479
      %v500 = vmul.f32 %v464, %v479
      %v501 = vmul.f32 %v465, %v479
      %v502 = vmul.f32 %v466, %v479
      %v503 = vmul.f32 %v467, %v479
      %v504 = vmul.f32 %v468, %v479
      %v505 = vmul.f32 %v469, %v479
      %v506 = vmul.f32 %v470, %v479
      %v507 = vmul.f32 %v471, %v479
      %v508 = vmul.f32 %v472, %v479
      %v509 = vmul.f32 %v473, %v479
      %v510 = vmul.f32 %v474, %v479
      %v511 = vmul.f32 %v475, %v479
      %v512 = vmul.f32 %v476, %v479
      %v513 = vld [vmem:[%s5] sm:$0x1]
      %v515 = vperm.slane %v513, 0
      %v517 = vadd.f32 %v481, %v515
      %v518 = vadd.f32 %v482, %v515
      %v519 = vadd.f32 %v483, %v515
      %v520 = vadd.f32 %v484, %v515
      %v521 = vadd.f32 %v485, %v515
      %v522 = vadd.f32 %v486, %v515
      %v523 = vadd.f32 %v487, %v515
      %v524 = vadd.f32 %v488, %v515
      %v525 = vadd.f32 %v489, %v515
      %v526 = vadd.f32 %v490, %v515
      %v527 = vadd.f32 %v491, %v515
      %v528 = vadd.f32 %v492, %v515
      %v529 = vadd.f32 %v493, %v515
      %v530 = vadd.f32 %v494, %v515
      %v531 = vadd.f32 %v495, %v515
      %v532 = vadd.f32 %v496, %v515
      %v533 = vadd.f32 %v497, %v515
      %v534 = vadd.f32 %v498, %v515
      %v535 = vadd.f32 %v499, %v515
      %v536 = vadd.f32 %v500, %v515
      %v537 = vadd.f32 %v501, %v515
      %v538 = vadd.f32 %v502, %v515
      %v539 = vadd.f32 %v503, %v515
      %v540 = vadd.f32 %v504, %v515
      %v541 = vadd.f32 %v505, %v515
      %v542 = vadd.f32 %v506, %v515
      %v543 = vadd.f32 %v507, %v515
      %v544 = vadd.f32 %v508, %v515
      %v545 = vadd.f32 %v509, %v515
      %v546 = vadd.f32 %v510, %v515
      %v547 = vadd.f32 %v511, %v515
      %v548 = vadd.f32 %v512, %v515
      %v549 = vadd.f32 %v381, %v517
      %v550 = vadd.f32 %v382, %v518
      %v551 = vadd.f32 %v383, %v519
      %v552 = vadd.f32 %v384, %v520
      %v553 = vadd.f32 %v385, %v521
      %v554 = vadd.f32 %v386, %v522
      %v555 = vadd.f32 %v387, %v523
      %v556 = vadd.f32 %v388, %v524
      %v557 = vadd.f32 %v389, %v525
      %v558 = vadd.f32 %v390, %v526
      %v559 = vadd.f32 %v391, %v527
      %v560 = vadd.f32 %v392, %v528
      %v561 = vadd.f32 %v393, %v529
      %v562 = vadd.f32 %v394, %v530
      %v563 = vadd.f32 %v395, %v531
      %v564 = vadd.f32 %v396, %v532
      %v565 = vadd.f32 %v397, %v533
      %v566 = vadd.f32 %v398, %v534
      %v567 = vadd.f32 %v399, %v535
      %v568 = vadd.f32 %v400, %v536
      %v569 = vadd.f32 %v401, %v537
      %v570 = vadd.f32 %v402, %v538
      %v571 = vadd.f32 %v403, %v539
      %v572 = vadd.f32 %v404, %v540
      %v573 = vadd.f32 %v405, %v541
      %v574 = vadd.f32 %v406, %v542
      %v575 = vadd.f32 %v407, %v543
      %v576 = vadd.f32 %v408, %v544
      %v577 = vadd.f32 %v409, %v545
      %v578 = vadd.f32 %v410, %v546
      %v579 = vadd.f32 %v411, %v547
      %v580 = vadd.f32 %v412, %v548
      %v581 = vmax.f32 %v549, 0.0
      %v582 = vmax.f32 %v550, 0.0
      %v583 = vmax.f32 %v551, 0.0
      %v584 = vmax.f32 %v552, 0.0
      %v585 = vmax.f32 %v553, 0.0
      %v586 = vmax.f32 %v554, 0.0
      %v587 = vmax.f32 %v555, 0.0
      %v588 = vmax.f32 %v556, 0.0
      %v589 = vmax.f32 %v557, 0.0
      %v590 = vmax.f32 %v558, 0.0
      %v591 = vmax.f32 %v559, 0.0
      %v592 = vmax.f32 %v560, 0.0
      %v593 = vmax.f32 %v561, 0.0
      %v594 = vmax.f32 %v562, 0.0
      %v595 = vmax.f32 %v563, 0.0
      %v596 = vmax.f32 %v564, 0.0
      %v597 = vmax.f32 %v565, 0.0
      %v598 = vmax.f32 %v566, 0.0
      %v599 = vmax.f32 %v567, 0.0
      %v600 = vmax.f32 %v568, 0.0
      %v601 = vmax.f32 %v569, 0.0
      %v602 = vmax.f32 %v570, 0.0
      %v603 = vmax.f32 %v571, 0.0
      %v604 = vmax.f32 %v572, 0.0
      %v605 = vmax.f32 %v573, 0.0
      %v606 = vmax.f32 %v574, 0.0
      %v607 = vmax.f32 %v575, 0.0
      %v608 = vmax.f32 %v576, 0.0
      %v609 = vmax.f32 %v577, 0.0
      %v610 = vmax.f32 %v578, 0.0
      %v611 = vmax.f32 %v579, 0.0
      %v612 = vmax.f32 %v580, 0.0
      %613 = vst [vmem:[%s275] sm:$0xff] %v581
      %614 = vst [vmem:[%s275 + $0x8] sm:$0xff] %v582
      %615 = vst [vmem:[%s275 + $0x10] sm:$0xff] %v583
      %616 = vst [vmem:[%s275 + $0x18] sm:$0xff] %v584
      %617 = vst [vmem:[%s275 + $0x20] sm:$0xff] %v585
      %618 = vst [vmem:[%s275 + $0x28] sm:$0xff] %v586
      %619 = vst [vmem:[%s275 + $0x30] sm:$0xff] %v587
      %620 = vst [vmem:[%s275 + $0x38] sm:$0xff] %v588
      %621 = vst [vmem:[%s275 + $0x40] sm:$0xff] %v589
      %622 = vst [vmem:[%s275 + $0x48] sm:$0xff] %v590
      %623 = vst [vmem:[%s275 + $0x50] sm:$0xff] %v591
      %624 = vst [vmem:[%s275 + $0x58] sm:$0xff] %v592
      %625 = vst [vmem:[%s275 + $0x60] sm:$0xff] %v593
      %626 = vst [vmem:[%s275 + $0x68] sm:$0xff] %v594
      %627 = vst [vmem:[%s275 + $0x70] sm:$0xff] %v595
      %628 = vst [vmem:[%s275 + $0x78] sm:$0xff] %v596
      %629 = vst [vmem:[%s275 + $0x80] sm:$0xff] %v597
      %630 = vst [vmem:[%s275 + $0x88] sm:$0xff] %v598
      %631 = vst [vmem:[%s275 + $0x90] sm:$0xff] %v599
      %632 = vst [vmem:[%s275 + $0x98] sm:$0xff] %v600
      %633 = vst [vmem:[%s275 + $0xa0] sm:$0xff] %v601
      %634 = vst [vmem:[%s275 + $0xa8] sm:$0xff] %v602
      %635 = vst [vmem:[%s275 + $0xb0] sm:$0xff] %v603
      %636 = vst [vmem:[%s275 + $0xb8] sm:$0xff] %v604
      %637 = vst [vmem:[%s275 + $0xc0] sm:$0xff] %v605
      %638 = vst [vmem:[%s275 + $0xc8] sm:$0xff] %v606
      %639 = vst [vmem:[%s275 + $0xd0] sm:$0xff] %v607
      %640 = vst [vmem:[%s275 + $0xd8] sm:$0xff] %v608
      %641 = vst [vmem:[%s275 + $0xe0] sm:$0xff] %v609
      %642 = vst [vmem:[%s275 + $0xe8] sm:$0xff] %v610
      %643 = vst [vmem:[%s275 + $0xf0] sm:$0xff] %v611
      %644 = vst [vmem:[%s275 + $0xf8] sm:$0xff] %v612
      %s645 = smul.u32 32, %s17
      %p646 = scmp.lt.s32.totalorder %s645, 63
      %s647 = scalar_select %p646, %s645, 63
      %s648 = smul.addr %s647, 8
      %s649 = scalar_lea.vmem %s6, %s648
      // Predicated region
      $region45: #{basic_block_forward.7} parent=43 // pred_check
        %p650 = pneg %p171
      $region46: #{basic_block_forward.7} parent=43 // pred_check_branch
        %652 = sbr.rel (%p650) target = $region48
      $region47: #{basic_block_forward.7} parent=43 // pred_region
        %s653 = smul.u32 32, %s17
      $region48: #{basic_block_forward.7} parent=43 // pred_fallthru
        _
    $region44: #{basic_block_forward.7} parent=5 // pred_fallthru
      _
    %p654 = scmp.le.s32.totalorder 2, %s12
    // Predicated region
    $region49: #{basic_block_forward.7} parent=5 // pred_check
      %p655 = pneg %p654
    $region50: #{basic_block_forward.7} parent=5 // pred_check_branch
      %657 = sbr.rel (%p655) target = $region52
    $region51: #{basic_block_forward.7} parent=5 // pred_region
      %s658 = ssub.s32 %s12, 2
      // Predicated region
      $region53: #{basic_block_forward.7} parent=51 // pred_check
        %p659 = pneg %p177
      $region54: #{basic_block_forward.7} parent=51 // pred_check_branch
        %661 = sbr.rel (%p659) target = $region56
      $region55: #{basic_block_forward.7} parent=51 // pred_region
        %s662 = smul.u32 32, %s18
        %p663 = scmp.lt.s32.totalorder %s662, 63
        %s664 = scalar_select %p663, %s662, 63
        %s665 = smul.addr %s664, 8
        %s666 = scalar_lea.vmem %s6, %s665
      $region56: #{basic_block_forward.7} parent=51 // pred_fallthru
        _
    $region52: #{basic_block_forward.7} parent=5 // pred_fallthru
      _
  $region6: #{basic_block_forward.7} parent=0 // loop_footer
    %s16 = sadd.s32 1, %s12
  $region7: #{basic_block_forward.7} parent=0 // loop_footer_branch
    %11 = sbr.rel target = $region3
  $region8: #{basic_block_forward.7} parent=0 // loop_exit
    _

// kernel: basic_block_forward.4
$region0: #{basic_block_forward.4}
  #allocation0 [shape = 'u32[]', space=smem, size = 0x4, offset = 0x4, fixed_abs, tag = 'smem constant byte address 0x4 - core index']
  #allocation1 [shape = 'u32[72,128]{1,0:T(1,128)}', space=vmem, size = 0x9000, scoped, tag = 'internal scratch']
  #allocation2 [shape = 'bf16[1,18,18,128]{3,2,1,0:T(8,128)(2,1)}', space=vmem, size = 0x1b000, scoped, tag = 'scratch operand']
  %s0 = inlined_call_operand.vmem [shape: f32[2,16,16,128], index: 0, kind: input, shape index: {}]
  %s1 = inlined_call_operand.vmem [shape: bf16[1152,128], index: 1, kind: input, shape index: {}]
  %s2 = inlined_call_operand.vmem [shape: f32[1,128], index: 2, kind: input, shape index: {}]
  %s3 = inlined_call_operand.vmem [shape: f32[1,128], index: 3, kind: input, shape index: {}]
  %s4 = inlined_call_operand.vmem [shape: bf16[2,16,16,128], index: 4, kind: output, shape index: {0}]
  %s5 = inlined_call_operand.vmem [shape: f32[2,2,128], index: 5, kind: output, shape index: {1}]
  %6 = xla_tuple %s4, %s5
  %s7 = sld [smem:[#allocation0]]
  $region57: #{basic_block_forward.4} parent=0
    _
  %s9 = ssub.s32 1, %s7
  %s10 = scalar_select 0, %s9, %s7
  loop: start=0, step=1, limit=4
  $region2: #{basic_block_forward.4} parent=0 // loop_pre_header
    _
  $region3: #{basic_block_forward.4} parent=0 // loop_header
    %s12 = sphi 0, %s16
    %p13 = scmp.ge.s32.totalorder %s12, 4
    %s22 = sphi 0, %s24
    %s25 = sphi 0, %s22
    %s26 = sphi 0, %s25
    %s42 = sphi 0, %s26
    %s46 = sphi 0, %s46
    %s48 = sphi 0, %s46
    %s49 = sphi 0, %s48
    %s63 = sphi 0, %s49
    %s67 = sphi 0, %s67
    %s69 = sphi 0, %s67
    %s70 = sphi 0, %s69
    %s84 = sphi 0, %s70
    %s88 = sphi 0, %s88
    %s90 = sphi 0, %s88
    %s91 = sphi 0, %s90
    %s105 = sphi 0, %s91
    %s111 = sphi 0, %s113
    %s114 = sphi 0, %s111
    %s115 = sphi 0, %s114
    %s131 = sphi 0, %s115
    %s137 = sphi 0, %s139
    %s140 = sphi 0, %s137
    %s141 = sphi 0, %s140
    %s157 = sphi 0, %s141
  $region4: #{basic_block_forward.4} parent=0 // loop_header_branch
    %15 = sbr.rel (%p13) target = $region8
  $region5: #{basic_block_forward.4} parent=0 // loop_body
    %s17 = ssub.s32 %s12, 1
    %s18 = ssub.s32 %s12, 2
    %s19 = sadd.s32 %s12, 1
    %s20 = ssub.s32 %s12, %s19
    %p21 = scmp.eq.s32.totalorder %s20, 0
    %s23 = sadd.s32 %s22, 1
    %s24 = scalar_select %p21, %s22, %s23
    %p27 = pneg %p21
    %p28 = scmp.eq.s32.totalorder %s12, 1
    %p29 = por %p27, %p28
    %p30 = scmp.ne.s32.totalorder %s22, %s25
    %p31 = scmp.eq.s32.totalorder %s12, 0
    %p32 = por %p30, %p31
    %p33 = scmp.ne.s32.totalorder %s22, %s25
    %p34 = scmp.eq.s32.totalorder %s17, 1
    %p35 = por %p33, %p34
    %p36 = scmp.ne.s32.totalorder %s25, %s26
    %p37 = scmp.eq.s32.totalorder %s17, 0
    %p38 = por %p36, %p37
    %p39 = scmp.ne.s32.totalorder %s25, %s26
    %p40 = scmp.eq.s32.totalorder %s18, 1
    %p41 = por %p39, %p40
    %p43 = scmp.ne.s32.totalorder %s26, %s42
    %p44 = scmp.eq.s32.totalorder %s18, 0
    %p45 = por %p43, %p44
    %s47 = sadd.s32 %s46, 1
    %p50 = scmp.eq.s32.totalorder %s12, 1
    %p51 = scmp.ne.s32.totalorder %s46, %s48
    %p52 = scmp.eq.s32.totalorder %s12, 0
    %p53 = por %p51, %p52
    %p54 = scmp.ne.s32.totalorder %s46, %s48
    %p55 = scmp.eq.s32.totalorder %s17, 1
    %p56 = por %p54, %p55
    %p57 = scmp.ne.s32.totalorder %s48, %s49
    %p58 = scmp.eq.s32.totalorder %s17, 0
    %p59 = por %p57, %p58
    %p60 = scmp.ne.s32.totalorder %s48, %s49
    %p61 = scmp.eq.s32.totalorder %s18, 1
    %p62 = por %p60, %p61
    %p64 = scmp.ne.s32.totalorder %s49, %s63
    %p65 = scmp.eq.s32.totalorder %s18, 0
    %p66 = por %p64, %p65
    %s68 = sadd.s32 %s67, 1
    %p71 = scmp.eq.s32.totalorder %s12, 1
    %p72 = scmp.ne.s32.totalorder %s67, %s69
    %p73 = scmp.eq.s32.totalorder %s12, 0
    %p74 = por %p72, %p73
    %p75 = scmp.ne.s32.totalorder %s67, %s69
    %p76 = scmp.eq.s32.totalorder %s17, 1
    %p77 = por %p75, %p76
    %p78 = scmp.ne.s32.totalorder %s69, %s70
    %p79 = scmp.eq.s32.totalorder %s17, 0
    %p80 = por %p78, %p79
    %p81 = scmp.ne.s32.totalorder %s69, %s70
    %p82 = scmp.eq.s32.totalorder %s18, 1
    %p83 = por %p81, %p82
    %p85 = scmp.ne.s32.totalorder %s70, %s84
    %p86 = scmp.eq.s32.totalorder %s18, 0
    %p87 = por %p85, %p86
    %s89 = sadd.s32 %s88, 1
    %p92 = scmp.eq.s32.totalorder %s12, 1
    %p93 = scmp.ne.s32.totalorder %s88, %s90
    %p94 = scmp.eq.s32.totalorder %s12, 0
    %p95 = por %p93, %p94
    %p96 = scmp.ne.s32.totalorder %s88, %s90
    %p97 = scmp.eq.s32.totalorder %s17, 1
    %p98 = por %p96, %p97
    %p99 = scmp.ne.s32.totalorder %s90, %s91
    %p100 = scmp.eq.s32.totalorder %s17, 0
    %p101 = por %p99, %p100
    %p102 = scmp.ne.s32.totalorder %s90, %s91
    %p103 = scmp.eq.s32.totalorder %s18, 1
    %p104 = por %p102, %p103
    %p106 = scmp.ne.s32.totalorder %s91, %s105
    %p107 = scmp.eq.s32.totalorder %s18, 0
    %p108 = por %p106, %p107
    %s109 = ssub.s32 %s12, %s19
    %p110 = scmp.eq.s32.totalorder %s109, 0
    %s112 = sadd.s32 %s111, 1
    %s113 = scalar_select %p110, %s111, %s112
    %p116 = pneg %p110
    %p117 = scmp.eq.s32.totalorder %s12, 1
    %p118 = por %p116, %p117
    %p119 = scmp.ne.s32.totalorder %s111, %s114
    %p120 = scmp.eq.s32.totalorder %s12, 0
    %p121 = por %p119, %p120
    %p122 = scmp.ne.s32.totalorder %s111, %s114
    %p123 = scmp.eq.s32.totalorder %s17, 1
    %p124 = por %p122, %p123
    %p125 = scmp.ne.s32.totalorder %s114, %s115
    %p126 = scmp.eq.s32.totalorder %s17, 0
    %p127 = por %p125, %p126
    %p128 = scmp.ne.s32.totalorder %s114, %s115
    %p129 = scmp.eq.s32.totalorder %s18, 1
    %p130 = por %p128, %p129
    %p132 = scmp.ne.s32.totalorder %s115, %s131
    %p133 = scmp.eq.s32.totalorder %s18, 0
    %p134 = por %p132, %p133
    %s135 = ssub.s32 %s12, %s19
    %p136 = scmp.eq.s32.totalorder %s135, 0
    %s138 = sadd.s32 %s137, 1
    %s139 = scalar_select %p136, %s137, %s138
    %p142 = pneg %p136
    %p143 = scmp.eq.s32.totalorder %s12, 1
    %p144 = por %p142, %p143
    %p145 = scmp.ne.s32.totalorder %s137, %s140
    %p146 = scmp.eq.s32.totalorder %s12, 0
    %p147 = por %p145, %p146
    %p148 = scmp.ne.s32.totalorder %s137, %s140
    %p149 = scmp.eq.s32.totalorder %s17, 1
    %p150 = por %p148, %p149
    %p151 = scmp.ne.s32.totalorder %s140, %s141
    %p152 = scmp.eq.s32.totalorder %s17, 0
    %p153 = por %p151, %p152
    %p154 = scmp.ne.s32.totalorder %s140, %s141
    %p155 = scmp.eq.s32.totalorder %s18, 1
    %p156 = por %p154, %p155
    %p158 = scmp.ne.s32.totalorder %s141, %s157
    %p159 = scmp.eq.s32.totalorder %s18, 0
    %p160 = por %p158, %p159
    %p161 = scmp.le.s32.totalorder 1, %s12
    %p162 = scmp.lt.s32.totalorder %s12, 3
    %p163 = pnand %p161, %p162
    %p164 = pneg %p163
    // Predicated region
    $region9: #{basic_block_forward.4} parent=5 // pred_check
      _
    $region10: #{basic_block_forward.4} parent=5 // pred_check_branch
      %166 = sbr.rel (%p163) target = $region12
    $region11: #{basic_block_forward.4} parent=5 // pred_region
      %s167 = ssub.s32 %s12, 1
      // Predicated region
      $region13: #{basic_block_forward.4} parent=11 // pred_check
        %p168 = pneg %p59
      $region14: #{basic_block_forward.4} parent=11 // pred_check_branch
        %170 = sbr.rel (%p168) target = $region16
      $region15: #{basic_block_forward.4} parent=11 // pred_region
        _
      $region16: #{basic_block_forward.4} parent=11 // pred_fallthru
        _
      // Predicated region
      $region17: #{basic_block_forward.4} parent=11 // pred_check
        %p171 = pneg %p80
      $region18: #{basic_block_forward.4} parent=11 // pred_check_branch
        %173 = sbr.rel (%p171) target = $region20
      $region19: #{basic_block_forward.4} parent=11 // pred_region
        _
      $region20: #{basic_block_forward.4} parent=11 // pred_fallthru
        _
      // Predicated region
      $region21: #{basic_block_forward.4} parent=11 // pred_check
        %p174 = pneg %p101
      $region22: #{basic_block_forward.4} parent=11 // pred_check_branch
        %176 = sbr.rel (%p174) target = $region24
      $region23: #{basic_block_forward.4} parent=11 // pred_region
        _
      $region24: #{basic_block_forward.4} parent=11 // pred_fallthru
        _
    $region12: #{basic_block_forward.4} parent=5 // pred_fallthru
      _
    %p177 = scmp.lt.s32.totalorder %s12, 2
    // Predicated region
    $region25: #{basic_block_forward.4} parent=5 // pred_check
      %p178 = pneg %p177
    $region26: #{basic_block_forward.4} parent=5 // pred_check_branch
      %180 = sbr.rel (%p178) target = $region28
    $region27: #{basic_block_forward.4} parent=5 // pred_region
      // Predicated region
      $region29: #{basic_block_forward.4} parent=27 // pred_check
        %p181 = pneg %p32
      $region30: #{basic_block_forward.4} parent=27 // pred_check_branch
        %183 = sbr.rel (%p181) target = $region32
      $region31: #{basic_block_forward.4} parent=27 // pred_region
        %p184 = scmp.lt.s32.totalorder %s12, 1
        %s185 = scalar_select %p184, %s12, 1
        %s186 = smul.addr %s185, 32
        %s187 = smul.addr %s186, 8
        %s188 = scalar_lea.vmem %s0, %s187
      $region32: #{basic_block_forward.4} parent=27 // pred_fallthru
        _
    $region28: #{basic_block_forward.4} parent=5 // pred_fallthru
      _
    %p189 = scmp.le.s32.totalorder 1, %s12
    %p190 = scmp.lt.s32.totalorder %s12, 3
    %p191 = pnand %p189, %p190
    %p192 = pneg %p191
    // Predicated region
    $region33: #{basic_block_forward.4} parent=5 // pred_check
      _
    $region34: #{basic_block_forward.4} parent=5 // pred_check_branch
      %194 = sbr.rel (%p191) target = $region36
    $region35: #{basic_block_forward.4} parent=5 // pred_region
      %s195 = ssub.s32 %s12, 1
      %p196 = scmp.lt.s32.totalorder %s17, 1
      %s197 = scalar_select %p196, %s17, 1
      %s198 = smul.addr %s197, 32
      %s199 = smul.addr %s198, 8
      %s200 = scalar_lea.vmem %s0, %s199
      %p201 = pneg %p38
      %p202 = pneg %p35
      %p203 = pneg %p59
      %p204 = pneg %p56
      %p205 = pneg %p80
      %p206 = pneg %p77
      %p207 = pneg %p101
      %p208 = pneg %p98
      %p209 = pneg %p127
      %p210 = pneg %p124
      %p211 = scmp.lt.s32.totalorder %s17, 1
      %s212 = scalar_select %p211, %s17, 1
      %s213 = smul.addr %s212, 32
      %s214 = smul.addr %s213, 4
      %s215 = scalar_lea.vmem %s4, %s214
      %p216 = pneg %p153
      %p217 = pneg %p150
      %p218 = scmp.lt.s32.totalorder %s17, 1
      %s219 = scalar_select %p218, %s17, 1
      %s220 = smul.addr %s219, 2
      %s221 = scalar_lea.vmem %s5, %s220
      %p222 = scmp.lt.s32.totalorder %s17, 1
      %s223 = scalar_select %p222, %s17, 1
      %s224 = smul.addr %s223, 32
      %s225 = smul.addr %s224, 8
      %s226 = scalar_lea.vmem %s0, %s225
      %p227 = scmp.lt.s32.totalorder %s17, 1
      %s228 = scalar_select %p227, %s17, 1
      %s229 = smul.addr %s228, 32
      %s230 = smul.addr %s229, 4
      %s231 = scalar_lea.vmem %s4, %s230
      %p232 = scmp.lt.s32.totalorder %s17, 1
      %s233 = scalar_select %p232, %s17, 1
      %s234 = smul.addr %s233, 2
      %s235 = scalar_lea.vmem %s5, %s234
      %237 = vst [vmem:[#allocation2] sm:$0xf] 0
      %238 = vst [vmem:[#allocation2 + $0x4] sm:$0xf] 0
      %239 = vst [vmem:[#allocation2 + $0x8] sm:$0x1] 0
      %240 = vst [vmem:[#allocation2 + $0xc] sm:$0xf] 0
      %241 = vst [vmem:[#allocation2 + $0x10] sm:$0xf] 0
      %242 = vst [vmem:[#allocation2 + $0x14] sm:$0x1] 0
      %243 = vst [vmem:[#allocation2 + $0x18] sm:$0xf] 0
      %244 = vst [vmem:[#allocation2 + $0x1c] sm:$0xf] 0
      %245 = vst [vmem:[#allocation2 + $0x20] sm:$0x1] 0
      %246 = vst [vmem:[#allocation2 + $0x24] sm:$0xf] 0
      %247 = vst [vmem:[#allocation2 + $0x28] sm:$0xf] 0
      %248 = vst [vmem:[#allocation2 + $0x2c] sm:$0x1] 0
      %249 = vst [vmem:[#allocation2 + $0x30] sm:$0xf] 0
      %250 = vst [vmem:[#allocation2 + $0x34] sm:$0xf] 0
      %251 = vst [vmem:[#allocation2 + $0x38] sm:$0x1] 0
      %252 = vst [vmem:[#allocation2 + $0x3c] sm:$0xf] 0
      %253 = vst [vmem:[#allocation2 + $0x40] sm:$0xf] 0
      %254 = vst [vmem:[#allocation2 + $0x44] sm:$0x1] 0
      %255 = vst [vmem:[#allocation2 + $0x48] sm:$0xf] 0
      %256 = vst [vmem:[#allocation2 + $0x4c] sm:$0xf] 0
      %257 = vst [vmem:[#allocation2 + $0x50] sm:$0x1] 0
      %258 = vst [vmem:[#allocation2 + $0x54] sm:$0xf] 0
      %259 = vst [vmem:[#allocation2 + $0x58] sm:$0xf] 0
      %260 = vst [vmem:[#allocation2 + $0x5c] sm:$0x1] 0
      %261 = vst [vmem:[#allocation2 + $0x60] sm:$0xf] 0
      %262 = vst [vmem:[#allocation2 + $0x64] sm:$0xf] 0
      %263 = vst [vmem:[#allocation2 + $0x68] sm:$0x1] 0
      %264 = vst [vmem:[#allocation2 + $0x6c] sm:$0xf] 0
      %265 = vst [vmem:[#allocation2 + $0x70] sm:$0xf] 0
      %266 = vst [vmem:[#allocation2 + $0x74] sm:$0x1] 0
      %267 = vst [vmem:[#allocation2 + $0x78] sm:$0xf] 0
      %268 = vst [vmem:[#allocation2 + $0x7c] sm:$0xf] 0
      %269 = vst [vmem:[#allocation2 + $0x80] sm:$0x1] 0
      %270 = vst [vmem:[#allocation2 + $0x84] sm:$0xf] 0
      %271 = vst [vmem:[#allocation2 + $0x88] sm:$0xf] 0
      %272 = vst [vmem:[#allocation2 + $0x8c] sm:$0x1] 0
      %273 = vst [vmem:[#allocation2 + $0x90] sm:$0xf] 0
      %274 = vst [vmem:[#allocation2 + $0x94] sm:$0xf] 0
      %275 = vst [vmem:[#allocation2 + $0x98] sm:$0x1] 0
      %276 = vst [vmem:[#allocation2 + $0x9c] sm:$0xf] 0
      %277 = vst [vmem:[#allocation2 + $0xa0] sm:$0xf] 0
      %278 = vst [vmem:[#allocation2 + $0xa4] sm:$0x1] 0
      %279 = vst [vmem:[#allocation2 + $0xa8] sm:$0xf] 0
      %280 = vst [vmem:[#allocation2 + $0xac] sm:$0xf] 0
      %281 = vst [vmem:[#allocation2 + $0xb0] sm:$0x1] 0
      %282 = vst [vmem:[#allocation2 + $0xb4] sm:$0xf] 0
      %283 = vst [vmem:[#allocation2 + $0xb8] sm:$0xf] 0
      %284 = vst [vmem:[#allocation2 + $0xbc] sm:$0x1] 0
      %285 = vst [vmem:[#allocation2 + $0xc0] sm:$0xf] 0
      %286 = vst [vmem:[#allocation2 + $0xc4] sm:$0xf] 0
      %287 = vst [vmem:[#allocation2 + $0xc8] sm:$0x1] 0
      %288 = vst [vmem:[#allocation2 + $0xcc] sm:$0xf] 0
      %289 = vst [vmem:[#allocation2 + $0xd0] sm:$0xf] 0
      %290 = vst [vmem:[#allocation2 + $0xd4] sm:$0x1] 0
      %v291 = vld [vmem:[%s226] sm:$0xff]
      %v292 = vld [vmem:[%s226 + $0x8] sm:$0xff]
      %v293 = vld [vmem:[%s226 + $0x10] sm:$0xff]
      %v294 = vld [vmem:[%s226 + $0x18] sm:$0xff]
      %v295 = vld [vmem:[%s226 + $0x20] sm:$0xff]
      %v296 = vld [vmem:[%s226 + $0x28] sm:$0xff]
      %v297 = vld [vmem:[%s226 + $0x30] sm:$0xff]
      %v298 = vld [vmem:[%s226 + $0x38] sm:$0xff]
      %v299 = vld [vmem:[%s226 + $0x40] sm:$0xff]
      %v300 = vld [vmem:[%s226 + $0x48] sm:$0xff]
      %v301 = vld [vmem:[%s226 + $0x50] sm:$0xff]
      %v302 = vld [vmem:[%s226 + $0x58] sm:$0xff]
      %v303 = vld [vmem:[%s226 + $0x60] sm:$0xff]
      %v304 = vld [vmem:[%s226 + $0x68] sm:$0xff]
      %v305 = vld [vmem:[%s226 + $0x70] sm:$0xff]
      %v306 = vld [vmem:[%s226 + $0x78] sm:$0xff]
      %v307 = vld [vmem:[%s226 + $0x80] sm:$0xff]
      %v308 = vld [vmem:[%s226 + $0x88] sm:$0xff]
      %v309 = vld [vmem:[%s226 + $0x90] sm:$0xff]
      %v310 = vld [vmem:[%s226 + $0x98] sm:$0xff]
      %v311 = vld [vmem:[%s226 + $0xa0] sm:$0xff]
      %v312 = vld [vmem:[%s226 + $0xa8] sm:$0xff]
      %v313 = vld [vmem:[%s226 + $0xb0] sm:$0xff]
      %v314 = vld [vmem:[%s226 + $0xb8] sm:$0xff]
      %v315 = vld [vmem:[%s226 + $0xc0] sm:$0xff]
      %v316 = vld [vmem:[%s226 + $0xc8] sm:$0xff]
      %v317 = vld [vmem:[%s226 + $0xd0] sm:$0xff]
      %v318 = vld [vmem:[%s226 + $0xd8] sm:$0xff]
      %v319 = vld [vmem:[%s226 + $0xe0] sm:$0xff]
      %v320 = vld [vmem:[%s226 + $0xe8] sm:$0xff]
      %v321 = vld [vmem:[%s226 + $0xf0] sm:$0xff]
      %v322 = vld [vmem:[%s226 + $0xf8] sm:$0xff]
      %v323 = vpack.c.bf16 %v291, %v291
      %v324 = vpack.c.bf16 %v292, %v292
      %v325 = vpack.c.bf16 %v293, %v293
      %v326 = vpack.c.bf16 %v294, %v294
      %v327 = vpack.c.bf16 %v295, %v295
      %v328 = vpack.c.bf16 %v296, %v296
      %v329 = vpack.c.bf16 %v297, %v297
      %v330 = vpack.c.bf16 %v298, %v298
      %v331 = vpack.c.bf16 %v299, %v299
      %v332 = vpack.c.bf16 %v300, %v300
      %v333 = vpack.c.bf16 %v301, %v301
      %v334 = vpack.c.bf16 %v302, %v302
      %v335 = vpack.c.bf16 %v303, %v303
      %v336 = vpack.c.bf16 %v304, %v304
      %v337 = vpack.c.bf16 %v305, %v305
      %v338 = vpack.c.bf16 %v306, %v306
      %v339 = vpack.c.bf16 %v307, %v307
      %v340 = vpack.c.bf16 %v308, %v308
      %v341 = vpack.c.bf16 %v309, %v309
      %v342 = vpack.c.bf16 %v310, %v310
      %v343 = vpack.c.bf16 %v311, %v311
      %v344 = vpack.c.bf16 %v312, %v312
      %v345 = vpack.c.bf16 %v313, %v313
      %v346 = vpack.c.bf16 %v314, %v314
      %v347 = vpack.c.bf16 %v315, %v315
      %v348 = vpack.c.bf16 %v316, %v316
      %v349 = vpack.c.bf16 %v317, %v317
      %v350 = vpack.c.bf16 %v318, %v318
      %v351 = vpack.c.bf16 %v319, %v319
      %v352 = vpack.c.bf16 %v320, %v320
      %v353 = vpack.c.bf16 %v321, %v321
      %v354 = vpack.c.bf16 %v322, %v322
      %vm355 = vsmask.f32 256
      %vm356 = vsmask.f32 4368
      %vm357 = vmor %vm355, %vm356
      %v359 = vshrl.u32 %v323, 16
      %v361 = vrot.slane %v359, 7
      %v362 = vshll.u32 %v323, 16
      %v364 = vor.u32 %v361, %v362
      %v365 = vrot.slane %v361, 4
      %v367 = vshrl.u32 %v324, 16
      %v369 = vrot.slane %v367, 7
      %v370 = vshll.u32 %v324, 16
      %v372 = vor.u32 %v369, %v370
      %v373 = vsel %vm357, %v365, %v372
      %v374 = vrot.slane %v369, 4
      %v376 = vshrl.u32 %v325, 16
      %v378 = vrot.slane %v376, 7
      %v379 = vshll.u32 %v325, 16
      %v381 = vor.u32 %v378, %v379
      %v382 = vrot.slane %v378, 4
      %v384 = vshrl.u32 %v326, 16
      %v386 = vrot.slane %v384, 7
      %v387 = vshll.u32 %v326, 16
      %v389 = vor.u32 %v386, %v387
      %v390 = vsel %vm357, %v382, %v389
      %v391 = vrot.slane %v386, 4
      %v393 = vshrl.u32 %v327, 16
      %v395 = vrot.slane %v393, 7
      %v396 = vshll.u32 %v327, 16
      %v398 = vor.u32 %v395, %v396
      %v399 = vrot.slane %v395, 4
      %v401 = vshrl.u32 %v328, 16
      %v403 = vrot.slane %v401, 7
      %v404 = vshll.u32 %v328, 16
      %v406 = vor.u32 %v403, %v404
      %v407 = vsel %vm357, %v399, %v406
      %v408 = vrot.slane %v403, 4
      %v410 = vshrl.u32 %v329, 16
      %v412 = vrot.slane %v410, 7
      %v413 = vshll.u32 %v329, 16
      %v415 = vor.u32 %v412, %v413
      %v416 = vrot.slane %v412, 4
      %v418 = vshrl.u32 %v330, 16
      %v420 = vrot.slane %v418, 7
      %v421 = vshll.u32 %v330, 16
      %v423 = vor.u32 %v420, %v421
      %v424 = vsel %vm357, %v416, %v423
      %v425 = vrot.slane %v420, 4
      %v427 = vshrl.u32 %v331, 16
      %v429 = vrot.slane %v427, 7
      %v430 = vshll.u32 %v331, 16
      %v432 = vor.u32 %v429, %v430
      %v433 = vrot.slane %v429, 4
      %v435 = vshrl.u32 %v332, 16
      %v437 = vrot.slane %v435, 7
      %v438 = vshll.u32 %v332, 16
      %v440 = vor.u32 %v437, %v438
      %v441 = vsel %vm357, %v433, %v440
      %v442 = vrot.slane %v437, 4
      %v444 = vshrl.u32 %v333, 16
      %v446 = vrot.slane %v444, 7
      %v447 = vshll.u32 %v333, 16
      %v449 = vor.u32 %v446, %v447
      %v450 = vrot.slane %v446, 4
      %v452 = vshrl.u32 %v334, 16
      %v454 = vrot.slane %v452, 7
      %v455 = vshll.u32 %v334, 16
      %v457 = vor.u32 %v454, %v455
      %v458 = vsel %vm357, %v450, %v457
      %v459 = vrot.slane %v454, 4
      %v461 = vshrl.u32 %v335, 16
      %v463 = vrot.slane %v461, 7
      %v464 = vshll.u32 %v335, 16
      %v466 = vor.u32 %v463, %v464
      %v467 = vrot.slane %v463, 4
      %v469 = vshrl.u32 %v336, 16
      %v471 = vrot.slane %v469, 7
      %v472 = vshll.u32 %v336, 16
      %v474 = vor.u32 %v471, %v472
      %v475 = vsel %vm357, %v467, %v474
      %v476 = vrot.slane %v471, 4
      %v478 = vshrl.u32 %v337, 16
      %v480 = vrot.slane %v478, 7
      %v481 = vshll.u32 %v337, 16
      %v483 = vor.u32 %v480, %v481
      %v484 = vrot.slane %v480, 4
      %v486 = vshrl.u32 %v338, 16
      %v488 = vrot.slane %v486, 7
      %v489 = vshll.u32 %v338, 16
      %v491 = vor.u32 %v488, %v489
      %v492 = vsel %vm357, %v484, %v491
      %v493 = vrot.slane %v488, 4
      %v495 = vshrl.u32 %v339, 16
      %v497 = vrot.slane %v495, 7
      %v498 = vshll.u32 %v339, 16
      %v500 = vor.u32 %v497, %v498
      %v501 = vrot.slane %v497, 4
      %v503 = vshrl.u32 %v340, 16
      %v505 = vrot.slane %v503, 7
      %v506 = vshll.u32 %v340, 16
      %v508 = vor.u32 %v505, %v506
      %v509 = vsel %vm357, %v501, %v508
      %v510 = vrot.slane %v505, 4
      %v512 = vshrl.u32 %v341, 16
      %v514 = vrot.slane %v512, 7
      %v515 = vshll.u32 %v341, 16
      %v517 = vor.u32 %v514, %v515
      %v518 = vrot.slane %v514, 4
      %v520 = vshrl.u32 %v342, 16
      %v522 = vrot.slane %v520, 7
      %v523 = vshll.u32 %v342, 16
      %v525 = vor.u32 %v522, %v523
      %v526 = vsel %vm357, %v518, %v525
      %v527 = vrot.slane %v522, 4
      %v529 = vshrl.u32 %v343, 16
      %v531 = vrot.slane %v529, 7
      %v532 = vshll.u32 %v343, 16
      %v534 = vor.u32 %v531, %v532
      %v535 = vrot.slane %v531, 4
      %v537 = vshrl.u32 %v344, 16
      %v539 = vrot.slane %v537, 7
      %v540 = vshll.u32 %v344, 16
      %v542 = vor.u32 %v539, %v540
      %v543 = vsel %vm357, %v535, %v542
      %v544 = vrot.slane %v539, 4
      %v546 = vshrl.u32 %v345, 16
      %v548 = vrot.slane %v546, 7
      %v549 = vshll.u32 %v345, 16
      %v551 = vor.u32 %v548, %v549
      %v552 = vrot.slane %v548, 4
      %v554 = vshrl.u32 %v346, 16
      %v556 = vrot.slane %v554, 7
      %v557 = vshll.u32 %v346, 16
      %v559 = vor.u32 %v556, %v557
      %v560 = vsel %vm357, %v552, %v559
      %v561 = vrot.slane %v556, 4
      %v563 = vshrl.u32 %v347, 16
      %v565 = vrot.slane %v563, 7
      %v566 = vshll.u32 %v347, 16
      %v568 = vor.u32 %v565, %v566
      %v569 = vrot.slane %v565, 4
      %v571 = vshrl.u32 %v348, 16
      %v573 = vrot.slane %v571, 7
      %v574 = vshll.u32 %v348, 16
      %v576 = vor.u32 %v573, %v574
      %v577 = vsel %vm357, %v569, %v576
      %v578 = vrot.slane %v573, 4
      %v580 = vshrl.u32 %v349, 16
      %v582 = vrot.slane %v580, 7
      %v583 = vshll.u32 %v349, 16
      %v585 = vor.u32 %v582, %v583
      %v586 = vrot.slane %v582, 4
      %v588 = vshrl.u32 %v350, 16
      %v590 = vrot.slane %v588, 7
      %v591 = vshll.u32 %v350, 16
      %v593 = vor.u32 %v590, %v591
      %v594 = vsel %vm357, %v586, %v593
      %v595 = vrot.slane %v590, 4
      %v597 = vshrl.u32 %v351, 16
      %v599 = vrot.slane %v597, 7
      %v600 = vshll.u32 %v351, 16
      %v602 = vor.u32 %v599, %v600
      %v603 = vrot.slane %v599, 4
      %v605 = vshrl.u32 %v352, 16
      %v607 = vrot.slane %v605, 7
      %v608 = vshll.u32 %v352, 16
      %v610 = vor.u32 %v607, %v608
      %v611 = vsel %vm357, %v603, %v610
      %v612 = vrot.slane %v607, 4
      %v614 = vshrl.u32 %v353, 16
      %v616 = vrot.slane %v614, 7
      %v617 = vshll.u32 %v353, 16
      %v619 = vor.u32 %v616, %v617
      %v620 = vrot.slane %v616, 4
      %v622 = vshrl.u32 %v354, 16
      %v624 = vrot.slane %v622, 7
      %v625 = vshll.u32 %v354, 16
      %v627 = vor.u32 %v624, %v625
      %v628 = vsel %vm357, %v620, %v627
      %v629 = vrot.slane %v624, 4
      %s678 = scalar_lea.vmem [#allocation2], 12
      %vm679 = vcmask 1043456
      %vm680 = vsmask.f32 7938
      %vm681 = vmand %vm679, %vm680
      %v682 = vld [vmem:[%s678] sm:$0xf]
      %v683 = vsel %vm681, %v364, %v682
      %684 = vst [vmem:[%s678] sm:$0xf] %v683
      %685 = vst [vmem:[%s678 + $0x4] sm:$0xf] %v373
      %vm686 = vcmask 1040384
      %vm687 = vmand %vm686, %vm355
      %v688 = vld [vmem:[%s678 + $0x8] sm:$0x1]
      %v689 = vsel %vm687, %v374, %v688
      %690 = vst [vmem:[%s678 + $0x8] sm:$0x1] %v689
      %v691 = vld [vmem:[%s678 + $0xc] sm:$0xf]
      %v692 = vsel %vm681, %v381, %v691
      %693 = vst [vmem:[%s678 + $0xc] sm:$0xf] %v692
      %694 = vst [vmem:[%s678 + $0x10] sm:$0xf] %v390
      %v695 = vld [vmem:[%s678 + $0x14] sm:$0x1]
      %v696 = vsel %vm687, %v391, %v695
      %697 = vst [vmem:[%s678 + $0x14] sm:$0x1] %v696
      %v698 = vld [vmem:[%s678 + $0x18] sm:$0xf]
      %v699 = vsel %vm681, %v398, %v698
      %700 = vst [vmem:[%s678 + $0x18] sm:$0xf] %v699
      %701 = vst [vmem:[%s678 + $0x1c] sm:$0xf] %v407
      %v702 = vld [vmem:[%s678 + $0x20] sm:$0x1]
      %v703 = vsel %vm687, %v408, %v702
      %704 = vst [vmem:[%s678 + $0x20] sm:$0x1] %v703
      %v705 = vld [vmem:[%s678 + $0x24] sm:$0xf]
      %v706 = vsel %vm681, %v415, %v705
      %707 = vst [vmem:[%s678 + $0x24] sm:$0xf] %v706
      %708 = vst [vmem:[%s678 + $0x28] sm:$0xf] %v424
      %v709 = vld [vmem:[%s678 + $0x2c] sm:$0x1]
      %v710 = vsel %vm687, %v425, %v709
      %711 = vst [vmem:[%s678 + $0x2c] sm:$0x1] %v710
      %v712 = vld [vmem:[%s678 + $0x30] sm:$0xf]
      %v713 = vsel %vm681, %v432, %v712
      %714 = vst [vmem:[%s678 + $0x30] sm:$0xf] %v713
      %715 = vst [vmem:[%s678 + $0x34] sm:$0xf] %v441
      %v716 = vld [vmem:[%s678 + $0x38] sm:$0x1]
      %v717 = vsel %vm687, %v442, %v716
      %718 = vst [vmem:[%s678 + $0x38] sm:$0x1] %v717
      %v719 = vld [vmem:[%s678 + $0x3c] sm:$0xf]
      %v720 = vsel %vm681, %v449, %v719
      %721 = vst [vmem:[%s678 + $0x3c] sm:$0xf] %v720
      %722 = vst [vmem:[%s678 + $0x40] sm:$0xf] %v458
      %v723 = vld [vmem:[%s678 + $0x44] sm:$0x1]
      %v724 = vsel %vm687, %v459, %v723
      %725 = vst [vmem:[%s678 + $0x44] sm:$0x1] %v724
      %v726 = vld [vmem:[%s678 + $0x48] sm:$0xf]
      %v727 = vsel %vm681, %v466, %v726
      %728 = vst [vmem:[%s678 + $0x48] sm:$0xf] %v727
      %729 = vst [vmem:[%s678 + $0x4c] sm:$0xf] %v475
      %v730 = vld [vmem:[%s678 + $0x50] sm:$0x1]
      %v731 = vsel %vm687, %v476, %v730
      %732 = vst [vmem:[%s678 + $0x50] sm:$0x1] %v731
      %v733 = vld [vmem:[%s678 + $0x54] sm:$0xf]
      %v734 = vsel %vm681, %v483, %v733
      %735 = vst [vmem:[%s678 + $0x54] sm:$0xf] %v734
      %736 = vst [vmem:[%s678 + $0x58] sm:$0xf] %v492
      %v737 = vld [vmem:[%s678 + $0x5c] sm:$0x1]
      %v738 = vsel %vm687, %v493, %v737
      %739 = vst [vmem:[%s678 + $0x5c] sm:$0x1] %v738
      %v740 = vld [vmem:[%s678 + $0x60] sm:$0xf]
      %v741 = vsel %vm681, %v500, %v740
      %742 = vst [vmem:[%s678 + $0x60] sm:$0xf] %v741
      %743 = vst [vmem:[%s678 + $0x64] sm:$0xf] %v509
      %v744 = vld [vmem:[%s678 + $0x68] sm:$0x1]
      %v745 = vsel %vm687, %v510, %v744
      %746 = vst [vmem:[%s678 + $0x68] sm:$0x1] %v745
      %v747 = vld [vmem:[%s678 + $0x6c] sm:$0xf]
      %v748 = vsel %vm681, %v517, %v747
      %749 = vst [vmem:[%s678 + $0x6c] sm:$0xf] %v748
      %750 = vst [vmem:[%s678 + $0x70] sm:$0xf] %v526
      %v751 = vld [vmem:[%s678 + $0x74] sm:$0x1]
      %v752 = vsel %vm687, %v527, %v751
      %753 = vst [vmem:[%s678 + $0x74] sm:$0x1] %v752
      %v754 = vld [vmem:[%s678 + $0x78] sm:$0xf]
      %v755 = vsel %vm681, %v534, %v754
      %756 = vst [vmem:[%s678 + $0x78] sm:$0xf] %v755
      %757 = vst [vmem:[%s678 + $0x7c] sm:$0xf] %v543
      %v758 = vld [vmem:[%s678 + $0x80] sm:$0x1]
      %v759 = vsel %vm687, %v544, %v758
      %760 = vst [vmem:[%s678 + $0x80] sm:$0x1] %v759
      %v761 = vld [vmem:[%s678 + $0x84] sm:$0xf]
      %v762 = vsel %vm681, %v551, %v761
      %763 = vst [vmem:[%s678 + $0x84] sm:$0xf] %v762
      %764 = vst [vmem:[%s678 + $0x88] sm:$0xf] %v560
      %v765 = vld [vmem:[%s678 + $0x8c] sm:$0x1]
      %v766 = vsel %vm687, %v561, %v765
      %767 = vst [vmem:[%s678 + $0x8c] sm:$0x1] %v766
      %v768 = vld [vmem:[%s678 + $0x90] sm:$0xf]
      %v769 = vsel %vm681, %v568, %v768
      %770 = vst [vmem:[%s678 + $0x90] sm:$0xf] %v769
      %771 = vst [vmem:[%s678 + $0x94] sm:$0xf] %v577
      %v772 = vld [vmem:[%s678 + $0x98] sm:$0x1]
      %v773 = vsel %vm687, %v578, %v772
      %774 = vst [vmem:[%s678 + $0x98] sm:$0x1] %v773
      %v775 = vld [vmem:[%s678 + $0x9c] sm:$0xf]
      %v776 = vsel %vm681, %v585, %v775
      %777 = vst [vmem:[%s678 + $0x9c] sm:$0xf] %v776
      %778 = vst [vmem:[%s678 + $0xa0] sm:$0xf] %v594
      %v779 = vld [vmem:[%s678 + $0xa4] sm:$0x1]
      %v780 = vsel %vm687, %v595, %v779
      %781 = vst [vmem:[%s678 + $0xa4] sm:$0x1] %v780
      %v782 = vld [vmem:[%s678 + $0xa8] sm:$0xf]
      %v783 = vsel %vm681, %v602, %v782
      %784 = vst [vmem:[%s678 + $0xa8] sm:$0xf] %v783
      %785 = vst [vmem:[%s678 + $0xac] sm:$0xf] %v611
      %v786 = vld [vmem:[%s678 + $0xb0] sm:$0x1]
      %v787 = vsel %vm687, %v612, %v786
      %788 = vst [vmem:[%s678 + $0xb0] sm:$0x1] %v787
      %v789 = vld [vmem:[%s678 + $0xb4] sm:$0xf]
      %v790 = vsel %vm681, %v619, %v789
      %791 = vst [vmem:[%s678 + $0xb4] sm:$0xf] %v790
      %792 = vst [vmem:[%s678 + $0xb8] sm:$0xf] %v628
      %v793 = vld [vmem:[%s678 + $0xbc] sm:$0x1]
      %v794 = vsel %vm687, %v629, %v793
      %795 = vst [vmem:[%s678 + $0xbc] sm:$0x1] %v794
      %v796 = vld [vmem:[#allocation2] sm:$0xf]
      %v797 = vld [vmem:[#allocation2 + $0x4] sm:$0xf]
      %v798 = vld [vmem:[#allocation2 + $0xc] sm:$0xf]
      %v799 = vld [vmem:[#allocation2 + $0x10] sm:$0xf]
      %v800 = vld [vmem:[#allocation2 + $0x18] sm:$0xf]
      %v801 = vld [vmem:[#allocation2 + $0x1c] sm:$0xf]
      %v802 = vld [vmem:[#allocation2 + $0x24] sm:$0xf]
      %v803 = vld [vmem:[#allocation2 + $0x28] sm:$0xf]
      %v804 = vld [vmem:[#allocation2 + $0x30] sm:$0xf]
      %v805 = vld [vmem:[#allocation2 + $0x34] sm:$0xf]
      %v806 = vld [vmem:[#allocation2 + $0x3c] sm:$0xf]
      %v807 = vld [vmem:[#allocation2 + $0x40] sm:$0xf]
      %v808 = vld [vmem:[#allocation2 + $0x48] sm:$0xf]
      %v809 = vld [vmem:[#allocation2 + $0x4c] sm:$0xf]
      %v810 = vld [vmem:[#allocation2 + $0x54] sm:$0xf]
      %v811 = vld [vmem:[#allocation2 + $0x58] sm:$0xf]
      %v812 = vld [vmem:[#allocation2 + $0x60] sm:$0xf]
      %v813 = vld [vmem:[#allocation2 + $0x64] sm:$0xf]
      %v814 = vld [vmem:[#allocation2 + $0x6c] sm:$0xf]
      %v815 = vld [vmem:[#allocation2 + $0x70] sm:$0xf]
      %v816 = vld [vmem:[#allocation2 + $0x78] sm:$0xf]
      %v817 = vld [vmem:[#allocation2 + $0x7c] sm:$0xf]
      %v818 = vld [vmem:[#allocation2 + $0x84] sm:$0xf]
      %v819 = vld [vmem:[#allocation2 + $0x88] sm:$0xf]
      %v820 = vld [vmem:[#allocation2 + $0x90] sm:$0xf]
      %v821 = vld [vmem:[#allocation2 + $0x94] sm:$0xf]
      %v822 = vld [vmem:[#allocation2 + $0x9c] sm:$0xf]
      %v823 = vld [vmem:[#allocation2 + $0xa0] sm:$0xf]
      %v824 = vld [vmem:[#allocation2 + $0xa8] sm:$0xf]
      %v825 = vld [vmem:[#allocation2 + $0xac] sm:$0xf]
      %v826 = vld [vmem:[#allocation2 + $0xb4] sm:$0xf]
      %v827 = vld [vmem:[#allocation2 + $0xb8] sm:$0xf]
      %v828 = vld [vmem:[#allocation2 + $0x8] sm:$0x1]
      %v829 = vld [vmem:[#allocation2 + $0x14] sm:$0x1]
      %v830 = vld [vmem:[#allocation2 + $0x20] sm:$0x1]
      %v831 = vld [vmem:[#allocation2 + $0x2c] sm:$0x1]
      %v832 = vld [vmem:[#allocation2 + $0x38] sm:$0x1]
      %v833 = vld [vmem:[#allocation2 + $0x44] sm:$0x1]
      %v834 = vld [vmem:[#allocation2 + $0x50] sm:$0x1]
      %v835 = vld [vmem:[#allocation2 + $0x5c] sm:$0x1]
      %v836 = vld [vmem:[#allocation2 + $0x68] sm:$0x1]
      %v837 = vld [vmem:[#allocation2 + $0x74] sm:$0x1]
      %v838 = vld [vmem:[#allocation2 + $0x80] sm:$0x1]
      %v839 = vld [vmem:[#allocation2 + $0x8c] sm:$0x1]
      %v840 = vld [vmem:[#allocation2 + $0x98] sm:$0x1]
      %v841 = vld [vmem:[#allocation2 + $0xa4] sm:$0x1]
      %v842 = vld [vmem:[#allocation2 + $0xb0] sm:$0x1]
      %v843 = vld [vmem:[#allocation2 + $0xbc] sm:$0x1]
      %v844 = vld [vmem:[#allocation2] sm:$0xe]
      %v845 = vld [vmem:[#allocation2 + $0xc] sm:$0xe]
      %v846 = vld [vmem:[#allocation2 + $0x18] sm:$0xe]
      %v847 = vld [vmem:[#allocation2 + $0x24] sm:$0xe]
      %v848 = vld [vmem:[#allocation2 + $0x30] sm:$0xe]
      %v849 = vld [vmem:[#allocation2 + $0x3c] sm:$0xe]
      %v850 = vld [vmem:[#allocation2 + $0x48] sm:$0xe]
      %v851 = vld [vmem:[#allocation2 + $0x54] sm:$0xe]
      %v852 = vld [vmem:[#allocation2 + $0x60] sm:$0xe]
      %v853 = vld [vmem:[#allocation2 + $0x6c] sm:$0xe]
      %v854 = vld [vmem:[#allocation2 + $0x78] sm:$0xe]
      %v855 = vld [vmem:[#allocation2 + $0x84] sm:$0xe]
      %v856 = vld [vmem:[#allocation2 + $0x90] sm:$0xe]
      %v857 = vld [vmem:[#allocation2 + $0x9c] sm:$0xe]
      %v858 = vld [vmem:[#allocation2 + $0xa8] sm:$0xe]
      %v859 = vld [vmem:[#allocation2 + $0xb4] sm:$0xe]
      %v860 = vld [vmem:[%s678] sm:$0xf]
      %v861 = vld [vmem:[%s678 + $0x4] sm:$0xf]
      %v862 = vld [vmem:[%s678 + $0xc] sm:$0xf]
      %v863 = vld [vmem:[%s678 + $0x10] sm:$0xf]
      %v864 = vld [vmem:[%s678 + $0x18] sm:$0xf]
      %v865 = vld [vmem:[%s678 + $0x1c] sm:$0xf]
      %v866 = vld [vmem:[%s678 + $0x24] sm:$0xf]
      %v867 = vld [vmem:[%s678 + $0x28] sm:$0xf]
      %v868 = vld [vmem:[%s678 + $0x30] sm:$0xf]
      %v869 = vld [vmem:[%s678 + $0x34] sm:$0xf]
      %v870 = vld [vmem:[%s678 + $0x3c] sm:$0xf]
      %v871 = vld [vmem:[%s678 + $0x40] sm:$0xf]
      %v872 = vld [vmem:[%s678 + $0x48] sm:$0xf]
      %v873 = vld [vmem:[%s678 + $0x4c] sm:$0xf]
      %v874 = vld [vmem:[%s678 + $0x54] sm:$0xf]
      %v875 = vld [vmem:[%s678 + $0x58] sm:$0xf]
      %v876 = vld [vmem:[%s678 + $0x60] sm:$0xf]
      %v877 = vld [vmem:[%s678 + $0x64] sm:$0xf]
      %v878 = vld [vmem:[%s678 + $0x6c] sm:$0xf]
      %v879 = vld [vmem:[%s678 + $0x70] sm:$0xf]
      %v880 = vld [vmem:[%s678 + $0x78] sm:$0xf]
      %v881 = vld [vmem:[%s678 + $0x7c] sm:$0xf]
      %v882 = vld [vmem:[%s678 + $0x84] sm:$0xf]
      %v883 = vld [vmem:[%s678 + $0x88] sm:$0xf]
      %v884 = vld [vmem:[%s678 + $0x90] sm:$0xf]
      %v885 = vld [vmem:[%s678 + $0x94] sm:$0xf]
      %v886 = vld [vmem:[%s678 + $0x9c] sm:$0xf]
      %v887 = vld [vmem:[%s678 + $0xa0] sm:$0xf]
      %v888 = vld [vmem:[%s678 + $0xa8] sm:$0xf]
      %v889 = vld [vmem:[%s678 + $0xac] sm:$0xf]
      %v890 = vld [vmem:[%s678 + $0xb4] sm:$0xf]
      %v891 = vld [vmem:[%s678 + $0xb8] sm:$0xf]
      %v892 = vld [vmem:[%s678 + $0x8] sm:$0x1]
      %v893 = vld [vmem:[%s678 + $0x14] sm:$0x1]
      %v894 = vld [vmem:[%s678 + $0x20] sm:$0x1]
      %v895 = vld [vmem:[%s678 + $0x2c] sm:$0x1]
      %v896 = vld [vmem:[%s678 + $0x38] sm:$0x1]
      %v897 = vld [vmem:[%s678 + $0x44] sm:$0x1]
      %v898 = vld [vmem:[%s678 + $0x50] sm:$0x1]
      %v899 = vld [vmem:[%s678 + $0x5c] sm:$0x1]
      %v900 = vld [vmem:[%s678 + $0x68] sm:$0x1]
      %v901 = vld [vmem:[%s678 + $0x74] sm:$0x1]
      %v902 = vld [vmem:[%s678 + $0x80] sm:$0x1]
      %v903 = vld [vmem:[%s678 + $0x8c] sm:$0x1]
      %v904 = vld [vmem:[%s678 + $0x98] sm:$0x1]
      %v905 = vld [vmem:[%s678 + $0xa4] sm:$0x1]
      %v906 = vld [vmem:[%s678 + $0xb0] sm:$0x1]
      %v907 = vld [vmem:[%s678 + $0xbc] sm:$0x1]
      %v908 = vld [vmem:[%s678] sm:$0xe]
      %v909 = vld [vmem:[%s678 + $0xc] sm:$0xe]
      %v910 = vld [vmem:[%s678 + $0x18] sm:$0xe]
      %v911 = vld [vmem:[%s678 + $0x24] sm:$0xe]
      %v912 = vld [vmem:[%s678 + $0x30] sm:$0xe]
      %v913 = vld [vmem:[%s678 + $0x3c] sm:$0xe]
      %v914 = vld [vmem:[%s678 + $0x48] sm:$0xe]
      %v915 = vld [vmem:[%s678 + $0x54] sm:$0xe]
      %v916 = vld [vmem:[%s678 + $0x60] sm:$0xe]
      %v917 = vld [vmem:[%s678 + $0x6c] sm:$0xe]
      %v918 = vld [vmem:[%s678 + $0x78] sm:$0xe]
      %v919 = vld [vmem:[%s678 + $0x84] sm:$0xe]
      %v920 = vld [vmem:[%s678 + $0x90] sm:$0xe]
      %v921 = vld [vmem:[%s678 + $0x9c] sm:$0xe]
      %v922 = vld [vmem:[%s678 + $0xa8] sm:$0xe]
      %v923 = vld [vmem:[%s678 + $0xb4] sm:$0xe]
      %s924 = scalar_lea.vmem [#allocation2], 24
      %v925 = vld [vmem:[%s924] sm:$0xf]
      %v926 = vld [vmem:[%s924 + $0x4] sm:$0xf]
      %v927 = vld [vmem:[%s924 + $0xc] sm:$0xf]
      %v928 = vld [vmem:[%s924 + $0x10] sm:$0xf]
      %v929 = vld [vmem:[%s924 + $0x18] sm:$0xf]
      %v930 = vld [vmem:[%s924 + $0x1c] sm:$0xf]
      %v931 = vld [vmem:[%s924 + $0x24] sm:$0xf]
      %v932 = vld [vmem:[%s924 + $0x28] sm:$0xf]
      %v933 = vld [vmem:[%s924 + $0x30] sm:$0xf]
      %v934 = vld [vmem:[%s924 + $0x34] sm:$0xf]
      %v935 = vld [vmem:[%s924 + $0x3c] sm:$0xf]
      %v936 = vld [vmem:[%s924 + $0x40] sm:$0xf]
      %v937 = vld [vmem:[%s924 + $0x48] sm:$0xf]
      %v938 = vld [vmem:[%s924 + $0x4c] sm:$0xf]
      %v939 = vld [vmem:[%s924 + $0x54] sm:$0xf]
      %v940 = vld [vmem:[%s924 + $0x58] sm:$0xf]
      %v941 = vld [vmem:[%s924 + $0x60] sm:$0xf]
      %v942 = vld [vmem:[%s924 + $0x64] sm:$0xf]
      %v943 = vld [vmem:[%s924 + $0x6c] sm:$0xf]
      %v944 = vld [vmem:[%s924 + $0x70] sm:$0xf]
      %v945 = vld [vmem:[%s924 + $0x78] sm:$0xf]
      %v946 = vld [vmem:[%s924 + $0x7c] sm:$0xf]
      %v947 = vld [vmem:[%s924 + $0x84] sm:$0xf]
      %v948 = vld [vmem:[%s924 + $0x88] sm:$0xf]
      %v949 = vld [vmem:[%s924 + $0x90] sm:$0xf]
      %v950 = vld [vmem:[%s924 + $0x94] sm:$0xf]
      %v951 = vld [vmem:[%s924 + $0x9c] sm:$0xf]
      %v952 = vld [vmem:[%s924 + $0xa0] sm:$0xf]
      %v953 = vld [vmem:[%s924 + $0xa8] sm:$0xf]
      %v954 = vld [vmem:[%s924 + $0xac] sm:$0xf]
      %v955 = vld [vmem:[%s924 + $0xb4] sm:$0xf]
      %v956 = vld [vmem:[%s924 + $0xb8] sm:$0xf]
      %v957 = vld [vmem:[%s924 + $0x8] sm:$0x1]
      %v958 = vld [vmem:[%s924 + $0x14] sm:$0x1]
      %v959 = vld [vmem:[%s924 + $0x20] sm:$0x1]
      %v960 = vld [vmem:[%s924 + $0x2c] sm:$0x1]
      %v961 = vld [vmem:[%s924 + $0x38] sm:$0x1]
      %v962 = vld [vmem:[%s924 + $0x44] sm:$0x1]
      %v963 = vld [vmem:[%s924 + $0x50] sm:$0x1]
      %v964 = vld [vmem:[%s924 + $0x5c] sm:$0x1]
      %v965 = vld [vmem:[%s924 + $0x68] sm:$0x1]
      %v966 = vld [vmem:[%s924 + $0x74] sm:$0x1]
      %v967 = vld [vmem:[%s924 + $0x80] sm:$0x1]
      %v968 = vld [vmem:[%s924 + $0x8c] sm:$0x1]
      %v969 = vld [vmem:[%s924 + $0x98] sm:$0x1]
      %v970 = vld [vmem:[%s924 + $0xa4] sm:$0x1]
      %v971 = vld [vmem:[%s924 + $0xb0] sm:$0x1]
      %v972 = vld [vmem:[%s924 + $0xbc] sm:$0x1]
      %v973 = vld [vmem:[%s924] sm:$0xe]
      %v974 = vld [vmem:[%s924 + $0xc] sm:$0xe]
      %v975 = vld [vmem:[%s924 + $0x18] sm:$0xe]
      %v976 = vld [vmem:[%s924 + $0x24] sm:$0xe]
      %v977 = vld [vmem:[%s924 + $0x30] sm:$0xe]
      %v978 = vld [vmem:[%s924 + $0x3c] sm:$0xe]
      %v979 = vld [vmem:[%s924 + $0x48] sm:$0xe]
      %v980 = vld [vmem:[%s924 + $0x54] sm:$0xe]
      %v981 = vld [vmem:[%s924 + $0x60] sm:$0xe]
      %v982 = vld [vmem:[%s924 + $0x6c] sm:$0xe]
      %v983 = vld [vmem:[%s924 + $0x78] sm:$0xe]
      %v984 = vld [vmem:[%s924 + $0x84] sm:$0xe]
      %v985 = vld [vmem:[%s924 + $0x90] sm:$0xe]
      %v986 = vld [vmem:[%s924 + $0x9c] sm:$0xe]
      %v987 = vld [vmem:[%s924 + $0xa8] sm:$0xe]
      %v988 = vld [vmem:[%s924 + $0xb4] sm:$0xe]
      %v1021 = vunpack.c.l.b16 %v796
      %v1022 = vunpack.c.l.b16 %v797
      %v1023 = vunpack.c.l.b16 %v798
      %v1024 = vunpack.c.l.b16 %v799
      %v1025 = vunpack.c.l.b16 %v800
      %v1026 = vunpack.c.l.b16 %v801
      %v1027 = vunpack.c.l.b16 %v802
      %v1028 = vunpack.c.l.b16 %v803
      %v1029 = vunpack.c.l.b16 %v804
      %v1030 = vunpack.c.l.b16 %v805
      %v1031 = vunpack.c.l.b16 %v806
      %v1032 = vunpack.c.l.b16 %v807
      %v1033 = vunpack.c.l.b16 %v808
      %v1034 = vunpack.c.l.b16 %v809
      %v1035 = vunpack.c.l.b16 %v810
      %v1036 = vunpack.c.l.b16 %v811
      %v1037 = vunpack.c.l.b16 %v812
      %v1038 = vunpack.c.l.b16 %v813
      %v1039 = vunpack.c.l.b16 %v814
      %v1040 = vunpack.c.l.b16 %v815
      %v1041 = vunpack.c.l.b16 %v816
      %v1042 = vunpack.c.l.b16 %v817
      %v1043 = vunpack.c.l.b16 %v818
      %v1044 = vunpack.c.l.b16 %v819
      %v1045 = vunpack.c.l.b16 %v820
      %v1046 = vunpack.c.l.b16 %v821
      %v1047 = vunpack.c.l.b16 %v822
      %v1048 = vunpack.c.l.b16 %v823
      %v1049 = vunpack.c.l.b16 %v824
      %v1050 = vunpack.c.l.b16 %v825
      %v1051 = vunpack.c.l.b16 %v826
      %v1052 = vunpack.c.l.b16 %v827
      %v1053 = vpack.c.b16 %v1022, %v1021
      %v1054 = vpack.c.b16 %v1024, %v1023
      %v1055 = vpack.c.b16 %v1026, %v1025
      %v1056 = vpack.c.b16 %v1028, %v1027
      %v1057 = vpack.c.b16 %v1030, %v1029
      %v1058 = vpack.c.b16 %v1032, %v1031
      %v1059 = vpack.c.b16 %v1034, %v1033
      %v1060 = vpack.c.b16 %v1036, %v1035
      %v1061 = vpack.c.b16 %v1038, %v1037
      %v1062 = vpack.c.b16 %v1040, %v1039
      %v1063 = vpack.c.b16 %v1042, %v1041
      %v1064 = vpack.c.b16 %v1044, %v1043
      %v1065 = vpack.c.b16 %v1046, %v1045
      %v1066 = vpack.c.b16 %v1048, %v1047
      %v1067 = vpack.c.b16 %v1050, %v1049
      %v1068 = vpack.c.b16 %v1052, %v1051
      %v1101 = vunpack.c.l.b16 %v828
      %v1102 = vunpack.c.l.b16 %v829
      %v1103 = vunpack.c.l.b16 %v830
      %v1104 = vunpack.c.l.b16 %v831
      %v1105 = vunpack.c.l.b16 %v832
      %v1106 = vunpack.c.l.b16 %v833
      %v1107 = vunpack.c.l.b16 %v834
      %v1108 = vunpack.c.l.b16 %v835
      %v1109 = vunpack.c.l.b16 %v836
      %v1110 = vunpack.c.l.b16 %v837
      %v1111 = vunpack.c.l.b16 %v838
      %v1112 = vunpack.c.l.b16 %v839
      %v1113 = vunpack.c.l.b16 %v840
      %v1114 = vunpack.c.l.b16 %v841
      %v1115 = vunpack.c.l.b16 %v842
      %v1116 = vunpack.c.l.b16 %v843
      %v1117 = vpack.c.b16 %v1101, %v1101
      %v1118 = vpack.c.b16 %v1102, %v1102
      %v1119 = vpack.c.b16 %v1103, %v1103
      %v1120 = vpack.c.b16 %v1104, %v1104
      %v1121 = vpack.c.b16 %v1105, %v1105
      %v1122 = vpack.c.b16 %v1106, %v1106
      %v1123 = vpack.c.b16 %v1107, %v1107
      %v1124 = vpack.c.b16 %v1108, %v1108
      %v1125 = vpack.c.b16 %v1109, %v1109
      %v1126 = vpack.c.b16 %v1110, %v1110
      %v1127 = vpack.c.b16 %v1111, %v1111
      %v1128 = vpack.c.b16 %v1112, %v1112
      %v1129 = vpack.c.b16 %v1113, %v1113
      %v1130 = vpack.c.b16 %v1114, %v1114
      %v1131 = vpack.c.b16 %v1115, %v1115
      %v1132 = vpack.c.b16 %v1116, %v1116
      %vm1133 = vsmask.f32 7424
      %v1135 = vshrl.u32 %v1053, 16
      %v1137 = vshll.u32 %v1053, 16
      %v1139 = vrot.slane %v1137, 1
      %v1140 = vor.u32 %v1135, %v1139
      %v1142 = vshll.u32 %v1117, 16
      %v1144 = vrot.slane %v1142, 1
      %v1145 = vsel %vm1133, %v1140, %v1144
      %v1147 = vshrl.u32 %v1054, 16
      %v1149 = vshll.u32 %v1054, 16
      %v1151 = vrot.slane %v1149, 1
      %v1152 = vor.u32 %v1147, %v1151
      %v1154 = vshll.u32 %v1118, 16
      %v1156 = vrot.slane %v1154, 1
      %v1157 = vsel %vm1133, %v1152, %v1156
      %v1159 = vshrl.u32 %v1055, 16
      %v1161 = vshll.u32 %v1055, 16
      %v1163 = vrot.slane %v1161, 1
      %v1164 = vor.u32 %v1159, %v1163
      %v1166 = vshll.u32 %v1119, 16
      %v1168 = vrot.slane %v1166, 1
      %v1169 = vsel %vm1133, %v1164, %v1168
      %v1171 = vshrl.u32 %v1056, 16
      %v1173 = vshll.u32 %v1056, 16
      %v1175 = vrot.slane %v1173, 1
      %v1176 = vor.u32 %v1171, %v1175
      %v1178 = vshll.u32 %v1120, 16
      %v1180 = vrot.slane %v1178, 1
      %v1181 = vsel %vm1133, %v1176, %v1180
      %v1183 = vshrl.u32 %v1057, 16
      %v1185 = vshll.u32 %v1057, 16
      %v1187 = vrot.slane %v1185, 1
      %v1188 = vor.u32 %v1183, %v1187
      %v1190 = vshll.u32 %v1121, 16
      %v1192 = vrot.slane %v1190, 1
      %v1193 = vsel %vm1133, %v1188, %v1192
      %v1195 = vshrl.u32 %v1058, 16
      %v1197 = vshll.u32 %v1058, 16
      %v1199 = vrot.slane %v1197, 1
      %v1200 = vor.u32 %v1195, %v1199
      %v1202 = vshll.u32 %v1122, 16
      %v1204 = vrot.slane %v1202, 1
      %v1205 = vsel %vm1133, %v1200, %v1204
      %v1207 = vshrl.u32 %v1059, 16
      %v1209 = vshll.u32 %v1059, 16
      %v1211 = vrot.slane %v1209, 1
      %v1212 = vor.u32 %v1207, %v1211
      %v1214 = vshll.u32 %v1123, 16
      %v1216 = vrot.slane %v1214, 1
      %v1217 = vsel %vm1133, %v1212, %v1216
      %v1219 = vshrl.u32 %v1060, 16
      %v1221 = vshll.u32 %v1060, 16
      %v1223 = vrot.slane %v1221, 1
      %v1224 = vor.u32 %v1219, %v1223
      %v1226 = vshll.u32 %v1124, 16
      %v1228 = vrot.slane %v1226, 1
      %v1229 = vsel %vm1133, %v1224, %v1228
      %v1231 = vshrl.u32 %v1061, 16
      %v1233 = vshll.u32 %v1061, 16
      %v1235 = vrot.slane %v1233, 1
      %v1236 = vor.u32 %v1231, %v1235
      %v1238 = vshll.u32 %v1125, 16
      %v1240 = vrot.slane %v1238, 1
      %v1241 = vsel %vm1133, %v1236, %v1240
      %v1243 = vshrl.u32 %v1062, 16
      %v1245 = vshll.u32 %v1062, 16
      %v1247 = vrot.slane %v1245, 1
      %v1248 = vor.u32 %v1243, %v1247
      %v1250 = vshll.u32 %v1126, 16
      %v1252 = vrot.slane %v1250, 1
      %v1253 = vsel %vm1133, %v1248, %v1252
      %v1255 = vshrl.u32 %v1063, 16
      %v1257 = vshll.u32 %v1063, 16
      %v1259 = vrot.slane %v1257, 1
      %v1260 = vor.u32 %v1255, %v1259
      %v1262 = vshll.u32 %v1127, 16
      %v1264 = vrot.slane %v1262, 1
      %v1265 = vsel %vm1133, %v1260, %v1264
      %v1267 = vshrl.u32 %v1064, 16
      %v1269 = vshll.u32 %v1064, 16
      %v1271 = vrot.slane %v1269, 1
      %v1272 = vor.u32 %v1267, %v1271
      %v1274 = vshll.u32 %v1128, 16
      %v1276 = vrot.slane %v1274, 1
      %v1277 = vsel %vm1133, %v1272, %v1276
      %v1279 = vshrl.u32 %v1065, 16
      %v1281 = vshll.u32 %v1065, 16
      %v1283 = vrot.slane %v1281, 1
      %v1284 = vor.u32 %v1279, %v1283
      %v1286 = vshll.u32 %v1129, 16
      %v1288 = vrot.slane %v1286, 1
      %v1289 = vsel %vm1133, %v1284, %v1288
      %v1291 = vshrl.u32 %v1066, 16
      %v1293 = vshll.u32 %v1066, 16
      %v1295 = vrot.slane %v1293, 1
      %v1296 = vor.u32 %v1291, %v1295
      %v1298 = vshll.u32 %v1130, 16
      %v1300 = vrot.slane %v1298, 1
      %v1301 = vsel %vm1133, %v1296, %v1300
      %v1303 = vshrl.u32 %v1067, 16
      %v1305 = vshll.u32 %v1067, 16
      %v1307 = vrot.slane %v1305, 1
      %v1308 = vor.u32 %v1303, %v1307
      %v1310 = vshll.u32 %v1131, 16
      %v1312 = vrot.slane %v1310, 1
      %v1313 = vsel %vm1133, %v1308, %v1312
      %v1315 = vshrl.u32 %v1068, 16
      %v1317 = vshll.u32 %v1068, 16
      %v1319 = vrot.slane %v1317, 1
      %v1320 = vor.u32 %v1315, %v1319
      %v1322 = vshll.u32 %v1132, 16
      %v1324 = vrot.slane %v1322, 1
      %v1325 = vsel %vm1133, %v1320, %v1324
      %v1358 = vunpack.c.l.b16 %v844
      %v1359 = vunpack.c.l.b16 %v845
      %v1360 = vunpack.c.l.b16 %v846
      %v1361 = vunpack.c.l.b16 %v847
      %v1362 = vunpack.c.l.b16 %v848
      %v1363 = vunpack.c.l.b16 %v849
      %v1364 = vunpack.c.l.b16 %v850
      %v1365 = vunpack.c.l.b16 %v851
      %v1366 = vunpack.c.l.b16 %v852
      %v1367 = vunpack.c.l.b16 %v853
      %v1368 = vunpack.c.l.b16 %v854
      %v1369 = vunpack.c.l.b16 %v855
      %v1370 = vunpack.c.l.b16 %v856
      %v1371 = vunpack.c.l.b16 %v857
      %v1372 = vunpack.c.l.b16 %v858
      %v1373 = vunpack.c.l.b16 %v859
      %v1374 = vpack.c.b16 %v1022, %v1358
      %v1375 = vpack.c.b16 %v1024, %v1359
      %v1376 = vpack.c.b16 %v1026, %v1360
      %v1377 = vpack.c.b16 %v1028, %v1361
      %v1378 = vpack.c.b16 %v1030, %v1362
      %v1379 = vpack.c.b16 %v1032, %v1363
      %v1380 = vpack.c.b16 %v1034, %v1364
      %v1381 = vpack.c.b16 %v1036, %v1365
      %v1382 = vpack.c.b16 %v1038, %v1366
      %v1383 = vpack.c.b16 %v1040, %v1367
      %v1384 = vpack.c.b16 %v1042, %v1368
      %v1385 = vpack.c.b16 %v1044, %v1369
      %v1386 = vpack.c.b16 %v1046, %v1370
      %v1387 = vpack.c.b16 %v1048, %v1371
      %v1388 = vpack.c.b16 %v1050, %v1372
      %v1389 = vpack.c.b16 %v1052, %v1373
      %vm1390 = vcmask 1046528
      %v1391 = vrot.slane %v1374, 1
      %v1392 = vrot.slane %v1117, 1
      %v1393 = vsel %vm1390, %v1391, %v1392
      %v1394 = vrot.slane %v1375, 1
      %v1395 = vrot.slane %v1118, 1
      %v1396 = vsel %vm1390, %v1394, %v1395
      %v1397 = vrot.slane %v1376, 1
      %v1398 = vrot.slane %v1119, 1
      %v1399 = vsel %vm1390, %v1397, %v1398
      %v1400 = vrot.slane %v1377, 1
      %v1401 = vrot.slane %v1120, 1
      %v1402 = vsel %vm1390, %v1400, %v1401
      %v1403 = vrot.slane %v1378, 1
      %v1404 = vrot.slane %v1121, 1
      %v1405 = vsel %vm1390, %v1403, %v1404
      %v1406 = vrot.slane %v1379, 1
      %v1407 = vrot.slane %v1122, 1
      %v1408 = vsel %vm1390, %v1406, %v1407
      %v1409 = vrot.slane %v1380, 1
      %v1410 = vrot.slane %v1123, 1
      %v1411 = vsel %vm1390, %v1409, %v1410
      %v1412 = vrot.slane %v1381, 1
      %v1413 = vrot.slane %v1124, 1
      %v1414 = vsel %vm1390, %v1412, %v1413
      %v1415 = vrot.slane %v1382, 1
      %v1416 = vrot.slane %v1125, 1
      %v1417 = vsel %vm1390, %v1415, %v1416
      %v1418 = vrot.slane %v1383, 1
      %v1419 = vrot.slane %v1126, 1
      %v1420 = vsel %vm1390, %v1418, %v1419
      %v1421 = vrot.slane %v1384, 1
      %v1422 = vrot.slane %v1127, 1
      %v1423 = vsel %vm1390, %v1421, %v1422
      %v1424 = vrot.slane %v1385, 1
      %v1425 = vrot.slane %v1128, 1
      %v1426 = vsel %vm1390, %v1424, %v1425
      %v1427 = vrot.slane %v1386, 1
      %v1428 = vrot.slane %v1129, 1
      %v1429 = vsel %vm1390, %v1427, %v1428
      %v1430 = vrot.slane %v1387, 1
      %v1431 = vrot.slane %v1130, 1
      %v1432 = vsel %vm1390, %v1430, %v1431
      %v1433 = vrot.slane %v1388, 1
      %v1434 = vrot.slane %v1131, 1
      %v1435 = vsel %vm1390, %v1433, %v1434
      %v1436 = vrot.slane %v1389, 1
      %v1437 = vrot.slane %v1132, 1
      %v1438 = vsel %vm1390, %v1436, %v1437
      %v1487 = vunpack.c.l.b16 %v860
      %v1488 = vunpack.c.l.b16 %v861
      %v1489 = vunpack.c.l.b16 %v862
      %v1490 = vunpack.c.l.b16 %v863
      %v1491 = vunpack.c.l.b16 %v864
      %v1492 = vunpack.c.l.b16 %v865
      %v1493 = vunpack.c.l.b16 %v866
      %v1494 = vunpack.c.l.b16 %v867
      %v1495 = vunpack.c.l.b16 %v868
      %v1496 = vunpack.c.l.b16 %v869
      %v1497 = vunpack.c.l.b16 %v870
      %v1498 = vunpack.c.l.b16 %v871
      %v1499 = vunpack.c.l.b16 %v872
      %v1500 = vunpack.c.l.b16 %v873
      %v1501 = vunpack.c.l.b16 %v874
      %v1502 = vunpack.c.l.b16 %v875
      %v1503 = vunpack.c.l.b16 %v876
      %v1504 = vunpack.c.l.b16 %v877
      %v1505 = vunpack.c.l.b16 %v878
      %v1506 = vunpack.c.l.b16 %v879
      %v1507 = vunpack.c.l.b16 %v880
      %v1508 = vunpack.c.l.b16 %v881
      %v1509 = vunpack.c.l.b16 %v882
      %v1510 = vunpack.c.l.b16 %v883
      %v1511 = vunpack.c.l.b16 %v884
      %v1512 = vunpack.c.l.b16 %v885
      %v1513 = vunpack.c.l.b16 %v886
      %v1514 = vunpack.c.l.b16 %v887
      %v1515 = vunpack.c.l.b16 %v888
      %v1516 = vunpack.c.l.b16 %v889
      %v1517 = vunpack.c.l.b16 %v890
      %v1518 = vunpack.c.l.b16 %v891
      %v1519 = vpack.c.b16 %v1488, %v1487
      %v1520 = vpack.c.b16 %v1490, %v1489
      %v1521 = vpack.c.b16 %v1492, %v1491
      %v1522 = vpack.c.b16 %v1494, %v1493
      %v1523 = vpack.c.b16 %v1496, %v1495
      %v1524 = vpack.c.b16 %v1498, %v1497
      %v1525 = vpack.c.b16 %v1500, %v1499
      %v1526 = vpack.c.b16 %v1502, %v1501
      %v1527 = vpack.c.b16 %v1504, %v1503
      %v1528 = vpack.c.b16 %v1506, %v1505
      %v1529 = vpack.c.b16 %v1508, %v1507
      %v1530 = vpack.c.b16 %v1510, %v1509
      %v1531 = vpack.c.b16 %v1512, %v1511
      %v1532 = vpack.c.b16 %v1514, %v1513
      %v1533 = vpack.c.b16 %v1516, %v1515
      %v1534 = vpack.c.b16 %v1518, %v1517
      %v1567 = vunpack.c.l.b16 %v892
      %v1568 = vunpack.c.l.b16 %v893
      %v1569 = vunpack.c.l.b16 %v894
      %v1570 = vunpack.c.l.b16 %v895
      %v1571 = vunpack.c.l.b16 %v896
      %v1572 = vunpack.c.l.b16 %v897
      %v1573 = vunpack.c.l.b16 %v898
      %v1574 = vunpack.c.l.b16 %v899
      %v1575 = vunpack.c.l.b16 %v900
      %v1576 = vunpack.c.l.b16 %v901
      %v1577 = vunpack.c.l.b16 %v902
      %v1578 = vunpack.c.l.b16 %v903
      %v1579 = vunpack.c.l.b16 %v904
      %v1580 = vunpack.c.l.b16 %v905
      %v1581 = vunpack.c.l.b16 %v906
      %v1582 = vunpack.c.l.b16 %v907
      %v1583 = vpack.c.b16 %v1567, %v1567
      %v1584 = vpack.c.b16 %v1568, %v1568
      %v1585 = vpack.c.b16 %v1569, %v1569
      %v1586 = vpack.c.b16 %v1570, %v1570
      %v1587 = vpack.c.b16 %v1571, %v1571
      %v1588 = vpack.c.b16 %v1572, %v1572
      %v1589 = vpack.c.b16 %v1573, %v1573
      %v1590 = vpack.c.b16 %v1574, %v1574
      %v1591 = vpack.c.b16 %v1575, %v1575
      %v1592 = vpack.c.b16 %v1576, %v1576
      %v1593 = vpack.c.b16 %v1577, %v1577
      %v1594 = vpack.c.b16 %v1578, %v1578
      %v1595 = vpack.c.b16 %v1579, %v1579
      %v1596 = vpack.c.b16 %v1580, %v1580
      %v1597 = vpack.c.b16 %v1581, %v1581
      %v1598 = vpack.c.b16 %v1582, %v1582
      %v1600 = vshrl.u32 %v1519, 16
      %v1602 = vshll.u32 %v1519, 16
      %v1604 = vrot.slane %v1602, 1
      %v1605 = vor.u32 %v1600, %v1604
      %v1607 = vshll.u32 %v1583, 16
      %v1609 = vrot.slane %v1607, 1
      %v1610 = vsel %vm1133, %v1605, %v1609
      %v1612 = vshrl.u32 %v1520, 16
      %v1614 = vshll.u32 %v1520, 16
      %v1616 = vrot.slane %v1614, 1
      %v1617 = vor.u32 %v1612, %v1616
      %v1619 = vshll.u32 %v1584, 16
      %v1621 = vrot.slane %v1619, 1
      %v1622 = vsel %vm1133, %v1617, %v1621
      %v1624 = vshrl.u32 %v1521, 16
      %v1626 = vshll.u32 %v1521, 16
      %v1628 = vrot.slane %v1626, 1
      %v1629 = vor.u32 %v1624, %v1628
      %v1631 = vshll.u32 %v1585, 16
      %v1633 = vrot.slane %v1631, 1
      %v1634 = vsel %vm1133, %v1629, %v1633
      %v1636 = vshrl.u32 %v1522, 16
      %v1638 = vshll.u32 %v1522, 16
      %v1640 = vrot.slane %v1638, 1
      %v1641 = vor.u32 %v1636, %v1640
      %v1643 = vshll.u32 %v1586, 16
      %v1645 = vrot.slane %v1643, 1
      %v1646 = vsel %vm1133, %v1641, %v1645
      %v1648 = vshrl.u32 %v1523, 16
      %v1650 = vshll.u32 %v1523, 16
      %v1652 = vrot.slane %v1650, 1
      %v1653 = vor.u32 %v1648, %v1652
      %v1655 = vshll.u32 %v1587, 16
      %v1657 = vrot.slane %v1655, 1
      %v1658 = vsel %vm1133, %v1653, %v1657
      %v1660 = vshrl.u32 %v1524, 16
      %v1662 = vshll.u32 %v1524, 16
      %v1664 = vrot.slane %v1662, 1
      %v1665 = vor.u32 %v1660, %v1664
      %v1667 = vshll.u32 %v1588, 16
      %v1669 = vrot.slane %v1667, 1
      %v1670 = vsel %vm1133, %v1665, %v1669
      %v1672 = vshrl.u32 %v1525, 16
      %v1674 = vshll.u32 %v1525, 16
      %v1676 = vrot.slane %v1674, 1
      %v1677 = vor.u32 %v1672, %v1676
      %v1679 = vshll.u32 %v1589, 16
      %v1681 = vrot.slane %v1679, 1
      %v1682 = vsel %vm1133, %v1677, %v1681
      %v1684 = vshrl.u32 %v1526, 16
      %v1686 = vshll.u32 %v1526, 16
      %v1688 = vrot.slane %v1686, 1
      %v1689 = vor.u32 %v1684, %v1688
      %v1691 = vshll.u32 %v1590, 16
      %v1693 = vrot.slane %v1691, 1
      %v1694 = vsel %vm1133, %v1689, %v1693
      %v1696 = vshrl.u32 %v1527, 16
      %v1698 = vshll.u32 %v1527, 16
      %v1700 = vrot.slane %v1698, 1
      %v1701 = vor.u32 %v1696, %v1700
      %v1703 = vshll.u32 %v1591, 16
      %v1705 = vrot.slane %v1703, 1
      %v1706 = vsel %vm1133, %v1701, %v1705
      %v1708 = vshrl.u32 %v1528, 16
      %v1710 = vshll.u32 %v1528, 16
      %v1712 = vrot.slane %v1710, 1
      %v1713 = vor.u32 %v1708, %v1712
      %v1715 = vshll.u32 %v1592, 16
      %v1717 = vrot.slane %v1715, 1
      %v1718 = vsel %vm1133, %v1713, %v1717
      %v1720 = vshrl.u32 %v1529, 16
      %v1722 = vshll.u32 %v1529, 16
      %v1724 = vrot.slane %v1722, 1
      %v1725 = vor.u32 %v1720, %v1724
      %v1727 = vshll.u32 %v1593, 16
      %v1729 = vrot.slane %v1727, 1
      %v1730 = vsel %vm1133, %v1725, %v1729
      %v1732 = vshrl.u32 %v1530, 16
      %v1734 = vshll.u32 %v1530, 16
      %v1736 = vrot.slane %v1734, 1
      %v1737 = vor.u32 %v1732, %v1736
      %v1739 = vshll.u32 %v1594, 16
      %v1741 = vrot.slane %v1739, 1
      %v1742 = vsel %vm1133, %v1737, %v1741
      %v1744 = vshrl.u32 %v1531, 16
      %v1746 = vshll.u32 %v1531, 16
      %v1748 = vrot.slane %v1746, 1
      %v1749 = vor.u32 %v1744, %v1748
      %v1751 = vshll.u32 %v1595, 16
      %v1753 = vrot.slane %v1751, 1
      %v1754 = vsel %vm1133, %v1749, %v1753
      %v1756 = vshrl.u32 %v1532, 16
      %v1758 = vshll.u32 %v1532, 16
      %v1760 = vrot.slane %v1758, 1
      %v1761 = vor.u32 %v1756, %v1760
      %v1763 = vshll.u32 %v1596, 16
      %v1765 = vrot.slane %v1763, 1
      %v1766 = vsel %vm1133, %v1761, %v1765
      %v1768 = vshrl.u32 %v1533, 16
      %v1770 = vshll.u32 %v1533, 16
      %v1772 = vrot.slane %v1770, 1
      %v1773 = vor.u32 %v1768, %v1772
      %v1775 = vshll.u32 %v1597, 16
      %v1777 = vrot.slane %v1775, 1
      %v1778 = vsel %vm1133, %v1773, %v1777
      %v1780 = vshrl.u32 %v1534, 16
      %v1782 = vshll.u32 %v1534, 16
      %v1784 = vrot.slane %v1782, 1
      %v1785 = vor.u32 %v1780, %v1784
      %v1787 = vshll.u32 %v1598, 16
      %v1789 = vrot.slane %v1787, 1
      %v1790 = vsel %vm1133, %v1785, %v1789
      %v1823 = vunpack.c.l.b16 %v908
      %v1824 = vunpack.c.l.b16 %v909
      %v1825 = vunpack.c.l.b16 %v910
      %v1826 = vunpack.c.l.b16 %v911
      %v1827 = vunpack.c.l.b16 %v912
      %v1828 = vunpack.c.l.b16 %v913
      %v1829 = vunpack.c.l.b16 %v914
      %v1830 = vunpack.c.l.b16 %v915
      %v1831 = vunpack.c.l.b16 %v916
      %v1832 = vunpack.c.l.b16 %v917
      %v1833 = vunpack.c.l.b16 %v918
      %v1834 = vunpack.c.l.b16 %v919
      %v1835 = vunpack.c.l.b16 %v920
      %v1836 = vunpack.c.l.b16 %v921
      %v1837 = vunpack.c.l.b16 %v922
      %v1838 = vunpack.c.l.b16 %v923
      %v1839 = vpack.c.b16 %v1488, %v1823
      %v1840 = vpack.c.b16 %v1490, %v1824
      %v1841 = vpack.c.b16 %v1492, %v1825
      %v1842 = vpack.c.b16 %v1494, %v1826
      %v1843 = vpack.c.b16 %v1496, %v1827
      %v1844 = vpack.c.b16 %v1498, %v1828
      %v1845 = vpack.c.b16 %v1500, %v1829
      %v1846 = vpack.c.b16 %v1502, %v1830
      %v1847 = vpack.c.b16 %v1504, %v1831
      %v1848 = vpack.c.b16 %v1506, %v1832
      %v1849 = vpack.c.b16 %v1508, %v1833
      %v1850 = vpack.c.b16 %v1510, %v1834
      %v1851 = vpack.c.b16 %v1512, %v1835
      %v1852 = vpack.c.b16 %v1514, %v1836
      %v1853 = vpack.c.b16 %v1516, %v1837
      %v1854 = vpack.c.b16 %v1518, %v1838
      %v1855 = vrot.slane %v1839, 1
      %v1856 = vrot.slane %v1583, 1
      %v1857 = vsel %vm1390, %v1855, %v1856
      %v1858 = vrot.slane %v1840, 1
      %v1859 = vrot.slane %v1584, 1
      %v1860 = vsel %vm1390, %v1858, %v1859
      %v1861 = vrot.slane %v1841, 1
      %v1862 = vrot.slane %v1585, 1
      %v1863 = vsel %vm1390, %v1861, %v1862
      %v1864 = vrot.slane %v1842, 1
      %v1865 = vrot.slane %v1586, 1
      %v1866 = vsel %vm1390, %v1864, %v1865
      %v1867 = vrot.slane %v1843, 1
      %v1868 = vrot.slane %v1587, 1
      %v1869 = vsel %vm1390, %v1867, %v1868
      %v1870 = vrot.slane %v1844, 1
      %v1871 = vrot.slane %v1588, 1
      %v1872 = vsel %vm1390, %v1870, %v1871
      %v1873 = vrot.slane %v1845, 1
      %v1874 = vrot.slane %v1589, 1
      %v1875 = vsel %vm1390, %v1873, %v1874
      %v1876 = vrot.slane %v1846, 1
      %v1877 = vrot.slane %v1590, 1
      %v1878 = vsel %vm1390, %v1876, %v1877
      %v1879 = vrot.slane %v1847, 1
      %v1880 = vrot.slane %v1591, 1
      %v1881 = vsel %vm1390, %v1879, %v1880
      %v1882 = vrot.slane %v1848, 1
      %v1883 = vrot.slane %v1592, 1
      %v1884 = vsel %vm1390, %v1882, %v1883
      %v1885 = vrot.slane %v1849, 1
      %v1886 = vrot.slane %v1593, 1
      %v1887 = vsel %vm1390, %v1885, %v1886
      %v1888 = vrot.slane %v1850, 1
      %v1889 = vrot.slane %v1594, 1
      %v1890 = vsel %vm1390, %v1888, %v1889
      %v1891 = vrot.slane %v1851, 1
      %v1892 = vrot.slane %v1595, 1
      %v1893 = vsel %vm1390, %v1891, %v1892
      %v1894 = vrot.slane %v1852, 1
      %v1895 = vrot.slane %v1596, 1
      %v1896 = vsel %vm1390, %v1894, %v1895
      %v1897 = vrot.slane %v1853, 1
      %v1898 = vrot.slane %v1597, 1
      %v1899 = vsel %vm1390, %v1897, %v1898
      %v1900 = vrot.slane %v1854, 1
      %v1901 = vrot.slane %v1598, 1
      %v1902 = vsel %vm1390, %v1900, %v1901
      %v1951 = vunpack.c.l.b16 %v925
      %v1952 = vunpack.c.l.b16 %v926
      %v1953 = vunpack.c.l.b16 %v927
      %v1954 = vunpack.c.l.b16 %v928
      %v1955 = vunpack.c.l.b16 %v929
      %v1956 = vunpack.c.l.b16 %v930
      %v1957 = vunpack.c.l.b16 %v931
      %v1958 = vunpack.c.l.b16 %v932
      %v1959 = vunpack.c.l.b16 %v933
      %v1960 = vunpack.c.l.b16 %v934
      %v1961 = vunpack.c.l.b16 %v935
      %v1962 = vunpack.c.l.b16 %v936
      %v1963 = vunpack.c.l.b16 %v937
      %v1964 = vunpack.c.l.b16 %v938
      %v1965 = vunpack.c.l.b16 %v939
      %v1966 = vunpack.c.l.b16 %v940
      %v1967 = vunpack.c.l.b16 %v941
      %v1968 = vunpack.c.l.b16 %v942
      %v1969 = vunpack.c.l.b16 %v943
      %v1970 = vunpack.c.l.b16 %v944
      %v1971 = vunpack.c.l.b16 %v945
      %v1972 = vunpack.c.l.b16 %v946
      %v1973 = vunpack.c.l.b16 %v947
      %v1974 = vunpack.c.l.b16 %v948
      %v1975 = vunpack.c.l.b16 %v949
      %v1976 = vunpack.c.l.b16 %v950
      %v1977 = vunpack.c.l.b16 %v951
      %v1978 = vunpack.c.l.b16 %v952
      %v1979 = vunpack.c.l.b16 %v953
      %v1980 = vunpack.c.l.b16 %v954
      %v1981 = vunpack.c.l.b16 %v955
      %v1982 = vunpack.c.l.b16 %v956
      %v1983 = vpack.c.b16 %v1952, %v1951
      %v1984 = vpack.c.b16 %v1954, %v1953
      %v1985 = vpack.c.b16 %v1956, %v1955
      %v1986 = vpack.c.b16 %v1958, %v1957
      %v1987 = vpack.c.b16 %v1960, %v1959
      %v1988 = vpack.c.b16 %v1962, %v1961
      %v1989 = vpack.c.b16 %v1964, %v1963
      %v1990 = vpack.c.b16 %v1966, %v1965
      %v1991 = vpack.c.b16 %v1968, %v1967
      %v1992 = vpack.c.b16 %v1970, %v1969
      %v1993 = vpack.c.b16 %v1972, %v1971
      %v1994 = vpack.c.b16 %v1974, %v1973
      %v1995 = vpack.c.b16 %v1976, %v1975
      %v1996 = vpack.c.b16 %v1978, %v1977
      %v1997 = vpack.c.b16 %v1980, %v1979
      %v1998 = vpack.c.b16 %v1982, %v1981
      %v2031 = vunpack.c.l.b16 %v957
      %v2032 = vunpack.c.l.b16 %v958
      %v2033 = vunpack.c.l.b16 %v959
      %v2034 = vunpack.c.l.b16 %v960
      %v2035 = vunpack.c.l.b16 %v961
      %v2036 = vunpack.c.l.b16 %v962
      %v2037 = vunpack.c.l.b16 %v963
      %v2038 = vunpack.c.l.b16 %v964
      %v2039 = vunpack.c.l.b16 %v965
      %v2040 = vunpack.c.l.b16 %v966
      %v2041 = vunpack.c.l.b16 %v967
      %v2042 = vunpack.c.l.b16 %v968
      %v2043 = vunpack.c.l.b16 %v969
      %v2044 = vunpack.c.l.b16 %v970
      %v2045 = vunpack.c.l.b16 %v971
      %v2046 = vunpack.c.l.b16 %v972
      %v2047 = vpack.c.b16 %v2031, %v2031
      %v2048 = vpack.c.b16 %v2032, %v2032
      %v2049 = vpack.c.b16 %v2033, %v2033
      %v2050 = vpack.c.b16 %v2034, %v2034
      %v2051 = vpack.c.b16 %v2035, %v2035
      %v2052 = vpack.c.b16 %v2036, %v2036
      %v2053 = vpack.c.b16 %v2037, %v2037
      %v2054 = vpack.c.b16 %v2038, %v2038
      %v2055 = vpack.c.b16 %v2039, %v2039
      %v2056 = vpack.c.b16 %v2040, %v2040
      %v2057 = vpack.c.b16 %v2041, %v2041
      %v2058 = vpack.c.b16 %v2042, %v2042
      %v2059 = vpack.c.b16 %v2043, %v2043
      %v2060 = vpack.c.b16 %v2044, %v2044
      %v2061 = vpack.c.b16 %v2045, %v2045
      %v2062 = vpack.c.b16 %v2046, %v2046
      %v2064 = vshrl.u32 %v1983, 16
      %v2066 = vshll.u32 %v1983, 16
      %v2068 = vrot.slane %v2066, 1
      %v2069 = vor.u32 %v2064, %v2068
      %v2071 = vshll.u32 %v2047, 16
      %v2073 = vrot.slane %v2071, 1
      %v2074 = vsel %vm1133, %v2069, %v2073
      %v2076 = vshrl.u32 %v1984, 16
      %v2078 = vshll.u32 %v1984, 16
      %v2080 = vrot.slane %v2078, 1
      %v2081 = vor.u32 %v2076, %v2080
      %v2083 = vshll.u32 %v2048, 16
      %v2085 = vrot.slane %v2083, 1
      %v2086 = vsel %vm1133, %v2081, %v2085
      %v2088 = vshrl.u32 %v1985, 16
      %v2090 = vshll.u32 %v1985, 16
      %v2092 = vrot.slane %v2090, 1
      %v2093 = vor.u32 %v2088, %v2092
      %v2095 = vshll.u32 %v2049, 16
      %v2097 = vrot.slane %v2095, 1
      %v2098 = vsel %vm1133, %v2093, %v2097
      %v2100 = vshrl.u32 %v1986, 16
      %v2102 = vshll.u32 %v1986, 16
      %v2104 = vrot.slane %v2102, 1
      %v2105 = vor.u32 %v2100, %v2104
      %v2107 = vshll.u32 %v2050, 16
      %v2109 = vrot.slane %v2107, 1
      %v2110 = vsel %vm1133, %v2105, %v2109
      %v2112 = vshrl.u32 %v1987, 16
      %v2114 = vshll.u32 %v1987, 16
      %v2116 = vrot.slane %v2114, 1
      %v2117 = vor.u32 %v2112, %v2116
      %v2119 = vshll.u32 %v2051, 16
      %v2121 = vrot.slane %v2119, 1
      %v2122 = vsel %vm1133, %v2117, %v2121
      %v2124 = vshrl.u32 %v1988, 16
      %v2126 = vshll.u32 %v1988, 16
      %v2128 = vrot.slane %v2126, 1
      %v2129 = vor.u32 %v2124, %v2128
      %v2131 = vshll.u32 %v2052, 16
      %v2133 = vrot.slane %v2131, 1
      %v2134 = vsel %vm1133, %v2129, %v2133
      %v2136 = vshrl.u32 %v1989, 16
      %v2138 = vshll.u32 %v1989, 16
      %v2140 = vrot.slane %v2138, 1
      %v2141 = vor.u32 %v2136, %v2140
      %v2143 = vshll.u32 %v2053, 16
      %v2145 = vrot.slane %v2143, 1
      %v2146 = vsel %vm1133, %v2141, %v2145
      %v2148 = vshrl.u32 %v1990, 16
      %v2150 = vshll.u32 %v1990, 16
      %v2152 = vrot.slane %v2150, 1
      %v2153 = vor.u32 %v2148, %v2152
      %v2155 = vshll.u32 %v2054, 16
      %v2157 = vrot.slane %v2155, 1
      %v2158 = vsel %vm1133, %v2153, %v2157
      %v2160 = vshrl.u32 %v1991, 16
      %v2162 = vshll.u32 %v1991, 16
      %v2164 = vrot.slane %v2162, 1
      %v2165 = vor.u32 %v2160, %v2164
      %v2167 = vshll.u32 %v2055, 16
      %v2169 = vrot.slane %v2167, 1
      %v2170 = vsel %vm1133, %v2165, %v2169
      %v2172 = vshrl.u32 %v1992, 16
      %v2174 = vshll.u32 %v1992, 16
      %v2176 = vrot.slane %v2174, 1
      %v2177 = vor.u32 %v2172, %v2176
      %v2179 = vshll.u32 %v2056, 16
      %v2181 = vrot.slane %v2179, 1
      %v2182 = vsel %vm1133, %v2177, %v2181
      %v2184 = vshrl.u32 %v1993, 16
      %v2186 = vshll.u32 %v1993, 16
      %v2188 = vrot.slane %v2186, 1
      %v2189 = vor.u32 %v2184, %v2188
      %v2191 = vshll.u32 %v2057, 16
      %v2193 = vrot.slane %v2191, 1
      %v2194 = vsel %vm1133, %v2189, %v2193
      %v2196 = vshrl.u32 %v1994, 16
      %v2198 = vshll.u32 %v1994, 16
      %v2200 = vrot.slane %v2198, 1
      %v2201 = vor.u32 %v2196, %v2200
      %v2203 = vshll.u32 %v2058, 16
      %v2205 = vrot.slane %v2203, 1
      %v2206 = vsel %vm1133, %v2201, %v2205
      %v2208 = vshrl.u32 %v1995, 16
      %v2210 = vshll.u32 %v1995, 16
      %v2212 = vrot.slane %v2210, 1
      %v2213 = vor.u32 %v2208, %v2212
      %v2215 = vshll.u32 %v2059, 16
      %v2217 = vrot.slane %v2215, 1
      %v2218 = vsel %vm1133, %v2213, %v2217
      %v2220 = vshrl.u32 %v1996, 16
      %v2222 = vshll.u32 %v1996, 16
      %v2224 = vrot.slane %v2222, 1
      %v2225 = vor.u32 %v2220, %v2224
      %v2227 = vshll.u32 %v2060, 16
      %v2229 = vrot.slane %v2227, 1
      %v2230 = vsel %vm1133, %v2225, %v2229
      %v2232 = vshrl.u32 %v1997, 16
      %v2234 = vshll.u32 %v1997, 16
      %v2236 = vrot.slane %v2234, 1
      %v2237 = vor.u32 %v2232, %v2236
      %v2239 = vshll.u32 %v2061, 16
      %v2241 = vrot.slane %v2239, 1
      %v2242 = vsel %vm1133, %v2237, %v2241
      %v2244 = vshrl.u32 %v1998, 16
      %v2246 = vshll.u32 %v1998, 16
      %v2248 = vrot.slane %v2246, 1
      %v2249 = vor.u32 %v2244, %v2248
      %v2251 = vshll.u32 %v2062, 16
      %v2253 = vrot.slane %v2251, 1
      %v2254 = vsel %vm1133, %v2249, %v2253
      %v2287 = vunpack.c.l.b16 %v973
      %v2288 = vunpack.c.l.b16 %v974
      %v2289 = vunpack.c.l.b16 %v975
      %v2290 = vunpack.c.l.b16 %v976
      %v2291 = vunpack.c.l.b16 %v977
      %v2292 = vunpack.c.l.b16 %v978
      %v2293 = vunpack.c.l.b16 %v979
      %v2294 = vunpack.c.l.b16 %v980
      %v2295 = vunpack.c.l.b16 %v981
      %v2296 = vunpack.c.l.b16 %v982
      %v2297 = vunpack.c.l.b16 %v983
      %v2298 = vunpack.c.l.b16 %v984
      %v2299 = vunpack.c.l.b16 %v985
      %v2300 = vunpack.c.l.b16 %v986
      %v2301 = vunpack.c.l.b16 %v987
      %v2302 = vunpack.c.l.b16 %v988
      %v2303 = vpack.c.b16 %v1952, %v2287
      %v2304 = vpack.c.b16 %v1954, %v2288
      %v2305 = vpack.c.b16 %v1956, %v2289
      %v2306 = vpack.c.b16 %v1958, %v2290
      %v2307 = vpack.c.b16 %v1960, %v2291
      %v2308 = vpack.c.b16 %v1962, %v2292
      %v2309 = vpack.c.b16 %v1964, %v2293
      %v2310 = vpack.c.b16 %v1966, %v2294
      %v2311 = vpack.c.b16 %v1968, %v2295
      %v2312 = vpack.c.b16 %v1970, %v2296
      %v2313 = vpack.c.b16 %v1972, %v2297
      %v2314 = vpack.c.b16 %v1974, %v2298
      %v2315 = vpack.c.b16 %v1976, %v2299
      %v2316 = vpack.c.b16 %v1978, %v2300
      %v2317 = vpack.c.b16 %v1980, %v2301
      %v2318 = vpack.c.b16 %v1982, %v2302
      %v2319 = vrot.slane %v2303, 1
      %v2320 = vrot.slane %v2047, 1
      %v2321 = vsel %vm1390, %v2319, %v2320
      %v2322 = vrot.slane %v2304, 1
      %v2323 = vrot.slane %v2048, 1
      %v2324 = vsel %vm1390, %v2322, %v2323
      %v2325 = vrot.slane %v2305, 1
      %v2326 = vrot.slane %v2049, 1
      %v2327 = vsel %vm1390, %v2325, %v2326
      %v2328 = vrot.slane %v2306, 1
      %v2329 = vrot.slane %v2050, 1
      %v2330 = vsel %vm1390, %v2328, %v2329
      %v2331 = vrot.slane %v2307, 1
      %v2332 = vrot.slane %v2051, 1
      %v2333 = vsel %vm1390, %v2331, %v2332
      %v2334 = vrot.slane %v2308, 1
      %v2335 = vrot.slane %v2052, 1
      %v2336 = vsel %vm1390, %v2334, %v2335
      %v2337 = vrot.slane %v2309, 1
      %v2338 = vrot.slane %v2053, 1
      %v2339 = vsel %vm1390, %v2337, %v2338
      %v2340 = vrot.slane %v2310, 1
      %v2341 = vrot.slane %v2054, 1
      %v2342 = vsel %vm1390, %v2340, %v2341
      %v2343 = vrot.slane %v2311, 1
      %v2344 = vrot.slane %v2055, 1
      %v2345 = vsel %vm1390, %v2343, %v2344
      %v2346 = vrot.slane %v2312, 1
      %v2347 = vrot.slane %v2056, 1
      %v2348 = vsel %vm1390, %v2346, %v2347
      %v2349 = vrot.slane %v2313, 1
      %v2350 = vrot.slane %v2057, 1
      %v2351 = vsel %vm1390, %v2349, %v2350
      %v2352 = vrot.slane %v2314, 1
      %v2353 = vrot.slane %v2058, 1
      %v2354 = vsel %vm1390, %v2352, %v2353
      %v2355 = vrot.slane %v2315, 1
      %v2356 = vrot.slane %v2059, 1
      %v2357 = vsel %vm1390, %v2355, %v2356
      %v2358 = vrot.slane %v2316, 1
      %v2359 = vrot.slane %v2060, 1
      %v2360 = vsel %vm1390, %v2358, %v2359
      %v2361 = vrot.slane %v2317, 1
      %v2362 = vrot.slane %v2061, 1
      %v2363 = vsel %vm1390, %v2361, %v2362
      %v2364 = vrot.slane %v2318, 1
      %v2365 = vrot.slane %v2062, 1
      %v2366 = vsel %vm1390, %v2364, %v2365
      %v2383 = vld [vmem:[%s1] sm:$0xf]
      %v2384 = vld [vmem:[%s1 + $0x4] sm:$0xf]
      %v2385 = vld [vmem:[%s1 + $0x8] sm:$0xf]
      %v2386 = vld [vmem:[%s1 + $0xc] sm:$0xf]
      %v2387 = vld [vmem:[%s1 + $0x10] sm:$0xf]
      %v2388 = vld [vmem:[%s1 + $0x14] sm:$0xf]
      %v2389 = vld [vmem:[%s1 + $0x18] sm:$0xf]
      %v2390 = vld [vmem:[%s1 + $0x1c] sm:$0xf]
      %v2391 = vld [vmem:[%s1 + $0x20] sm:$0xf]
      %v2392 = vld [vmem:[%s1 + $0x24] sm:$0xf]
      %v2393 = vld [vmem:[%s1 + $0x28] sm:$0xf]
      %v2394 = vld [vmem:[%s1 + $0x2c] sm:$0xf]
      %v2395 = vld [vmem:[%s1 + $0x30] sm:$0xf]
      %v2396 = vld [vmem:[%s1 + $0x34] sm:$0xf]
      %v2397 = vld [vmem:[%s1 + $0x38] sm:$0xf]
      %v2398 = vld [vmem:[%s1 + $0x3c] sm:$0xf]
      %v2399 = vld [vmem:[%s1 + $0x40] sm:$0xf]
      %v2400 = vld [vmem:[%s1 + $0x44] sm:$0xf]
      %v2401 = vld [vmem:[%s1 + $0x48] sm:$0xf]
      %v2402 = vld [vmem:[%s1 + $0x4c] sm:$0xf]
      %v2403 = vld [vmem:[%s1 + $0x50] sm:$0xf]
      %v2404 = vld [vmem:[%s1 + $0x54] sm:$0xf]
      %v2405 = vld [vmem:[%s1 + $0x58] sm:$0xf]
      %v2406 = vld [vmem:[%s1 + $0x5c] sm:$0xf]
      %v2407 = vld [vmem:[%s1 + $0x60] sm:$0xf]
      %v2408 = vld [vmem:[%s1 + $0x64] sm:$0xf]
      %v2409 = vld [vmem:[%s1 + $0x68] sm:$0xf]
      %v2410 = vld [vmem:[%s1 + $0x6c] sm:$0xf]
      %v2411 = vld [vmem:[%s1 + $0x70] sm:$0xf]
      %v2412 = vld [vmem:[%s1 + $0x74] sm:$0xf]
      %v2413 = vld [vmem:[%s1 + $0x78] sm:$0xf]
      %v2414 = vld [vmem:[%s1 + $0x7c] sm:$0xf]
      %v2415 = vld [vmem:[%s1 + $0x80] sm:$0xf]
      %v2416 = vld [vmem:[%s1 + $0x84] sm:$0xf]
      %v2417 = vld [vmem:[%s1 + $0x88] sm:$0xf]
      %v2418 = vld [vmem:[%s1 + $0x8c] sm:$0xf]
      %v2419 = vld [vmem:[%s1 + $0x90] sm:$0xf]
      %v2420 = vld [vmem:[%s1 + $0x94] sm:$0xf]
      %v2421 = vld [vmem:[%s1 + $0x98] sm:$0xf]
      %v2422 = vld [vmem:[%s1 + $0x9c] sm:$0xf]
      %v2423 = vld [vmem:[%s1 + $0xa0] sm:$0xf]
      %v2424 = vld [vmem:[%s1 + $0xa4] sm:$0xf]
      %v2425 = vld [vmem:[%s1 + $0xa8] sm:$0xf]
      %v2426 = vld [vmem:[%s1 + $0xac] sm:$0xf]
      %v2427 = vld [vmem:[%s1 + $0xb0] sm:$0xf]
      %v2428 = vld [vmem:[%s1 + $0xb4] sm:$0xf]
      %v2429 = vld [vmem:[%s1 + $0xb8] sm:$0xf]
      %v2430 = vld [vmem:[%s1 + $0xbc] sm:$0xf]
      %v2431 = vld [vmem:[%s1 + $0xc0] sm:$0xf]
      %v2432 = vld [vmem:[%s1 + $0xc4] sm:$0xf]
      %v2433 = vld [vmem:[%s1 + $0xc8] sm:$0xf]
      %v2434 = vld [vmem:[%s1 + $0xcc] sm:$0xf]
      %v2435 = vld [vmem:[%s1 + $0xd0] sm:$0xf]
      %v2436 = vld [vmem:[%s1 + $0xd4] sm:$0xf]
      %v2437 = vld [vmem:[%s1 + $0xd8] sm:$0xf]
      %v2438 = vld [vmem:[%s1 + $0xdc] sm:$0xf]
      %v2439 = vld [vmem:[%s1 + $0xe0] sm:$0xf]
      %v2440 = vld [vmem:[%s1 + $0xe4] sm:$0xf]
      %v2441 = vld [vmem:[%s1 + $0xe8] sm:$0xf]
      %v2442 = vld [vmem:[%s1 + $0xec] sm:$0xf]
      %v2443 = vld [vmem:[%s1 + $0xf0] sm:$0xf]
      %v2444 = vld [vmem:[%s1 + $0xf4] sm:$0xf]
      %v2445 = vld [vmem:[%s1 + $0xf8] sm:$0xf]
      %v2446 = vld [vmem:[%s1 + $0xfc] sm:$0xf]
      %v2447 = vld [vmem:[%s1 + $0x100] sm:$0xf]
      %v2448 = vld [vmem:[%s1 + $0x104] sm:$0xf]
      %v2449 = vld [vmem:[%s1 + $0x108] sm:$0xf]
      %v2450 = vld [vmem:[%s1 + $0x10c] sm:$0xf]
      %v2451 = vld [vmem:[%s1 + $0x110] sm:$0xf]
      %v2452 = vld [vmem:[%s1 + $0x114] sm:$0xf]
      %v2453 = vld [vmem:[%s1 + $0x118] sm:$0xf]
      %v2454 = vld [vmem:[%s1 + $0x11c] sm:$0xf]
      %v2455 = vld [vmem:[%s1 + $0x120] sm:$0xf]
      %v2456 = vld [vmem:[%s1 + $0x124] sm:$0xf]
      %v2457 = vld [vmem:[%s1 + $0x128] sm:$0xf]
      %v2458 = vld [vmem:[%s1 + $0x12c] sm:$0xf]
      %v2459 = vld [vmem:[%s1 + $0x130] sm:$0xf]
      %v2460 = vld [vmem:[%s1 + $0x134] sm:$0xf]
      %v2461 = vld [vmem:[%s1 + $0x138] sm:$0xf]
      %v2462 = vld [vmem:[%s1 + $0x13c] sm:$0xf]
      %v2463 = vld [vmem:[%s1 + $0x140] sm:$0xf]
      %v2464 = vld [vmem:[%s1 + $0x144] sm:$0xf]
      %v2465 = vld [vmem:[%s1 + $0x148] sm:$0xf]
      %v2466 = vld [vmem:[%s1 + $0x14c] sm:$0xf]
      %v2467 = vld [vmem:[%s1 + $0x150] sm:$0xf]
      %v2468 = vld [vmem:[%s1 + $0x154] sm:$0xf]
      %v2469 = vld [vmem:[%s1 + $0x158] sm:$0xf]
      %v2470 = vld [vmem:[%s1 + $0x15c] sm:$0xf]
      %v2471 = vld [vmem:[%s1 + $0x160] sm:$0xf]
      %v2472 = vld [vmem:[%s1 + $0x164] sm:$0xf]
      %v2473 = vld [vmem:[%s1 + $0x168] sm:$0xf]
      %v2474 = vld [vmem:[%s1 + $0x16c] sm:$0xf]
      %v2475 = vld [vmem:[%s1 + $0x170] sm:$0xf]
      %v2476 = vld [vmem:[%s1 + $0x174] sm:$0xf]
      %v2477 = vld [vmem:[%s1 + $0x178] sm:$0xf]
      %v2478 = vld [vmem:[%s1 + $0x17c] sm:$0xf]
      %v2479 = vld [vmem:[%s1 + $0x180] sm:$0xf]
      %v2480 = vld [vmem:[%s1 + $0x184] sm:$0xf]
      %v2481 = vld [vmem:[%s1 + $0x188] sm:$0xf]
      %v2482 = vld [vmem:[%s1 + $0x18c] sm:$0xf]
      %v2483 = vld [vmem:[%s1 + $0x190] sm:$0xf]
      %v2484 = vld [vmem:[%s1 + $0x194] sm:$0xf]
      %v2485 = vld [vmem:[%s1 + $0x198] sm:$0xf]
      %v2486 = vld [vmem:[%s1 + $0x19c] sm:$0xf]
      %v2487 = vld [vmem:[%s1 + $0x1a0] sm:$0xf]
      %v2488 = vld [vmem:[%s1 + $0x1a4] sm:$0xf]
      %v2489 = vld [vmem:[%s1 + $0x1a8] sm:$0xf]
      %v2490 = vld [vmem:[%s1 + $0x1ac] sm:$0xf]
      %v2491 = vld [vmem:[%s1 + $0x1b0] sm:$0xf]
      %v2492 = vld [vmem:[%s1 + $0x1b4] sm:$0xf]
      %v2493 = vld [vmem:[%s1 + $0x1b8] sm:$0xf]
      %v2494 = vld [vmem:[%s1 + $0x1bc] sm:$0xf]
      %v2495 = vld [vmem:[%s1 + $0x1c0] sm:$0xf]
      %v2496 = vld [vmem:[%s1 + $0x1c4] sm:$0xf]
      %v2497 = vld [vmem:[%s1 + $0x1c8] sm:$0xf]
      %v2498 = vld [vmem:[%s1 + $0x1cc] sm:$0xf]
      %v2499 = vld [vmem:[%s1 + $0x1d0] sm:$0xf]
      %v2500 = vld [vmem:[%s1 + $0x1d4] sm:$0xf]
      %v2501 = vld [vmem:[%s1 + $0x1d8] sm:$0xf]
      %v2502 = vld [vmem:[%s1 + $0x1dc] sm:$0xf]
      %v2503 = vld [vmem:[%s1 + $0x1e0] sm:$0xf]
      %v2504 = vld [vmem:[%s1 + $0x1e4] sm:$0xf]
      %v2505 = vld [vmem:[%s1 + $0x1e8] sm:$0xf]
      %v2506 = vld [vmem:[%s1 + $0x1ec] sm:$0xf]
      %v2507 = vld [vmem:[%s1 + $0x1f0] sm:$0xf]
      %v2508 = vld [vmem:[%s1 + $0x1f4] sm:$0xf]
      %v2509 = vld [vmem:[%s1 + $0x1f8] sm:$0xf]
      %v2510 = vld [vmem:[%s1 + $0x1fc] sm:$0xf]
      %v2511 = vld [vmem:[%s1 + $0x200] sm:$0xf]
      %v2512 = vld [vmem:[%s1 + $0x204] sm:$0xf]
      %v2513 = vld [vmem:[%s1 + $0x208] sm:$0xf]
      %v2514 = vld [vmem:[%s1 + $0x20c] sm:$0xf]
      %v2515 = vld [vmem:[%s1 + $0x210] sm:$0xf]
      %v2516 = vld [vmem:[%s1 + $0x214] sm:$0xf]
      %v2517 = vld [vmem:[%s1 + $0x218] sm:$0xf]
      %v2518 = vld [vmem:[%s1 + $0x21c] sm:$0xf]
      %v2519 = vld [vmem:[%s1 + $0x220] sm:$0xf]
      %v2520 = vld [vmem:[%s1 + $0x224] sm:$0xf]
      %v2521 = vld [vmem:[%s1 + $0x228] sm:$0xf]
      %v2522 = vld [vmem:[%s1 + $0x22c] sm:$0xf]
      %v2523 = vld [vmem:[%s1 + $0x230] sm:$0xf]
      %v2524 = vld [vmem:[%s1 + $0x234] sm:$0xf]
      %v2525 = vld [vmem:[%s1 + $0x238] sm:$0xf]
      %v2526 = vld [vmem:[%s1 + $0x23c] sm:$0xf]
      %v2671 = vunpack.c.l.b16 %v2383
      %v2672 = vunpack.c.l.b16 %v2384
      %v2673 = vunpack.c.l.b16 %v2385
      %v2674 = vunpack.c.l.b16 %v2386
      %v2675 = vunpack.c.l.b16 %v2387
      %v2676 = vunpack.c.l.b16 %v2388
      %v2677 = vunpack.c.l.b16 %v2389
      %v2678 = vunpack.c.l.b16 %v2390
      %v2679 = vunpack.c.l.b16 %v2391
      %v2680 = vunpack.c.l.b16 %v2392
      %v2681 = vunpack.c.l.b16 %v2393
      %v2682 = vunpack.c.l.b16 %v2394
      %v2683 = vunpack.c.l.b16 %v2395
      %v2684 = vunpack.c.l.b16 %v2396
      %v2685 = vunpack.c.l.b16 %v2397
      %v2686 = vunpack.c.l.b16 %v2398
      %v2687 = vunpack.c.l.b16 %v2399
      %v2688 = vunpack.c.l.b16 %v2400
      %v2689 = vunpack.c.l.b16 %v2401
      %v2690 = vunpack.c.l.b16 %v2402
      %v2691 = vunpack.c.l.b16 %v2403
      %v2692 = vunpack.c.l.b16 %v2404
      %v2693 = vunpack.c.l.b16 %v2405
      %v2694 = vunpack.c.l.b16 %v2406
      %v2695 = vunpack.c.l.b16 %v2407
      %v2696 = vunpack.c.l.b16 %v2408
      %v2697 = vunpack.c.l.b16 %v2409
      %v2698 = vunpack.c.l.b16 %v2410
      %v2699 = vunpack.c.l.b16 %v2411
      %v2700 = vunpack.c.l.b16 %v2412
      %v2701 = vunpack.c.l.b16 %v2413
      %v2702 = vunpack.c.l.b16 %v2414
      %v2703 = vunpack.c.l.b16 %v2415
      %v2704 = vunpack.c.l.b16 %v2416
      %v2705 = vunpack.c.l.b16 %v2417
      %v2706 = vunpack.c.l.b16 %v2418
      %v2707 = vunpack.c.l.b16 %v2419
      %v2708 = vunpack.c.l.b16 %v2420
      %v2709 = vunpack.c.l.b16 %v2421
      %v2710 = vunpack.c.l.b16 %v2422
      %v2711 = vunpack.c.l.b16 %v2423
      %v2712 = vunpack.c.l.b16 %v2424
      %v2713 = vunpack.c.l.b16 %v2425
      %v2714 = vunpack.c.l.b16 %v2426
      %v2715 = vunpack.c.l.b16 %v2427
      %v2716 = vunpack.c.l.b16 %v2428
      %v2717 = vunpack.c.l.b16 %v2429
      %v2718 = vunpack.c.l.b16 %v2430
      %v2719 = vunpack.c.l.b16 %v2431
      %v2720 = vunpack.c.l.b16 %v2432
      %v2721 = vunpack.c.l.b16 %v2433
      %v2722 = vunpack.c.l.b16 %v2434
      %v2723 = vunpack.c.l.b16 %v2435
      %v2724 = vunpack.c.l.b16 %v2436
      %v2725 = vunpack.c.l.b16 %v2437
      %v2726 = vunpack.c.l.b16 %v2438
      %v2727 = vunpack.c.l.b16 %v2439
      %v2728 = vunpack.c.l.b16 %v2440
      %v2729 = vunpack.c.l.b16 %v2441
      %v2730 = vunpack.c.l.b16 %v2442
      %v2731 = vunpack.c.l.b16 %v2443
      %v2732 = vunpack.c.l.b16 %v2444
      %v2733 = vunpack.c.l.b16 %v2445
      %v2734 = vunpack.c.l.b16 %v2446
      %v2735 = vunpack.c.l.b16 %v2447
      %v2736 = vunpack.c.l.b16 %v2448
      %v2737 = vunpack.c.l.b16 %v2449
      %v2738 = vunpack.c.l.b16 %v2450
      %v2739 = vunpack.c.l.b16 %v2451
      %v2740 = vunpack.c.l.b16 %v2452
      %v2741 = vunpack.c.l.b16 %v2453
      %v2742 = vunpack.c.l.b16 %v2454
      %v2743 = vunpack.c.l.b16 %v2455
      %v2744 = vunpack.c.l.b16 %v2456
      %v2745 = vunpack.c.l.b16 %v2457
      %v2746 = vunpack.c.l.b16 %v2458
      %v2747 = vunpack.c.l.b16 %v2459
      %v2748 = vunpack.c.l.b16 %v2460
      %v2749 = vunpack.c.l.b16 %v2461
      %v2750 = vunpack.c.l.b16 %v2462
      %v2751 = vunpack.c.l.b16 %v2463
      %v2752 = vunpack.c.l.b16 %v2464
      %v2753 = vunpack.c.l.b16 %v2465
      %v2754 = vunpack.c.l.b16 %v2466
      %v2755 = vunpack.c.l.b16 %v2467
      %v2756 = vunpack.c.l.b16 %v2468
      %v2757 = vunpack.c.l.b16 %v2469
      %v2758 = vunpack.c.l.b16 %v2470
      %v2759 = vunpack.c.l.b16 %v2471
      %v2760 = vunpack.c.l.b16 %v2472
      %v2761 = vunpack.c.l.b16 %v2473
      %v2762 = vunpack.c.l.b16 %v2474
      %v2763 = vunpack.c.l.b16 %v2475
      %v2764 = vunpack.c.l.b16 %v2476
      %v2765 = vunpack.c.l.b16 %v2477
      %v2766 = vunpack.c.l.b16 %v2478
      %v2767 = vunpack.c.l.b16 %v2479
      %v2768 = vunpack.c.l.b16 %v2480
      %v2769 = vunpack.c.l.b16 %v2481
      %v2770 = vunpack.c.l.b16 %v2482
      %v2771 = vunpack.c.l.b16 %v2483
      %v2772 = vunpack.c.l.b16 %v2484
      %v2773 = vunpack.c.l.b16 %v2485
      %v2774 = vunpack.c.l.b16 %v2486
      %v2775 = vunpack.c.l.b16 %v2487
      %v2776 = vunpack.c.l.b16 %v2488
      %v2777 = vunpack.c.l.b16 %v2489
      %v2778 = vunpack.c.l.b16 %v2490
      %v2779 = vunpack.c.l.b16 %v2491
      %v2780 = vunpack.c.l.b16 %v2492
      %v2781 = vunpack.c.l.b16 %v2493
      %v2782 = vunpack.c.l.b16 %v2494
      %v2783 = vunpack.c.l.b16 %v2495
      %v2784 = vunpack.c.l.b16 %v2496
      %v2785 = vunpack.c.l.b16 %v2497
      %v2786 = vunpack.c.l.b16 %v2498
      %v2787 = vunpack.c.l.b16 %v2499
      %v2788 = vunpack.c.l.b16 %v2500
      %v2789 = vunpack.c.l.b16 %v2501
      %v2790 = vunpack.c.l.b16 %v2502
      %v2791 = vunpack.c.l.b16 %v2503
      %v2792 = vunpack.c.l.b16 %v2504
      %v2793 = vunpack.c.l.b16 %v2505
      %v2794 = vunpack.c.l.b16 %v2506
      %v2795 = vunpack.c.l.b16 %v2507
      %v2796 = vunpack.c.l.b16 %v2508
      %v2797 = vunpack.c.l.b16 %v2509
      %v2798 = vunpack.c.l.b16 %v2510
      %v2799 = vunpack.c.l.b16 %v2511
      %v2800 = vunpack.c.l.b16 %v2512
      %v2801 = vunpack.c.l.b16 %v2513
      %v2802 = vunpack.c.l.b16 %v2514
      %v2803 = vunpack.c.l.b16 %v2515
      %v2804 = vunpack.c.l.b16 %v2516
      %v2805 = vunpack.c.l.b16 %v2517
      %v2806 = vunpack.c.l.b16 %v2518
      %v2807 = vunpack.c.l.b16 %v2519
      %v2808 = vunpack.c.l.b16 %v2520
      %v2809 = vunpack.c.l.b16 %v2521
      %v2810 = vunpack.c.l.b16 %v2522
      %v2811 = vunpack.c.l.b16 %v2523
      %v2812 = vunpack.c.l.b16 %v2524
      %v2813 = vunpack.c.l.b16 %v2525
      %v2814 = vunpack.c.l.b16 %v2526
      %v2815 = vpack.c.b16 %v2672, %v2671
      %v2816 = vpack.c.b16 %v2674, %v2673
      %v2817 = vpack.c.b16 %v2676, %v2675
      %v2818 = vpack.c.b16 %v2678, %v2677
      %v2819 = vpack.c.b16 %v2680, %v2679
      %v2820 = vpack.c.b16 %v2682, %v2681
      %v2821 = vpack.c.b16 %v2684, %v2683
      %v2822 = vpack.c.b16 %v2686, %v2685
      %v2823 = vpack.c.b16 %v2688, %v2687
      %v2824 = vpack.c.b16 %v2690, %v2689
      %v2825 = vpack.c.b16 %v2692, %v2691
      %v2826 = vpack.c.b16 %v2694, %v2693
      %v2827 = vpack.c.b16 %v2696, %v2695
      %v2828 = vpack.c.b16 %v2698, %v2697
      %v2829 = vpack.c.b16 %v2700, %v2699
      %v2830 = vpack.c.b16 %v2702, %v2701
      %v2831 = vpack.c.b16 %v2704, %v2703
      %v2832 = vpack.c.b16 %v2706, %v2705
      %v2833 = vpack.c.b16 %v2708, %v2707
      %v2834 = vpack.c.b16 %v2710, %v2709
      %v2835 = vpack.c.b16 %v2712, %v2711
      %v2836 = vpack.c.b16 %v2714, %v2713
      %v2837 = vpack.c.b16 %v2716, %v2715
      %v2838 = vpack.c.b16 %v2718, %v2717
      %v2839 = vpack.c.b16 %v2720, %v2719
      %v2840 = vpack.c.b16 %v2722, %v2721
      %v2841 = vpack.c.b16 %v2724, %v2723
      %v2842 = vpack.c.b16 %v2726, %v2725
      %v2843 = vpack.c.b16 %v2728, %v2727
      %v2844 = vpack.c.b16 %v2730, %v2729
      %v2845 = vpack.c.b16 %v2732, %v2731
      %v2846 = vpack.c.b16 %v2734, %v2733
      %v2847 = vpack.c.b16 %v2736, %v2735
      %v2848 = vpack.c.b16 %v2738, %v2737
      %v2849 = vpack.c.b16 %v2740, %v2739
      %v2850 = vpack.c.b16 %v2742, %v2741
      %v2851 = vpack.c.b16 %v2744, %v2743
      %v2852 = vpack.c.b16 %v2746, %v2745
      %v2853 = vpack.c.b16 %v2748, %v2747
      %v2854 = vpack.c.b16 %v2750, %v2749
      %v2855 = vpack.c.b16 %v2752, %v2751
      %v2856 = vpack.c.b16 %v2754, %v2753
      %v2857 = vpack.c.b16 %v2756, %v2755
      %v2858 = vpack.c.b16 %v2758, %v2757
      %v2859 = vpack.c.b16 %v2760, %v2759
      %v2860 = vpack.c.b16 %v2762, %v2761
      %v2861 = vpack.c.b16 %v2764, %v2763
      %v2862 = vpack.c.b16 %v2766, %v2765
      %v2863 = vpack.c.b16 %v2768, %v2767
      %v2864 = vpack.c.b16 %v2770, %v2769
      %v2865 = vpack.c.b16 %v2772, %v2771
      %v2866 = vpack.c.b16 %v2774, %v2773
      %v2867 = vpack.c.b16 %v2776, %v2775
      %v2868 = vpack.c.b16 %v2778, %v2777
      %v2869 = vpack.c.b16 %v2780, %v2779
      %v2870 = vpack.c.b16 %v2782, %v2781
      %v2871 = vpack.c.b16 %v2784, %v2783
      %v2872 = vpack.c.b16 %v2786, %v2785
      %v2873 = vpack.c.b16 %v2788, %v2787
      %v2874 = vpack.c.b16 %v2790, %v2789
      %v2875 = vpack.c.b16 %v2792, %v2791
      %v2876 = vpack.c.b16 %v2794, %v2793
      %v2877 = vpack.c.b16 %v2796, %v2795
      %v2878 = vpack.c.b16 %v2798, %v2797
      %v2879 = vpack.c.b16 %v2800, %v2799
      %v2880 = vpack.c.b16 %v2802, %v2801
      %v2881 = vpack.c.b16 %v2804, %v2803
      %v2882 = vpack.c.b16 %v2806, %v2805
      %v2883 = vpack.c.b16 %v2808, %v2807
      %v2884 = vpack.c.b16 %v2810, %v2809
      %v2885 = vpack.c.b16 %v2812, %v2811
      %v2886 = vpack.c.b16 %v2814, %v2813
      %2959 = vmatpush.bf16.msra.mxu0 %v2822
      %2960 = vmatpush.bf16.msra.mxu0 %v2821
      %2961 = vmatpush.bf16.msra.mxu0 %v2820
      %2962 = vmatpush.bf16.msra.mxu0 %v2819
      %2963 = vmatpush.bf16.msra.mxu0 %v2818
      %2964 = vmatpush.bf16.msra.mxu0 %v2817
      %2965 = vmatpush.bf16.msra.mxu0 %v2816
      %2966 = vmatpush.bf16.msra.mxu0 %v2815
      %2967 = vmatmul.bf16.gmra.mxu0 %v1053
      %v2968 = vpop.f32.mrf.mxu0
      %v2969 = vadd.f32 0.0, %v2968
      %v2970 = vpop.f32.mrf.mxu0
      %v2971 = vadd.f32 0.0, %v2970
      %2972 = vmatmul.bf16.gmra.mxu0 %v1054
      %v2973 = vpop.f32.mrf.mxu0
      %v2974 = vadd.f32 0.0, %v2973
      %v2975 = vpop.f32.mrf.mxu0
      %v2976 = vadd.f32 0.0, %v2975
      %2977 = vmatmul.bf16.gmra.mxu0 %v1055
      %v2978 = vpop.f32.mrf.mxu0
      %v2979 = vadd.f32 0.0, %v2978
      %v2980 = vpop.f32.mrf.mxu0
      %v2981 = vadd.f32 0.0, %v2980
      %2982 = vmatmul.bf16.gmra.mxu0 %v1056
      %v2983 = vpop.f32.mrf.mxu0
      %v2984 = vadd.f32 0.0, %v2983
      %v2985 = vpop.f32.mrf.mxu0
      %v2986 = vadd.f32 0.0, %v2985
      %2987 = vmatmul.bf16.gmra.mxu0 %v1057
      %v2988 = vpop.f32.mrf.mxu0
      %v2989 = vadd.f32 0.0, %v2988
      %v2990 = vpop.f32.mrf.mxu0
      %v2991 = vadd.f32 0.0, %v2990
      %2992 = vmatmul.bf16.gmra.mxu0 %v1058
      %v2993 = vpop.f32.mrf.mxu0
      %v2994 = vadd.f32 0.0, %v2993
      %v2995 = vpop.f32.mrf.mxu0
      %v2996 = vadd.f32 0.0, %v2995
      %2997 = vmatmul.bf16.gmra.mxu0 %v1059
      %v2998 = vpop.f32.mrf.mxu0
      %v2999 = vadd.f32 0.0, %v2998
      %v3000 = vpop.f32.mrf.mxu0
      %v3001 = vadd.f32 0.0, %v3000
      %3002 = vmatmul.bf16.gmra.mxu0 %v1060
      %v3003 = vpop.f32.mrf.mxu0
      %v3004 = vadd.f32 0.0, %v3003
      %v3005 = vpop.f32.mrf.mxu0
      %v3006 = vadd.f32 0.0, %v3005
      %3007 = vmatmul.bf16.gmra.mxu0 %v1061
      %v3008 = vpop.f32.mrf.mxu0
      %v3009 = vadd.f32 0.0, %v3008
      %v3010 = vpop.f32.mrf.mxu0
      %v3011 = vadd.f32 0.0, %v3010
      %3012 = vmatmul.bf16.gmra.mxu0 %v1062
      %v3013 = vpop.f32.mrf.mxu0
      %v3014 = vadd.f32 0.0, %v3013
      %v3015 = vpop.f32.mrf.mxu0
      %v3016 = vadd.f32 0.0, %v3015
      %3017 = vmatmul.bf16.gmra.mxu0 %v1063
      %v3018 = vpop.f32.mrf.mxu0
      %v3019 = vadd.f32 0.0, %v3018
      %v3020 = vpop.f32.mrf.mxu0
      %v3021 = vadd.f32 0.0, %v3020
      %3022 = vmatmul.bf16.gmra.mxu0 %v1064
      %v3023 = vpop.f32.mrf.mxu0
      %v3024 = vadd.f32 0.0, %v3023
      %v3025 = vpop.f32.mrf.mxu0
      %v3026 = vadd.f32 0.0, %v3025
      %3027 = vmatmul.bf16.gmra.mxu0 %v1065
      %v3028 = vpop.f32.mrf.mxu0
      %v3029 = vadd.f32 0.0, %v3028
      %v3030 = vpop.f32.mrf.mxu0
      %v3031 = vadd.f32 0.0, %v3030
      %3032 = vmatmul.bf16.gmra.mxu0 %v1066
      %v3033 = vpop.f32.mrf.mxu0
      %v3034 = vadd.f32 0.0, %v3033
      %v3035 = vpop.f32.mrf.mxu0
      %v3036 = vadd.f32 0.0, %v3035
      %3037 = vmatmul.bf16.gmra.mxu0 %v1067
      %v3038 = vpop.f32.mrf.mxu0
      %v3039 = vadd.f32 0.0, %v3038
      %v3040 = vpop.f32.mrf.mxu0
      %v3041 = vadd.f32 0.0, %v3040
      %3042 = vmatmul.bf16.gmra.mxu0 %v1068
      %v3043 = vpop.f32.mrf.mxu0
      %v3044 = vadd.f32 0.0, %v3043
      %v3045 = vpop.f32.mrf.mxu0
      %v3046 = vadd.f32 0.0, %v3045
      %3047 = vdwg.mxu0
      %3048 = vmatpush.bf16.msra.mxu0 %v2830
      %3049 = vmatpush.bf16.msra.mxu0 %v2829
      %3050 = vmatpush.bf16.msra.mxu0 %v2828
      %3051 = vmatpush.bf16.msra.mxu0 %v2827
      %3052 = vmatpush.bf16.msra.mxu0 %v2826
      %3053 = vmatpush.bf16.msra.mxu0 %v2825
      %3054 = vmatpush.bf16.msra.mxu0 %v2824
      %3055 = vmatpush.bf16.msra.mxu0 %v2823
      %3056 = vmatmul.bf16.gmra.mxu0 %v1145
      %v3057 = vpop.f32.mrf.mxu0
      %v3058 = vadd.f32 %v2969, %v3057
      %v3059 = vpop.f32.mrf.mxu0
      %v3060 = vadd.f32 %v2971, %v3059
      %3061 = vmatmul.bf16.gmra.mxu0 %v1157
      %v3062 = vpop.f32.mrf.mxu0
      %v3063 = vadd.f32 %v2974, %v3062
      %v3064 = vpop.f32.mrf.mxu0
      %v3065 = vadd.f32 %v2976, %v3064
      %3066 = vmatmul.bf16.gmra.mxu0 %v1169
      %v3067 = vpop.f32.mrf.mxu0
      %v3068 = vadd.f32 %v2979, %v3067
      %v3069 = vpop.f32.mrf.mxu0
      %v3070 = vadd.f32 %v2981, %v3069
      %3071 = vmatmul.bf16.gmra.mxu0 %v1181
      %v3072 = vpop.f32.mrf.mxu0
      %v3073 = vadd.f32 %v2984, %v3072
      %v3074 = vpop.f32.mrf.mxu0
      %v3075 = vadd.f32 %v2986, %v3074
      %3076 = vmatmul.bf16.gmra.mxu0 %v1193
      %v3077 = vpop.f32.mrf.mxu0
      %v3078 = vadd.f32 %v2989, %v3077
      %v3079 = vpop.f32.mrf.mxu0
      %v3080 = vadd.f32 %v2991, %v3079
      %3081 = vmatmul.bf16.gmra.mxu0 %v1205
      %v3082 = vpop.f32.mrf.mxu0
      %v3083 = vadd.f32 %v2994, %v3082
      %v3084 = vpop.f32.mrf.mxu0
      %v3085 = vadd.f32 %v2996, %v3084
      %3086 = vmatmul.bf16.gmra.mxu0 %v1217
      %v3087 = vpop.f32.mrf.mxu0
      %v3088 = vadd.f32 %v2999, %v3087
      %v3089 = vpop.f32.mrf.mxu0
      %v3090 = vadd.f32 %v3001, %v3089
      %3091 = vmatmul.bf16.gmra.mxu0 %v1229
      %v3092 = vpop.f32.mrf.mxu0
      %v3093 = vadd.f32 %v3004, %v3092
      %v3094 = vpop.f32.mrf.mxu0
      %v3095 = vadd.f32 %v3006, %v3094
      %3096 = vmatmul.bf16.gmra.mxu0 %v1241
      %v3097 = vpop.f32.mrf.mxu0
      %v3098 = vadd.f32 %v3009, %v3097
      %v3099 = vpop.f32.mrf.mxu0
      %v3100 = vadd.f32 %v3011, %v3099
      %3101 = vmatmul.bf16.gmra.mxu0 %v1253
      %v3102 = vpop.f32.mrf.mxu0
      %v3103 = vadd.f32 %v3014, %v3102
      %v3104 = vpop.f32.mrf.mxu0
      %v3105 = vadd.f32 %v3016, %v3104
      %3106 = vmatmul.bf16.gmra.mxu0 %v1265
      %v3107 = vpop.f32.mrf.mxu0
      %v3108 = vadd.f32 %v3019, %v3107
      %v3109 = vpop.f32.mrf.mxu0
      %v3110 = vadd.f32 %v3021, %v3109
      %3111 = vmatmul.bf16.gmra.mxu0 %v1277
      %v3112 = vpop.f32.mrf.mxu0
      %v3113 = vadd.f32 %v3024, %v3112
      %v3114 = vpop.f32.mrf.mxu0
      %v3115 = vadd.f32 %v3026, %v3114
      %3116 = vmatmul.bf16.gmra.mxu0 %v1289
      %v3117 = vpop.f32.mrf.mxu0
      %v3118 = vadd.f32 %v3029, %v3117
      %v3119 = vpop.f32.mrf.mxu0
      %v3120 = vadd.f32 %v3031, %v3119
      %3121 = vmatmul.bf16.gmra.mxu0 %v1301
      %v3122 = vpop.f32.mrf.mxu0
      %v3123 = vadd.f32 %v3034, %v3122
      %v3124 = vpop.f32.mrf.mxu0
      %v3125 = vadd.f32 %v3036, %v3124
      %3126 = vmatmul.bf16.gmra.mxu0 %v1313
      %v3127 = vpop.f32.mrf.mxu0
      %v3128 = vadd.f32 %v3039, %v3127
      %v3129 = vpop.f32.mrf.mxu0
      %v3130 = vadd.f32 %v3041, %v3129
      %3131 = vmatmul.bf16.gmra.mxu0 %v1325
      %v3132 = vpop.f32.mrf.mxu0
      %v3133 = vadd.f32 %v3044, %v3132
      %v3134 = vpop.f32.mrf.mxu0
      %v3135 = vadd.f32 %v3046, %v3134
      %3136 = vdwg.mxu0
      %3137 = vmatpush.bf16.msra.mxu0 %v2838
      %3138 = vmatpush.bf16.msra.mxu0 %v2837
      %3139 = vmatpush.bf16.msra.mxu0 %v2836
      %3140 = vmatpush.bf16.msra.mxu0 %v2835
      %3141 = vmatpush.bf16.msra.mxu0 %v2834
      %3142 = vmatpush.bf16.msra.mxu0 %v2833
      %3143 = vmatpush.bf16.msra.mxu0 %v2832
      %3144 = vmatpush.bf16.msra.mxu0 %v2831
      %3145 = vmatmul.bf16.gmra.mxu0 %v1393
      %v3146 = vpop.f32.mrf.mxu0
      %v3147 = vadd.f32 %v3058, %v3146
      %v3148 = vpop.f32.mrf.mxu0
      %v3149 = vadd.f32 %v3060, %v3148
      %3150 = vmatmul.bf16.gmra.mxu0 %v1396
      %v3151 = vpop.f32.mrf.mxu0
      %v3152 = vadd.f32 %v3063, %v3151
      %v3153 = vpop.f32.mrf.mxu0
      %v3154 = vadd.f32 %v3065, %v3153
      %3155 = vmatmul.bf16.gmra.mxu0 %v1399
      %v3156 = vpop.f32.mrf.mxu0
      %v3157 = vadd.f32 %v3068, %v3156
      %v3158 = vpop.f32.mrf.mxu0
      %v3159 = vadd.f32 %v3070, %v3158
      %3160 = vmatmul.bf16.gmra.mxu0 %v1402
      %v3161 = vpop.f32.mrf.mxu0
      %v3162 = vadd.f32 %v3073, %v3161
      %v3163 = vpop.f32.mrf.mxu0
      %v3164 = vadd.f32 %v3075, %v3163
      %3165 = vmatmul.bf16.gmra.mxu0 %v1405
      %v3166 = vpop.f32.mrf.mxu0
      %v3167 = vadd.f32 %v3078, %v3166
      %v3168 = vpop.f32.mrf.mxu0
      %v3169 = vadd.f32 %v3080, %v3168
      %3170 = vmatmul.bf16.gmra.mxu0 %v1408
      %v3171 = vpop.f32.mrf.mxu0
      %v3172 = vadd.f32 %v3083, %v3171
      %v3173 = vpop.f32.mrf.mxu0
      %v3174 = vadd.f32 %v3085, %v3173
      %3175 = vmatmul.bf16.gmra.mxu0 %v1411
      %v3176 = vpop.f32.mrf.mxu0
      %v3177 = vadd.f32 %v3088, %v3176
      %v3178 = vpop.f32.mrf.mxu0
      %v3179 = vadd.f32 %v3090, %v3178
      %3180 = vmatmul.bf16.gmra.mxu0 %v1414
      %v3181 = vpop.f32.mrf.mxu0
      %v3182 = vadd.f32 %v3093, %v3181
      %v3183 = vpop.f32.mrf.mxu0
      %v3184 = vadd.f32 %v3095, %v3183
      %3185 = vmatmul.bf16.gmra.mxu0 %v1417
      %v3186 = vpop.f32.mrf.mxu0
      %v3187 = vadd.f32 %v3098, %v3186
      %v3188 = vpop.f32.mrf.mxu0
      %v3189 = vadd.f32 %v3100, %v3188
      %3190 = vmatmul.bf16.gmra.mxu0 %v1420
      %v3191 = vpop.f32.mrf.mxu0
      %v3192 = vadd.f32 %v3103, %v3191
      %v3193 = vpop.f32.mrf.mxu0
      %v3194 = vadd.f32 %v3105, %v3193
      %3195 = vmatmul.bf16.gmra.mxu0 %v1423
      %v3196 = vpop.f32.mrf.mxu0
      %v3197 = vadd.f32 %v3108, %v3196
      %v3198 = vpop.f32.mrf.mxu0
      %v3199 = vadd.f32 %v3110, %v3198
      %3200 = vmatmul.bf16.gmra.mxu0 %v1426
      %v3201 = vpop.f32.mrf.mxu0
      %v3202 = vadd.f32 %v3113, %v3201
      %v3203 = vpop.f32.mrf.mxu0
      %v3204 = vadd.f32 %v3115, %v3203
      %3205 = vmatmul.bf16.gmra.mxu0 %v1429
      %v3206 = vpop.f32.mrf.mxu0
      %v3207 = vadd.f32 %v3118, %v3206
      %v3208 = vpop.f32.mrf.mxu0
      %v3209 = vadd.f32 %v3120, %v3208
      %3210 = vmatmul.bf16.gmra.mxu0 %v1432
      %v3211 = vpop.f32.mrf.mxu0
      %v3212 = vadd.f32 %v3123, %v3211
      %v3213 = vpop.f32.mrf.mxu0
      %v3214 = vadd.f32 %v3125, %v3213
      %3215 = vmatmul.bf16.gmra.mxu0 %v1435
      %v3216 = vpop.f32.mrf.mxu0
      %v3217 = vadd.f32 %v3128, %v3216
      %v3218 = vpop.f32.mrf.mxu0
      %v3219 = vadd.f32 %v3130, %v3218
      %3220 = vmatmul.bf16.gmra.mxu0 %v1438
      %v3221 = vpop.f32.mrf.mxu0
      %v3222 = vadd.f32 %v3133, %v3221
      %v3223 = vpop.f32.mrf.mxu0
      %v3224 = vadd.f32 %v3135, %v3223
      %3225 = vdwg.mxu0
      %3226 = vmatpush.bf16.msra.mxu0 %v2846
      %3227 = vmatpush.bf16.msra.mxu0 %v2845
      %3228 = vmatpush.bf16.msra.mxu0 %v2844
      %3229 = vmatpush.bf16.msra.mxu0 %v2843
      %3230 = vmatpush.bf16.msra.mxu0 %v2842
      %3231 = vmatpush.bf16.msra.mxu0 %v2841
      %3232 = vmatpush.bf16.msra.mxu0 %v2840
      %3233 = vmatpush.bf16.msra.mxu0 %v2839
      %3234 = vmatmul.bf16.gmra.mxu0 %v1519
      %v3235 = vpop.f32.mrf.mxu0
      %v3236 = vadd.f32 %v3147, %v3235
      %v3237 = vpop.f32.mrf.mxu0
      %v3238 = vadd.f32 %v3149, %v3237
      %3239 = vmatmul.bf16.gmra.mxu0 %v1520
      %v3240 = vpop.f32.mrf.mxu0
      %v3241 = vadd.f32 %v3152, %v3240
      %v3242 = vpop.f32.mrf.mxu0
      %v3243 = vadd.f32 %v3154, %v3242
      %3244 = vmatmul.bf16.gmra.mxu0 %v1521
      %v3245 = vpop.f32.mrf.mxu0
      %v3246 = vadd.f32 %v3157, %v3245
      %v3247 = vpop.f32.mrf.mxu0
      %v3248 = vadd.f32 %v3159, %v3247
      %3249 = vmatmul.bf16.gmra.mxu0 %v1522
      %v3250 = vpop.f32.mrf.mxu0
      %v3251 = vadd.f32 %v3162, %v3250
      %v3252 = vpop.f32.mrf.mxu0
      %v3253 = vadd.f32 %v3164, %v3252
      %3254 = vmatmul.bf16.gmra.mxu0 %v1523
      %v3255 = vpop.f32.mrf.mxu0
      %v3256 = vadd.f32 %v3167, %v3255
      %v3257 = vpop.f32.mrf.mxu0
      %v3258 = vadd.f32 %v3169, %v3257
      %3259 = vmatmul.bf16.gmra.mxu0 %v1524
      %v3260 = vpop.f32.mrf.mxu0
      %v3261 = vadd.f32 %v3172, %v3260
      %v3262 = vpop.f32.mrf.mxu0
      %v3263 = vadd.f32 %v3174, %v3262
      %3264 = vmatmul.bf16.gmra.mxu0 %v1525
      %v3265 = vpop.f32.mrf.mxu0
      %v3266 = vadd.f32 %v3177, %v3265
      %v3267 = vpop.f32.mrf.mxu0
      %v3268 = vadd.f32 %v3179, %v3267
      %3269 = vmatmul.bf16.gmra.mxu0 %v1526
      %v3270 = vpop.f32.mrf.mxu0
      %v3271 = vadd.f32 %v3182, %v3270
      %v3272 = vpop.f32.mrf.mxu0
      %v3273 = vadd.f32 %v3184, %v3272
      %3274 = vmatmul.bf16.gmra.mxu0 %v1527
      %v3275 = vpop.f32.mrf.mxu0
      %v3276 = vadd.f32 %v3187, %v3275
      %v3277 = vpop.f32.mrf.mxu0
      %v3278 = vadd.f32 %v3189, %v3277
      %3279 = vmatmul.bf16.gmra.mxu0 %v1528
      %v3280 = vpop.f32.mrf.mxu0
      %v3281 = vadd.f32 %v3192, %v3280
      %v3282 = vpop.f32.mrf.mxu0
      %v3283 = vadd.f32 %v3194, %v3282
      %3284 = vmatmul.bf16.gmra.mxu0 %v1529
      %v3285 = vpop.f32.mrf.mxu0
      %v3286 = vadd.f32 %v3197, %v3285
      %v3287 = vpop.f32.mrf.mxu0
      %v3288 = vadd.f32 %v3199, %v3287
      %3289 = vmatmul.bf16.gmra.mxu0 %v1530
      %v3290 = vpop.f32.mrf.mxu0
      %v3291 = vadd.f32 %v3202, %v3290
      %v3292 = vpop.f32.mrf.mxu0
      %v3293 = vadd.f32 %v3204, %v3292
      %3294 = vmatmul.bf16.gmra.mxu0 %v1531
      %v3295 = vpop.f32.mrf.mxu0
      %v3296 = vadd.f32 %v3207, %v3295
      %v3297 = vpop.f32.mrf.mxu0
      %v3298 = vadd.f32 %v3209, %v3297
      %3299 = vmatmul.bf16.gmra.mxu0 %v1532
      %v3300 = vpop.f32.mrf.mxu0
      %v3301 = vadd.f32 %v3212, %v3300
      %v3302 = vpop.f32.mrf.mxu0
      %v3303 = vadd.f32 %v3214, %v3302
      %3304 = vmatmul.bf16.gmra.mxu0 %v1533
      %v3305 = vpop.f32.mrf.mxu0
      %v3306 = vadd.f32 %v3217, %v3305
      %v3307 = vpop.f32.mrf.mxu0
      %v3308 = vadd.f32 %v3219, %v3307
      %3309 = vmatmul.bf16.gmra.mxu0 %v1534
      %v3310 = vpop.f32.mrf.mxu0
      %v3311 = vadd.f32 %v3222, %v3310
      %v3312 = vpop.f32.mrf.mxu0
      %v3313 = vadd.f32 %v3224, %v3312
      %3314 = vdwg.mxu0
      %3315 = vmatpush.bf16.msra.mxu0 %v2854
      %3316 = vmatpush.bf16.msra.mxu0 %v2853
      %3317 = vmatpush.bf16.msra.mxu0 %v2852
      %3318 = vmatpush.bf16.msra.mxu0 %v2851
      %3319 = vmatpush.bf16.msra.mxu0 %v2850
      %3320 = vmatpush.bf16.msra.mxu0 %v2849
      %3321 = vmatpush.bf16.msra.mxu0 %v2848
      %3322 = vmatpush.bf16.msra.mxu0 %v2847
      %3323 = vmatmul.bf16.gmra.mxu0 %v1610
      %v3324 = vpop.f32.mrf.mxu0
      %v3325 = vadd.f32 %v3236, %v3324
      %v3326 = vpop.f32.mrf.mxu0
      %v3327 = vadd.f32 %v3238, %v3326
      %3328 = vmatmul.bf16.gmra.mxu0 %v1622
      %v3329 = vpop.f32.mrf.mxu0
      %v3330 = vadd.f32 %v3241, %v3329
      %v3331 = vpop.f32.mrf.mxu0
      %v3332 = vadd.f32 %v3243, %v3331
      %3333 = vmatmul.bf16.gmra.mxu0 %v1634
      %v3334 = vpop.f32.mrf.mxu0
      %v3335 = vadd.f32 %v3246, %v3334
      %v3336 = vpop.f32.mrf.mxu0
      %v3337 = vadd.f32 %v3248, %v3336
      %3338 = vmatmul.bf16.gmra.mxu0 %v1646
      %v3339 = vpop.f32.mrf.mxu0
      %v3340 = vadd.f32 %v3251, %v3339
      %v3341 = vpop.f32.mrf.mxu0
      %v3342 = vadd.f32 %v3253, %v3341
      %3343 = vmatmul.bf16.gmra.mxu0 %v1658
      %v3344 = vpop.f32.mrf.mxu0
      %v3345 = vadd.f32 %v3256, %v3344
      %v3346 = vpop.f32.mrf.mxu0
      %v3347 = vadd.f32 %v3258, %v3346
      %3348 = vmatmul.bf16.gmra.mxu0 %v1670
      %v3349 = vpop.f32.mrf.mxu0
      %v3350 = vadd.f32 %v3261, %v3349
      %v3351 = vpop.f32.mrf.mxu0
      %v3352 = vadd.f32 %v3263, %v3351
      %3353 = vmatmul.bf16.gmra.mxu0 %v1682
      %v3354 = vpop.f32.mrf.mxu0
      %v3355 = vadd.f32 %v3266, %v3354
      %v3356 = vpop.f32.mrf.mxu0
      %v3357 = vadd.f32 %v3268, %v3356
      %3358 = vmatmul.bf16.gmra.mxu0 %v1694
      %v3359 = vpop.f32.mrf.mxu0
      %v3360 = vadd.f32 %v3271, %v3359
      %v3361 = vpop.f32.mrf.mxu0
      %v3362 = vadd.f32 %v3273, %v3361
      %3363 = vmatmul.bf16.gmra.mxu0 %v1706
      %v3364 = vpop.f32.mrf.mxu0
      %v3365 = vadd.f32 %v3276, %v3364
      %v3366 = vpop.f32.mrf.mxu0
      %v3367 = vadd.f32 %v3278, %v3366
      %3368 = vmatmul.bf16.gmra.mxu0 %v1718
      %v3369 = vpop.f32.mrf.mxu0
      %v3370 = vadd.f32 %v3281, %v3369
      %v3371 = vpop.f32.mrf.mxu0
      %v3372 = vadd.f32 %v3283, %v3371
      %3373 = vmatmul.bf16.gmra.mxu0 %v1730
      %v3374 = vpop.f32.mrf.mxu0
      %v3375 = vadd.f32 %v3286, %v3374
      %v3376 = vpop.f32.mrf.mxu0
      %v3377 = vadd.f32 %v3288, %v3376
      %3378 = vmatmul.bf16.gmra.mxu0 %v1742
      %v3379 = vpop.f32.mrf.mxu0
      %v3380 = vadd.f32 %v3291, %v3379
      %v3381 = vpop.f32.mrf.mxu0
      %v3382 = vadd.f32 %v3293, %v3381
      %3383 = vmatmul.bf16.gmra.mxu0 %v1754
      %v3384 = vpop.f32.mrf.mxu0
      %v3385 = vadd.f32 %v3296, %v3384
      %v3386 = vpop.f32.mrf.mxu0
      %v3387 = vadd.f32 %v3298, %v3386
      %3388 = vmatmul.bf16.gmra.mxu0 %v1766
      %v3389 = vpop.f32.mrf.mxu0
      %v3390 = vadd.f32 %v3301, %v3389
      %v3391 = vpop.f32.mrf.mxu0
      %v3392 = vadd.f32 %v3303, %v3391
      %3393 = vmatmul.bf16.gmra.mxu0 %v1778
      %v3394 = vpop.f32.mrf.mxu0
      %v3395 = vadd.f32 %v3306, %v3394
      %v3396 = vpop.f32.mrf.mxu0
      %v3397 = vadd.f32 %v3308, %v3396
      %3398 = vmatmul.bf16.gmra.mxu0 %v1790
      %v3399 = vpop.f32.mrf.mxu0
      %v3400 = vadd.f32 %v3311, %v3399
      %v3401 = vpop.f32.mrf.mxu0
      %v3402 = vadd.f32 %v3313, %v3401
      %3403 = vdwg.mxu0
      %3404 = vmatpush.bf16.msra.mxu0 %v2862
      %3405 = vmatpush.bf16.msra.mxu0 %v2861
      %3406 = vmatpush.bf16.msra.mxu0 %v2860
      %3407 = vmatpush.bf16.msra.mxu0 %v2859
      %3408 = vmatpush.bf16.msra.mxu0 %v2858
      %3409 = vmatpush.bf16.msra.mxu0 %v2857
      %3410 = vmatpush.bf16.msra.mxu0 %v2856
      %3411 = vmatpush.bf16.msra.mxu0 %v2855
      %3412 = vmatmul.bf16.gmra.mxu0 %v1857
      %v3413 = vpop.f32.mrf.mxu0
      %v3414 = vadd.f32 %v3325, %v3413
      %v3415 = vpop.f32.mrf.mxu0
      %v3416 = vadd.f32 %v3327, %v3415
      %3417 = vmatmul.bf16.gmra.mxu0 %v1860
      %v3418 = vpop.f32.mrf.mxu0
      %v3419 = vadd.f32 %v3330, %v3418
      %v3420 = vpop.f32.mrf.mxu0
      %v3421 = vadd.f32 %v3332, %v3420
      %3422 = vmatmul.bf16.gmra.mxu0 %v1863
      %v3423 = vpop.f32.mrf.mxu0
      %v3424 = vadd.f32 %v3335, %v3423
      %v3425 = vpop.f32.mrf.mxu0
      %v3426 = vadd.f32 %v3337, %v3425
      %3427 = vmatmul.bf16.gmra.mxu0 %v1866
      %v3428 = vpop.f32.mrf.mxu0
      %v3429 = vadd.f32 %v3340, %v3428
      %v3430 = vpop.f32.mrf.mxu0
      %v3431 = vadd.f32 %v3342, %v3430
      %3432 = vmatmul.bf16.gmra.mxu0 %v1869
      %v3433 = vpop.f32.mrf.mxu0
      %v3434 = vadd.f32 %v3345, %v3433
      %v3435 = vpop.f32.mrf.mxu0
      %v3436 = vadd.f32 %v3347, %v3435
      %3437 = vmatmul.bf16.gmra.mxu0 %v1872
      %v3438 = vpop.f32.mrf.mxu0
      %v3439 = vadd.f32 %v3350, %v3438
      %v3440 = vpop.f32.mrf.mxu0
      %v3441 = vadd.f32 %v3352, %v3440
      %3442 = vmatmul.bf16.gmra.mxu0 %v1875
      %v3443 = vpop.f32.mrf.mxu0
      %v3444 = vadd.f32 %v3355, %v3443
      %v3445 = vpop.f32.mrf.mxu0
      %v3446 = vadd.f32 %v3357, %v3445
      %3447 = vmatmul.bf16.gmra.mxu0 %v1878
      %v3448 = vpop.f32.mrf.mxu0
      %v3449 = vadd.f32 %v3360, %v3448
      %v3450 = vpop.f32.mrf.mxu0
      %v3451 = vadd.f32 %v3362, %v3450
      %3452 = vmatmul.bf16.gmra.mxu0 %v1881
      %v3453 = vpop.f32.mrf.mxu0
      %v3454 = vadd.f32 %v3365, %v3453
      %v3455 = vpop.f32.mrf.mxu0
      %v3456 = vadd.f32 %v3367, %v3455
      %3457 = vmatmul.bf16.gmra.mxu0 %v1884
      %v3458 = vpop.f32.mrf.mxu0
      %v3459 = vadd.f32 %v3370, %v3458
      %v3460 = vpop.f32.mrf.mxu0
      %v3461 = vadd.f32 %v3372, %v3460
      %3462 = vmatmul.bf16.gmra.mxu0 %v1887
      %v3463 = vpop.f32.mrf.mxu0
      %v3464 = vadd.f32 %v3375, %v3463
      %v3465 = vpop.f32.mrf.mxu0
      %v3466 = vadd.f32 %v3377, %v3465
      %3467 = vmatmul.bf16.gmra.mxu0 %v1890
      %v3468 = vpop.f32.mrf.mxu0
      %v3469 = vadd.f32 %v3380, %v3468
      %v3470 = vpop.f32.mrf.mxu0
      %v3471 = vadd.f32 %v3382, %v3470
      %3472 = vmatmul.bf16.gmra.mxu0 %v1893
      %v3473 = vpop.f32.mrf.mxu0
      %v3474 = vadd.f32 %v3385, %v3473
      %v3475 = vpop.f32.mrf.mxu0
      %v3476 = vadd.f32 %v3387, %v3475
      %3477 = vmatmul.bf16.gmra.mxu0 %v1896
      %v3478 = vpop.f32.mrf.mxu0
      %v3479 = vadd.f32 %v3390, %v3478
      %v3480 = vpop.f32.mrf.mxu0
      %v3481 = vadd.f32 %v3392, %v3480
      %3482 = vmatmul.bf16.gmra.mxu0 %v1899
      %v3483 = vpop.f32.mrf.mxu0
      %v3484 = vadd.f32 %v3395, %v3483
      %v3485 = vpop.f32.mrf.mxu0
      %v3486 = vadd.f32 %v3397, %v3485
      %3487 = vmatmul.bf16.gmra.mxu0 %v1902
      %v3488 = vpop.f32.mrf.mxu0
      %v3489 = vadd.f32 %v3400, %v3488
      %v3490 = vpop.f32.mrf.mxu0
      %v3491 = vadd.f32 %v3402, %v3490
      %3492 = vdwg.mxu0
      %3493 = vmatpush.bf16.msra.mxu0 %v2870
      %3494 = vmatpush.bf16.msra.mxu0 %v2869
      %3495 = vmatpush.bf16.msra.mxu0 %v2868
      %3496 = vmatpush.bf16.msra.mxu0 %v2867
      %3497 = vmatpush.bf16.msra.mxu0 %v2866
      %3498 = vmatpush.bf16.msra.mxu0 %v2865
      %3499 = vmatpush.bf16.msra.mxu0 %v2864
      %3500 = vmatpush.bf16.msra.mxu0 %v2863
      %3501 = vmatmul.bf16.gmra.mxu0 %v1983
      %v3502 = vpop.f32.mrf.mxu0
      %v3503 = vadd.f32 %v3414, %v3502
      %v3504 = vpop.f32.mrf.mxu0
      %v3505 = vadd.f32 %v3416, %v3504
      %3506 = vmatmul.bf16.gmra.mxu0 %v1984
      %v3507 = vpop.f32.mrf.mxu0
      %v3508 = vadd.f32 %v3419, %v3507
      %v3509 = vpop.f32.mrf.mxu0
      %v3510 = vadd.f32 %v3421, %v3509
      %3511 = vmatmul.bf16.gmra.mxu0 %v1985
      %v3512 = vpop.f32.mrf.mxu0
      %v3513 = vadd.f32 %v3424, %v3512
      %v3514 = vpop.f32.mrf.mxu0
      %v3515 = vadd.f32 %v3426, %v3514
      %3516 = vmatmul.bf16.gmra.mxu0 %v1986
      %v3517 = vpop.f32.mrf.mxu0
      %v3518 = vadd.f32 %v3429, %v3517
      %v3519 = vpop.f32.mrf.mxu0
      %v3520 = vadd.f32 %v3431, %v3519
      %3521 = vmatmul.bf16.gmra.mxu0 %v1987
      %v3522 = vpop.f32.mrf.mxu0
      %v3523 = vadd.f32 %v3434, %v3522
      %v3524 = vpop.f32.mrf.mxu0
      %v3525 = vadd.f32 %v3436, %v3524
      %3526 = vmatmul.bf16.gmra.mxu0 %v1988
      %v3527 = vpop.f32.mrf.mxu0
      %v3528 = vadd.f32 %v3439, %v3527
      %v3529 = vpop.f32.mrf.mxu0
      %v3530 = vadd.f32 %v3441, %v3529
      %3531 = vmatmul.bf16.gmra.mxu0 %v1989
      %v3532 = vpop.f32.mrf.mxu0
      %v3533 = vadd.f32 %v3444, %v3532
      %v3534 = vpop.f32.mrf.mxu0
      %v3535 = vadd.f32 %v3446, %v3534
      %3536 = vmatmul.bf16.gmra.mxu0 %v1990
      %v3537 = vpop.f32.mrf.mxu0
      %v3538 = vadd.f32 %v3449, %v3537
      %v3539 = vpop.f32.mrf.mxu0
      %v3540 = vadd.f32 %v3451, %v3539
      %3541 = vmatmul.bf16.gmra.mxu0 %v1991
      %v3542 = vpop.f32.mrf.mxu0
      %v3543 = vadd.f32 %v3454, %v3542
      %v3544 = vpop.f32.mrf.mxu0
      %v3545 = vadd.f32 %v3456, %v3544
      %3546 = vmatmul.bf16.gmra.mxu0 %v1992
      %v3547 = vpop.f32.mrf.mxu0
      %v3548 = vadd.f32 %v3459, %v3547
      %v3549 = vpop.f32.mrf.mxu0
      %v3550 = vadd.f32 %v3461, %v3549
      %3551 = vmatmul.bf16.gmra.mxu0 %v1993
      %v3552 = vpop.f32.mrf.mxu0
      %v3553 = vadd.f32 %v3464, %v3552
      %v3554 = vpop.f32.mrf.mxu0
      %v3555 = vadd.f32 %v3466, %v3554
      %3556 = vmatmul.bf16.gmra.mxu0 %v1994
      %v3557 = vpop.f32.mrf.mxu0
      %v3558 = vadd.f32 %v3469, %v3557
      %v3559 = vpop.f32.mrf.mxu0
      %v3560 = vadd.f32 %v3471, %v3559
      %3561 = vmatmul.bf16.gmra.mxu0 %v1995
      %v3562 = vpop.f32.mrf.mxu0
      %v3563 = vadd.f32 %v3474, %v3562
      %v3564 = vpop.f32.mrf.mxu0
      %v3565 = vadd.f32 %v3476, %v3564
      %3566 = vmatmul.bf16.gmra.mxu0 %v1996
      %v3567 = vpop.f32.mrf.mxu0
      %v3568 = vadd.f32 %v3479, %v3567
      %v3569 = vpop.f32.mrf.mxu0
      %v3570 = vadd.f32 %v3481, %v3569
      %3571 = vmatmul.bf16.gmra.mxu0 %v1997
      %v3572 = vpop.f32.mrf.mxu0
      %v3573 = vadd.f32 %v3484, %v3572
      %v3574 = vpop.f32.mrf.mxu0
      %v3575 = vadd.f32 %v3486, %v3574
      %3576 = vmatmul.bf16.gmra.mxu0 %v1998
      %v3577 = vpop.f32.mrf.mxu0
      %v3578 = vadd.f32 %v3489, %v3577
      %v3579 = vpop.f32.mrf.mxu0
      %v3580 = vadd.f32 %v3491, %v3579
      %3581 = vdwg.mxu0
      %3582 = vmatpush.bf16.msra.mxu0 %v2878
      %3583 = vmatpush.bf16.msra.mxu0 %v2877
      %3584 = vmatpush.bf16.msra.mxu0 %v2876
      %3585 = vmatpush.bf16.msra.mxu0 %v2875
      %3586 = vmatpush.bf16.msra.mxu0 %v2874
      %3587 = vmatpush.bf16.msra.mxu0 %v2873
      %3588 = vmatpush.bf16.msra.mxu0 %v2872
      %3589 = vmatpush.bf16.msra.mxu0 %v2871
      %3590 = vmatmul.bf16.gmra.mxu0 %v2074
      %v3591 = vpop.f32.mrf.mxu0
      %v3592 = vadd.f32 %v3503, %v3591
      %v3593 = vpop.f32.mrf.mxu0
      %v3594 = vadd.f32 %v3505, %v3593
      %3595 = vmatmul.bf16.gmra.mxu0 %v2086
      %v3596 = vpop.f32.mrf.mxu0
      %v3597 = vadd.f32 %v3508, %v3596
      %v3598 = vpop.f32.mrf.mxu0
      %v3599 = vadd.f32 %v3510, %v3598
      %3600 = vmatmul.bf16.gmra.mxu0 %v2098
      %v3601 = vpop.f32.mrf.mxu0
      %v3602 = vadd.f32 %v3513, %v3601
      %v3603 = vpop.f32.mrf.mxu0
      %v3604 = vadd.f32 %v3515, %v3603
      %3605 = vmatmul.bf16.gmra.mxu0 %v2110
      %v3606 = vpop.f32.mrf.mxu0
      %v3607 = vadd.f32 %v3518, %v3606
      %v3608 = vpop.f32.mrf.mxu0
      %v3609 = vadd.f32 %v3520, %v3608
      %3610 = vmatmul.bf16.gmra.mxu0 %v2122
      %v3611 = vpop.f32.mrf.mxu0
      %v3612 = vadd.f32 %v3523, %v3611
      %v3613 = vpop.f32.mrf.mxu0
      %v3614 = vadd.f32 %v3525, %v3613
      %3615 = vmatmul.bf16.gmra.mxu0 %v2134
      %v3616 = vpop.f32.mrf.mxu0
      %v3617 = vadd.f32 %v3528, %v3616
      %v3618 = vpop.f32.mrf.mxu0
      %v3619 = vadd.f32 %v3530, %v3618
      %3620 = vmatmul.bf16.gmra.mxu0 %v2146
      %v3621 = vpop.f32.mrf.mxu0
      %v3622 = vadd.f32 %v3533, %v3621
      %v3623 = vpop.f32.mrf.mxu0
      %v3624 = vadd.f32 %v3535, %v3623
      %3625 = vmatmul.bf16.gmra.mxu0 %v2158
      %v3626 = vpop.f32.mrf.mxu0
      %v3627 = vadd.f32 %v3538, %v3626
      %v3628 = vpop.f32.mrf.mxu0
      %v3629 = vadd.f32 %v3540, %v3628
      %3630 = vmatmul.bf16.gmra.mxu0 %v2170
      %v3631 = vpop.f32.mrf.mxu0
      %v3632 = vadd.f32 %v3543, %v3631
      %v3633 = vpop.f32.mrf.mxu0
      %v3634 = vadd.f32 %v3545, %v3633
      %3635 = vmatmul.bf16.gmra.mxu0 %v2182
      %v3636 = vpop.f32.mrf.mxu0
      %v3637 = vadd.f32 %v3548, %v3636
      %v3638 = vpop.f32.mrf.mxu0
      %v3639 = vadd.f32 %v3550, %v3638
      %3640 = vmatmul.bf16.gmra.mxu0 %v2194
      %v3641 = vpop.f32.mrf.mxu0
      %v3642 = vadd.f32 %v3553, %v3641
      %v3643 = vpop.f32.mrf.mxu0
      %v3644 = vadd.f32 %v3555, %v3643
      %3645 = vmatmul.bf16.gmra.mxu0 %v2206
      %v3646 = vpop.f32.mrf.mxu0
      %v3647 = vadd.f32 %v3558, %v3646
      %v3648 = vpop.f32.mrf.mxu0
      %v3649 = vadd.f32 %v3560, %v3648
      %3650 = vmatmul.bf16.gmra.mxu0 %v2218
      %v3651 = vpop.f32.mrf.mxu0
      %v3652 = vadd.f32 %v3563, %v3651
      %v3653 = vpop.f32.mrf.mxu0
      %v3654 = vadd.f32 %v3565, %v3653
      %3655 = vmatmul.bf16.gmra.mxu0 %v2230
      %v3656 = vpop.f32.mrf.mxu0
      %v3657 = vadd.f32 %v3568, %v3656
      %v3658 = vpop.f32.mrf.mxu0
      %v3659 = vadd.f32 %v3570, %v3658
      %3660 = vmatmul.bf16.gmra.mxu0 %v2242
      %v3661 = vpop.f32.mrf.mxu0
      %v3662 = vadd.f32 %v3573, %v3661
      %v3663 = vpop.f32.mrf.mxu0
      %v3664 = vadd.f32 %v3575, %v3663
      %3665 = vmatmul.bf16.gmra.mxu0 %v2254
      %v3666 = vpop.f32.mrf.mxu0
      %v3667 = vadd.f32 %v3578, %v3666
      %v3668 = vpop.f32.mrf.mxu0
      %v3669 = vadd.f32 %v3580, %v3668
      %3670 = vdwg.mxu0
      %3671 = vmatpush.bf16.msra.mxu0 %v2886
      %3672 = vmatpush.bf16.msra.mxu0 %v2885
      %3673 = vmatpush.bf16.msra.mxu0 %v2884
      %3674 = vmatpush.bf16.msra.mxu0 %v2883
      %3675 = vmatpush.bf16.msra.mxu0 %v2882
      %3676 = vmatpush.bf16.msra.mxu0 %v2881
      %3677 = vmatpush.bf16.msra.mxu0 %v2880
      %3678 = vmatpush.bf16.msra.mxu0 %v2879
      %3679 = vmatmul.bf16.gmra.mxu0 %v2321
      %v3680 = vpop.f32.mrf.mxu0
      %v3681 = vadd.f32 %v3592, %v3680
      %v3682 = vpop.f32.mrf.mxu0
      %v3683 = vadd.f32 %v3594, %v3682
      %3684 = vmatmul.bf16.gmra.mxu0 %v2324
      %v3685 = vpop.f32.mrf.mxu0
      %v3686 = vadd.f32 %v3597, %v3685
      %v3687 = vpop.f32.mrf.mxu0
      %v3688 = vadd.f32 %v3599, %v3687
      %3689 = vmatmul.bf16.gmra.mxu0 %v2327
      %v3690 = vpop.f32.mrf.mxu0
      %v3691 = vadd.f32 %v3602, %v3690
      %v3692 = vpop.f32.mrf.mxu0
      %v3693 = vadd.f32 %v3604, %v3692
      %3694 = vmatmul.bf16.gmra.mxu0 %v2330
      %v3695 = vpop.f32.mrf.mxu0
      %v3696 = vadd.f32 %v3607, %v3695
      %v3697 = vpop.f32.mrf.mxu0
      %v3698 = vadd.f32 %v3609, %v3697
      %3699 = vmatmul.bf16.gmra.mxu0 %v2333
      %v3700 = vpop.f32.mrf.mxu0
      %v3701 = vadd.f32 %v3612, %v3700
      %v3702 = vpop.f32.mrf.mxu0
      %v3703 = vadd.f32 %v3614, %v3702
      %3704 = vmatmul.bf16.gmra.mxu0 %v2336
      %v3705 = vpop.f32.mrf.mxu0
      %v3706 = vadd.f32 %v3617, %v3705
      %v3707 = vpop.f32.mrf.mxu0
      %v3708 = vadd.f32 %v3619, %v3707
      %3709 = vmatmul.bf16.gmra.mxu0 %v2339
      %v3710 = vpop.f32.mrf.mxu0
      %v3711 = vadd.f32 %v3622, %v3710
      %v3712 = vpop.f32.mrf.mxu0
      %v3713 = vadd.f32 %v3624, %v3712
      %3714 = vmatmul.bf16.gmra.mxu0 %v2342
      %v3715 = vpop.f32.mrf.mxu0
      %v3716 = vadd.f32 %v3627, %v3715
      %v3717 = vpop.f32.mrf.mxu0
      %v3718 = vadd.f32 %v3629, %v3717
      %3719 = vmatmul.bf16.gmra.mxu0 %v2345
      %v3720 = vpop.f32.mrf.mxu0
      %v3721 = vadd.f32 %v3632, %v3720
      %v3722 = vpop.f32.mrf.mxu0
      %v3723 = vadd.f32 %v3634, %v3722
      %3724 = vmatmul.bf16.gmra.mxu0 %v2348
      %v3725 = vpop.f32.mrf.mxu0
      %v3726 = vadd.f32 %v3637, %v3725
      %v3727 = vpop.f32.mrf.mxu0
      %v3728 = vadd.f32 %v3639, %v3727
      %3729 = vmatmul.bf16.gmra.mxu0 %v2351
      %v3730 = vpop.f32.mrf.mxu0
      %v3731 = vadd.f32 %v3642, %v3730
      %v3732 = vpop.f32.mrf.mxu0
      %v3733 = vadd.f32 %v3644, %v3732
      %3734 = vmatmul.bf16.gmra.mxu0 %v2354
      %v3735 = vpop.f32.mrf.mxu0
      %v3736 = vadd.f32 %v3647, %v3735
      %v3737 = vpop.f32.mrf.mxu0
      %v3738 = vadd.f32 %v3649, %v3737
      %3739 = vmatmul.bf16.gmra.mxu0 %v2357
      %v3740 = vpop.f32.mrf.mxu0
      %v3741 = vadd.f32 %v3652, %v3740
      %v3742 = vpop.f32.mrf.mxu0
      %v3743 = vadd.f32 %v3654, %v3742
      %3744 = vmatmul.bf16.gmra.mxu0 %v2360
      %v3745 = vpop.f32.mrf.mxu0
      %v3746 = vadd.f32 %v3657, %v3745
      %v3747 = vpop.f32.mrf.mxu0
      %v3748 = vadd.f32 %v3659, %v3747
      %3749 = vmatmul.bf16.gmra.mxu0 %v2363
      %v3750 = vpop.f32.mrf.mxu0
      %v3751 = vadd.f32 %v3662, %v3750
      %v3752 = vpop.f32.mrf.mxu0
      %v3753 = vadd.f32 %v3664, %v3752
      %3754 = vmatmul.bf16.gmra.mxu0 %v2366
      %v3755 = vpop.f32.mrf.mxu0
      %v3756 = vadd.f32 %v3667, %v3755
      %v3757 = vpop.f32.mrf.mxu0
      %v3758 = vadd.f32 %v3669, %v3757
      %3759 = vdwg.mxu0
      %v3760 = vpack.c.bf16 %v3681, %v3681
      %v3761 = vpack.c.bf16 %v3683, %v3683
      %v3762 = vpack.c.bf16 %v3686, %v3686
      %v3763 = vpack.c.bf16 %v3688, %v3688
      %v3764 = vpack.c.bf16 %v3691, %v3691
      %v3765 = vpack.c.bf16 %v3693, %v3693
      %v3766 = vpack.c.bf16 %v3696, %v3696
      %v3767 = vpack.c.bf16 %v3698, %v3698
      %v3768 = vpack.c.bf16 %v3701, %v3701
      %v3769 = vpack.c.bf16 %v3703, %v3703
      %v3770 = vpack.c.bf16 %v3706, %v3706
      %v3771 = vpack.c.bf16 %v3708, %v3708
      %v3772 = vpack.c.bf16 %v3711, %v3711
      %v3773 = vpack.c.bf16 %v3713, %v3713
      %v3774 = vpack.c.bf16 %v3716, %v3716
      %v3775 = vpack.c.bf16 %v3718, %v3718
      %v3776 = vpack.c.bf16 %v3721, %v3721
      %v3777 = vpack.c.bf16 %v3723, %v3723
      %v3778 = vpack.c.bf16 %v3726, %v3726
      %v3779 = vpack.c.bf16 %v3728, %v3728
      %v3780 = vpack.c.bf16 %v3731, %v3731
      %v3781 = vpack.c.bf16 %v3733, %v3733
      %v3782 = vpack.c.bf16 %v3736, %v3736
      %v3783 = vpack.c.bf16 %v3738, %v3738
      %v3784 = vpack.c.bf16 %v3741, %v3741
      %v3785 = vpack.c.bf16 %v3743, %v3743
      %v3786 = vpack.c.bf16 %v3746, %v3746
      %v3787 = vpack.c.bf16 %v3748, %v3748
      %v3788 = vpack.c.bf16 %v3751, %v3751
      %v3789 = vpack.c.bf16 %v3753, %v3753
      %v3790 = vpack.c.bf16 %v3756, %v3756
      %v3791 = vpack.c.bf16 %v3758, %v3758
      %3792 = vst [vmem:[%s231] sm:$0xf] %v3760
      %3793 = vst [vmem:[%s231 + $0x4] sm:$0xf] %v3761
      %3794 = vst [vmem:[%s231 + $0x8] sm:$0xf] %v3762
      %3795 = vst [vmem:[%s231 + $0xc] sm:$0xf] %v3763
      %3796 = vst [vmem:[%s231 + $0x10] sm:$0xf] %v3764
      %3797 = vst [vmem:[%s231 + $0x14] sm:$0xf] %v3765
      %3798 = vst [vmem:[%s231 + $0x18] sm:$0xf] %v3766
      %3799 = vst [vmem:[%s231 + $0x1c] sm:$0xf] %v3767
      %3800 = vst [vmem:[%s231 + $0x20] sm:$0xf] %v3768
      %3801 = vst [vmem:[%s231 + $0x24] sm:$0xf] %v3769
      %3802 = vst [vmem:[%s231 + $0x28] sm:$0xf] %v3770
      %3803 = vst [vmem:[%s231 + $0x2c] sm:$0xf] %v3771
      %3804 = vst [vmem:[%s231 + $0x30] sm:$0xf] %v3772
      %3805 = vst [vmem:[%s231 + $0x34] sm:$0xf] %v3773
      %3806 = vst [vmem:[%s231 + $0x38] sm:$0xf] %v3774
      %3807 = vst [vmem:[%s231 + $0x3c] sm:$0xf] %v3775
      %3808 = vst [vmem:[%s231 + $0x40] sm:$0xf] %v3776
      %3809 = vst [vmem:[%s231 + $0x44] sm:$0xf] %v3777
      %3810 = vst [vmem:[%s231 + $0x48] sm:$0xf] %v3778
      %3811 = vst [vmem:[%s231 + $0x4c] sm:$0xf] %v3779
      %3812 = vst [vmem:[%s231 + $0x50] sm:$0xf] %v3780
      %3813 = vst [vmem:[%s231 + $0x54] sm:$0xf] %v3781
      %3814 = vst [vmem:[%s231 + $0x58] sm:$0xf] %v3782
      %3815 = vst [vmem:[%s231 + $0x5c] sm:$0xf] %v3783
      %3816 = vst [vmem:[%s231 + $0x60] sm:$0xf] %v3784
      %3817 = vst [vmem:[%s231 + $0x64] sm:$0xf] %v3785
      %3818 = vst [vmem:[%s231 + $0x68] sm:$0xf] %v3786
      %3819 = vst [vmem:[%s231 + $0x6c] sm:$0xf] %v3787
      %3820 = vst [vmem:[%s231 + $0x70] sm:$0xf] %v3788
      %3821 = vst [vmem:[%s231 + $0x74] sm:$0xf] %v3789
      %3822 = vst [vmem:[%s231 + $0x78] sm:$0xf] %v3790
      %3823 = vst [vmem:[%s231 + $0x7c] sm:$0xf] %v3791
      %v3824 = vadd.f32 %v3681, %v3683
      %v3825 = vadd.f32 %v3824, %v3686
      %v3826 = vadd.f32 %v3825, %v3688
      %v3827 = vadd.f32 %v3826, %v3691
      %v3828 = vadd.f32 %v3827, %v3693
      %v3829 = vadd.f32 %v3828, %v3696
      %v3830 = vadd.f32 %v3829, %v3698
      %v3831 = vadd.f32 %v3830, %v3701
      %v3832 = vadd.f32 %v3831, %v3703
      %v3833 = vadd.f32 %v3832, %v3706
      %v3834 = vadd.f32 %v3833, %v3708
      %v3835 = vadd.f32 %v3834, %v3711
      %v3836 = vadd.f32 %v3835, %v3713
      %v3837 = vadd.f32 %v3836, %v3716
      %v3838 = vadd.f32 %v3837, %v3718
      %v3839 = vadd.f32 %v3838, %v3721
      %v3840 = vadd.f32 %v3839, %v3723
      %v3841 = vadd.f32 %v3840, %v3726
      %v3842 = vadd.f32 %v3841, %v3728
      %v3843 = vadd.f32 %v3842, %v3731
      %v3844 = vadd.f32 %v3843, %v3733
      %v3845 = vadd.f32 %v3844, %v3736
      %v3846 = vadd.f32 %v3845, %v3738
      %v3847 = vadd.f32 %v3846, %v3741
      %v3848 = vadd.f32 %v3847, %v3743
      %v3849 = vadd.f32 %v3848, %v3746
      %v3850 = vadd.f32 %v3849, %v3748
      %v3851 = vadd.f32 %v3850, %v3751
      %v3852 = vadd.f32 %v3851, %v3753
      %v3853 = vadd.f32 %v3852, %v3756
      %v3854 = vadd.f32 %v3853, %v3758
      %v3855 = vrot.slane %v3854, 4
      %v3856 = vadd.f32 %v3854, %v3855
      %v3857 = vrot.slane %v3856, 2
      %v3858 = vadd.f32 %v3856, %v3857
      %v3859 = vrot.slane %v3858, 1
      %v3860 = vadd.f32 %v3858, %v3859
      %v3861 = vmul.f32 %v3681, %v3681
      %v3862 = vmul.f32 %v3683, %v3683
      %v3863 = vmul.f32 %v3686, %v3686
      %v3864 = vmul.f32 %v3688, %v3688
      %v3865 = vmul.f32 %v3691, %v3691
      %v3866 = vmul.f32 %v3693, %v3693
      %v3867 = vmul.f32 %v3696, %v3696
      %v3868 = vmul.f32 %v3698, %v3698
      %v3869 = vmul.f32 %v3701, %v3701
      %v3870 = vmul.f32 %v3703, %v3703
      %v3871 = vmul.f32 %v3706, %v3706
      %v3872 = vmul.f32 %v3708, %v3708
      %v3873 = vmul.f32 %v3711, %v3711
      %v3874 = vmul.f32 %v3713, %v3713
      %v3875 = vmul.f32 %v3716, %v3716
      %v3876 = vmul.f32 %v3718, %v3718
      %v3877 = vmul.f32 %v3721, %v3721
      %v3878 = vmul.f32 %v3723, %v3723
      %v3879 = vmul.f32 %v3726, %v3726
      %v3880 = vmul.f32 %v3728, %v3728
      %v3881 = vmul.f32 %v3731, %v3731
      %v3882 = vmul.f32 %v3733, %v3733
      %v3883 = vmul.f32 %v3736, %v3736
      %v3884 = vmul.f32 %v3738, %v3738
      %v3885 = vmul.f32 %v3741, %v3741
      %v3886 = vmul.f32 %v3743, %v3743
      %v3887 = vmul.f32 %v3746, %v3746
      %v3888 = vmul.f32 %v3748, %v3748
      %v3889 = vmul.f32 %v3751, %v3751
      %v3890 = vmul.f32 %v3753, %v3753
      %v3891 = vmul.f32 %v3756, %v3756
      %v3892 = vmul.f32 %v3758, %v3758
      %v3893 = vadd.f32 %v3861, %v3862
      %v3894 = vadd.f32 %v3893, %v3863
      %v3895 = vadd.f32 %v3894, %v3864
      %v3896 = vadd.f32 %v3895, %v3865
      %v3897 = vadd.f32 %v3896, %v3866
      %v3898 = vadd.f32 %v3897, %v3867
      %v3899 = vadd.f32 %v3898, %v3868
      %v3900 = vadd.f32 %v3899, %v3869
      %v3901 = vadd.f32 %v3900, %v3870
      %v3902 = vadd.f32 %v3901, %v3871
      %v3903 = vadd.f32 %v3902, %v3872
      %v3904 = vadd.f32 %v3903, %v3873
      %v3905 = vadd.f32 %v3904, %v3874
      %v3906 = vadd.f32 %v3905, %v3875
      %v3907 = vadd.f32 %v3906, %v3876
      %v3908 = vadd.f32 %v3907, %v3877
      %v3909 = vadd.f32 %v3908, %v3878
      %v3910 = vadd.f32 %v3909, %v3879
      %v3911 = vadd.f32 %v3910, %v3880
      %v3912 = vadd.f32 %v3911, %v3881
      %v3913 = vadd.f32 %v3912, %v3882
      %v3914 = vadd.f32 %v3913, %v3883
      %v3915 = vadd.f32 %v3914, %v3884
      %v3916 = vadd.f32 %v3915, %v3885
      %v3917 = vadd.f32 %v3916, %v3886
      %v3918 = vadd.f32 %v3917, %v3887
      %v3919 = vadd.f32 %v3918, %v3888
      %v3920 = vadd.f32 %v3919, %v3889
      %v3921 = vadd.f32 %v3920, %v3890
      %v3922 = vadd.f32 %v3921, %v3891
      %v3923 = vadd.f32 %v3922, %v3892
      %v3924 = vrot.slane %v3923, 4
      %v3925 = vadd.f32 %v3923, %v3924
      %v3926 = vrot.slane %v3925, 2
      %v3927 = vadd.f32 %v3925, %v3926
      %v3928 = vrot.slane %v3927, 1
      %v3929 = vadd.f32 %v3927, %v3928
      %vm3930 = vcmask 1040384
      %v3931 = vsel %vm3930, %v3860, %v3929
      %3932 = vst [vmem:[%s235] sm:$0x3] %v3931
      %p3933 = scmp.lt.s32.totalorder %s17, 1
      %s3934 = scalar_select %p3933, %s17, 1
      %s3935 = smul.addr %s3934, 32
      %s3936 = smul.addr %s3935, 4
      %s3937 = scalar_lea.vmem %s4, %s3936
      %p3938 = scmp.lt.s32.totalorder %s17, 1
      %s3939 = scalar_select %p3938, %s17, 1
      %s3940 = smul.addr %s3939, 2
      %s3941 = scalar_lea.vmem %s5, %s3940
      // Predicated region
      $region37: #{basic_block_forward.4} parent=35 // pred_check
        %p3942 = pneg %p124
      $region38: #{basic_block_forward.4} parent=35 // pred_check_branch
        %3944 = sbr.rel (%p3942) target = $region40
      $region39: #{basic_block_forward.4} parent=35 // pred_region
        _
      $region40: #{basic_block_forward.4} parent=35 // pred_fallthru
        _
      // Predicated region
      $region41: #{basic_block_forward.4} parent=35 // pred_check
        %p3945 = pneg %p150
      $region42: #{basic_block_forward.4} parent=35 // pred_check_branch
        %3947 = sbr.rel (%p3945) target = $region44
      $region43: #{basic_block_forward.4} parent=35 // pred_region
        _
      $region44: #{basic_block_forward.4} parent=35 // pred_fallthru
        _
    $region36: #{basic_block_forward.4} parent=5 // pred_fallthru
      _
    %p3948 = scmp.le.s32.totalorder 2, %s12
    // Predicated region
    $region45: #{basic_block_forward.4} parent=5 // pred_check
      %p3949 = pneg %p3948
    $region46: #{basic_block_forward.4} parent=5 // pred_check_branch
      %3951 = sbr.rel (%p3949) target = $region48
    $region47: #{basic_block_forward.4} parent=5 // pred_region
      %s3952 = ssub.s32 %s12, 2
      // Predicated region
      $region49: #{basic_block_forward.4} parent=47 // pred_check
        %p3953 = pneg %p130
      $region50: #{basic_block_forward.4} parent=47 // pred_check_branch
        %3955 = sbr.rel (%p3953) target = $region52
      $region51: #{basic_block_forward.4} parent=47 // pred_region
        %p3956 = scmp.lt.s32.totalorder %s18, 1
        %s3957 = scalar_select %p3956, %s18, 1
        %s3958 = smul.addr %s3957, 32
        %s3959 = smul.addr %s3958, 4
        %s3960 = scalar_lea.vmem %s4, %s3959
      $region52: #{basic_block_forward.4} parent=47 // pred_fallthru
        _
      // Predicated region
      $region53: #{basic_block_forward.4} parent=47 // pred_check
        %p3961 = pneg %p156
      $region54: #{basic_block_forward.4} parent=47 // pred_check_branch
        %3963 = sbr.rel (%p3961) target = $region56
      $region55: #{basic_block_forward.4} parent=47 // pred_region
        %p3964 = scmp.lt.s32.totalorder %s18, 1
        %s3965 = scalar_select %p3964, %s18, 1
        %s3966 = smul.addr %s3965, 2
        %s3967 = scalar_lea.vmem %s5, %s3966
      $region56: #{basic_block_forward.4} parent=47 // pred_fallthru
        _
    $region48: #{basic_block_forward.4} parent=5 // pred_fallthru
      _
  $region6: #{basic_block_forward.4} parent=0 // loop_footer
    %s16 = sadd.s32 1, %s12
  $region7: #{basic_block_forward.4} parent=0 // loop_footer_branch
    %11 = sbr.rel target = $region3
  $region8: #{basic_block_forward.4} parent=0 // loop_exit
    _

// kernel: basic_block_forward.5
$region0: #{basic_block_forward.5}
  #allocation0 [shape = 'u32[]', space=smem, size = 0x4, offset = 0x4, fixed_abs, tag = 'smem constant byte address 0x4 - core index']
  #allocation1 [shape = 'u32[72,128]{1,0:T(1,128)}', space=vmem, size = 0x9000, scoped, tag = 'internal scratch']
  #allocation2 [shape = 'bf16[1,18,18,128]{3,2,1,0:T(8,128)(2,1)}', space=vmem, size = 0x1b000, scoped, tag = 'scratch operand']
  %s0 = inlined_call_operand.vmem [shape: bf16[2,16,16,128], index: 0, kind: input, shape index: {}]
  %s1 = inlined_call_operand.vmem [shape: bf16[1152,128], index: 1, kind: input, shape index: {}]
  %s2 = inlined_call_operand.vmem [shape: f32[1,128], index: 2, kind: input, shape index: {}]
  %s3 = inlined_call_operand.vmem [shape: f32[1,128], index: 3, kind: input, shape index: {}]
  %s4 = inlined_call_operand.vmem [shape: bf16[2,16,16,128], index: 4, kind: output, shape index: {0}]
  %s5 = inlined_call_operand.vmem [shape: f32[2,2,128], index: 5, kind: output, shape index: {1}]
  %6 = xla_tuple %s4, %s5
  %s7 = sld [smem:[#allocation0]]
  $region57: #{basic_block_forward.5} parent=0
    _
  %s9 = ssub.s32 1, %s7
  %s10 = scalar_select 0, %s9, %s7
  loop: start=0, step=1, limit=4
  $region2: #{basic_block_forward.5} parent=0 // loop_pre_header
    _
  $region3: #{basic_block_forward.5} parent=0 // loop_header
    %s12 = sphi 0, %s16
    %p13 = scmp.ge.s32.totalorder %s12, 4
    %s22 = sphi 0, %s24
    %s25 = sphi 0, %s22
    %s26 = sphi 0, %s25
    %s42 = sphi 0, %s26
    %s46 = sphi 0, %s46
    %s48 = sphi 0, %s46
    %s49 = sphi 0, %s48
    %s63 = sphi 0, %s49
    %s67 = sphi 0, %s67
    %s69 = sphi 0, %s67
    %s70 = sphi 0, %s69
    %s84 = sphi 0, %s70
    %s88 = sphi 0, %s88
    %s90 = sphi 0, %s88
    %s91 = sphi 0, %s90
    %s105 = sphi 0, %s91
    %s111 = sphi 0, %s113
    %s114 = sphi 0, %s111
    %s115 = sphi 0, %s114
    %s131 = sphi 0, %s115
    %s137 = sphi 0, %s139
    %s140 = sphi 0, %s137
    %s141 = sphi 0, %s140
    %s157 = sphi 0, %s141
  $region4: #{basic_block_forward.5} parent=0 // loop_header_branch
    %15 = sbr.rel (%p13) target = $region8
  $region5: #{basic_block_forward.5} parent=0 // loop_body
    %s17 = ssub.s32 %s12, 1
    %s18 = ssub.s32 %s12, 2
    %s19 = sadd.s32 %s12, 1
    %s20 = ssub.s32 %s12, %s19
    %p21 = scmp.eq.s32.totalorder %s20, 0
    %s23 = sadd.s32 %s22, 1
    %s24 = scalar_select %p21, %s22, %s23
    %p27 = pneg %p21
    %p28 = scmp.eq.s32.totalorder %s12, 1
    %p29 = por %p27, %p28
    %p30 = scmp.ne.s32.totalorder %s22, %s25
    %p31 = scmp.eq.s32.totalorder %s12, 0
    %p32 = por %p30, %p31
    %p33 = scmp.ne.s32.totalorder %s22, %s25
    %p34 = scmp.eq.s32.totalorder %s17, 1
    %p35 = por %p33, %p34
    %p36 = scmp.ne.s32.totalorder %s25, %s26
    %p37 = scmp.eq.s32.totalorder %s17, 0
    %p38 = por %p36, %p37
    %p39 = scmp.ne.s32.totalorder %s25, %s26
    %p40 = scmp.eq.s32.totalorder %s18, 1
    %p41 = por %p39, %p40
    %p43 = scmp.ne.s32.totalorder %s26, %s42
    %p44 = scmp.eq.s32.totalorder %s18, 0
    %p45 = por %p43, %p44
    %s47 = sadd.s32 %s46, 1
    %p50 = scmp.eq.s32.totalorder %s12, 1
    %p51 = scmp.ne.s32.totalorder %s46, %s48
    %p52 = scmp.eq.s32.totalorder %s12, 0
    %p53 = por %p51, %p52
    %p54 = scmp.ne.s32.totalorder %s46, %s48
    %p55 = scmp.eq.s32.totalorder %s17, 1
    %p56 = por %p54, %p55
    %p57 = scmp.ne.s32.totalorder %s48, %s49
    %p58 = scmp.eq.s32.totalorder %s17, 0
    %p59 = por %p57, %p58
    %p60 = scmp.ne.s32.totalorder %s48, %s49
    %p61 = scmp.eq.s32.totalorder %s18, 1
    %p62 = por %p60, %p61
    %p64 = scmp.ne.s32.totalorder %s49, %s63
    %p65 = scmp.eq.s32.totalorder %s18, 0
    %p66 = por %p64, %p65
    %s68 = sadd.s32 %s67, 1
    %p71 = scmp.eq.s32.totalorder %s12, 1
    %p72 = scmp.ne.s32.totalorder %s67, %s69
    %p73 = scmp.eq.s32.totalorder %s12, 0
    %p74 = por %p72, %p73
    %p75 = scmp.ne.s32.totalorder %s67, %s69
    %p76 = scmp.eq.s32.totalorder %s17, 1
    %p77 = por %p75, %p76
    %p78 = scmp.ne.s32.totalorder %s69, %s70
    %p79 = scmp.eq.s32.totalorder %s17, 0
    %p80 = por %p78, %p79
    %p81 = scmp.ne.s32.totalorder %s69, %s70
    %p82 = scmp.eq.s32.totalorder %s18, 1
    %p83 = por %p81, %p82
    %p85 = scmp.ne.s32.totalorder %s70, %s84
    %p86 = scmp.eq.s32.totalorder %s18, 0
    %p87 = por %p85, %p86
    %s89 = sadd.s32 %s88, 1
    %p92 = scmp.eq.s32.totalorder %s12, 1
    %p93 = scmp.ne.s32.totalorder %s88, %s90
    %p94 = scmp.eq.s32.totalorder %s12, 0
    %p95 = por %p93, %p94
    %p96 = scmp.ne.s32.totalorder %s88, %s90
    %p97 = scmp.eq.s32.totalorder %s17, 1
    %p98 = por %p96, %p97
    %p99 = scmp.ne.s32.totalorder %s90, %s91
    %p100 = scmp.eq.s32.totalorder %s17, 0
    %p101 = por %p99, %p100
    %p102 = scmp.ne.s32.totalorder %s90, %s91
    %p103 = scmp.eq.s32.totalorder %s18, 1
    %p104 = por %p102, %p103
    %p106 = scmp.ne.s32.totalorder %s91, %s105
    %p107 = scmp.eq.s32.totalorder %s18, 0
    %p108 = por %p106, %p107
    %s109 = ssub.s32 %s12, %s19
    %p110 = scmp.eq.s32.totalorder %s109, 0
    %s112 = sadd.s32 %s111, 1
    %s113 = scalar_select %p110, %s111, %s112
    %p116 = pneg %p110
    %p117 = scmp.eq.s32.totalorder %s12, 1
    %p118 = por %p116, %p117
    %p119 = scmp.ne.s32.totalorder %s111, %s114
    %p120 = scmp.eq.s32.totalorder %s12, 0
    %p121 = por %p119, %p120
    %p122 = scmp.ne.s32.totalorder %s111, %s114
    %p123 = scmp.eq.s32.totalorder %s17, 1
    %p124 = por %p122, %p123
    %p125 = scmp.ne.s32.totalorder %s114, %s115
    %p126 = scmp.eq.s32.totalorder %s17, 0
    %p127 = por %p125, %p126
    %p128 = scmp.ne.s32.totalorder %s114, %s115
    %p129 = scmp.eq.s32.totalorder %s18, 1
    %p130 = por %p128, %p129
    %p132 = scmp.ne.s32.totalorder %s115, %s131
    %p133 = scmp.eq.s32.totalorder %s18, 0
    %p134 = por %p132, %p133
    %s135 = ssub.s32 %s12, %s19
    %p136 = scmp.eq.s32.totalorder %s135, 0
    %s138 = sadd.s32 %s137, 1
    %s139 = scalar_select %p136, %s137, %s138
    %p142 = pneg %p136
    %p143 = scmp.eq.s32.totalorder %s12, 1
    %p144 = por %p142, %p143
    %p145 = scmp.ne.s32.totalorder %s137, %s140
    %p146 = scmp.eq.s32.totalorder %s12, 0
    %p147 = por %p145, %p146
    %p148 = scmp.ne.s32.totalorder %s137, %s140
    %p149 = scmp.eq.s32.totalorder %s17, 1
    %p150 = por %p148, %p149
    %p151 = scmp.ne.s32.totalorder %s140, %s141
    %p152 = scmp.eq.s32.totalorder %s17, 0
    %p153 = por %p151, %p152
    %p154 = scmp.ne.s32.totalorder %s140, %s141
    %p155 = scmp.eq.s32.totalorder %s18, 1
    %p156 = por %p154, %p155
    %p158 = scmp.ne.s32.totalorder %s141, %s157
    %p159 = scmp.eq.s32.totalorder %s18, 0
    %p160 = por %p158, %p159
    %p161 = scmp.le.s32.totalorder 1, %s12
    %p162 = scmp.lt.s32.totalorder %s12, 3
    %p163 = pnand %p161, %p162
    %p164 = pneg %p163
    // Predicated region
    $region9: #{basic_block_forward.5} parent=5 // pred_check
      _
    $region10: #{basic_block_forward.5} parent=5 // pred_check_branch
      %166 = sbr.rel (%p163) target = $region12
    $region11: #{basic_block_forward.5} parent=5 // pred_region
      %s167 = ssub.s32 %s12, 1
      // Predicated region
      $region13: #{basic_block_forward.5} parent=11 // pred_check
        %p168 = pneg %p59
      $region14: #{basic_block_forward.5} parent=11 // pred_check_branch
        %170 = sbr.rel (%p168) target = $region16
      $region15: #{basic_block_forward.5} parent=11 // pred_region
        _
      $region16: #{basic_block_forward.5} parent=11 // pred_fallthru
        _
      // Predicated region
      $region17: #{basic_block_forward.5} parent=11 // pred_check
        %p171 = pneg %p80
      $region18: #{basic_block_forward.5} parent=11 // pred_check_branch
        %173 = sbr.rel (%p171) target = $region20
      $region19: #{basic_block_forward.5} parent=11 // pred_region
        _
      $region20: #{basic_block_forward.5} parent=11 // pred_fallthru
        _
      // Predicated region
      $region21: #{basic_block_forward.5} parent=11 // pred_check
        %p174 = pneg %p101
      $region22: #{basic_block_forward.5} parent=11 // pred_check_branch
        %176 = sbr.rel (%p174) target = $region24
      $region23: #{basic_block_forward.5} parent=11 // pred_region
        _
      $region24: #{basic_block_forward.5} parent=11 // pred_fallthru
        _
    $region12: #{basic_block_forward.5} parent=5 // pred_fallthru
      _
    %p177 = scmp.lt.s32.totalorder %s12, 2
    // Predicated region
    $region25: #{basic_block_forward.5} parent=5 // pred_check
      %p178 = pneg %p177
    $region26: #{basic_block_forward.5} parent=5 // pred_check_branch
      %180 = sbr.rel (%p178) target = $region28
    $region27: #{basic_block_forward.5} parent=5 // pred_region
      // Predicated region
      $region29: #{basic_block_forward.5} parent=27 // pred_check
        %p181 = pneg %p32
      $region30: #{basic_block_forward.5} parent=27 // pred_check_branch
        %183 = sbr.rel (%p181) target = $region32
      $region31: #{basic_block_forward.5} parent=27 // pred_region
        %p184 = scmp.lt.s32.totalorder %s12, 1
        %s185 = scalar_select %p184, %s12, 1
        %s186 = smul.addr %s185, 32
        %s187 = smul.addr %s186, 4
        %s188 = scalar_lea.vmem %s0, %s187
      $region32: #{basic_block_forward.5} parent=27 // pred_fallthru
        _
    $region28: #{basic_block_forward.5} parent=5 // pred_fallthru
      _
    %p189 = scmp.le.s32.totalorder 1, %s12
    %p190 = scmp.lt.s32.totalorder %s12, 3
    %p191 = pnand %p189, %p190
    %p192 = pneg %p191
    // Predicated region
    $region33: #{basic_block_forward.5} parent=5 // pred_check
      _
    $region34: #{basic_block_forward.5} parent=5 // pred_check_branch
      %194 = sbr.rel (%p191) target = $region36
    $region35: #{basic_block_forward.5} parent=5 // pred_region
      %s195 = ssub.s32 %s12, 1
      %p196 = scmp.lt.s32.totalorder %s17, 1
      %s197 = scalar_select %p196, %s17, 1
      %s198 = smul.addr %s197, 32
      %s199 = smul.addr %s198, 4
      %s200 = scalar_lea.vmem %s0, %s199
      %p201 = pneg %p38
      %p202 = pneg %p35
      %p203 = pneg %p59
      %p204 = pneg %p56
      %p205 = pneg %p80
      %p206 = pneg %p77
      %p207 = pneg %p101
      %p208 = pneg %p98
      %p209 = pneg %p127
      %p210 = pneg %p124
      %p211 = scmp.lt.s32.totalorder %s17, 1
      %s212 = scalar_select %p211, %s17, 1
      %s213 = smul.addr %s212, 32
      %s214 = smul.addr %s213, 4
      %s215 = scalar_lea.vmem %s4, %s214
      %p216 = pneg %p153
      %p217 = pneg %p150
      %p218 = scmp.lt.s32.totalorder %s17, 1
      %s219 = scalar_select %p218, %s17, 1
      %s220 = smul.addr %s219, 2
      %s221 = scalar_lea.vmem %s5, %s220
      %p222 = scmp.lt.s32.totalorder %s17, 1
      %s223 = scalar_select %p222, %s17, 1
      %s224 = smul.addr %s223, 32
      %s225 = smul.addr %s224, 4
      %s226 = scalar_lea.vmem %s0, %s225
      %p227 = scmp.lt.s32.totalorder %s17, 1
      %s228 = scalar_select %p227, %s17, 1
      %s229 = smul.addr %s228, 32
      %s230 = smul.addr %s229, 4
      %s231 = scalar_lea.vmem %s4, %s230
      %p232 = scmp.lt.s32.totalorder %s17, 1
      %s233 = scalar_select %p232, %s17, 1
      %s234 = smul.addr %s233, 2
      %s235 = scalar_lea.vmem %s5, %s234
      %237 = vst [vmem:[#allocation2] sm:$0xf] 0
      %238 = vst [vmem:[#allocation2 + $0x4] sm:$0xf] 0
      %239 = vst [vmem:[#allocation2 + $0x8] sm:$0x1] 0
      %240 = vst [vmem:[#allocation2 + $0xc] sm:$0xf] 0
      %241 = vst [vmem:[#allocation2 + $0x10] sm:$0xf] 0
      %242 = vst [vmem:[#allocation2 + $0x14] sm:$0x1] 0
      %243 = vst [vmem:[#allocation2 + $0x18] sm:$0xf] 0
      %244 = vst [vmem:[#allocation2 + $0x1c] sm:$0xf] 0
      %245 = vst [vmem:[#allocation2 + $0x20] sm:$0x1] 0
      %246 = vst [vmem:[#allocation2 + $0x24] sm:$0xf] 0
      %247 = vst [vmem:[#allocation2 + $0x28] sm:$0xf] 0
      %248 = vst [vmem:[#allocation2 + $0x2c] sm:$0x1] 0
      %249 = vst [vmem:[#allocation2 + $0x30] sm:$0xf] 0
      %250 = vst [vmem:[#allocation2 + $0x34] sm:$0xf] 0
      %251 = vst [vmem:[#allocation2 + $0x38] sm:$0x1] 0
      %252 = vst [vmem:[#allocation2 + $0x3c] sm:$0xf] 0
      %253 = vst [vmem:[#allocation2 + $0x40] sm:$0xf] 0
      %254 = vst [vmem:[#allocation2 + $0x44] sm:$0x1] 0
      %255 = vst [vmem:[#allocation2 + $0x48] sm:$0xf] 0
      %256 = vst [vmem:[#allocation2 + $0x4c] sm:$0xf] 0
      %257 = vst [vmem:[#allocation2 + $0x50] sm:$0x1] 0
      %258 = vst [vmem:[#allocation2 + $0x54] sm:$0xf] 0
      %259 = vst [vmem:[#allocation2 + $0x58] sm:$0xf] 0
      %260 = vst [vmem:[#allocation2 + $0x5c] sm:$0x1] 0
      %261 = vst [vmem:[#allocation2 + $0x60] sm:$0xf] 0
      %262 = vst [vmem:[#allocation2 + $0x64] sm:$0xf] 0
      %263 = vst [vmem:[#allocation2 + $0x68] sm:$0x1] 0
      %264 = vst [vmem:[#allocation2 + $0x6c] sm:$0xf] 0
      %265 = vst [vmem:[#allocation2 + $0x70] sm:$0xf] 0
      %266 = vst [vmem:[#allocation2 + $0x74] sm:$0x1] 0
      %267 = vst [vmem:[#allocation2 + $0x78] sm:$0xf] 0
      %268 = vst [vmem:[#allocation2 + $0x7c] sm:$0xf] 0
      %269 = vst [vmem:[#allocation2 + $0x80] sm:$0x1] 0
      %270 = vst [vmem:[#allocation2 + $0x84] sm:$0xf] 0
      %271 = vst [vmem:[#allocation2 + $0x88] sm:$0xf] 0
      %272 = vst [vmem:[#allocation2 + $0x8c] sm:$0x1] 0
      %273 = vst [vmem:[#allocation2 + $0x90] sm:$0xf] 0
      %274 = vst [vmem:[#allocation2 + $0x94] sm:$0xf] 0
      %275 = vst [vmem:[#allocation2 + $0x98] sm:$0x1] 0
      %276 = vst [vmem:[#allocation2 + $0x9c] sm:$0xf] 0
      %277 = vst [vmem:[#allocation2 + $0xa0] sm:$0xf] 0
      %278 = vst [vmem:[#allocation2 + $0xa4] sm:$0x1] 0
      %279 = vst [vmem:[#allocation2 + $0xa8] sm:$0xf] 0
      %280 = vst [vmem:[#allocation2 + $0xac] sm:$0xf] 0
      %281 = vst [vmem:[#allocation2 + $0xb0] sm:$0x1] 0
      %282 = vst [vmem:[#allocation2 + $0xb4] sm:$0xf] 0
      %283 = vst [vmem:[#allocation2 + $0xb8] sm:$0xf] 0
      %284 = vst [vmem:[#allocation2 + $0xbc] sm:$0x1] 0
      %285 = vst [vmem:[#allocation2 + $0xc0] sm:$0xf] 0
      %286 = vst [vmem:[#allocation2 + $0xc4] sm:$0xf] 0
      %287 = vst [vmem:[#allocation2 + $0xc8] sm:$0x1] 0
      %288 = vst [vmem:[#allocation2 + $0xcc] sm:$0xf] 0
      %289 = vst [vmem:[#allocation2 + $0xd0] sm:$0xf] 0
      %290 = vst [vmem:[#allocation2 + $0xd4] sm:$0x1] 0
      %v291 = vld [vmem:[%s226] sm:$0xf]
      %v292 = vld [vmem:[%s226 + $0x4] sm:$0xf]
      %v293 = vld [vmem:[%s226 + $0x8] sm:$0xf]
      %v294 = vld [vmem:[%s226 + $0xc] sm:$0xf]
      %v295 = vld [vmem:[%s226 + $0x10] sm:$0xf]
      %v296 = vld [vmem:[%s226 + $0x14] sm:$0xf]
      %v297 = vld [vmem:[%s226 + $0x18] sm:$0xf]
      %v298 = vld [vmem:[%s226 + $0x1c] sm:$0xf]
      %v299 = vld [vmem:[%s226 + $0x20] sm:$0xf]
      %v300 = vld [vmem:[%s226 + $0x24] sm:$0xf]
      %v301 = vld [vmem:[%s226 + $0x28] sm:$0xf]
      %v302 = vld [vmem:[%s226 + $0x2c] sm:$0xf]
      %v303 = vld [vmem:[%s226 + $0x30] sm:$0xf]
      %v304 = vld [vmem:[%s226 + $0x34] sm:$0xf]
      %v305 = vld [vmem:[%s226 + $0x38] sm:$0xf]
      %v306 = vld [vmem:[%s226 + $0x3c] sm:$0xf]
      %v307 = vld [vmem:[%s226 + $0x40] sm:$0xf]
      %v308 = vld [vmem:[%s226 + $0x44] sm:$0xf]
      %v309 = vld [vmem:[%s226 + $0x48] sm:$0xf]
      %v310 = vld [vmem:[%s226 + $0x4c] sm:$0xf]
      %v311 = vld [vmem:[%s226 + $0x50] sm:$0xf]
      %v312 = vld [vmem:[%s226 + $0x54] sm:$0xf]
      %v313 = vld [vmem:[%s226 + $0x58] sm:$0xf]
      %v314 = vld [vmem:[%s226 + $0x5c] sm:$0xf]
      %v315 = vld [vmem:[%s226 + $0x60] sm:$0xf]
      %v316 = vld [vmem:[%s226 + $0x64] sm:$0xf]
      %v317 = vld [vmem:[%s226 + $0x68] sm:$0xf]
      %v318 = vld [vmem:[%s226 + $0x6c] sm:$0xf]
      %v319 = vld [vmem:[%s226 + $0x70] sm:$0xf]
      %v320 = vld [vmem:[%s226 + $0x74] sm:$0xf]
      %v321 = vld [vmem:[%s226 + $0x78] sm:$0xf]
      %v322 = vld [vmem:[%s226 + $0x7c] sm:$0xf]
      %v323 = vunpack.c.l.bf16 %v291
      %v324 = vunpack.c.l.bf16 %v292
      %v325 = vunpack.c.l.bf16 %v293
      %v326 = vunpack.c.l.bf16 %v294
      %v327 = vunpack.c.l.bf16 %v295
      %v328 = vunpack.c.l.bf16 %v296
      %v329 = vunpack.c.l.bf16 %v297
      %v330 = vunpack.c.l.bf16 %v298
      %v331 = vunpack.c.l.bf16 %v299
      %v332 = vunpack.c.l.bf16 %v300
      %v333 = vunpack.c.l.bf16 %v301
      %v334 = vunpack.c.l.bf16 %v302
      %v335 = vunpack.c.l.bf16 %v303
      %v336 = vunpack.c.l.bf16 %v304
      %v337 = vunpack.c.l.bf16 %v305
      %v338 = vunpack.c.l.bf16 %v306
      %v339 = vunpack.c.l.bf16 %v307
      %v340 = vunpack.c.l.bf16 %v308
      %v341 = vunpack.c.l.bf16 %v309
      %v342 = vunpack.c.l.bf16 %v310
      %v343 = vunpack.c.l.bf16 %v311
      %v344 = vunpack.c.l.bf16 %v312
      %v345 = vunpack.c.l.bf16 %v313
      %v346 = vunpack.c.l.bf16 %v314
      %v347 = vunpack.c.l.bf16 %v315
      %v348 = vunpack.c.l.bf16 %v316
      %v349 = vunpack.c.l.bf16 %v317
      %v350 = vunpack.c.l.bf16 %v318
      %v351 = vunpack.c.l.bf16 %v319
      %v352 = vunpack.c.l.bf16 %v320
      %v353 = vunpack.c.l.bf16 %v321
      %v354 = vunpack.c.l.bf16 %v322
      %v355 = vld [vmem:[%s2] sm:$0x1]
      %v357 = vperm.slane %v355, 0
      %v359 = vmul.f32 %v323, %v357
      %v360 = vmul.f32 %v324, %v357
      %v361 = vmul.f32 %v325, %v357
      %v362 = vmul.f32 %v326, %v357
      %v363 = vmul.f32 %v327, %v357
      %v364 = vmul.f32 %v328, %v357
      %v365 = vmul.f32 %v329, %v357
      %v366 = vmul.f32 %v330, %v357
      %v367 = vmul.f32 %v331, %v357
      %v368 = vmul.f32 %v332, %v357
      %v369 = vmul.f32 %v333, %v357
      %v370 = vmul.f32 %v334, %v357
      %v371 = vmul.f32 %v335, %v357
      %v372 = vmul.f32 %v336, %v357
      %v373 = vmul.f32 %v337, %v357
      %v374 = vmul.f32 %v338, %v357
      %v375 = vmul.f32 %v339, %v357
      %v376 = vmul.f32 %v340, %v357
      %v377 = vmul.f32 %v341, %v357
      %v378 = vmul.f32 %v342, %v357
      %v379 = vmul.f32 %v343, %v357
      %v380 = vmul.f32 %v344, %v357
      %v381 = vmul.f32 %v345, %v357
      %v382 = vmul.f32 %v346, %v357
      %v383 = vmul.f32 %v347, %v357
      %v384 = vmul.f32 %v348, %v357
      %v385 = vmul.f32 %v349, %v357
      %v386 = vmul.f32 %v350, %v357
      %v387 = vmul.f32 %v351, %v357
      %v388 = vmul.f32 %v352, %v357
      %v389 = vmul.f32 %v353, %v357
      %v390 = vmul.f32 %v354, %v357
      %v391 = vld [vmem:[%s3] sm:$0x1]
      %v393 = vperm.slane %v391, 0
      %v395 = vadd.f32 %v359, %v393
      %v396 = vadd.f32 %v360, %v393
      %v397 = vadd.f32 %v361, %v393
      %v398 = vadd.f32 %v362, %v393
      %v399 = vadd.f32 %v363, %v393
      %v400 = vadd.f32 %v364, %v393
      %v401 = vadd.f32 %v365, %v393
      %v402 = vadd.f32 %v366, %v393
      %v403 = vadd.f32 %v367, %v393
      %v404 = vadd.f32 %v368, %v393
      %v405 = vadd.f32 %v369, %v393
      %v406 = vadd.f32 %v370, %v393
      %v407 = vadd.f32 %v371, %v393
      %v408 = vadd.f32 %v372, %v393
      %v409 = vadd.f32 %v373, %v393
      %v410 = vadd.f32 %v374, %v393
      %v411 = vadd.f32 %v375, %v393
      %v412 = vadd.f32 %v376, %v393
      %v413 = vadd.f32 %v377, %v393
      %v414 = vadd.f32 %v378, %v393
      %v415 = vadd.f32 %v379, %v393
      %v416 = vadd.f32 %v380, %v393
      %v417 = vadd.f32 %v381, %v393
      %v418 = vadd.f32 %v382, %v393
      %v419 = vadd.f32 %v383, %v393
      %v420 = vadd.f32 %v384, %v393
      %v421 = vadd.f32 %v385, %v393
      %v422 = vadd.f32 %v386, %v393
      %v423 = vadd.f32 %v387, %v393
      %v424 = vadd.f32 %v388, %v393
      %v425 = vadd.f32 %v389, %v393
      %v426 = vadd.f32 %v390, %v393
      %v427 = vmax.f32 %v395, 0.0
      %v428 = vmax.f32 %v396, 0.0
      %v429 = vmax.f32 %v397, 0.0
      %v430 = vmax.f32 %v398, 0.0
      %v431 = vmax.f32 %v399, 0.0
      %v432 = vmax.f32 %v400, 0.0
      %v433 = vmax.f32 %v401, 0.0
      %v434 = vmax.f32 %v402, 0.0
      %v435 = vmax.f32 %v403, 0.0
      %v436 = vmax.f32 %v404, 0.0
      %v437 = vmax.f32 %v405, 0.0
      %v438 = vmax.f32 %v406, 0.0
      %v439 = vmax.f32 %v407, 0.0
      %v440 = vmax.f32 %v408, 0.0
      %v441 = vmax.f32 %v409, 0.0
      %v442 = vmax.f32 %v410, 0.0
      %v443 = vmax.f32 %v411, 0.0
      %v444 = vmax.f32 %v412, 0.0
      %v445 = vmax.f32 %v413, 0.0
      %v446 = vmax.f32 %v414, 0.0
      %v447 = vmax.f32 %v415, 0.0
      %v448 = vmax.f32 %v416, 0.0
      %v449 = vmax.f32 %v417, 0.0
      %v450 = vmax.f32 %v418, 0.0
      %v451 = vmax.f32 %v419, 0.0
      %v452 = vmax.f32 %v420, 0.0
      %v453 = vmax.f32 %v421, 0.0
      %v454 = vmax.f32 %v422, 0.0
      %v455 = vmax.f32 %v423, 0.0
      %v456 = vmax.f32 %v424, 0.0
      %v457 = vmax.f32 %v425, 0.0
      %v458 = vmax.f32 %v426, 0.0
      %v459 = vpack.c.bf16 %v427, %v427
      %v460 = vpack.c.bf16 %v428, %v428
      %v461 = vpack.c.bf16 %v429, %v429
      %v462 = vpack.c.bf16 %v430, %v430
      %v463 = vpack.c.bf16 %v431, %v431
      %v464 = vpack.c.bf16 %v432, %v432
      %v465 = vpack.c.bf16 %v433, %v433
      %v466 = vpack.c.bf16 %v434, %v434
      %v467 = vpack.c.bf16 %v435, %v435
      %v468 = vpack.c.bf16 %v436, %v436
      %v469 = vpack.c.bf16 %v437, %v437
      %v470 = vpack.c.bf16 %v438, %v438
      %v471 = vpack.c.bf16 %v439, %v439
      %v472 = vpack.c.bf16 %v440, %v440
      %v473 = vpack.c.bf16 %v441, %v441
      %v474 = vpack.c.bf16 %v442, %v442
      %v475 = vpack.c.bf16 %v443, %v443
      %v476 = vpack.c.bf16 %v444, %v444
      %v477 = vpack.c.bf16 %v445, %v445
      %v478 = vpack.c.bf16 %v446, %v446
      %v479 = vpack.c.bf16 %v447, %v447
      %v480 = vpack.c.bf16 %v448, %v448
      %v481 = vpack.c.bf16 %v449, %v449
      %v482 = vpack.c.bf16 %v450, %v450
      %v483 = vpack.c.bf16 %v451, %v451
      %v484 = vpack.c.bf16 %v452, %v452
      %v485 = vpack.c.bf16 %v453, %v453
      %v486 = vpack.c.bf16 %v454, %v454
      %v487 = vpack.c.bf16 %v455, %v455
      %v488 = vpack.c.bf16 %v456, %v456
      %v489 = vpack.c.bf16 %v457, %v457
      %v490 = vpack.c.bf16 %v458, %v458
      %vm491 = vsmask.f32 256
      %vm492 = vsmask.f32 4368
      %vm493 = vmor %vm491, %vm492
      %v495 = vshrl.u32 %v459, 16
      %v497 = vrot.slane %v495, 7
      %v498 = vshll.u32 %v459, 16
      %v500 = vor.u32 %v497, %v498
      %v501 = vrot.slane %v497, 4
      %v503 = vshrl.u32 %v460, 16
      %v505 = vrot.slane %v503, 7
      %v506 = vshll.u32 %v460, 16
      %v508 = vor.u32 %v505, %v506
      %v509 = vsel %vm493, %v501, %v508
      %v510 = vrot.slane %v505, 4
      %v512 = vshrl.u32 %v461, 16
      %v514 = vrot.slane %v512, 7
      %v515 = vshll.u32 %v461, 16
      %v517 = vor.u32 %v514, %v515
      %v518 = vrot.slane %v514, 4
      %v520 = vshrl.u32 %v462, 16
      %v522 = vrot.slane %v520, 7
      %v523 = vshll.u32 %v462, 16
      %v525 = vor.u32 %v522, %v523
      %v526 = vsel %vm493, %v518, %v525
      %v527 = vrot.slane %v522, 4
      %v529 = vshrl.u32 %v463, 16
      %v531 = vrot.slane %v529, 7
      %v532 = vshll.u32 %v463, 16
      %v534 = vor.u32 %v531, %v532
      %v535 = vrot.slane %v531, 4
      %v537 = vshrl.u32 %v464, 16
      %v539 = vrot.slane %v537, 7
      %v540 = vshll.u32 %v464, 16
      %v542 = vor.u32 %v539, %v540
      %v543 = vsel %vm493, %v535, %v542
      %v544 = vrot.slane %v539, 4
      %v546 = vshrl.u32 %v465, 16
      %v548 = vrot.slane %v546, 7
      %v549 = vshll.u32 %v465, 16
      %v551 = vor.u32 %v548, %v549
      %v552 = vrot.slane %v548, 4
      %v554 = vshrl.u32 %v466, 16
      %v556 = vrot.slane %v554, 7
      %v557 = vshll.u32 %v466, 16
      %v559 = vor.u32 %v556, %v557
      %v560 = vsel %vm493, %v552, %v559
      %v561 = vrot.slane %v556, 4
      %v563 = vshrl.u32 %v467, 16
      %v565 = vrot.slane %v563, 7
      %v566 = vshll.u32 %v467, 16
      %v568 = vor.u32 %v565, %v566
      %v569 = vrot.slane %v565, 4
      %v571 = vshrl.u32 %v468, 16
      %v573 = vrot.slane %v571, 7
      %v574 = vshll.u32 %v468, 16
      %v576 = vor.u32 %v573, %v574
      %v577 = vsel %vm493, %v569, %v576
      %v578 = vrot.slane %v573, 4
      %v580 = vshrl.u32 %v469, 16
      %v582 = vrot.slane %v580, 7
      %v583 = vshll.u32 %v469, 16
      %v585 = vor.u32 %v582, %v583
      %v586 = vrot.slane %v582, 4
      %v588 = vshrl.u32 %v470, 16
      %v590 = vrot.slane %v588, 7
      %v591 = vshll.u32 %v470, 16
      %v593 = vor.u32 %v590, %v591
      %v594 = vsel %vm493, %v586, %v593
      %v595 = vrot.slane %v590, 4
      %v597 = vshrl.u32 %v471, 16
      %v599 = vrot.slane %v597, 7
      %v600 = vshll.u32 %v471, 16
      %v602 = vor.u32 %v599, %v600
      %v603 = vrot.slane %v599, 4
      %v605 = vshrl.u32 %v472, 16
      %v607 = vrot.slane %v605, 7
      %v608 = vshll.u32 %v472, 16
      %v610 = vor.u32 %v607, %v608
      %v611 = vsel %vm493, %v603, %v610
      %v612 = vrot.slane %v607, 4
      %v614 = vshrl.u32 %v473, 16
      %v616 = vrot.slane %v614, 7
      %v617 = vshll.u32 %v473, 16
      %v619 = vor.u32 %v616, %v617
      %v620 = vrot.slane %v616, 4
      %v622 = vshrl.u32 %v474, 16
      %v624 = vrot.slane %v622, 7
      %v625 = vshll.u32 %v474, 16
      %v627 = vor.u32 %v624, %v625
      %v628 = vsel %vm493, %v620, %v627
      %v629 = vrot.slane %v624, 4
      %v631 = vshrl.u32 %v475, 16
      %v633 = vrot.slane %v631, 7
      %v634 = vshll.u32 %v475, 16
      %v636 = vor.u32 %v633, %v634
      %v637 = vrot.slane %v633, 4
      %v639 = vshrl.u32 %v476, 16
      %v641 = vrot.slane %v639, 7
      %v642 = vshll.u32 %v476, 16
      %v644 = vor.u32 %v641, %v642
      %v645 = vsel %vm493, %v637, %v644
      %v646 = vrot.slane %v641, 4
      %v648 = vshrl.u32 %v477, 16
      %v650 = vrot.slane %v648, 7
      %v651 = vshll.u32 %v477, 16
      %v653 = vor.u32 %v650, %v651
      %v654 = vrot.slane %v650, 4
      %v656 = vshrl.u32 %v478, 16
      %v658 = vrot.slane %v656, 7
      %v659 = vshll.u32 %v478, 16
      %v661 = vor.u32 %v658, %v659
      %v662 = vsel %vm493, %v654, %v661
      %v663 = vrot.slane %v658, 4
      %v665 = vshrl.u32 %v479, 16
      %v667 = vrot.slane %v665, 7
      %v668 = vshll.u32 %v479, 16
      %v670 = vor.u32 %v667, %v668
      %v671 = vrot.slane %v667, 4
      %v673 = vshrl.u32 %v480, 16
      %v675 = vrot.slane %v673, 7
      %v676 = vshll.u32 %v480, 16
      %v678 = vor.u32 %v675, %v676
      %v679 = vsel %vm493, %v671, %v678
      %v680 = vrot.slane %v675, 4
      %v682 = vshrl.u32 %v481, 16
      %v684 = vrot.slane %v682, 7
      %v685 = vshll.u32 %v481, 16
      %v687 = vor.u32 %v684, %v685
      %v688 = vrot.slane %v684, 4
      %v690 = vshrl.u32 %v482, 16
      %v692 = vrot.slane %v690, 7
      %v693 = vshll.u32 %v482, 16
      %v695 = vor.u32 %v692, %v693
      %v696 = vsel %vm493, %v688, %v695
      %v697 = vrot.slane %v692, 4
      %v699 = vshrl.u32 %v483, 16
      %v701 = vrot.slane %v699, 7
      %v702 = vshll.u32 %v483, 16
      %v704 = vor.u32 %v701, %v702
      %v705 = vrot.slane %v701, 4
      %v707 = vshrl.u32 %v484, 16
      %v709 = vrot.slane %v707, 7
      %v710 = vshll.u32 %v484, 16
      %v712 = vor.u32 %v709, %v710
      %v713 = vsel %vm493, %v705, %v712
      %v714 = vrot.slane %v709, 4
      %v716 = vshrl.u32 %v485, 16
      %v718 = vrot.slane %v716, 7
      %v719 = vshll.u32 %v485, 16
      %v721 = vor.u32 %v718, %v719
      %v722 = vrot.slane %v718, 4
      %v724 = vshrl.u32 %v486, 16
      %v726 = vrot.slane %v724, 7
      %v727 = vshll.u32 %v486, 16
      %v729 = vor.u32 %v726, %v727
      %v730 = vsel %vm493, %v722, %v729
      %v731 = vrot.slane %v726, 4
      %v733 = vshrl.u32 %v487, 16
      %v735 = vrot.slane %v733, 7
      %v736 = vshll.u32 %v487, 16
      %v738 = vor.u32 %v735, %v736
      %v739 = vrot.slane %v735, 4
      %v741 = vshrl.u32 %v488, 16
      %v743 = vrot.slane %v741, 7
      %v744 = vshll.u32 %v488, 16
      %v746 = vor.u32 %v743, %v744
      %v747 = vsel %vm493, %v739, %v746
      %v748 = vrot.slane %v743, 4
      %v750 = vshrl.u32 %v489, 16
      %v752 = vrot.slane %v750, 7
      %v753 = vshll.u32 %v489, 16
      %v755 = vor.u32 %v752, %v753
      %v756 = vrot.slane %v752, 4
      %v758 = vshrl.u32 %v490, 16
      %v760 = vrot.slane %v758, 7
      %v761 = vshll.u32 %v490, 16
      %v763 = vor.u32 %v760, %v761
      %v764 = vsel %vm493, %v756, %v763
      %v765 = vrot.slane %v760, 4
      %s814 = scalar_lea.vmem [#allocation2], 12
      %vm815 = vcmask 1043456
      %vm816 = vsmask.f32 7938
      %vm817 = vmand %vm815, %vm816
      %v818 = vld [vmem:[%s814] sm:$0xf]
      %v819 = vsel %vm817, %v500, %v818
      %820 = vst [vmem:[%s814] sm:$0xf] %v819
      %821 = vst [vmem:[%s814 + $0x4] sm:$0xf] %v509
      %vm822 = vcmask 1040384
      %vm823 = vmand %vm822, %vm491
      %v824 = vld [vmem:[%s814 + $0x8] sm:$0x1]
      %v825 = vsel %vm823, %v510, %v824
      %826 = vst [vmem:[%s814 + $0x8] sm:$0x1] %v825
      %v827 = vld [vmem:[%s814 + $0xc] sm:$0xf]
      %v828 = vsel %vm817, %v517, %v827
      %829 = vst [vmem:[%s814 + $0xc] sm:$0xf] %v828
      %830 = vst [vmem:[%s814 + $0x10] sm:$0xf] %v526
      %v831 = vld [vmem:[%s814 + $0x14] sm:$0x1]
      %v832 = vsel %vm823, %v527, %v831
      %833 = vst [vmem:[%s814 + $0x14] sm:$0x1] %v832
      %v834 = vld [vmem:[%s814 + $0x18] sm:$0xf]
      %v835 = vsel %vm817, %v534, %v834
      %836 = vst [vmem:[%s814 + $0x18] sm:$0xf] %v835
      %837 = vst [vmem:[%s814 + $0x1c] sm:$0xf] %v543
      %v838 = vld [vmem:[%s814 + $0x20] sm:$0x1]
      %v839 = vsel %vm823, %v544, %v838
      %840 = vst [vmem:[%s814 + $0x20] sm:$0x1] %v839
      %v841 = vld [vmem:[%s814 + $0x24] sm:$0xf]
      %v842 = vsel %vm817, %v551, %v841
      %843 = vst [vmem:[%s814 + $0x24] sm:$0xf] %v842
      %844 = vst [vmem:[%s814 + $0x28] sm:$0xf] %v560
      %v845 = vld [vmem:[%s814 + $0x2c] sm:$0x1]
      %v846 = vsel %vm823, %v561, %v845
      %847 = vst [vmem:[%s814 + $0x2c] sm:$0x1] %v846
      %v848 = vld [vmem:[%s814 + $0x30] sm:$0xf]
      %v849 = vsel %vm817, %v568, %v848
      %850 = vst [vmem:[%s814 + $0x30] sm:$0xf] %v849
      %851 = vst [vmem:[%s814 + $0x34] sm:$0xf] %v577
      %v852 = vld [vmem:[%s814 + $0x38] sm:$0x1]
      %v853 = vsel %vm823, %v578, %v852
      %854 = vst [vmem:[%s814 + $0x38] sm:$0x1] %v853
      %v855 = vld [vmem:[%s814 + $0x3c] sm:$0xf]
      %v856 = vsel %vm817, %v585, %v855
      %857 = vst [vmem:[%s814 + $0x3c] sm:$0xf] %v856
      %858 = vst [vmem:[%s814 + $0x40] sm:$0xf] %v594
      %v859 = vld [vmem:[%s814 + $0x44] sm:$0x1]
      %v860 = vsel %vm823, %v595, %v859
      %861 = vst [vmem:[%s814 + $0x44] sm:$0x1] %v860
      %v862 = vld [vmem:[%s814 + $0x48] sm:$0xf]
      %v863 = vsel %vm817, %v602, %v862
      %864 = vst [vmem:[%s814 + $0x48] sm:$0xf] %v863
      %865 = vst [vmem:[%s814 + $0x4c] sm:$0xf] %v611
      %v866 = vld [vmem:[%s814 + $0x50] sm:$0x1]
      %v867 = vsel %vm823, %v612, %v866
      %868 = vst [vmem:[%s814 + $0x50] sm:$0x1] %v867
      %v869 = vld [vmem:[%s814 + $0x54] sm:$0xf]
      %v870 = vsel %vm817, %v619, %v869
      %871 = vst [vmem:[%s814 + $0x54] sm:$0xf] %v870
      %872 = vst [vmem:[%s814 + $0x58] sm:$0xf] %v628
      %v873 = vld [vmem:[%s814 + $0x5c] sm:$0x1]
      %v874 = vsel %vm823, %v629, %v873
      %875 = vst [vmem:[%s814 + $0x5c] sm:$0x1] %v874
      %v876 = vld [vmem:[%s814 + $0x60] sm:$0xf]
      %v877 = vsel %vm817, %v636, %v876
      %878 = vst [vmem:[%s814 + $0x60] sm:$0xf] %v877
      %879 = vst [vmem:[%s814 + $0x64] sm:$0xf] %v645
      %v880 = vld [vmem:[%s814 + $0x68] sm:$0x1]
      %v881 = vsel %vm823, %v646, %v880
      %882 = vst [vmem:[%s814 + $0x68] sm:$0x1] %v881
      %v883 = vld [vmem:[%s814 + $0x6c] sm:$0xf]
      %v884 = vsel %vm817, %v653, %v883
      %885 = vst [vmem:[%s814 + $0x6c] sm:$0xf] %v884
      %886 = vst [vmem:[%s814 + $0x70] sm:$0xf] %v662
      %v887 = vld [vmem:[%s814 + $0x74] sm:$0x1]
      %v888 = vsel %vm823, %v663, %v887
      %889 = vst [vmem:[%s814 + $0x74] sm:$0x1] %v888
      %v890 = vld [vmem:[%s814 + $0x78] sm:$0xf]
      %v891 = vsel %vm817, %v670, %v890
      %892 = vst [vmem:[%s814 + $0x78] sm:$0xf] %v891
      %893 = vst [vmem:[%s814 + $0x7c] sm:$0xf] %v679
      %v894 = vld [vmem:[%s814 + $0x80] sm:$0x1]
      %v895 = vsel %vm823, %v680, %v894
      %896 = vst [vmem:[%s814 + $0x80] sm:$0x1] %v895
      %v897 = vld [vmem:[%s814 + $0x84] sm:$0xf]
      %v898 = vsel %vm817, %v687, %v897
      %899 = vst [vmem:[%s814 + $0x84] sm:$0xf] %v898
      %900 = vst [vmem:[%s814 + $0x88] sm:$0xf] %v696
      %v901 = vld [vmem:[%s814 + $0x8c] sm:$0x1]
      %v902 = vsel %vm823, %v697, %v901
      %903 = vst [vmem:[%s814 + $0x8c] sm:$0x1] %v902
      %v904 = vld [vmem:[%s814 + $0x90] sm:$0xf]
      %v905 = vsel %vm817, %v704, %v904
      %906 = vst [vmem:[%s814 + $0x90] sm:$0xf] %v905
      %907 = vst [vmem:[%s814 + $0x94] sm:$0xf] %v713
      %v908 = vld [vmem:[%s814 + $0x98] sm:$0x1]
      %v909 = vsel %vm823, %v714, %v908
      %910 = vst [vmem:[%s814 + $0x98] sm:$0x1] %v909
      %v911 = vld [vmem:[%s814 + $0x9c] sm:$0xf]
      %v912 = vsel %vm817, %v721, %v911
      %913 = vst [vmem:[%s814 + $0x9c] sm:$0xf] %v912
      %914 = vst [vmem:[%s814 + $0xa0] sm:$0xf] %v730
      %v915 = vld [vmem:[%s814 + $0xa4] sm:$0x1]
      %v916 = vsel %vm823, %v731, %v915
      %917 = vst [vmem:[%s814 + $0xa4] sm:$0x1] %v916
      %v918 = vld [vmem:[%s814 + $0xa8] sm:$0xf]
      %v919 = vsel %vm817, %v738, %v918
      %920 = vst [vmem:[%s814 + $0xa8] sm:$0xf] %v919
      %921 = vst [vmem:[%s814 + $0xac] sm:$0xf] %v747
      %v922 = vld [vmem:[%s814 + $0xb0] sm:$0x1]
      %v923 = vsel %vm823, %v748, %v922
      %924 = vst [vmem:[%s814 + $0xb0] sm:$0x1] %v923
      %v925 = vld [vmem:[%s814 + $0xb4] sm:$0xf]
      %v926 = vsel %vm817, %v755, %v925
      %927 = vst [vmem:[%s814 + $0xb4] sm:$0xf] %v926
      %928 = vst [vmem:[%s814 + $0xb8] sm:$0xf] %v764
      %v929 = vld [vmem:[%s814 + $0xbc] sm:$0x1]
      %v930 = vsel %vm823, %v765, %v929
      %931 = vst [vmem:[%s814 + $0xbc] sm:$0x1] %v930
      %v932 = vld [vmem:[#allocation2] sm:$0xf]
      %v933 = vld [vmem:[#allocation2 + $0x4] sm:$0xf]
      %v934 = vld [vmem:[#allocation2 + $0xc] sm:$0xf]
      %v935 = vld [vmem:[#allocation2 + $0x10] sm:$0xf]
      %v936 = vld [vmem:[#allocation2 + $0x18] sm:$0xf]
      %v937 = vld [vmem:[#allocation2 + $0x1c] sm:$0xf]
      %v938 = vld [vmem:[#allocation2 + $0x24] sm:$0xf]
      %v939 = vld [vmem:[#allocation2 + $0x28] sm:$0xf]
      %v940 = vld [vmem:[#allocation2 + $0x30] sm:$0xf]
      %v941 = vld [vmem:[#allocation2 + $0x34] sm:$0xf]
      %v942 = vld [vmem:[#allocation2 + $0x3c] sm:$0xf]
      %v943 = vld [vmem:[#allocation2 + $0x40] sm:$0xf]
      %v944 = vld [vmem:[#allocation2 + $0x48] sm:$0xf]
      %v945 = vld [vmem:[#allocation2 + $0x4c] sm:$0xf]
      %v946 = vld [vmem:[#allocation2 + $0x54] sm:$0xf]
      %v947 = vld [vmem:[#allocation2 + $0x58] sm:$0xf]
      %v948 = vld [vmem:[#allocation2 + $0x60] sm:$0xf]
      %v949 = vld [vmem:[#allocation2 + $0x64] sm:$0xf]
      %v950 = vld [vmem:[#allocation2 + $0x6c] sm:$0xf]
      %v951 = vld [vmem:[#allocation2 + $0x70] sm:$0xf]
      %v952 = vld [vmem:[#allocation2 + $0x78] sm:$0xf]
      %v953 = vld [vmem:[#allocation2 + $0x7c] sm:$0xf]
      %v954 = vld [vmem:[#allocation2 + $0x84] sm:$0xf]
      %v955 = vld [vmem:[#allocation2 + $0x88] sm:$0xf]
      %v956 = vld [vmem:[#allocation2 + $0x90] sm:$0xf]
      %v957 = vld [vmem:[#allocation2 + $0x94] sm:$0xf]
      %v958 = vld [vmem:[#allocation2 + $0x9c] sm:$0xf]
      %v959 = vld [vmem:[#allocation2 + $0xa0] sm:$0xf]
      %v960 = vld [vmem:[#allocation2 + $0xa8] sm:$0xf]
      %v961 = vld [vmem:[#allocation2 + $0xac] sm:$0xf]
      %v962 = vld [vmem:[#allocation2 + $0xb4] sm:$0xf]
      %v963 = vld [vmem:[#allocation2 + $0xb8] sm:$0xf]
      %v964 = vld [vmem:[#allocation2 + $0x8] sm:$0x1]
      %v965 = vld [vmem:[#allocation2 + $0x14] sm:$0x1]
      %v966 = vld [vmem:[#allocation2 + $0x20] sm:$0x1]
      %v967 = vld [vmem:[#allocation2 + $0x2c] sm:$0x1]
      %v968 = vld [vmem:[#allocation2 + $0x38] sm:$0x1]
      %v969 = vld [vmem:[#allocation2 + $0x44] sm:$0x1]
      %v970 = vld [vmem:[#allocation2 + $0x50] sm:$0x1]
      %v971 = vld [vmem:[#allocation2 + $0x5c] sm:$0x1]
      %v972 = vld [vmem:[#allocation2 + $0x68] sm:$0x1]
      %v973 = vld [vmem:[#allocation2 + $0x74] sm:$0x1]
      %v974 = vld [vmem:[#allocation2 + $0x80] sm:$0x1]
      %v975 = vld [vmem:[#allocation2 + $0x8c] sm:$0x1]
      %v976 = vld [vmem:[#allocation2 + $0x98] sm:$0x1]
      %v977 = vld [vmem:[#allocation2 + $0xa4] sm:$0x1]
      %v978 = vld [vmem:[#allocation2 + $0xb0] sm:$0x1]
      %v979 = vld [vmem:[#allocation2 + $0xbc] sm:$0x1]
      %v980 = vld [vmem:[#allocation2] sm:$0xe]
      %v981 = vld [vmem:[#allocation2 + $0xc] sm:$0xe]
      %v982 = vld [vmem:[#allocation2 + $0x18] sm:$0xe]
      %v983 = vld [vmem:[#allocation2 + $0x24] sm:$0xe]
      %v984 = vld [vmem:[#allocation2 + $0x30] sm:$0xe]
      %v985 = vld [vmem:[#allocation2 + $0x3c] sm:$0xe]
      %v986 = vld [vmem:[#allocation2 + $0x48] sm:$0xe]
      %v987 = vld [vmem:[#allocation2 + $0x54] sm:$0xe]
      %v988 = vld [vmem:[#allocation2 + $0x60] sm:$0xe]
      %v989 = vld [vmem:[#allocation2 + $0x6c] sm:$0xe]
      %v990 = vld [vmem:[#allocation2 + $0x78] sm:$0xe]
      %v991 = vld [vmem:[#allocation2 + $0x84] sm:$0xe]
      %v992 = vld [vmem:[#allocation2 + $0x90] sm:$0xe]
      %v993 = vld [vmem:[#allocation2 + $0x9c] sm:$0xe]
      %v994 = vld [vmem:[#allocation2 + $0xa8] sm:$0xe]
      %v995 = vld [vmem:[#allocation2 + $0xb4] sm:$0xe]
      %v996 = vld [vmem:[%s814] sm:$0xf]
      %v997 = vld [vmem:[%s814 + $0x4] sm:$0xf]
      %v998 = vld [vmem:[%s814 + $0xc] sm:$0xf]
      %v999 = vld [vmem:[%s814 + $0x10] sm:$0xf]
      %v1000 = vld [vmem:[%s814 + $0x18] sm:$0xf]
      %v1001 = vld [vmem:[%s814 + $0x1c] sm:$0xf]
      %v1002 = vld [vmem:[%s814 + $0x24] sm:$0xf]
      %v1003 = vld [vmem:[%s814 + $0x28] sm:$0xf]
      %v1004 = vld [vmem:[%s814 + $0x30] sm:$0xf]
      %v1005 = vld [vmem:[%s814 + $0x34] sm:$0xf]
      %v1006 = vld [vmem:[%s814 + $0x3c] sm:$0xf]
      %v1007 = vld [vmem:[%s814 + $0x40] sm:$0xf]
      %v1008 = vld [vmem:[%s814 + $0x48] sm:$0xf]
      %v1009 = vld [vmem:[%s814 + $0x4c] sm:$0xf]
      %v1010 = vld [vmem:[%s814 + $0x54] sm:$0xf]
      %v1011 = vld [vmem:[%s814 + $0x58] sm:$0xf]
      %v1012 = vld [vmem:[%s814 + $0x60] sm:$0xf]
      %v1013 = vld [vmem:[%s814 + $0x64] sm:$0xf]
      %v1014 = vld [vmem:[%s814 + $0x6c] sm:$0xf]
      %v1015 = vld [vmem:[%s814 + $0x70] sm:$0xf]
      %v1016 = vld [vmem:[%s814 + $0x78] sm:$0xf]
      %v1017 = vld [vmem:[%s814 + $0x7c] sm:$0xf]
      %v1018 = vld [vmem:[%s814 + $0x84] sm:$0xf]
      %v1019 = vld [vmem:[%s814 + $0x88] sm:$0xf]
      %v1020 = vld [vmem:[%s814 + $0x90] sm:$0xf]
      %v1021 = vld [vmem:[%s814 + $0x94] sm:$0xf]
      %v1022 = vld [vmem:[%s814 + $0x9c] sm:$0xf]
      %v1023 = vld [vmem:[%s814 + $0xa0] sm:$0xf]
      %v1024 = vld [vmem:[%s814 + $0xa8] sm:$0xf]
      %v1025 = vld [vmem:[%s814 + $0xac] sm:$0xf]
      %v1026 = vld [vmem:[%s814 + $0xb4] sm:$0xf]
      %v1027 = vld [vmem:[%s814 + $0xb8] sm:$0xf]
      %v1028 = vld [vmem:[%s814 + $0x8] sm:$0x1]
      %v1029 = vld [vmem:[%s814 + $0x14] sm:$0x1]
      %v1030 = vld [vmem:[%s814 + $0x20] sm:$0x1]
      %v1031 = vld [vmem:[%s814 + $0x2c] sm:$0x1]
      %v1032 = vld [vmem:[%s814 + $0x38] sm:$0x1]
      %v1033 = vld [vmem:[%s814 + $0x44] sm:$0x1]
      %v1034 = vld [vmem:[%s814 + $0x50] sm:$0x1]
      %v1035 = vld [vmem:[%s814 + $0x5c] sm:$0x1]
      %v1036 = vld [vmem:[%s814 + $0x68] sm:$0x1]
      %v1037 = vld [vmem:[%s814 + $0x74] sm:$0x1]
      %v1038 = vld [vmem:[%s814 + $0x80] sm:$0x1]
      %v1039 = vld [vmem:[%s814 + $0x8c] sm:$0x1]
      %v1040 = vld [vmem:[%s814 + $0x98] sm:$0x1]
      %v1041 = vld [vmem:[%s814 + $0xa4] sm:$0x1]
      %v1042 = vld [vmem:[%s814 + $0xb0] sm:$0x1]
      %v1043 = vld [vmem:[%s814 + $0xbc] sm:$0x1]
      %v1044 = vld [vmem:[%s814] sm:$0xe]
      %v1045 = vld [vmem:[%s814 + $0xc] sm:$0xe]
      %v1046 = vld [vmem:[%s814 + $0x18] sm:$0xe]
      %v1047 = vld [vmem:[%s814 + $0x24] sm:$0xe]
      %v1048 = vld [vmem:[%s814 + $0x30] sm:$0xe]
      %v1049 = vld [vmem:[%s814 + $0x3c] sm:$0xe]
      %v1050 = vld [vmem:[%s814 + $0x48] sm:$0xe]
      %v1051 = vld [vmem:[%s814 + $0x54] sm:$0xe]
      %v1052 = vld [vmem:[%s814 + $0x60] sm:$0xe]
      %v1053 = vld [vmem:[%s814 + $0x6c] sm:$0xe]
      %v1054 = vld [vmem:[%s814 + $0x78] sm:$0xe]
      %v1055 = vld [vmem:[%s814 + $0x84] sm:$0xe]
      %v1056 = vld [vmem:[%s814 + $0x90] sm:$0xe]
      %v1057 = vld [vmem:[%s814 + $0x9c] sm:$0xe]
      %v1058 = vld [vmem:[%s814 + $0xa8] sm:$0xe]
      %v1059 = vld [vmem:[%s814 + $0xb4] sm:$0xe]
      %s1060 = scalar_lea.vmem [#allocation2], 24
      %v1061 = vld [vmem:[%s1060] sm:$0xf]
      %v1062 = vld [vmem:[%s1060 + $0x4] sm:$0xf]
      %v1063 = vld [vmem:[%s1060 + $0xc] sm:$0xf]
      %v1064 = vld [vmem:[%s1060 + $0x10] sm:$0xf]
      %v1065 = vld [vmem:[%s1060 + $0x18] sm:$0xf]
      %v1066 = vld [vmem:[%s1060 + $0x1c] sm:$0xf]
      %v1067 = vld [vmem:[%s1060 + $0x24] sm:$0xf]
      %v1068 = vld [vmem:[%s1060 + $0x28] sm:$0xf]
      %v1069 = vld [vmem:[%s1060 + $0x30] sm:$0xf]
      %v1070 = vld [vmem:[%s1060 + $0x34] sm:$0xf]
      %v1071 = vld [vmem:[%s1060 + $0x3c] sm:$0xf]
      %v1072 = vld [vmem:[%s1060 + $0x40] sm:$0xf]
      %v1073 = vld [vmem:[%s1060 + $0x48] sm:$0xf]
      %v1074 = vld [vmem:[%s1060 + $0x4c] sm:$0xf]
      %v1075 = vld [vmem:[%s1060 + $0x54] sm:$0xf]
      %v1076 = vld [vmem:[%s1060 + $0x58] sm:$0xf]
      %v1077 = vld [vmem:[%s1060 + $0x60] sm:$0xf]
      %v1078 = vld [vmem:[%s1060 + $0x64] sm:$0xf]
      %v1079 = vld [vmem:[%s1060 + $0x6c] sm:$0xf]
      %v1080 = vld [vmem:[%s1060 + $0x70] sm:$0xf]
      %v1081 = vld [vmem:[%s1060 + $0x78] sm:$0xf]
      %v1082 = vld [vmem:[%s1060 + $0x7c] sm:$0xf]
      %v1083 = vld [vmem:[%s1060 + $0x84] sm:$0xf]
      %v1084 = vld [vmem:[%s1060 + $0x88] sm:$0xf]
      %v1085 = vld [vmem:[%s1060 + $0x90] sm:$0xf]
      %v1086 = vld [vmem:[%s1060 + $0x94] sm:$0xf]
      %v1087 = vld [vmem:[%s1060 + $0x9c] sm:$0xf]
      %v1088 = vld [vmem:[%s1060 + $0xa0] sm:$0xf]
      %v1089 = vld [vmem:[%s1060 + $0xa8] sm:$0xf]
      %v1090 = vld [vmem:[%s1060 + $0xac] sm:$0xf]
      %v1091 = vld [vmem:[%s1060 + $0xb4] sm:$0xf]
      %v1092 = vld [vmem:[%s1060 + $0xb8] sm:$0xf]
      %v1093 = vld [vmem:[%s1060 + $0x8] sm:$0x1]
      %v1094 = vld [vmem:[%s1060 + $0x14] sm:$0x1]
      %v1095 = vld [vmem:[%s1060 + $0x20] sm:$0x1]
      %v1096 = vld [vmem:[%s1060 + $0x2c] sm:$0x1]
      %v1097 = vld [vmem:[%s1060 + $0x38] sm:$0x1]
      %v1098 = vld [vmem:[%s1060 + $0x44] sm:$0x1]
      %v1099 = vld [vmem:[%s1060 + $0x50] sm:$0x1]
      %v1100 = vld [vmem:[%s1060 + $0x5c] sm:$0x1]
      %v1101 = vld [vmem:[%s1060 + $0x68] sm:$0x1]
      %v1102 = vld [vmem:[%s1060 + $0x74] sm:$0x1]
      %v1103 = vld [vmem:[%s1060 + $0x80] sm:$0x1]
      %v1104 = vld [vmem:[%s1060 + $0x8c] sm:$0x1]
      %v1105 = vld [vmem:[%s1060 + $0x98] sm:$0x1]
      %v1106 = vld [vmem:[%s1060 + $0xa4] sm:$0x1]
      %v1107 = vld [vmem:[%s1060 + $0xb0] sm:$0x1]
      %v1108 = vld [vmem:[%s1060 + $0xbc] sm:$0x1]
      %v1109 = vld [vmem:[%s1060] sm:$0xe]
      %v1110 = vld [vmem:[%s1060 + $0xc] sm:$0xe]
      %v1111 = vld [vmem:[%s1060 + $0x18] sm:$0xe]
      %v1112 = vld [vmem:[%s1060 + $0x24] sm:$0xe]
      %v1113 = vld [vmem:[%s1060 + $0x30] sm:$0xe]
      %v1114 = vld [vmem:[%s1060 + $0x3c] sm:$0xe]
      %v1115 = vld [vmem:[%s1060 + $0x48] sm:$0xe]
      %v1116 = vld [vmem:[%s1060 + $0x54] sm:$0xe]
      %v1117 = vld [vmem:[%s1060 + $0x60] sm:$0xe]
      %v1118 = vld [vmem:[%s1060 + $0x6c] sm:$0xe]
      %v1119 = vld [vmem:[%s1060 + $0x78] sm:$0xe]
      %v1120 = vld [vmem:[%s1060 + $0x84] sm:$0xe]
      %v1121 = vld [vmem:[%s1060 + $0x90] sm:$0xe]
      %v1122 = vld [vmem:[%s1060 + $0x9c] sm:$0xe]
      %v1123 = vld [vmem:[%s1060 + $0xa8] sm:$0xe]
      %v1124 = vld [vmem:[%s1060 + $0xb4] sm:$0xe]
      %v1157 = vunpack.c.l.b16 %v932
      %v1158 = vunpack.c.l.b16 %v933
      %v1159 = vunpack.c.l.b16 %v934
      %v1160 = vunpack.c.l.b16 %v935
      %v1161 = vunpack.c.l.b16 %v936
      %v1162 = vunpack.c.l.b16 %v937
      %v1163 = vunpack.c.l.b16 %v938
      %v1164 = vunpack.c.l.b16 %v939
      %v1165 = vunpack.c.l.b16 %v940
      %v1166 = vunpack.c.l.b16 %v941
      %v1167 = vunpack.c.l.b16 %v942
      %v1168 = vunpack.c.l.b16 %v943
      %v1169 = vunpack.c.l.b16 %v944
      %v1170 = vunpack.c.l.b16 %v945
      %v1171 = vunpack.c.l.b16 %v946
      %v1172 = vunpack.c.l.b16 %v947
      %v1173 = vunpack.c.l.b16 %v948
      %v1174 = vunpack.c.l.b16 %v949
      %v1175 = vunpack.c.l.b16 %v950
      %v1176 = vunpack.c.l.b16 %v951
      %v1177 = vunpack.c.l.b16 %v952
      %v1178 = vunpack.c.l.b16 %v953
      %v1179 = vunpack.c.l.b16 %v954
      %v1180 = vunpack.c.l.b16 %v955
      %v1181 = vunpack.c.l.b16 %v956
      %v1182 = vunpack.c.l.b16 %v957
      %v1183 = vunpack.c.l.b16 %v958
      %v1184 = vunpack.c.l.b16 %v959
      %v1185 = vunpack.c.l.b16 %v960
      %v1186 = vunpack.c.l.b16 %v961
      %v1187 = vunpack.c.l.b16 %v962
      %v1188 = vunpack.c.l.b16 %v963
      %v1189 = vpack.c.b16 %v1158, %v1157
      %v1190 = vpack.c.b16 %v1160, %v1159
      %v1191 = vpack.c.b16 %v1162, %v1161
      %v1192 = vpack.c.b16 %v1164, %v1163
      %v1193 = vpack.c.b16 %v1166, %v1165
      %v1194 = vpack.c.b16 %v1168, %v1167
      %v1195 = vpack.c.b16 %v1170, %v1169
      %v1196 = vpack.c.b16 %v1172, %v1171
      %v1197 = vpack.c.b16 %v1174, %v1173
      %v1198 = vpack.c.b16 %v1176, %v1175
      %v1199 = vpack.c.b16 %v1178, %v1177
      %v1200 = vpack.c.b16 %v1180, %v1179
      %v1201 = vpack.c.b16 %v1182, %v1181
      %v1202 = vpack.c.b16 %v1184, %v1183
      %v1203 = vpack.c.b16 %v1186, %v1185
      %v1204 = vpack.c.b16 %v1188, %v1187
      %v1237 = vunpack.c.l.b16 %v964
      %v1238 = vunpack.c.l.b16 %v965
      %v1239 = vunpack.c.l.b16 %v966
      %v1240 = vunpack.c.l.b16 %v967
      %v1241 = vunpack.c.l.b16 %v968
      %v1242 = vunpack.c.l.b16 %v969
      %v1243 = vunpack.c.l.b16 %v970
      %v1244 = vunpack.c.l.b16 %v971
      %v1245 = vunpack.c.l.b16 %v972
      %v1246 = vunpack.c.l.b16 %v973
      %v1247 = vunpack.c.l.b16 %v974
      %v1248 = vunpack.c.l.b16 %v975
      %v1249 = vunpack.c.l.b16 %v976
      %v1250 = vunpack.c.l.b16 %v977
      %v1251 = vunpack.c.l.b16 %v978
      %v1252 = vunpack.c.l.b16 %v979
      %v1253 = vpack.c.b16 %v1237, %v1237
      %v1254 = vpack.c.b16 %v1238, %v1238
      %v1255 = vpack.c.b16 %v1239, %v1239
      %v1256 = vpack.c.b16 %v1240, %v1240
      %v1257 = vpack.c.b16 %v1241, %v1241
      %v1258 = vpack.c.b16 %v1242, %v1242
      %v1259 = vpack.c.b16 %v1243, %v1243
      %v1260 = vpack.c.b16 %v1244, %v1244
      %v1261 = vpack.c.b16 %v1245, %v1245
      %v1262 = vpack.c.b16 %v1246, %v1246
      %v1263 = vpack.c.b16 %v1247, %v1247
      %v1264 = vpack.c.b16 %v1248, %v1248
      %v1265 = vpack.c.b16 %v1249, %v1249
      %v1266 = vpack.c.b16 %v1250, %v1250
      %v1267 = vpack.c.b16 %v1251, %v1251
      %v1268 = vpack.c.b16 %v1252, %v1252
      %vm1269 = vsmask.f32 7424
      %v1271 = vshrl.u32 %v1189, 16
      %v1273 = vshll.u32 %v1189, 16
      %v1275 = vrot.slane %v1273, 1
      %v1276 = vor.u32 %v1271, %v1275
      %v1278 = vshll.u32 %v1253, 16
      %v1280 = vrot.slane %v1278, 1
      %v1281 = vsel %vm1269, %v1276, %v1280
      %v1283 = vshrl.u32 %v1190, 16
      %v1285 = vshll.u32 %v1190, 16
      %v1287 = vrot.slane %v1285, 1
      %v1288 = vor.u32 %v1283, %v1287
      %v1290 = vshll.u32 %v1254, 16
      %v1292 = vrot.slane %v1290, 1
      %v1293 = vsel %vm1269, %v1288, %v1292
      %v1295 = vshrl.u32 %v1191, 16
      %v1297 = vshll.u32 %v1191, 16
      %v1299 = vrot.slane %v1297, 1
      %v1300 = vor.u32 %v1295, %v1299
      %v1302 = vshll.u32 %v1255, 16
      %v1304 = vrot.slane %v1302, 1
      %v1305 = vsel %vm1269, %v1300, %v1304
      %v1307 = vshrl.u32 %v1192, 16
      %v1309 = vshll.u32 %v1192, 16
      %v1311 = vrot.slane %v1309, 1
      %v1312 = vor.u32 %v1307, %v1311
      %v1314 = vshll.u32 %v1256, 16
      %v1316 = vrot.slane %v1314, 1
      %v1317 = vsel %vm1269, %v1312, %v1316
      %v1319 = vshrl.u32 %v1193, 16
      %v1321 = vshll.u32 %v1193, 16
      %v1323 = vrot.slane %v1321, 1
      %v1324 = vor.u32 %v1319, %v1323
      %v1326 = vshll.u32 %v1257, 16
      %v1328 = vrot.slane %v1326, 1
      %v1329 = vsel %vm1269, %v1324, %v1328
      %v1331 = vshrl.u32 %v1194, 16
      %v1333 = vshll.u32 %v1194, 16
      %v1335 = vrot.slane %v1333, 1
      %v1336 = vor.u32 %v1331, %v1335
      %v1338 = vshll.u32 %v1258, 16
      %v1340 = vrot.slane %v1338, 1
      %v1341 = vsel %vm1269, %v1336, %v1340
      %v1343 = vshrl.u32 %v1195, 16
      %v1345 = vshll.u32 %v1195, 16
      %v1347 = vrot.slane %v1345, 1
      %v1348 = vor.u32 %v1343, %v1347
      %v1350 = vshll.u32 %v1259, 16
      %v1352 = vrot.slane %v1350, 1
      %v1353 = vsel %vm1269, %v1348, %v1352
      %v1355 = vshrl.u32 %v1196, 16
      %v1357 = vshll.u32 %v1196, 16
      %v1359 = vrot.slane %v1357, 1
      %v1360 = vor.u32 %v1355, %v1359
      %v1362 = vshll.u32 %v1260, 16
      %v1364 = vrot.slane %v1362, 1
      %v1365 = vsel %vm1269, %v1360, %v1364
      %v1367 = vshrl.u32 %v1197, 16
      %v1369 = vshll.u32 %v1197, 16
      %v1371 = vrot.slane %v1369, 1
      %v1372 = vor.u32 %v1367, %v1371
      %v1374 = vshll.u32 %v1261, 16
      %v1376 = vrot.slane %v1374, 1
      %v1377 = vsel %vm1269, %v1372, %v1376
      %v1379 = vshrl.u32 %v1198, 16
      %v1381 = vshll.u32 %v1198, 16
      %v1383 = vrot.slane %v1381, 1
      %v1384 = vor.u32 %v1379, %v1383
      %v1386 = vshll.u32 %v1262, 16
      %v1388 = vrot.slane %v1386, 1
      %v1389 = vsel %vm1269, %v1384, %v1388
      %v1391 = vshrl.u32 %v1199, 16
      %v1393 = vshll.u32 %v1199, 16
      %v1395 = vrot.slane %v1393, 1
      %v1396 = vor.u32 %v1391, %v1395
      %v1398 = vshll.u32 %v1263, 16
      %v1400 = vrot.slane %v1398, 1
      %v1401 = vsel %vm1269, %v1396, %v1400
      %v1403 = vshrl.u32 %v1200, 16
      %v1405 = vshll.u32 %v1200, 16
      %v1407 = vrot.slane %v1405, 1
      %v1408 = vor.u32 %v1403, %v1407
      %v1410 = vshll.u32 %v1264, 16
      %v1412 = vrot.slane %v1410, 1
      %v1413 = vsel %vm1269, %v1408, %v1412
      %v1415 = vshrl.u32 %v1201, 16
      %v1417 = vshll.u32 %v1201, 16
      %v1419 = vrot.slane %v1417, 1
      %v1420 = vor.u32 %v1415, %v1419
      %v1422 = vshll.u32 %v1265, 16
      %v1424 = vrot.slane %v1422, 1
      %v1425 = vsel %vm1269, %v1420, %v1424
      %v1427 = vshrl.u32 %v1202, 16
      %v1429 = vshll.u32 %v1202, 16
      %v1431 = vrot.slane %v1429, 1
      %v1432 = vor.u32 %v1427, %v1431
      %v1434 = vshll.u32 %v1266, 16
      %v1436 = vrot.slane %v1434, 1
      %v1437 = vsel %vm1269, %v1432, %v1436
      %v1439 = vshrl.u32 %v1203, 16
      %v1441 = vshll.u32 %v1203, 16
      %v1443 = vrot.slane %v1441, 1
      %v1444 = vor.u32 %v1439, %v1443
      %v1446 = vshll.u32 %v1267, 16
      %v1448 = vrot.slane %v1446, 1
      %v1449 = vsel %vm1269, %v1444, %v1448
      %v1451 = vshrl.u32 %v1204, 16
      %v1453 = vshll.u32 %v1204, 16
      %v1455 = vrot.slane %v1453, 1
      %v1456 = vor.u32 %v1451, %v1455
      %v1458 = vshll.u32 %v1268, 16
      %v1460 = vrot.slane %v1458, 1
      %v1461 = vsel %vm1269, %v1456, %v1460
      %v1494 = vunpack.c.l.b16 %v980
      %v1495 = vunpack.c.l.b16 %v981
      %v1496 = vunpack.c.l.b16 %v982
      %v1497 = vunpack.c.l.b16 %v983
      %v1498 = vunpack.c.l.b16 %v984
      %v1499 = vunpack.c.l.b16 %v985
      %v1500 = vunpack.c.l.b16 %v986
      %v1501 = vunpack.c.l.b16 %v987
      %v1502 = vunpack.c.l.b16 %v988
      %v1503 = vunpack.c.l.b16 %v989
      %v1504 = vunpack.c.l.b16 %v990
      %v1505 = vunpack.c.l.b16 %v991
      %v1506 = vunpack.c.l.b16 %v992
      %v1507 = vunpack.c.l.b16 %v993
      %v1508 = vunpack.c.l.b16 %v994
      %v1509 = vunpack.c.l.b16 %v995
      %v1510 = vpack.c.b16 %v1158, %v1494
      %v1511 = vpack.c.b16 %v1160, %v1495
      %v1512 = vpack.c.b16 %v1162, %v1496
      %v1513 = vpack.c.b16 %v1164, %v1497
      %v1514 = vpack.c.b16 %v1166, %v1498
      %v1515 = vpack.c.b16 %v1168, %v1499
      %v1516 = vpack.c.b16 %v1170, %v1500
      %v1517 = vpack.c.b16 %v1172, %v1501
      %v1518 = vpack.c.b16 %v1174, %v1502
      %v1519 = vpack.c.b16 %v1176, %v1503
      %v1520 = vpack.c.b16 %v1178, %v1504
      %v1521 = vpack.c.b16 %v1180, %v1505
      %v1522 = vpack.c.b16 %v1182, %v1506
      %v1523 = vpack.c.b16 %v1184, %v1507
      %v1524 = vpack.c.b16 %v1186, %v1508
      %v1525 = vpack.c.b16 %v1188, %v1509
      %vm1526 = vcmask 1046528
      %v1527 = vrot.slane %v1510, 1
      %v1528 = vrot.slane %v1253, 1
      %v1529 = vsel %vm1526, %v1527, %v1528
      %v1530 = vrot.slane %v1511, 1
      %v1531 = vrot.slane %v1254, 1
      %v1532 = vsel %vm1526, %v1530, %v1531
      %v1533 = vrot.slane %v1512, 1
      %v1534 = vrot.slane %v1255, 1
      %v1535 = vsel %vm1526, %v1533, %v1534
      %v1536 = vrot.slane %v1513, 1
      %v1537 = vrot.slane %v1256, 1
      %v1538 = vsel %vm1526, %v1536, %v1537
      %v1539 = vrot.slane %v1514, 1
      %v1540 = vrot.slane %v1257, 1
      %v1541 = vsel %vm1526, %v1539, %v1540
      %v1542 = vrot.slane %v1515, 1
      %v1543 = vrot.slane %v1258, 1
      %v1544 = vsel %vm1526, %v1542, %v1543
      %v1545 = vrot.slane %v1516, 1
      %v1546 = vrot.slane %v1259, 1
      %v1547 = vsel %vm1526, %v1545, %v1546
      %v1548 = vrot.slane %v1517, 1
      %v1549 = vrot.slane %v1260, 1
      %v1550 = vsel %vm1526, %v1548, %v1549
      %v1551 = vrot.slane %v1518, 1
      %v1552 = vrot.slane %v1261, 1
      %v1553 = vsel %vm1526, %v1551, %v1552
      %v1554 = vrot.slane %v1519, 1
      %v1555 = vrot.slane %v1262, 1
      %v1556 = vsel %vm1526, %v1554, %v1555
      %v1557 = vrot.slane %v1520, 1
      %v1558 = vrot.slane %v1263, 1
      %v1559 = vsel %vm1526, %v1557, %v1558
      %v1560 = vrot.slane %v1521, 1
      %v1561 = vrot.slane %v1264, 1
      %v1562 = vsel %vm1526, %v1560, %v1561
      %v1563 = vrot.slane %v1522, 1
      %v1564 = vrot.slane %v1265, 1
      %v1565 = vsel %vm1526, %v1563, %v1564
      %v1566 = vrot.slane %v1523, 1
      %v1567 = vrot.slane %v1266, 1
      %v1568 = vsel %vm1526, %v1566, %v1567
      %v1569 = vrot.slane %v1524, 1
      %v1570 = vrot.slane %v1267, 1
      %v1571 = vsel %vm1526, %v1569, %v1570
      %v1572 = vrot.slane %v1525, 1
      %v1573 = vrot.slane %v1268, 1
      %v1574 = vsel %vm1526, %v1572, %v1573
      %v1623 = vunpack.c.l.b16 %v996
      %v1624 = vunpack.c.l.b16 %v997
      %v1625 = vunpack.c.l.b16 %v998
      %v1626 = vunpack.c.l.b16 %v999
      %v1627 = vunpack.c.l.b16 %v1000
      %v1628 = vunpack.c.l.b16 %v1001
      %v1629 = vunpack.c.l.b16 %v1002
      %v1630 = vunpack.c.l.b16 %v1003
      %v1631 = vunpack.c.l.b16 %v1004
      %v1632 = vunpack.c.l.b16 %v1005
      %v1633 = vunpack.c.l.b16 %v1006
      %v1634 = vunpack.c.l.b16 %v1007
      %v1635 = vunpack.c.l.b16 %v1008
      %v1636 = vunpack.c.l.b16 %v1009
      %v1637 = vunpack.c.l.b16 %v1010
      %v1638 = vunpack.c.l.b16 %v1011
      %v1639 = vunpack.c.l.b16 %v1012
      %v1640 = vunpack.c.l.b16 %v1013
      %v1641 = vunpack.c.l.b16 %v1014
      %v1642 = vunpack.c.l.b16 %v1015
      %v1643 = vunpack.c.l.b16 %v1016
      %v1644 = vunpack.c.l.b16 %v1017
      %v1645 = vunpack.c.l.b16 %v1018
      %v1646 = vunpack.c.l.b16 %v1019
      %v1647 = vunpack.c.l.b16 %v1020
      %v1648 = vunpack.c.l.b16 %v1021
      %v1649 = vunpack.c.l.b16 %v1022
      %v1650 = vunpack.c.l.b16 %v1023
      %v1651 = vunpack.c.l.b16 %v1024
      %v1652 = vunpack.c.l.b16 %v1025
      %v1653 = vunpack.c.l.b16 %v1026
      %v1654 = vunpack.c.l.b16 %v1027
      %v1655 = vpack.c.b16 %v1624, %v1623
      %v1656 = vpack.c.b16 %v1626, %v1625
      %v1657 = vpack.c.b16 %v1628, %v1627
      %v1658 = vpack.c.b16 %v1630, %v1629
      %v1659 = vpack.c.b16 %v1632, %v1631
      %v1660 = vpack.c.b16 %v1634, %v1633
      %v1661 = vpack.c.b16 %v1636, %v1635
      %v1662 = vpack.c.b16 %v1638, %v1637
      %v1663 = vpack.c.b16 %v1640, %v1639
      %v1664 = vpack.c.b16 %v1642, %v1641
      %v1665 = vpack.c.b16 %v1644, %v1643
      %v1666 = vpack.c.b16 %v1646, %v1645
      %v1667 = vpack.c.b16 %v1648, %v1647
      %v1668 = vpack.c.b16 %v1650, %v1649
      %v1669 = vpack.c.b16 %v1652, %v1651
      %v1670 = vpack.c.b16 %v1654, %v1653
      %v1703 = vunpack.c.l.b16 %v1028
      %v1704 = vunpack.c.l.b16 %v1029
      %v1705 = vunpack.c.l.b16 %v1030
      %v1706 = vunpack.c.l.b16 %v1031
      %v1707 = vunpack.c.l.b16 %v1032
      %v1708 = vunpack.c.l.b16 %v1033
      %v1709 = vunpack.c.l.b16 %v1034
      %v1710 = vunpack.c.l.b16 %v1035
      %v1711 = vunpack.c.l.b16 %v1036
      %v1712 = vunpack.c.l.b16 %v1037
      %v1713 = vunpack.c.l.b16 %v1038
      %v1714 = vunpack.c.l.b16 %v1039
      %v1715 = vunpack.c.l.b16 %v1040
      %v1716 = vunpack.c.l.b16 %v1041
      %v1717 = vunpack.c.l.b16 %v1042
      %v1718 = vunpack.c.l.b16 %v1043
      %v1719 = vpack.c.b16 %v1703, %v1703
      %v1720 = vpack.c.b16 %v1704, %v1704
      %v1721 = vpack.c.b16 %v1705, %v1705
      %v1722 = vpack.c.b16 %v1706, %v1706
      %v1723 = vpack.c.b16 %v1707, %v1707
      %v1724 = vpack.c.b16 %v1708, %v1708
      %v1725 = vpack.c.b16 %v1709, %v1709
      %v1726 = vpack.c.b16 %v1710, %v1710
      %v1727 = vpack.c.b16 %v1711, %v1711
      %v1728 = vpack.c.b16 %v1712, %v1712
      %v1729 = vpack.c.b16 %v1713, %v1713
      %v1730 = vpack.c.b16 %v1714, %v1714
      %v1731 = vpack.c.b16 %v1715, %v1715
      %v1732 = vpack.c.b16 %v1716, %v1716
      %v1733 = vpack.c.b16 %v1717, %v1717
      %v1734 = vpack.c.b16 %v1718, %v1718
      %v1736 = vshrl.u32 %v1655, 16
      %v1738 = vshll.u32 %v1655, 16
      %v1740 = vrot.slane %v1738, 1
      %v1741 = vor.u32 %v1736, %v1740
      %v1743 = vshll.u32 %v1719, 16
      %v1745 = vrot.slane %v1743, 1
      %v1746 = vsel %vm1269, %v1741, %v1745
      %v1748 = vshrl.u32 %v1656, 16
      %v1750 = vshll.u32 %v1656, 16
      %v1752 = vrot.slane %v1750, 1
      %v1753 = vor.u32 %v1748, %v1752
      %v1755 = vshll.u32 %v1720, 16
      %v1757 = vrot.slane %v1755, 1
      %v1758 = vsel %vm1269, %v1753, %v1757
      %v1760 = vshrl.u32 %v1657, 16
      %v1762 = vshll.u32 %v1657, 16
      %v1764 = vrot.slane %v1762, 1
      %v1765 = vor.u32 %v1760, %v1764
      %v1767 = vshll.u32 %v1721, 16
      %v1769 = vrot.slane %v1767, 1
      %v1770 = vsel %vm1269, %v1765, %v1769
      %v1772 = vshrl.u32 %v1658, 16
      %v1774 = vshll.u32 %v1658, 16
      %v1776 = vrot.slane %v1774, 1
      %v1777 = vor.u32 %v1772, %v1776
      %v1779 = vshll.u32 %v1722, 16
      %v1781 = vrot.slane %v1779, 1
      %v1782 = vsel %vm1269, %v1777, %v1781
      %v1784 = vshrl.u32 %v1659, 16
      %v1786 = vshll.u32 %v1659, 16
      %v1788 = vrot.slane %v1786, 1
      %v1789 = vor.u32 %v1784, %v1788
      %v1791 = vshll.u32 %v1723, 16
      %v1793 = vrot.slane %v1791, 1
      %v1794 = vsel %vm1269, %v1789, %v1793
      %v1796 = vshrl.u32 %v1660, 16
      %v1798 = vshll.u32 %v1660, 16
      %v1800 = vrot.slane %v1798, 1
      %v1801 = vor.u32 %v1796, %v1800
      %v1803 = vshll.u32 %v1724, 16
      %v1805 = vrot.slane %v1803, 1
      %v1806 = vsel %vm1269, %v1801, %v1805
      %v1808 = vshrl.u32 %v1661, 16
      %v1810 = vshll.u32 %v1661, 16
      %v1812 = vrot.slane %v1810, 1
      %v1813 = vor.u32 %v1808, %v1812
      %v1815 = vshll.u32 %v1725, 16
      %v1817 = vrot.slane %v1815, 1
      %v1818 = vsel %vm1269, %v1813, %v1817
      %v1820 = vshrl.u32 %v1662, 16
      %v1822 = vshll.u32 %v1662, 16
      %v1824 = vrot.slane %v1822, 1
      %v1825 = vor.u32 %v1820, %v1824
      %v1827 = vshll.u32 %v1726, 16
      %v1829 = vrot.slane %v1827, 1
      %v1830 = vsel %vm1269, %v1825, %v1829
      %v1832 = vshrl.u32 %v1663, 16
      %v1834 = vshll.u32 %v1663, 16
      %v1836 = vrot.slane %v1834, 1
      %v1837 = vor.u32 %v1832, %v1836
      %v1839 = vshll.u32 %v1727, 16
      %v1841 = vrot.slane %v1839, 1
      %v1842 = vsel %vm1269, %v1837, %v1841
      %v1844 = vshrl.u32 %v1664, 16
      %v1846 = vshll.u32 %v1664, 16
      %v1848 = vrot.slane %v1846, 1
      %v1849 = vor.u32 %v1844, %v1848
      %v1851 = vshll.u32 %v1728, 16
      %v1853 = vrot.slane %v1851, 1
      %v1854 = vsel %vm1269, %v1849, %v1853
      %v1856 = vshrl.u32 %v1665, 16
      %v1858 = vshll.u32 %v1665, 16
      %v1860 = vrot.slane %v1858, 1
      %v1861 = vor.u32 %v1856, %v1860
      %v1863 = vshll.u32 %v1729, 16
      %v1865 = vrot.slane %v1863, 1
      %v1866 = vsel %vm1269, %v1861, %v1865
      %v1868 = vshrl.u32 %v1666, 16
      %v1870 = vshll.u32 %v1666, 16
      %v1872 = vrot.slane %v1870, 1
      %v1873 = vor.u32 %v1868, %v1872
      %v1875 = vshll.u32 %v1730, 16
      %v1877 = vrot.slane %v1875, 1
      %v1878 = vsel %vm1269, %v1873, %v1877
      %v1880 = vshrl.u32 %v1667, 16
      %v1882 = vshll.u32 %v1667, 16
      %v1884 = vrot.slane %v1882, 1
      %v1885 = vor.u32 %v1880, %v1884
      %v1887 = vshll.u32 %v1731, 16
      %v1889 = vrot.slane %v1887, 1
      %v1890 = vsel %vm1269, %v1885, %v1889
      %v1892 = vshrl.u32 %v1668, 16
      %v1894 = vshll.u32 %v1668, 16
      %v1896 = vrot.slane %v1894, 1
      %v1897 = vor.u32 %v1892, %v1896
      %v1899 = vshll.u32 %v1732, 16
      %v1901 = vrot.slane %v1899, 1
      %v1902 = vsel %vm1269, %v1897, %v1901
      %v1904 = vshrl.u32 %v1669, 16
      %v1906 = vshll.u32 %v1669, 16
      %v1908 = vrot.slane %v1906, 1
      %v1909 = vor.u32 %v1904, %v1908
      %v1911 = vshll.u32 %v1733, 16
      %v1913 = vrot.slane %v1911, 1
      %v1914 = vsel %vm1269, %v1909, %v1913
      %v1916 = vshrl.u32 %v1670, 16
      %v1918 = vshll.u32 %v1670, 16
      %v1920 = vrot.slane %v1918, 1
      %v1921 = vor.u32 %v1916, %v1920
      %v1923 = vshll.u32 %v1734, 16
      %v1925 = vrot.slane %v1923, 1
      %v1926 = vsel %vm1269, %v1921, %v1925
      %v1959 = vunpack.c.l.b16 %v1044
      %v1960 = vunpack.c.l.b16 %v1045
      %v1961 = vunpack.c.l.b16 %v1046
      %v1962 = vunpack.c.l.b16 %v1047
      %v1963 = vunpack.c.l.b16 %v1048
      %v1964 = vunpack.c.l.b16 %v1049
      %v1965 = vunpack.c.l.b16 %v1050
      %v1966 = vunpack.c.l.b16 %v1051
      %v1967 = vunpack.c.l.b16 %v1052
      %v1968 = vunpack.c.l.b16 %v1053
      %v1969 = vunpack.c.l.b16 %v1054
      %v1970 = vunpack.c.l.b16 %v1055
      %v1971 = vunpack.c.l.b16 %v1056
      %v1972 = vunpack.c.l.b16 %v1057
      %v1973 = vunpack.c.l.b16 %v1058
      %v1974 = vunpack.c.l.b16 %v1059
      %v1975 = vpack.c.b16 %v1624, %v1959
      %v1976 = vpack.c.b16 %v1626, %v1960
      %v1977 = vpack.c.b16 %v1628, %v1961
      %v1978 = vpack.c.b16 %v1630, %v1962
      %v1979 = vpack.c.b16 %v1632, %v1963
      %v1980 = vpack.c.b16 %v1634, %v1964
      %v1981 = vpack.c.b16 %v1636, %v1965
      %v1982 = vpack.c.b16 %v1638, %v1966
      %v1983 = vpack.c.b16 %v1640, %v1967
      %v1984 = vpack.c.b16 %v1642, %v1968
      %v1985 = vpack.c.b16 %v1644, %v1969
      %v1986 = vpack.c.b16 %v1646, %v1970
      %v1987 = vpack.c.b16 %v1648, %v1971
      %v1988 = vpack.c.b16 %v1650, %v1972
      %v1989 = vpack.c.b16 %v1652, %v1973
      %v1990 = vpack.c.b16 %v1654, %v1974
      %v1991 = vrot.slane %v1975, 1
      %v1992 = vrot.slane %v1719, 1
      %v1993 = vsel %vm1526, %v1991, %v1992
      %v1994 = vrot.slane %v1976, 1
      %v1995 = vrot.slane %v1720, 1
      %v1996 = vsel %vm1526, %v1994, %v1995
      %v1997 = vrot.slane %v1977, 1
      %v1998 = vrot.slane %v1721, 1
      %v1999 = vsel %vm1526, %v1997, %v1998
      %v2000 = vrot.slane %v1978, 1
      %v2001 = vrot.slane %v1722, 1
      %v2002 = vsel %vm1526, %v2000, %v2001
      %v2003 = vrot.slane %v1979, 1
      %v2004 = vrot.slane %v1723, 1
      %v2005 = vsel %vm1526, %v2003, %v2004
      %v2006 = vrot.slane %v1980, 1
      %v2007 = vrot.slane %v1724, 1
      %v2008 = vsel %vm1526, %v2006, %v2007
      %v2009 = vrot.slane %v1981, 1
      %v2010 = vrot.slane %v1725, 1
      %v2011 = vsel %vm1526, %v2009, %v2010
      %v2012 = vrot.slane %v1982, 1
      %v2013 = vrot.slane %v1726, 1
      %v2014 = vsel %vm1526, %v2012, %v2013
      %v2015 = vrot.slane %v1983, 1
      %v2016 = vrot.slane %v1727, 1
      %v2017 = vsel %vm1526, %v2015, %v2016
      %v2018 = vrot.slane %v1984, 1
      %v2019 = vrot.slane %v1728, 1
      %v2020 = vsel %vm1526, %v2018, %v2019
      %v2021 = vrot.slane %v1985, 1
      %v2022 = vrot.slane %v1729, 1
      %v2023 = vsel %vm1526, %v2021, %v2022
      %v2024 = vrot.slane %v1986, 1
      %v2025 = vrot.slane %v1730, 1
      %v2026 = vsel %vm1526, %v2024, %v2025
      %v2027 = vrot.slane %v1987, 1
      %v2028 = vrot.slane %v1731, 1
      %v2029 = vsel %vm1526, %v2027, %v2028
      %v2030 = vrot.slane %v1988, 1
      %v2031 = vrot.slane %v1732, 1
      %v2032 = vsel %vm1526, %v2030, %v2031
      %v2033 = vrot.slane %v1989, 1
      %v2034 = vrot.slane %v1733, 1
      %v2035 = vsel %vm1526, %v2033, %v2034
      %v2036 = vrot.slane %v1990, 1
      %v2037 = vrot.slane %v1734, 1
      %v2038 = vsel %vm1526, %v2036, %v2037
      %v2087 = vunpack.c.l.b16 %v1061
      %v2088 = vunpack.c.l.b16 %v1062
      %v2089 = vunpack.c.l.b16 %v1063
      %v2090 = vunpack.c.l.b16 %v1064
      %v2091 = vunpack.c.l.b16 %v1065
      %v2092 = vunpack.c.l.b16 %v1066
      %v2093 = vunpack.c.l.b16 %v1067
      %v2094 = vunpack.c.l.b16 %v1068
      %v2095 = vunpack.c.l.b16 %v1069
      %v2096 = vunpack.c.l.b16 %v1070
      %v2097 = vunpack.c.l.b16 %v1071
      %v2098 = vunpack.c.l.b16 %v1072
      %v2099 = vunpack.c.l.b16 %v1073
      %v2100 = vunpack.c.l.b16 %v1074
      %v2101 = vunpack.c.l.b16 %v1075
      %v2102 = vunpack.c.l.b16 %v1076
      %v2103 = vunpack.c.l.b16 %v1077
      %v2104 = vunpack.c.l.b16 %v1078
      %v2105 = vunpack.c.l.b16 %v1079
      %v2106 = vunpack.c.l.b16 %v1080
      %v2107 = vunpack.c.l.b16 %v1081
      %v2108 = vunpack.c.l.b16 %v1082
      %v2109 = vunpack.c.l.b16 %v1083
      %v2110 = vunpack.c.l.b16 %v1084
      %v2111 = vunpack.c.l.b16 %v1085
      %v2112 = vunpack.c.l.b16 %v1086
      %v2113 = vunpack.c.l.b16 %v1087
      %v2114 = vunpack.c.l.b16 %v1088
      %v2115 = vunpack.c.l.b16 %v1089
      %v2116 = vunpack.c.l.b16 %v1090
      %v2117 = vunpack.c.l.b16 %v1091
      %v2118 = vunpack.c.l.b16 %v1092
      %v2119 = vpack.c.b16 %v2088, %v2087
      %v2120 = vpack.c.b16 %v2090, %v2089
      %v2121 = vpack.c.b16 %v2092, %v2091
      %v2122 = vpack.c.b16 %v2094, %v2093
      %v2123 = vpack.c.b16 %v2096, %v2095
      %v2124 = vpack.c.b16 %v2098, %v2097
      %v2125 = vpack.c.b16 %v2100, %v2099
      %v2126 = vpack.c.b16 %v2102, %v2101
      %v2127 = vpack.c.b16 %v2104, %v2103
      %v2128 = vpack.c.b16 %v2106, %v2105
      %v2129 = vpack.c.b16 %v2108, %v2107
      %v2130 = vpack.c.b16 %v2110, %v2109
      %v2131 = vpack.c.b16 %v2112, %v2111
      %v2132 = vpack.c.b16 %v2114, %v2113
      %v2133 = vpack.c.b16 %v2116, %v2115
      %v2134 = vpack.c.b16 %v2118, %v2117
      %v2167 = vunpack.c.l.b16 %v1093
      %v2168 = vunpack.c.l.b16 %v1094
      %v2169 = vunpack.c.l.b16 %v1095
      %v2170 = vunpack.c.l.b16 %v1096
      %v2171 = vunpack.c.l.b16 %v1097
      %v2172 = vunpack.c.l.b16 %v1098
      %v2173 = vunpack.c.l.b16 %v1099
      %v2174 = vunpack.c.l.b16 %v1100
      %v2175 = vunpack.c.l.b16 %v1101
      %v2176 = vunpack.c.l.b16 %v1102
      %v2177 = vunpack.c.l.b16 %v1103
      %v2178 = vunpack.c.l.b16 %v1104
      %v2179 = vunpack.c.l.b16 %v1105
      %v2180 = vunpack.c.l.b16 %v1106
      %v2181 = vunpack.c.l.b16 %v1107
      %v2182 = vunpack.c.l.b16 %v1108
      %v2183 = vpack.c.b16 %v2167, %v2167
      %v2184 = vpack.c.b16 %v2168, %v2168
      %v2185 = vpack.c.b16 %v2169, %v2169
      %v2186 = vpack.c.b16 %v2170, %v2170
      %v2187 = vpack.c.b16 %v2171, %v2171
      %v2188 = vpack.c.b16 %v2172, %v2172
      %v2189 = vpack.c.b16 %v2173, %v2173
      %v2190 = vpack.c.b16 %v2174, %v2174
      %v2191 = vpack.c.b16 %v2175, %v2175
      %v2192 = vpack.c.b16 %v2176, %v2176
      %v2193 = vpack.c.b16 %v2177, %v2177
      %v2194 = vpack.c.b16 %v2178, %v2178
      %v2195 = vpack.c.b16 %v2179, %v2179
      %v2196 = vpack.c.b16 %v2180, %v2180
      %v2197 = vpack.c.b16 %v2181, %v2181
      %v2198 = vpack.c.b16 %v2182, %v2182
      %v2200 = vshrl.u32 %v2119, 16
      %v2202 = vshll.u32 %v2119, 16
      %v2204 = vrot.slane %v2202, 1
      %v2205 = vor.u32 %v2200, %v2204
      %v2207 = vshll.u32 %v2183, 16
      %v2209 = vrot.slane %v2207, 1
      %v2210 = vsel %vm1269, %v2205, %v2209
      %v2212 = vshrl.u32 %v2120, 16
      %v2214 = vshll.u32 %v2120, 16
      %v2216 = vrot.slane %v2214, 1
      %v2217 = vor.u32 %v2212, %v2216
      %v2219 = vshll.u32 %v2184, 16
      %v2221 = vrot.slane %v2219, 1
      %v2222 = vsel %vm1269, %v2217, %v2221
      %v2224 = vshrl.u32 %v2121, 16
      %v2226 = vshll.u32 %v2121, 16
      %v2228 = vrot.slane %v2226, 1
      %v2229 = vor.u32 %v2224, %v2228
      %v2231 = vshll.u32 %v2185, 16
      %v2233 = vrot.slane %v2231, 1
      %v2234 = vsel %vm1269, %v2229, %v2233
      %v2236 = vshrl.u32 %v2122, 16
      %v2238 = vshll.u32 %v2122, 16
      %v2240 = vrot.slane %v2238, 1
      %v2241 = vor.u32 %v2236, %v2240
      %v2243 = vshll.u32 %v2186, 16
      %v2245 = vrot.slane %v2243, 1
      %v2246 = vsel %vm1269, %v2241, %v2245
      %v2248 = vshrl.u32 %v2123, 16
      %v2250 = vshll.u32 %v2123, 16
      %v2252 = vrot.slane %v2250, 1
      %v2253 = vor.u32 %v2248, %v2252
      %v2255 = vshll.u32 %v2187, 16
      %v2257 = vrot.slane %v2255, 1
      %v2258 = vsel %vm1269, %v2253, %v2257
      %v2260 = vshrl.u32 %v2124, 16
      %v2262 = vshll.u32 %v2124, 16
      %v2264 = vrot.slane %v2262, 1
      %v2265 = vor.u32 %v2260, %v2264
      %v2267 = vshll.u32 %v2188, 16
      %v2269 = vrot.slane %v2267, 1
      %v2270 = vsel %vm1269, %v2265, %v2269
      %v2272 = vshrl.u32 %v2125, 16
      %v2274 = vshll.u32 %v2125, 16
      %v2276 = vrot.slane %v2274, 1
      %v2277 = vor.u32 %v2272, %v2276
      %v2279 = vshll.u32 %v2189, 16
      %v2281 = vrot.slane %v2279, 1
      %v2282 = vsel %vm1269, %v2277, %v2281
      %v2284 = vshrl.u32 %v2126, 16
      %v2286 = vshll.u32 %v2126, 16
      %v2288 = vrot.slane %v2286, 1
      %v2289 = vor.u32 %v2284, %v2288
      %v2291 = vshll.u32 %v2190, 16
      %v2293 = vrot.slane %v2291, 1
      %v2294 = vsel %vm1269, %v2289, %v2293
      %v2296 = vshrl.u32 %v2127, 16
      %v2298 = vshll.u32 %v2127, 16
      %v2300 = vrot.slane %v2298, 1
      %v2301 = vor.u32 %v2296, %v2300
      %v2303 = vshll.u32 %v2191, 16
      %v2305 = vrot.slane %v2303, 1
      %v2306 = vsel %vm1269, %v2301, %v2305
      %v2308 = vshrl.u32 %v2128, 16
      %v2310 = vshll.u32 %v2128, 16
      %v2312 = vrot.slane %v2310, 1
      %v2313 = vor.u32 %v2308, %v2312
      %v2315 = vshll.u32 %v2192, 16
      %v2317 = vrot.slane %v2315, 1
      %v2318 = vsel %vm1269, %v2313, %v2317
      %v2320 = vshrl.u32 %v2129, 16
      %v2322 = vshll.u32 %v2129, 16
      %v2324 = vrot.slane %v2322, 1
      %v2325 = vor.u32 %v2320, %v2324
      %v2327 = vshll.u32 %v2193, 16
      %v2329 = vrot.slane %v2327, 1
      %v2330 = vsel %vm1269, %v2325, %v2329
      %v2332 = vshrl.u32 %v2130, 16
      %v2334 = vshll.u32 %v2130, 16
      %v2336 = vrot.slane %v2334, 1
      %v2337 = vor.u32 %v2332, %v2336
      %v2339 = vshll.u32 %v2194, 16
      %v2341 = vrot.slane %v2339, 1
      %v2342 = vsel %vm1269, %v2337, %v2341
      %v2344 = vshrl.u32 %v2131, 16
      %v2346 = vshll.u32 %v2131, 16
      %v2348 = vrot.slane %v2346, 1
      %v2349 = vor.u32 %v2344, %v2348
      %v2351 = vshll.u32 %v2195, 16
      %v2353 = vrot.slane %v2351, 1
      %v2354 = vsel %vm1269, %v2349, %v2353
      %v2356 = vshrl.u32 %v2132, 16
      %v2358 = vshll.u32 %v2132, 16
      %v2360 = vrot.slane %v2358, 1
      %v2361 = vor.u32 %v2356, %v2360
      %v2363 = vshll.u32 %v2196, 16
      %v2365 = vrot.slane %v2363, 1
      %v2366 = vsel %vm1269, %v2361, %v2365
      %v2368 = vshrl.u32 %v2133, 16
      %v2370 = vshll.u32 %v2133, 16
      %v2372 = vrot.slane %v2370, 1
      %v2373 = vor.u32 %v2368, %v2372
      %v2375 = vshll.u32 %v2197, 16
      %v2377 = vrot.slane %v2375, 1
      %v2378 = vsel %vm1269, %v2373, %v2377
      %v2380 = vshrl.u32 %v2134, 16
      %v2382 = vshll.u32 %v2134, 16
      %v2384 = vrot.slane %v2382, 1
      %v2385 = vor.u32 %v2380, %v2384
      %v2387 = vshll.u32 %v2198, 16
      %v2389 = vrot.slane %v2387, 1
      %v2390 = vsel %vm1269, %v2385, %v2389
      %v2423 = vunpack.c.l.b16 %v1109
      %v2424 = vunpack.c.l.b16 %v1110
      %v2425 = vunpack.c.l.b16 %v1111
      %v2426 = vunpack.c.l.b16 %v1112
      %v2427 = vunpack.c.l.b16 %v1113
      %v2428 = vunpack.c.l.b16 %v1114
      %v2429 = vunpack.c.l.b16 %v1115
      %v2430 = vunpack.c.l.b16 %v1116
      %v2431 = vunpack.c.l.b16 %v1117
      %v2432 = vunpack.c.l.b16 %v1118
      %v2433 = vunpack.c.l.b16 %v1119
      %v2434 = vunpack.c.l.b16 %v1120
      %v2435 = vunpack.c.l.b16 %v1121
      %v2436 = vunpack.c.l.b16 %v1122
      %v2437 = vunpack.c.l.b16 %v1123
      %v2438 = vunpack.c.l.b16 %v1124
      %v2439 = vpack.c.b16 %v2088, %v2423
      %v2440 = vpack.c.b16 %v2090, %v2424
      %v2441 = vpack.c.b16 %v2092, %v2425
      %v2442 = vpack.c.b16 %v2094, %v2426
      %v2443 = vpack.c.b16 %v2096, %v2427
      %v2444 = vpack.c.b16 %v2098, %v2428
      %v2445 = vpack.c.b16 %v2100, %v2429
      %v2446 = vpack.c.b16 %v2102, %v2430
      %v2447 = vpack.c.b16 %v2104, %v2431
      %v2448 = vpack.c.b16 %v2106, %v2432
      %v2449 = vpack.c.b16 %v2108, %v2433
      %v2450 = vpack.c.b16 %v2110, %v2434
      %v2451 = vpack.c.b16 %v2112, %v2435
      %v2452 = vpack.c.b16 %v2114, %v2436
      %v2453 = vpack.c.b16 %v2116, %v2437
      %v2454 = vpack.c.b16 %v2118, %v2438
      %v2455 = vrot.slane %v2439, 1
      %v2456 = vrot.slane %v2183, 1
      %v2457 = vsel %vm1526, %v2455, %v2456
      %v2458 = vrot.slane %v2440, 1
      %v2459 = vrot.slane %v2184, 1
      %v2460 = vsel %vm1526, %v2458, %v2459
      %v2461 = vrot.slane %v2441, 1
      %v2462 = vrot.slane %v2185, 1
      %v2463 = vsel %vm1526, %v2461, %v2462
      %v2464 = vrot.slane %v2442, 1
      %v2465 = vrot.slane %v2186, 1
      %v2466 = vsel %vm1526, %v2464, %v2465
      %v2467 = vrot.slane %v2443, 1
      %v2468 = vrot.slane %v2187, 1
      %v2469 = vsel %vm1526, %v2467, %v2468
      %v2470 = vrot.slane %v2444, 1
      %v2471 = vrot.slane %v2188, 1
      %v2472 = vsel %vm1526, %v2470, %v2471
      %v2473 = vrot.slane %v2445, 1
      %v2474 = vrot.slane %v2189, 1
      %v2475 = vsel %vm1526, %v2473, %v2474
      %v2476 = vrot.slane %v2446, 1
      %v2477 = vrot.slane %v2190, 1
      %v2478 = vsel %vm1526, %v2476, %v2477
      %v2479 = vrot.slane %v2447, 1
      %v2480 = vrot.slane %v2191, 1
      %v2481 = vsel %vm1526, %v2479, %v2480
      %v2482 = vrot.slane %v2448, 1
      %v2483 = vrot.slane %v2192, 1
      %v2484 = vsel %vm1526, %v2482, %v2483
      %v2485 = vrot.slane %v2449, 1
      %v2486 = vrot.slane %v2193, 1
      %v2487 = vsel %vm1526, %v2485, %v2486
      %v2488 = vrot.slane %v2450, 1
      %v2489 = vrot.slane %v2194, 1
      %v2490 = vsel %vm1526, %v2488, %v2489
      %v2491 = vrot.slane %v2451, 1
      %v2492 = vrot.slane %v2195, 1
      %v2493 = vsel %vm1526, %v2491, %v2492
      %v2494 = vrot.slane %v2452, 1
      %v2495 = vrot.slane %v2196, 1
      %v2496 = vsel %vm1526, %v2494, %v2495
      %v2497 = vrot.slane %v2453, 1
      %v2498 = vrot.slane %v2197, 1
      %v2499 = vsel %vm1526, %v2497, %v2498
      %v2500 = vrot.slane %v2454, 1
      %v2501 = vrot.slane %v2198, 1
      %v2502 = vsel %vm1526, %v2500, %v2501
      %v2519 = vld [vmem:[%s1] sm:$0xf]
      %v2520 = vld [vmem:[%s1 + $0x4] sm:$0xf]
      %v2521 = vld [vmem:[%s1 + $0x8] sm:$0xf]
      %v2522 = vld [vmem:[%s1 + $0xc] sm:$0xf]
      %v2523 = vld [vmem:[%s1 + $0x10] sm:$0xf]
      %v2524 = vld [vmem:[%s1 + $0x14] sm:$0xf]
      %v2525 = vld [vmem:[%s1 + $0x18] sm:$0xf]
      %v2526 = vld [vmem:[%s1 + $0x1c] sm:$0xf]
      %v2527 = vld [vmem:[%s1 + $0x20] sm:$0xf]
      %v2528 = vld [vmem:[%s1 + $0x24] sm:$0xf]
      %v2529 = vld [vmem:[%s1 + $0x28] sm:$0xf]
      %v2530 = vld [vmem:[%s1 + $0x2c] sm:$0xf]
      %v2531 = vld [vmem:[%s1 + $0x30] sm:$0xf]
      %v2532 = vld [vmem:[%s1 + $0x34] sm:$0xf]
      %v2533 = vld [vmem:[%s1 + $0x38] sm:$0xf]
      %v2534 = vld [vmem:[%s1 + $0x3c] sm:$0xf]
      %v2535 = vld [vmem:[%s1 + $0x40] sm:$0xf]
      %v2536 = vld [vmem:[%s1 + $0x44] sm:$0xf]
      %v2537 = vld [vmem:[%s1 + $0x48] sm:$0xf]
      %v2538 = vld [vmem:[%s1 + $0x4c] sm:$0xf]
      %v2539 = vld [vmem:[%s1 + $0x50] sm:$0xf]
      %v2540 = vld [vmem:[%s1 + $0x54] sm:$0xf]
      %v2541 = vld [vmem:[%s1 + $0x58] sm:$0xf]
      %v2542 = vld [vmem:[%s1 + $0x5c] sm:$0xf]
      %v2543 = vld [vmem:[%s1 + $0x60] sm:$0xf]
      %v2544 = vld [vmem:[%s1 + $0x64] sm:$0xf]
      %v2545 = vld [vmem:[%s1 + $0x68] sm:$0xf]
      %v2546 = vld [vmem:[%s1 + $0x6c] sm:$0xf]
      %v2547 = vld [vmem:[%s1 + $0x70] sm:$0xf]
      %v2548 = vld [vmem:[%s1 + $0x74] sm:$0xf]
      %v2549 = vld [vmem:[%s1 + $0x78] sm:$0xf]
      %v2550 = vld [vmem:[%s1 + $0x7c] sm:$0xf]
      %v2551 = vld [vmem:[%s1 + $0x80] sm:$0xf]
      %v2552 = vld [vmem:[%s1 + $0x84] sm:$0xf]
      %v2553 = vld [vmem:[%s1 + $0x88] sm:$0xf]
      %v2554 = vld [vmem:[%s1 + $0x8c] sm:$0xf]
      %v2555 = vld [vmem:[%s1 + $0x90] sm:$0xf]
      %v2556 = vld [vmem:[%s1 + $0x94] sm:$0xf]
      %v2557 = vld [vmem:[%s1 + $0x98] sm:$0xf]
      %v2558 = vld [vmem:[%s1 + $0x9c] sm:$0xf]
      %v2559 = vld [vmem:[%s1 + $0xa0] sm:$0xf]
      %v2560 = vld [vmem:[%s1 + $0xa4] sm:$0xf]
      %v2561 = vld [vmem:[%s1 + $0xa8] sm:$0xf]
      %v2562 = vld [vmem:[%s1 + $0xac] sm:$0xf]
      %v2563 = vld [vmem:[%s1 + $0xb0] sm:$0xf]
      %v2564 = vld [vmem:[%s1 + $0xb4] sm:$0xf]
      %v2565 = vld [vmem:[%s1 + $0xb8] sm:$0xf]
      %v2566 = vld [vmem:[%s1 + $0xbc] sm:$0xf]
      %v2567 = vld [vmem:[%s1 + $0xc0] sm:$0xf]
      %v2568 = vld [vmem:[%s1 + $0xc4] sm:$0xf]
      %v2569 = vld [vmem:[%s1 + $0xc8] sm:$0xf]
      %v2570 = vld [vmem:[%s1 + $0xcc] sm:$0xf]
      %v2571 = vld [vmem:[%s1 + $0xd0] sm:$0xf]
      %v2572 = vld [vmem:[%s1 + $0xd4] sm:$0xf]
      %v2573 = vld [vmem:[%s1 + $0xd8] sm:$0xf]
      %v2574 = vld [vmem:[%s1 + $0xdc] sm:$0xf]
      %v2575 = vld [vmem:[%s1 + $0xe0] sm:$0xf]
      %v2576 = vld [vmem:[%s1 + $0xe4] sm:$0xf]
      %v2577 = vld [vmem:[%s1 + $0xe8] sm:$0xf]
      %v2578 = vld [vmem:[%s1 + $0xec] sm:$0xf]
      %v2579 = vld [vmem:[%s1 + $0xf0] sm:$0xf]
      %v2580 = vld [vmem:[%s1 + $0xf4] sm:$0xf]
      %v2581 = vld [vmem:[%s1 + $0xf8] sm:$0xf]
      %v2582 = vld [vmem:[%s1 + $0xfc] sm:$0xf]
      %v2583 = vld [vmem:[%s1 + $0x100] sm:$0xf]
      %v2584 = vld [vmem:[%s1 + $0x104] sm:$0xf]
      %v2585 = vld [vmem:[%s1 + $0x108] sm:$0xf]
      %v2586 = vld [vmem:[%s1 + $0x10c] sm:$0xf]
      %v2587 = vld [vmem:[%s1 + $0x110] sm:$0xf]
      %v2588 = vld [vmem:[%s1 + $0x114] sm:$0xf]
      %v2589 = vld [vmem:[%s1 + $0x118] sm:$0xf]
      %v2590 = vld [vmem:[%s1 + $0x11c] sm:$0xf]
      %v2591 = vld [vmem:[%s1 + $0x120] sm:$0xf]
      %v2592 = vld [vmem:[%s1 + $0x124] sm:$0xf]
      %v2593 = vld [vmem:[%s1 + $0x128] sm:$0xf]
      %v2594 = vld [vmem:[%s1 + $0x12c] sm:$0xf]
      %v2595 = vld [vmem:[%s1 + $0x130] sm:$0xf]
      %v2596 = vld [vmem:[%s1 + $0x134] sm:$0xf]
      %v2597 = vld [vmem:[%s1 + $0x138] sm:$0xf]
      %v2598 = vld [vmem:[%s1 + $0x13c] sm:$0xf]
      %v2599 = vld [vmem:[%s1 + $0x140] sm:$0xf]
      %v2600 = vld [vmem:[%s1 + $0x144] sm:$0xf]
      %v2601 = vld [vmem:[%s1 + $0x148] sm:$0xf]
      %v2602 = vld [vmem:[%s1 + $0x14c] sm:$0xf]
      %v2603 = vld [vmem:[%s1 + $0x150] sm:$0xf]
      %v2604 = vld [vmem:[%s1 + $0x154] sm:$0xf]
      %v2605 = vld [vmem:[%s1 + $0x158] sm:$0xf]
      %v2606 = vld [vmem:[%s1 + $0x15c] sm:$0xf]
      %v2607 = vld [vmem:[%s1 + $0x160] sm:$0xf]
      %v2608 = vld [vmem:[%s1 + $0x164] sm:$0xf]
      %v2609 = vld [vmem:[%s1 + $0x168] sm:$0xf]
      %v2610 = vld [vmem:[%s1 + $0x16c] sm:$0xf]
      %v2611 = vld [vmem:[%s1 + $0x170] sm:$0xf]
      %v2612 = vld [vmem:[%s1 + $0x174] sm:$0xf]
      %v2613 = vld [vmem:[%s1 + $0x178] sm:$0xf]
      %v2614 = vld [vmem:[%s1 + $0x17c] sm:$0xf]
      %v2615 = vld [vmem:[%s1 + $0x180] sm:$0xf]
      %v2616 = vld [vmem:[%s1 + $0x184] sm:$0xf]
      %v2617 = vld [vmem:[%s1 + $0x188] sm:$0xf]
      %v2618 = vld [vmem:[%s1 + $0x18c] sm:$0xf]
      %v2619 = vld [vmem:[%s1 + $0x190] sm:$0xf]
      %v2620 = vld [vmem:[%s1 + $0x194] sm:$0xf]
      %v2621 = vld [vmem:[%s1 + $0x198] sm:$0xf]
      %v2622 = vld [vmem:[%s1 + $0x19c] sm:$0xf]
      %v2623 = vld [vmem:[%s1 + $0x1a0] sm:$0xf]
      %v2624 = vld [vmem:[%s1 + $0x1a4] sm:$0xf]
      %v2625 = vld [vmem:[%s1 + $0x1a8] sm:$0xf]
      %v2626 = vld [vmem:[%s1 + $0x1ac] sm:$0xf]
      %v2627 = vld [vmem:[%s1 + $0x1b0] sm:$0xf]
      %v2628 = vld [vmem:[%s1 + $0x1b4] sm:$0xf]
      %v2629 = vld [vmem:[%s1 + $0x1b8] sm:$0xf]
      %v2630 = vld [vmem:[%s1 + $0x1bc] sm:$0xf]
      %v2631 = vld [vmem:[%s1 + $0x1c0] sm:$0xf]
      %v2632 = vld [vmem:[%s1 + $0x1c4] sm:$0xf]
      %v2633 = vld [vmem:[%s1 + $0x1c8] sm:$0xf]
      %v2634 = vld [vmem:[%s1 + $0x1cc] sm:$0xf]
      %v2635 = vld [vmem:[%s1 + $0x1d0] sm:$0xf]
      %v2636 = vld [vmem:[%s1 + $0x1d4] sm:$0xf]
      %v2637 = vld [vmem:[%s1 + $0x1d8] sm:$0xf]
      %v2638 = vld [vmem:[%s1 + $0x1dc] sm:$0xf]
      %v2639 = vld [vmem:[%s1 + $0x1e0] sm:$0xf]
      %v2640 = vld [vmem:[%s1 + $0x1e4] sm:$0xf]
      %v2641 = vld [vmem:[%s1 + $0x1e8] sm:$0xf]
      %v2642 = vld [vmem:[%s1 + $0x1ec] sm:$0xf]
      %v2643 = vld [vmem:[%s1 + $0x1f0] sm:$0xf]
      %v2644 = vld [vmem:[%s1 + $0x1f4] sm:$0xf]
      %v2645 = vld [vmem:[%s1 + $0x1f8] sm:$0xf]
      %v2646 = vld [vmem:[%s1 + $0x1fc] sm:$0xf]
      %v2647 = vld [vmem:[%s1 + $0x200] sm:$0xf]
      %v2648 = vld [vmem:[%s1 + $0x204] sm:$0xf]
      %v2649 = vld [vmem:[%s1 + $0x208] sm:$0xf]
      %v2650 = vld [vmem:[%s1 + $0x20c] sm:$0xf]
      %v2651 = vld [vmem:[%s1 + $0x210] sm:$0xf]
      %v2652 = vld [vmem:[%s1 + $0x214] sm:$0xf]
      %v2653 = vld [vmem:[%s1 + $0x218] sm:$0xf]
      %v2654 = vld [vmem:[%s1 + $0x21c] sm:$0xf]
      %v2655 = vld [vmem:[%s1 + $0x220] sm:$0xf]
      %v2656 = vld [vmem:[%s1 + $0x224] sm:$0xf]
      %v2657 = vld [vmem:[%s1 + $0x228] sm:$0xf]
      %v2658 = vld [vmem:[%s1 + $0x22c] sm:$0xf]
      %v2659 = vld [vmem:[%s1 + $0x230] sm:$0xf]
      %v2660 = vld [vmem:[%s1 + $0x234] sm:$0xf]
      %v2661 = vld [vmem:[%s1 + $0x238] sm:$0xf]
      %v2662 = vld [vmem:[%s1 + $0x23c] sm:$0xf]
      %v2807 = vunpack.c.l.b16 %v2519
      %v2808 = vunpack.c.l.b16 %v2520
      %v2809 = vunpack.c.l.b16 %v2521
      %v2810 = vunpack.c.l.b16 %v2522
      %v2811 = vunpack.c.l.b16 %v2523
      %v2812 = vunpack.c.l.b16 %v2524
      %v2813 = vunpack.c.l.b16 %v2525
      %v2814 = vunpack.c.l.b16 %v2526
      %v2815 = vunpack.c.l.b16 %v2527
      %v2816 = vunpack.c.l.b16 %v2528
      %v2817 = vunpack.c.l.b16 %v2529
      %v2818 = vunpack.c.l.b16 %v2530
      %v2819 = vunpack.c.l.b16 %v2531
      %v2820 = vunpack.c.l.b16 %v2532
      %v2821 = vunpack.c.l.b16 %v2533
      %v2822 = vunpack.c.l.b16 %v2534
      %v2823 = vunpack.c.l.b16 %v2535
      %v2824 = vunpack.c.l.b16 %v2536
      %v2825 = vunpack.c.l.b16 %v2537
      %v2826 = vunpack.c.l.b16 %v2538
      %v2827 = vunpack.c.l.b16 %v2539
      %v2828 = vunpack.c.l.b16 %v2540
      %v2829 = vunpack.c.l.b16 %v2541
      %v2830 = vunpack.c.l.b16 %v2542
      %v2831 = vunpack.c.l.b16 %v2543
      %v2832 = vunpack.c.l.b16 %v2544
      %v2833 = vunpack.c.l.b16 %v2545
      %v2834 = vunpack.c.l.b16 %v2546
      %v2835 = vunpack.c.l.b16 %v2547
      %v2836 = vunpack.c.l.b16 %v2548
      %v2837 = vunpack.c.l.b16 %v2549
      %v2838 = vunpack.c.l.b16 %v2550
      %v2839 = vunpack.c.l.b16 %v2551
      %v2840 = vunpack.c.l.b16 %v2552
      %v2841 = vunpack.c.l.b16 %v2553
      %v2842 = vunpack.c.l.b16 %v2554
      %v2843 = vunpack.c.l.b16 %v2555
      %v2844 = vunpack.c.l.b16 %v2556
      %v2845 = vunpack.c.l.b16 %v2557
      %v2846 = vunpack.c.l.b16 %v2558
      %v2847 = vunpack.c.l.b16 %v2559
      %v2848 = vunpack.c.l.b16 %v2560
      %v2849 = vunpack.c.l.b16 %v2561
      %v2850 = vunpack.c.l.b16 %v2562
      %v2851 = vunpack.c.l.b16 %v2563
      %v2852 = vunpack.c.l.b16 %v2564
      %v2853 = vunpack.c.l.b16 %v2565
      %v2854 = vunpack.c.l.b16 %v2566
      %v2855 = vunpack.c.l.b16 %v2567
      %v2856 = vunpack.c.l.b16 %v2568
      %v2857 = vunpack.c.l.b16 %v2569
      %v2858 = vunpack.c.l.b16 %v2570
      %v2859 = vunpack.c.l.b16 %v2571
      %v2860 = vunpack.c.l.b16 %v2572
      %v2861 = vunpack.c.l.b16 %v2573
      %v2862 = vunpack.c.l.b16 %v2574
      %v2863 = vunpack.c.l.b16 %v2575
      %v2864 = vunpack.c.l.b16 %v2576
      %v2865 = vunpack.c.l.b16 %v2577
      %v2866 = vunpack.c.l.b16 %v2578
      %v2867 = vunpack.c.l.b16 %v2579
      %v2868 = vunpack.c.l.b16 %v2580
      %v2869 = vunpack.c.l.b16 %v2581
      %v2870 = vunpack.c.l.b16 %v2582
      %v2871 = vunpack.c.l.b16 %v2583
      %v2872 = vunpack.c.l.b16 %v2584
      %v2873 = vunpack.c.l.b16 %v2585
      %v2874 = vunpack.c.l.b16 %v2586
      %v2875 = vunpack.c.l.b16 %v2587
      %v2876 = vunpack.c.l.b16 %v2588
      %v2877 = vunpack.c.l.b16 %v2589
      %v2878 = vunpack.c.l.b16 %v2590
      %v2879 = vunpack.c.l.b16 %v2591
      %v2880 = vunpack.c.l.b16 %v2592
      %v2881 = vunpack.c.l.b16 %v2593
      %v2882 = vunpack.c.l.b16 %v2594
      %v2883 = vunpack.c.l.b16 %v2595
      %v2884 = vunpack.c.l.b16 %v2596
      %v2885 = vunpack.c.l.b16 %v2597
      %v2886 = vunpack.c.l.b16 %v2598
      %v2887 = vunpack.c.l.b16 %v2599
      %v2888 = vunpack.c.l.b16 %v2600
      %v2889 = vunpack.c.l.b16 %v2601
      %v2890 = vunpack.c.l.b16 %v2602
      %v2891 = vunpack.c.l.b16 %v2603
      %v2892 = vunpack.c.l.b16 %v2604
      %v2893 = vunpack.c.l.b16 %v2605
      %v2894 = vunpack.c.l.b16 %v2606
      %v2895 = vunpack.c.l.b16 %v2607
      %v2896 = vunpack.c.l.b16 %v2608
      %v2897 = vunpack.c.l.b16 %v2609
      %v2898 = vunpack.c.l.b16 %v2610
      %v2899 = vunpack.c.l.b16 %v2611
      %v2900 = vunpack.c.l.b16 %v2612
      %v2901 = vunpack.c.l.b16 %v2613
      %v2902 = vunpack.c.l.b16 %v2614
      %v2903 = vunpack.c.l.b16 %v2615
      %v2904 = vunpack.c.l.b16 %v2616
      %v2905 = vunpack.c.l.b16 %v2617
      %v2906 = vunpack.c.l.b16 %v2618
      %v2907 = vunpack.c.l.b16 %v2619
      %v2908 = vunpack.c.l.b16 %v2620
      %v2909 = vunpack.c.l.b16 %v2621
      %v2910 = vunpack.c.l.b16 %v2622
      %v2911 = vunpack.c.l.b16 %v2623
      %v2912 = vunpack.c.l.b16 %v2624
      %v2913 = vunpack.c.l.b16 %v2625
      %v2914 = vunpack.c.l.b16 %v2626
      %v2915 = vunpack.c.l.b16 %v2627
      %v2916 = vunpack.c.l.b16 %v2628
      %v2917 = vunpack.c.l.b16 %v2629
      %v2918 = vunpack.c.l.b16 %v2630
      %v2919 = vunpack.c.l.b16 %v2631
      %v2920 = vunpack.c.l.b16 %v2632
      %v2921 = vunpack.c.l.b16 %v2633
      %v2922 = vunpack.c.l.b16 %v2634
      %v2923 = vunpack.c.l.b16 %v2635
      %v2924 = vunpack.c.l.b16 %v2636
      %v2925 = vunpack.c.l.b16 %v2637
      %v2926 = vunpack.c.l.b16 %v2638
      %v2927 = vunpack.c.l.b16 %v2639
      %v2928 = vunpack.c.l.b16 %v2640
      %v2929 = vunpack.c.l.b16 %v2641
      %v2930 = vunpack.c.l.b16 %v2642
      %v2931 = vunpack.c.l.b16 %v2643
      %v2932 = vunpack.c.l.b16 %v2644
      %v2933 = vunpack.c.l.b16 %v2645
      %v2934 = vunpack.c.l.b16 %v2646
      %v2935 = vunpack.c.l.b16 %v2647
      %v2936 = vunpack.c.l.b16 %v2648
      %v2937 = vunpack.c.l.b16 %v2649
      %v2938 = vunpack.c.l.b16 %v2650
      %v2939 = vunpack.c.l.b16 %v2651
      %v2940 = vunpack.c.l.b16 %v2652
      %v2941 = vunpack.c.l.b16 %v2653
      %v2942 = vunpack.c.l.b16 %v2654
      %v2943 = vunpack.c.l.b16 %v2655
      %v2944 = vunpack.c.l.b16 %v2656
      %v2945 = vunpack.c.l.b16 %v2657
      %v2946 = vunpack.c.l.b16 %v2658
      %v2947 = vunpack.c.l.b16 %v2659
      %v2948 = vunpack.c.l.b16 %v2660
      %v2949 = vunpack.c.l.b16 %v2661
      %v2950 = vunpack.c.l.b16 %v2662
      %v2951 = vpack.c.b16 %v2808, %v2807
      %v2952 = vpack.c.b16 %v2810, %v2809
      %v2953 = vpack.c.b16 %v2812, %v2811
      %v2954 = vpack.c.b16 %v2814, %v2813
      %v2955 = vpack.c.b16 %v2816, %v2815
      %v2956 = vpack.c.b16 %v2818, %v2817
      %v2957 = vpack.c.b16 %v2820, %v2819
      %v2958 = vpack.c.b16 %v2822, %v2821
      %v2959 = vpack.c.b16 %v2824, %v2823
      %v2960 = vpack.c.b16 %v2826, %v2825
      %v2961 = vpack.c.b16 %v2828, %v2827
      %v2962 = vpack.c.b16 %v2830, %v2829
      %v2963 = vpack.c.b16 %v2832, %v2831
      %v2964 = vpack.c.b16 %v2834, %v2833
      %v2965 = vpack.c.b16 %v2836, %v2835
      %v2966 = vpack.c.b16 %v2838, %v2837
      %v2967 = vpack.c.b16 %v2840, %v2839
      %v2968 = vpack.c.b16 %v2842, %v2841
      %v2969 = vpack.c.b16 %v2844, %v2843
      %v2970 = vpack.c.b16 %v2846, %v2845
      %v2971 = vpack.c.b16 %v2848, %v2847
      %v2972 = vpack.c.b16 %v2850, %v2849
      %v2973 = vpack.c.b16 %v2852, %v2851
      %v2974 = vpack.c.b16 %v2854, %v2853
      %v2975 = vpack.c.b16 %v2856, %v2855
      %v2976 = vpack.c.b16 %v2858, %v2857
      %v2977 = vpack.c.b16 %v2860, %v2859
      %v2978 = vpack.c.b16 %v2862, %v2861
      %v2979 = vpack.c.b16 %v2864, %v2863
      %v2980 = vpack.c.b16 %v2866, %v2865
      %v2981 = vpack.c.b16 %v2868, %v2867
      %v2982 = vpack.c.b16 %v2870, %v2869
      %v2983 = vpack.c.b16 %v2872, %v2871
      %v2984 = vpack.c.b16 %v2874, %v2873
      %v2985 = vpack.c.b16 %v2876, %v2875
      %v2986 = vpack.c.b16 %v2878, %v2877
      %v2987 = vpack.c.b16 %v2880, %v2879
      %v2988 = vpack.c.b16 %v2882, %v2881
      %v2989 = vpack.c.b16 %v2884, %v2883
      %v2990 = vpack.c.b16 %v2886, %v2885
      %v2991 = vpack.c.b16 %v2888, %v2887
      %v2992 = vpack.c.b16 %v2890, %v2889
      %v2993 = vpack.c.b16 %v2892, %v2891
      %v2994 = vpack.c.b16 %v2894, %v2893
      %v2995 = vpack.c.b16 %v2896, %v2895
      %v2996 = vpack.c.b16 %v2898, %v2897
      %v2997 = vpack.c.b16 %v2900, %v2899
      %v2998 = vpack.c.b16 %v2902, %v2901
      %v2999 = vpack.c.b16 %v2904, %v2903
      %v3000 = vpack.c.b16 %v2906, %v2905
      %v3001 = vpack.c.b16 %v2908, %v2907
      %v3002 = vpack.c.b16 %v2910, %v2909
      %v3003 = vpack.c.b16 %v2912, %v2911
      %v3004 = vpack.c.b16 %v2914, %v2913
      %v3005 = vpack.c.b16 %v2916, %v2915
      %v3006 = vpack.c.b16 %v2918, %v2917
      %v3007 = vpack.c.b16 %v2920, %v2919
      %v3008 = vpack.c.b16 %v2922, %v2921
      %v3009 = vpack.c.b16 %v2924, %v2923
      %v3010 = vpack.c.b16 %v2926, %v2925
      %v3011 = vpack.c.b16 %v2928, %v2927
      %v3012 = vpack.c.b16 %v2930, %v2929
      %v3013 = vpack.c.b16 %v2932, %v2931
      %v3014 = vpack.c.b16 %v2934, %v2933
      %v3015 = vpack.c.b16 %v2936, %v2935
      %v3016 = vpack.c.b16 %v2938, %v2937
      %v3017 = vpack.c.b16 %v2940, %v2939
      %v3018 = vpack.c.b16 %v2942, %v2941
      %v3019 = vpack.c.b16 %v2944, %v2943
      %v3020 = vpack.c.b16 %v2946, %v2945
      %v3021 = vpack.c.b16 %v2948, %v2947
      %v3022 = vpack.c.b16 %v2950, %v2949
      %3095 = vmatpush.bf16.msra.mxu0 %v2958
      %3096 = vmatpush.bf16.msra.mxu0 %v2957
      %3097 = vmatpush.bf16.msra.mxu0 %v2956
      %3098 = vmatpush.bf16.msra.mxu0 %v2955
      %3099 = vmatpush.bf16.msra.mxu0 %v2954
      %3100 = vmatpush.bf16.msra.mxu0 %v2953
      %3101 = vmatpush.bf16.msra.mxu0 %v2952
      %3102 = vmatpush.bf16.msra.mxu0 %v2951
      %3103 = vmatmul.bf16.gmra.mxu0 %v1189
      %v3104 = vpop.f32.mrf.mxu0
      %v3105 = vadd.f32 0.0, %v3104
      %v3106 = vpop.f32.mrf.mxu0
      %v3107 = vadd.f32 0.0, %v3106
      %3108 = vmatmul.bf16.gmra.mxu0 %v1190
      %v3109 = vpop.f32.mrf.mxu0
      %v3110 = vadd.f32 0.0, %v3109
      %v3111 = vpop.f32.mrf.mxu0
      %v3112 = vadd.f32 0.0, %v3111
      %3113 = vmatmul.bf16.gmra.mxu0 %v1191
      %v3114 = vpop.f32.mrf.mxu0
      %v3115 = vadd.f32 0.0, %v3114
      %v3116 = vpop.f32.mrf.mxu0
      %v3117 = vadd.f32 0.0, %v3116
      %3118 = vmatmul.bf16.gmra.mxu0 %v1192
      %v3119 = vpop.f32.mrf.mxu0
      %v3120 = vadd.f32 0.0, %v3119
      %v3121 = vpop.f32.mrf.mxu0
      %v3122 = vadd.f32 0.0, %v3121
      %3123 = vmatmul.bf16.gmra.mxu0 %v1193
      %v3124 = vpop.f32.mrf.mxu0
      %v3125 = vadd.f32 0.0, %v3124
      %v3126 = vpop.f32.mrf.mxu0
      %v3127 = vadd.f32 0.0, %v3126
      %3128 = vmatmul.bf16.gmra.mxu0 %v1194
      %v3129 = vpop.f32.mrf.mxu0
      %v3130 = vadd.f32 0.0, %v3129
      %v3131 = vpop.f32.mrf.mxu0
      %v3132 = vadd.f32 0.0, %v3131
      %3133 = vmatmul.bf16.gmra.mxu0 %v1195
      %v3134 = vpop.f32.mrf.mxu0
      %v3135 = vadd.f32 0.0, %v3134
      %v3136 = vpop.f32.mrf.mxu0
      %v3137 = vadd.f32 0.0, %v3136
      %3138 = vmatmul.bf16.gmra.mxu0 %v1196
      %v3139 = vpop.f32.mrf.mxu0
      %v3140 = vadd.f32 0.0, %v3139
      %v3141 = vpop.f32.mrf.mxu0
      %v3142 = vadd.f32 0.0, %v3141
      %3143 = vmatmul.bf16.gmra.mxu0 %v1197
      %v3144 = vpop.f32.mrf.mxu0
      %v3145 = vadd.f32 0.0, %v3144
      %v3146 = vpop.f32.mrf.mxu0
      %v3147 = vadd.f32 0.0, %v3146
      %3148 = vmatmul.bf16.gmra.mxu0 %v1198
      %v3149 = vpop.f32.mrf.mxu0
      %v3150 = vadd.f32 0.0, %v3149
      %v3151 = vpop.f32.mrf.mxu0
      %v3152 = vadd.f32 0.0, %v3151
      %3153 = vmatmul.bf16.gmra.mxu0 %v1199
      %v3154 = vpop.f32.mrf.mxu0
      %v3155 = vadd.f32 0.0, %v3154
      %v3156 = vpop.f32.mrf.mxu0
      %v3157 = vadd.f32 0.0, %v3156
      %3158 = vmatmul.bf16.gmra.mxu0 %v1200
      %v3159 = vpop.f32.mrf.mxu0
      %v3160 = vadd.f32 0.0, %v3159
      %v3161 = vpop.f32.mrf.mxu0
      %v3162 = vadd.f32 0.0, %v3161
      %3163 = vmatmul.bf16.gmra.mxu0 %v1201
      %v3164 = vpop.f32.mrf.mxu0
      %v3165 = vadd.f32 0.0, %v3164
      %v3166 = vpop.f32.mrf.mxu0
      %v3167 = vadd.f32 0.0, %v3166
      %3168 = vmatmul.bf16.gmra.mxu0 %v1202
      %v3169 = vpop.f32.mrf.mxu0
      %v3170 = vadd.f32 0.0, %v3169
      %v3171 = vpop.f32.mrf.mxu0
      %v3172 = vadd.f32 0.0, %v3171
      %3173 = vmatmul.bf16.gmra.mxu0 %v1203
      %v3174 = vpop.f32.mrf.mxu0
      %v3175 = vadd.f32 0.0, %v3174
      %v3176 = vpop.f32.mrf.mxu0
      %v3177 = vadd.f32 0.0, %v3176
      %3178 = vmatmul.bf16.gmra.mxu0 %v1204
      %v3179 = vpop.f32.mrf.mxu0
      %v3180 = vadd.f32 0.0, %v3179
      %v3181 = vpop.f32.mrf.mxu0
      %v3182 = vadd.f32 0.0, %v3181
      %3183 = vdwg.mxu0
      %3184 = vmatpush.bf16.msra.mxu0 %v2966
      %3185 = vmatpush.bf16.msra.mxu0 %v2965
      %3186 = vmatpush.bf16.msra.mxu0 %v2964
      %3187 = vmatpush.bf16.msra.mxu0 %v2963
      %3188 = vmatpush.bf16.msra.mxu0 %v2962
      %3189 = vmatpush.bf16.msra.mxu0 %v2961
      %3190 = vmatpush.bf16.msra.mxu0 %v2960
      %3191 = vmatpush.bf16.msra.mxu0 %v2959
      %3192 = vmatmul.bf16.gmra.mxu0 %v1281
      %v3193 = vpop.f32.mrf.mxu0
      %v3194 = vadd.f32 %v3105, %v3193
      %v3195 = vpop.f32.mrf.mxu0
      %v3196 = vadd.f32 %v3107, %v3195
      %3197 = vmatmul.bf16.gmra.mxu0 %v1293
      %v3198 = vpop.f32.mrf.mxu0
      %v3199 = vadd.f32 %v3110, %v3198
      %v3200 = vpop.f32.mrf.mxu0
      %v3201 = vadd.f32 %v3112, %v3200
      %3202 = vmatmul.bf16.gmra.mxu0 %v1305
      %v3203 = vpop.f32.mrf.mxu0
      %v3204 = vadd.f32 %v3115, %v3203
      %v3205 = vpop.f32.mrf.mxu0
      %v3206 = vadd.f32 %v3117, %v3205
      %3207 = vmatmul.bf16.gmra.mxu0 %v1317
      %v3208 = vpop.f32.mrf.mxu0
      %v3209 = vadd.f32 %v3120, %v3208
      %v3210 = vpop.f32.mrf.mxu0
      %v3211 = vadd.f32 %v3122, %v3210
      %3212 = vmatmul.bf16.gmra.mxu0 %v1329
      %v3213 = vpop.f32.mrf.mxu0
      %v3214 = vadd.f32 %v3125, %v3213
      %v3215 = vpop.f32.mrf.mxu0
      %v3216 = vadd.f32 %v3127, %v3215
      %3217 = vmatmul.bf16.gmra.mxu0 %v1341
      %v3218 = vpop.f32.mrf.mxu0
      %v3219 = vadd.f32 %v3130, %v3218
      %v3220 = vpop.f32.mrf.mxu0
      %v3221 = vadd.f32 %v3132, %v3220
      %3222 = vmatmul.bf16.gmra.mxu0 %v1353
      %v3223 = vpop.f32.mrf.mxu0
      %v3224 = vadd.f32 %v3135, %v3223
      %v3225 = vpop.f32.mrf.mxu0
      %v3226 = vadd.f32 %v3137, %v3225
      %3227 = vmatmul.bf16.gmra.mxu0 %v1365
      %v3228 = vpop.f32.mrf.mxu0
      %v3229 = vadd.f32 %v3140, %v3228
      %v3230 = vpop.f32.mrf.mxu0
      %v3231 = vadd.f32 %v3142, %v3230
      %3232 = vmatmul.bf16.gmra.mxu0 %v1377
      %v3233 = vpop.f32.mrf.mxu0
      %v3234 = vadd.f32 %v3145, %v3233
      %v3235 = vpop.f32.mrf.mxu0
      %v3236 = vadd.f32 %v3147, %v3235
      %3237 = vmatmul.bf16.gmra.mxu0 %v1389
      %v3238 = vpop.f32.mrf.mxu0
      %v3239 = vadd.f32 %v3150, %v3238
      %v3240 = vpop.f32.mrf.mxu0
      %v3241 = vadd.f32 %v3152, %v3240
      %3242 = vmatmul.bf16.gmra.mxu0 %v1401
      %v3243 = vpop.f32.mrf.mxu0
      %v3244 = vadd.f32 %v3155, %v3243
      %v3245 = vpop.f32.mrf.mxu0
      %v3246 = vadd.f32 %v3157, %v3245
      %3247 = vmatmul.bf16.gmra.mxu0 %v1413
      %v3248 = vpop.f32.mrf.mxu0
      %v3249 = vadd.f32 %v3160, %v3248
      %v3250 = vpop.f32.mrf.mxu0
      %v3251 = vadd.f32 %v3162, %v3250
      %3252 = vmatmul.bf16.gmra.mxu0 %v1425
      %v3253 = vpop.f32.mrf.mxu0
      %v3254 = vadd.f32 %v3165, %v3253
      %v3255 = vpop.f32.mrf.mxu0
      %v3256 = vadd.f32 %v3167, %v3255
      %3257 = vmatmul.bf16.gmra.mxu0 %v1437
      %v3258 = vpop.f32.mrf.mxu0
      %v3259 = vadd.f32 %v3170, %v3258
      %v3260 = vpop.f32.mrf.mxu0
      %v3261 = vadd.f32 %v3172, %v3260
      %3262 = vmatmul.bf16.gmra.mxu0 %v1449
      %v3263 = vpop.f32.mrf.mxu0
      %v3264 = vadd.f32 %v3175, %v3263
      %v3265 = vpop.f32.mrf.mxu0
      %v3266 = vadd.f32 %v3177, %v3265
      %3267 = vmatmul.bf16.gmra.mxu0 %v1461
      %v3268 = vpop.f32.mrf.mxu0
      %v3269 = vadd.f32 %v3180, %v3268
      %v3270 = vpop.f32.mrf.mxu0
      %v3271 = vadd.f32 %v3182, %v3270
      %3272 = vdwg.mxu0
      %3273 = vmatpush.bf16.msra.mxu0 %v2974
      %3274 = vmatpush.bf16.msra.mxu0 %v2973
      %3275 = vmatpush.bf16.msra.mxu0 %v2972
      %3276 = vmatpush.bf16.msra.mxu0 %v2971
      %3277 = vmatpush.bf16.msra.mxu0 %v2970
      %3278 = vmatpush.bf16.msra.mxu0 %v2969
      %3279 = vmatpush.bf16.msra.mxu0 %v2968
      %3280 = vmatpush.bf16.msra.mxu0 %v2967
      %3281 = vmatmul.bf16.gmra.mxu0 %v1529
      %v3282 = vpop.f32.mrf.mxu0
      %v3283 = vadd.f32 %v3194, %v3282
      %v3284 = vpop.f32.mrf.mxu0
      %v3285 = vadd.f32 %v3196, %v3284
      %3286 = vmatmul.bf16.gmra.mxu0 %v1532
      %v3287 = vpop.f32.mrf.mxu0
      %v3288 = vadd.f32 %v3199, %v3287
      %v3289 = vpop.f32.mrf.mxu0
      %v3290 = vadd.f32 %v3201, %v3289
      %3291 = vmatmul.bf16.gmra.mxu0 %v1535
      %v3292 = vpop.f32.mrf.mxu0
      %v3293 = vadd.f32 %v3204, %v3292
      %v3294 = vpop.f32.mrf.mxu0
      %v3295 = vadd.f32 %v3206, %v3294
      %3296 = vmatmul.bf16.gmra.mxu0 %v1538
      %v3297 = vpop.f32.mrf.mxu0
      %v3298 = vadd.f32 %v3209, %v3297
      %v3299 = vpop.f32.mrf.mxu0
      %v3300 = vadd.f32 %v3211, %v3299
      %3301 = vmatmul.bf16.gmra.mxu0 %v1541
      %v3302 = vpop.f32.mrf.mxu0
      %v3303 = vadd.f32 %v3214, %v3302
      %v3304 = vpop.f32.mrf.mxu0
      %v3305 = vadd.f32 %v3216, %v3304
      %3306 = vmatmul.bf16.gmra.mxu0 %v1544
      %v3307 = vpop.f32.mrf.mxu0
      %v3308 = vadd.f32 %v3219, %v3307
      %v3309 = vpop.f32.mrf.mxu0
      %v3310 = vadd.f32 %v3221, %v3309
      %3311 = vmatmul.bf16.gmra.mxu0 %v1547
      %v3312 = vpop.f32.mrf.mxu0
      %v3313 = vadd.f32 %v3224, %v3312
      %v3314 = vpop.f32.mrf.mxu0
      %v3315 = vadd.f32 %v3226, %v3314
      %3316 = vmatmul.bf16.gmra.mxu0 %v1550
      %v3317 = vpop.f32.mrf.mxu0
      %v3318 = vadd.f32 %v3229, %v3317
      %v3319 = vpop.f32.mrf.mxu0
      %v3320 = vadd.f32 %v3231, %v3319
      %3321 = vmatmul.bf16.gmra.mxu0 %v1553
      %v3322 = vpop.f32.mrf.mxu0
      %v3323 = vadd.f32 %v3234, %v3322
      %v3324 = vpop.f32.mrf.mxu0
      %v3325 = vadd.f32 %v3236, %v3324
      %3326 = vmatmul.bf16.gmra.mxu0 %v1556
      %v3327 = vpop.f32.mrf.mxu0
      %v3328 = vadd.f32 %v3239, %v3327
      %v3329 = vpop.f32.mrf.mxu0
      %v3330 = vadd.f32 %v3241, %v3329
      %3331 = vmatmul.bf16.gmra.mxu0 %v1559
      %v3332 = vpop.f32.mrf.mxu0
      %v3333 = vadd.f32 %v3244, %v3332
      %v3334 = vpop.f32.mrf.mxu0
      %v3335 = vadd.f32 %v3246, %v3334
      %3336 = vmatmul.bf16.gmra.mxu0 %v1562
      %v3337 = vpop.f32.mrf.mxu0
      %v3338 = vadd.f32 %v3249, %v3337
      %v3339 = vpop.f32.mrf.mxu0
      %v3340 = vadd.f32 %v3251, %v3339
      %3341 = vmatmul.bf16.gmra.mxu0 %v1565
      %v3342 = vpop.f32.mrf.mxu0
      %v3343 = vadd.f32 %v3254, %v3342
      %v3344 = vpop.f32.mrf.mxu0
      %v3345 = vadd.f32 %v3256, %v3344
      %3346 = vmatmul.bf16.gmra.mxu0 %v1568
      %v3347 = vpop.f32.mrf.mxu0
      %v3348 = vadd.f32 %v3259, %v3347
      %v3349 = vpop.f32.mrf.mxu0
      %v3350 = vadd.f32 %v3261, %v3349
      %3351 = vmatmul.bf16.gmra.mxu0 %v1571
      %v3352 = vpop.f32.mrf.mxu0
      %v3353 = vadd.f32 %v3264, %v3352
      %v3354 = vpop.f32.mrf.mxu0
      %v3355 = vadd.f32 %v3266, %v3354
      %3356 = vmatmul.bf16.gmra.mxu0 %v1574
      %v3357 = vpop.f32.mrf.mxu0
      %v3358 = vadd.f32 %v3269, %v3357
      %v3359 = vpop.f32.mrf.mxu0
      %v3360 = vadd.f32 %v3271, %v3359
      %3361 = vdwg.mxu0
      %3362 = vmatpush.bf16.msra.mxu0 %v2982
      %3363 = vmatpush.bf16.msra.mxu0 %v2981
      %3364 = vmatpush.bf16.msra.mxu0 %v2980
      %3365 = vmatpush.bf16.msra.mxu0 %v2979
      %3366 = vmatpush.bf16.msra.mxu0 %v2978
      %3367 = vmatpush.bf16.msra.mxu0 %v2977
      %3368 = vmatpush.bf16.msra.mxu0 %v2976
      %3369 = vmatpush.bf16.msra.mxu0 %v2975
      %3370 = vmatmul.bf16.gmra.mxu0 %v1655
      %v3371 = vpop.f32.mrf.mxu0
      %v3372 = vadd.f32 %v3283, %v3371
      %v3373 = vpop.f32.mrf.mxu0
      %v3374 = vadd.f32 %v3285, %v3373
      %3375 = vmatmul.bf16.gmra.mxu0 %v1656
      %v3376 = vpop.f32.mrf.mxu0
      %v3377 = vadd.f32 %v3288, %v3376
      %v3378 = vpop.f32.mrf.mxu0
      %v3379 = vadd.f32 %v3290, %v3378
      %3380 = vmatmul.bf16.gmra.mxu0 %v1657
      %v3381 = vpop.f32.mrf.mxu0
      %v3382 = vadd.f32 %v3293, %v3381
      %v3383 = vpop.f32.mrf.mxu0
      %v3384 = vadd.f32 %v3295, %v3383
      %3385 = vmatmul.bf16.gmra.mxu0 %v1658
      %v3386 = vpop.f32.mrf.mxu0
      %v3387 = vadd.f32 %v3298, %v3386
      %v3388 = vpop.f32.mrf.mxu0
      %v3389 = vadd.f32 %v3300, %v3388
      %3390 = vmatmul.bf16.gmra.mxu0 %v1659
      %v3391 = vpop.f32.mrf.mxu0
      %v3392 = vadd.f32 %v3303, %v3391
      %v3393 = vpop.f32.mrf.mxu0
      %v3394 = vadd.f32 %v3305, %v3393
      %3395 = vmatmul.bf16.gmra.mxu0 %v1660
      %v3396 = vpop.f32.mrf.mxu0
      %v3397 = vadd.f32 %v3308, %v3396
      %v3398 = vpop.f32.mrf.mxu0
      %v3399 = vadd.f32 %v3310, %v3398
      %3400 = vmatmul.bf16.gmra.mxu0 %v1661
      %v3401 = vpop.f32.mrf.mxu0
      %v3402 = vadd.f32 %v3313, %v3401
      %v3403 = vpop.f32.mrf.mxu0
      %v3404 = vadd.f32 %v3315, %v3403
      %3405 = vmatmul.bf16.gmra.mxu0 %v1662
      %v3406 = vpop.f32.mrf.mxu0
      %v3407 = vadd.f32 %v3318, %v3406
      %v3408 = vpop.f32.mrf.mxu0
      %v3409 = vadd.f32 %v3320, %v3408
      %3410 = vmatmul.bf16.gmra.mxu0 %v1663
      %v3411 = vpop.f32.mrf.mxu0
      %v3412 = vadd.f32 %v3323, %v3411
      %v3413 = vpop.f32.mrf.mxu0
      %v3414 = vadd.f32 %v3325, %v3413
      %3415 = vmatmul.bf16.gmra.mxu0 %v1664
      %v3416 = vpop.f32.mrf.mxu0
      %v3417 = vadd.f32 %v3328, %v3416
      %v3418 = vpop.f32.mrf.mxu0
      %v3419 = vadd.f32 %v3330, %v3418
      %3420 = vmatmul.bf16.gmra.mxu0 %v1665
      %v3421 = vpop.f32.mrf.mxu0
      %v3422 = vadd.f32 %v3333, %v3421
      %v3423 = vpop.f32.mrf.mxu0
      %v3424 = vadd.f32 %v3335, %v3423
      %3425 = vmatmul.bf16.gmra.mxu0 %v1666
      %v3426 = vpop.f32.mrf.mxu0
      %v3427 = vadd.f32 %v3338, %v3426
      %v3428 = vpop.f32.mrf.mxu0
      %v3429 = vadd.f32 %v3340, %v3428
      %3430 = vmatmul.bf16.gmra.mxu0 %v1667
      %v3431 = vpop.f32.mrf.mxu0
      %v3432 = vadd.f32 %v3343, %v3431
      %v3433 = vpop.f32.mrf.mxu0
      %v3434 = vadd.f32 %v3345, %v3433
      %3435 = vmatmul.bf16.gmra.mxu0 %v1668
      %v3436 = vpop.f32.mrf.mxu0
      %v3437 = vadd.f32 %v3348, %v3436
      %v3438 = vpop.f32.mrf.mxu0
      %v3439 = vadd.f32 %v3350, %v3438
      %3440 = vmatmul.bf16.gmra.mxu0 %v1669
      %v3441 = vpop.f32.mrf.mxu0
      %v3442 = vadd.f32 %v3353, %v3441
      %v3443 = vpop.f32.mrf.mxu0
      %v3444 = vadd.f32 %v3355, %v3443
      %3445 = vmatmul.bf16.gmra.mxu0 %v1670
      %v3446 = vpop.f32.mrf.mxu0
      %v3447 = vadd.f32 %v3358, %v3446
      %v3448 = vpop.f32.mrf.mxu0
      %v3449 = vadd.f32 %v3360, %v3448
      %3450 = vdwg.mxu0
      %3451 = vmatpush.bf16.msra.mxu0 %v2990
      %3452 = vmatpush.bf16.msra.mxu0 %v2989
      %3453 = vmatpush.bf16.msra.mxu0 %v2988
      %3454 = vmatpush.bf16.msra.mxu0 %v2987
      %3455 = vmatpush.bf16.msra.mxu0 %v2986
      %3456 = vmatpush.bf16.msra.mxu0 %v2985
      %3457 = vmatpush.bf16.msra.mxu0 %v2984
      %3458 = vmatpush.bf16.msra.mxu0 %v2983
      %3459 = vmatmul.bf16.gmra.mxu0 %v1746
      %v3460 = vpop.f32.mrf.mxu0
      %v3461 = vadd.f32 %v3372, %v3460
      %v3462 = vpop.f32.mrf.mxu0
      %v3463 = vadd.f32 %v3374, %v3462
      %3464 = vmatmul.bf16.gmra.mxu0 %v1758
      %v3465 = vpop.f32.mrf.mxu0
      %v3466 = vadd.f32 %v3377, %v3465
      %v3467 = vpop.f32.mrf.mxu0
      %v3468 = vadd.f32 %v3379, %v3467
      %3469 = vmatmul.bf16.gmra.mxu0 %v1770
      %v3470 = vpop.f32.mrf.mxu0
      %v3471 = vadd.f32 %v3382, %v3470
      %v3472 = vpop.f32.mrf.mxu0
      %v3473 = vadd.f32 %v3384, %v3472
      %3474 = vmatmul.bf16.gmra.mxu0 %v1782
      %v3475 = vpop.f32.mrf.mxu0
      %v3476 = vadd.f32 %v3387, %v3475
      %v3477 = vpop.f32.mrf.mxu0
      %v3478 = vadd.f32 %v3389, %v3477
      %3479 = vmatmul.bf16.gmra.mxu0 %v1794
      %v3480 = vpop.f32.mrf.mxu0
      %v3481 = vadd.f32 %v3392, %v3480
      %v3482 = vpop.f32.mrf.mxu0
      %v3483 = vadd.f32 %v3394, %v3482
      %3484 = vmatmul.bf16.gmra.mxu0 %v1806
      %v3485 = vpop.f32.mrf.mxu0
      %v3486 = vadd.f32 %v3397, %v3485
      %v3487 = vpop.f32.mrf.mxu0
      %v3488 = vadd.f32 %v3399, %v3487
      %3489 = vmatmul.bf16.gmra.mxu0 %v1818
      %v3490 = vpop.f32.mrf.mxu0
      %v3491 = vadd.f32 %v3402, %v3490
      %v3492 = vpop.f32.mrf.mxu0
      %v3493 = vadd.f32 %v3404, %v3492
      %3494 = vmatmul.bf16.gmra.mxu0 %v1830
      %v3495 = vpop.f32.mrf.mxu0
      %v3496 = vadd.f32 %v3407, %v3495
      %v3497 = vpop.f32.mrf.mxu0
      %v3498 = vadd.f32 %v3409, %v3497
      %3499 = vmatmul.bf16.gmra.mxu0 %v1842
      %v3500 = vpop.f32.mrf.mxu0
      %v3501 = vadd.f32 %v3412, %v3500
      %v3502 = vpop.f32.mrf.mxu0
      %v3503 = vadd.f32 %v3414, %v3502
      %3504 = vmatmul.bf16.gmra.mxu0 %v1854
      %v3505 = vpop.f32.mrf.mxu0
      %v3506 = vadd.f32 %v3417, %v3505
      %v3507 = vpop.f32.mrf.mxu0
      %v3508 = vadd.f32 %v3419, %v3507
      %3509 = vmatmul.bf16.gmra.mxu0 %v1866
      %v3510 = vpop.f32.mrf.mxu0
      %v3511 = vadd.f32 %v3422, %v3510
      %v3512 = vpop.f32.mrf.mxu0
      %v3513 = vadd.f32 %v3424, %v3512
      %3514 = vmatmul.bf16.gmra.mxu0 %v1878
      %v3515 = vpop.f32.mrf.mxu0
      %v3516 = vadd.f32 %v3427, %v3515
      %v3517 = vpop.f32.mrf.mxu0
      %v3518 = vadd.f32 %v3429, %v3517
      %3519 = vmatmul.bf16.gmra.mxu0 %v1890
      %v3520 = vpop.f32.mrf.mxu0
      %v3521 = vadd.f32 %v3432, %v3520
      %v3522 = vpop.f32.mrf.mxu0
      %v3523 = vadd.f32 %v3434, %v3522
      %3524 = vmatmul.bf16.gmra.mxu0 %v1902
      %v3525 = vpop.f32.mrf.mxu0
      %v3526 = vadd.f32 %v3437, %v3525
      %v3527 = vpop.f32.mrf.mxu0
      %v3528 = vadd.f32 %v3439, %v3527
      %3529 = vmatmul.bf16.gmra.mxu0 %v1914
      %v3530 = vpop.f32.mrf.mxu0
      %v3531 = vadd.f32 %v3442, %v3530
      %v3532 = vpop.f32.mrf.mxu0
      %v3533 = vadd.f32 %v3444, %v3532
      %3534 = vmatmul.bf16.gmra.mxu0 %v1926
      %v3535 = vpop.f32.mrf.mxu0
      %v3536 = vadd.f32 %v3447, %v3535
      %v3537 = vpop.f32.mrf.mxu0
      %v3538 = vadd.f32 %v3449, %v3537
      %3539 = vdwg.mxu0
      %3540 = vmatpush.bf16.msra.mxu0 %v2998
      %3541 = vmatpush.bf16.msra.mxu0 %v2997
      %3542 = vmatpush.bf16.msra.mxu0 %v2996
      %3543 = vmatpush.bf16.msra.mxu0 %v2995
      %3544 = vmatpush.bf16.msra.mxu0 %v2994
      %3545 = vmatpush.bf16.msra.mxu0 %v2993
      %3546 = vmatpush.bf16.msra.mxu0 %v2992
      %3547 = vmatpush.bf16.msra.mxu0 %v2991
      %3548 = vmatmul.bf16.gmra.mxu0 %v1993
      %v3549 = vpop.f32.mrf.mxu0
      %v3550 = vadd.f32 %v3461, %v3549
      %v3551 = vpop.f32.mrf.mxu0
      %v3552 = vadd.f32 %v3463, %v3551
      %3553 = vmatmul.bf16.gmra.mxu0 %v1996
      %v3554 = vpop.f32.mrf.mxu0
      %v3555 = vadd.f32 %v3466, %v3554
      %v3556 = vpop.f32.mrf.mxu0
      %v3557 = vadd.f32 %v3468, %v3556
      %3558 = vmatmul.bf16.gmra.mxu0 %v1999
      %v3559 = vpop.f32.mrf.mxu0
      %v3560 = vadd.f32 %v3471, %v3559
      %v3561 = vpop.f32.mrf.mxu0
      %v3562 = vadd.f32 %v3473, %v3561
      %3563 = vmatmul.bf16.gmra.mxu0 %v2002
      %v3564 = vpop.f32.mrf.mxu0
      %v3565 = vadd.f32 %v3476, %v3564
      %v3566 = vpop.f32.mrf.mxu0
      %v3567 = vadd.f32 %v3478, %v3566
      %3568 = vmatmul.bf16.gmra.mxu0 %v2005
      %v3569 = vpop.f32.mrf.mxu0
      %v3570 = vadd.f32 %v3481, %v3569
      %v3571 = vpop.f32.mrf.mxu0
      %v3572 = vadd.f32 %v3483, %v3571
      %3573 = vmatmul.bf16.gmra.mxu0 %v2008
      %v3574 = vpop.f32.mrf.mxu0
      %v3575 = vadd.f32 %v3486, %v3574
      %v3576 = vpop.f32.mrf.mxu0
      %v3577 = vadd.f32 %v3488, %v3576
      %3578 = vmatmul.bf16.gmra.mxu0 %v2011
      %v3579 = vpop.f32.mrf.mxu0
      %v3580 = vadd.f32 %v3491, %v3579
      %v3581 = vpop.f32.mrf.mxu0
      %v3582 = vadd.f32 %v3493, %v3581
      %3583 = vmatmul.bf16.gmra.mxu0 %v2014
      %v3584 = vpop.f32.mrf.mxu0
      %v3585 = vadd.f32 %v3496, %v3584
      %v3586 = vpop.f32.mrf.mxu0
      %v3587 = vadd.f32 %v3498, %v3586
      %3588 = vmatmul.bf16.gmra.mxu0 %v2017
      %v3589 = vpop.f32.mrf.mxu0
      %v3590 = vadd.f32 %v3501, %v3589
      %v3591 = vpop.f32.mrf.mxu0
      %v3592 = vadd.f32 %v3503, %v3591
      %3593 = vmatmul.bf16.gmra.mxu0 %v2020
      %v3594 = vpop.f32.mrf.mxu0
      %v3595 = vadd.f32 %v3506, %v3594
      %v3596 = vpop.f32.mrf.mxu0
      %v3597 = vadd.f32 %v3508, %v3596
      %3598 = vmatmul.bf16.gmra.mxu0 %v2023
      %v3599 = vpop.f32.mrf.mxu0
      %v3600 = vadd.f32 %v3511, %v3599
      %v3601 = vpop.f32.mrf.mxu0
      %v3602 = vadd.f32 %v3513, %v3601
      %3603 = vmatmul.bf16.gmra.mxu0 %v2026
      %v3604 = vpop.f32.mrf.mxu0
      %v3605 = vadd.f32 %v3516, %v3604
      %v3606 = vpop.f32.mrf.mxu0
      %v3607 = vadd.f32 %v3518, %v3606
      %3608 = vmatmul.bf16.gmra.mxu0 %v2029
      %v3609 = vpop.f32.mrf.mxu0
      %v3610 = vadd.f32 %v3521, %v3609
      %v3611 = vpop.f32.mrf.mxu0
      %v3612 = vadd.f32 %v3523, %v3611
      %3613 = vmatmul.bf16.gmra.mxu0 %v2032
      %v3614 = vpop.f32.mrf.mxu0
      %v3615 = vadd.f32 %v3526, %v3614
      %v3616 = vpop.f32.mrf.mxu0
      %v3617 = vadd.f32 %v3528, %v3616
      %3618 = vmatmul.bf16.gmra.mxu0 %v2035
      %v3619 = vpop.f32.mrf.mxu0
      %v3620 = vadd.f32 %v3531, %v3619
      %v3621 = vpop.f32.mrf.mxu0
      %v3622 = vadd.f32 %v3533, %v3621
      %3623 = vmatmul.bf16.gmra.mxu0 %v2038
      %v3624 = vpop.f32.mrf.mxu0
      %v3625 = vadd.f32 %v3536, %v3624
      %v3626 = vpop.f32.mrf.mxu0
      %v3627 = vadd.f32 %v3538, %v3626
      %3628 = vdwg.mxu0
      %3629 = vmatpush.bf16.msra.mxu0 %v3006
      %3630 = vmatpush.bf16.msra.mxu0 %v3005
      %3631 = vmatpush.bf16.msra.mxu0 %v3004
      %3632 = vmatpush.bf16.msra.mxu0 %v3003
      %3633 = vmatpush.bf16.msra.mxu0 %v3002
      %3634 = vmatpush.bf16.msra.mxu0 %v3001
      %3635 = vmatpush.bf16.msra.mxu0 %v3000
      %3636 = vmatpush.bf16.msra.mxu0 %v2999
      %3637 = vmatmul.bf16.gmra.mxu0 %v2119
      %v3638 = vpop.f32.mrf.mxu0
      %v3639 = vadd.f32 %v3550, %v3638
      %v3640 = vpop.f32.mrf.mxu0
      %v3641 = vadd.f32 %v3552, %v3640
      %3642 = vmatmul.bf16.gmra.mxu0 %v2120
      %v3643 = vpop.f32.mrf.mxu0
      %v3644 = vadd.f32 %v3555, %v3643
      %v3645 = vpop.f32.mrf.mxu0
      %v3646 = vadd.f32 %v3557, %v3645
      %3647 = vmatmul.bf16.gmra.mxu0 %v2121
      %v3648 = vpop.f32.mrf.mxu0
      %v3649 = vadd.f32 %v3560, %v3648
      %v3650 = vpop.f32.mrf.mxu0
      %v3651 = vadd.f32 %v3562, %v3650
      %3652 = vmatmul.bf16.gmra.mxu0 %v2122
      %v3653 = vpop.f32.mrf.mxu0
      %v3654 = vadd.f32 %v3565, %v3653
      %v3655 = vpop.f32.mrf.mxu0
      %v3656 = vadd.f32 %v3567, %v3655
      %3657 = vmatmul.bf16.gmra.mxu0 %v2123
      %v3658 = vpop.f32.mrf.mxu0
      %v3659 = vadd.f32 %v3570, %v3658
      %v3660 = vpop.f32.mrf.mxu0
      %v3661 = vadd.f32 %v3572, %v3660
      %3662 = vmatmul.bf16.gmra.mxu0 %v2124
      %v3663 = vpop.f32.mrf.mxu0
      %v3664 = vadd.f32 %v3575, %v3663
      %v3665 = vpop.f32.mrf.mxu0
      %v3666 = vadd.f32 %v3577, %v3665
      %3667 = vmatmul.bf16.gmra.mxu0 %v2125
      %v3668 = vpop.f32.mrf.mxu0
      %v3669 = vadd.f32 %v3580, %v3668
      %v3670 = vpop.f32.mrf.mxu0
      %v3671 = vadd.f32 %v3582, %v3670
      %3672 = vmatmul.bf16.gmra.mxu0 %v2126
      %v3673 = vpop.f32.mrf.mxu0
      %v3674 = vadd.f32 %v3585, %v3673
      %v3675 = vpop.f32.mrf.mxu0
      %v3676 = vadd.f32 %v3587, %v3675
      %3677 = vmatmul.bf16.gmra.mxu0 %v2127
      %v3678 = vpop.f32.mrf.mxu0
      %v3679 = vadd.f32 %v3590, %v3678
      %v3680 = vpop.f32.mrf.mxu0
      %v3681 = vadd.f32 %v3592, %v3680
      %3682 = vmatmul.bf16.gmra.mxu0 %v2128
      %v3683 = vpop.f32.mrf.mxu0
      %v3684 = vadd.f32 %v3595, %v3683
      %v3685 = vpop.f32.mrf.mxu0
      %v3686 = vadd.f32 %v3597, %v3685
      %3687 = vmatmul.bf16.gmra.mxu0 %v2129
      %v3688 = vpop.f32.mrf.mxu0
      %v3689 = vadd.f32 %v3600, %v3688
      %v3690 = vpop.f32.mrf.mxu0
      %v3691 = vadd.f32 %v3602, %v3690
      %3692 = vmatmul.bf16.gmra.mxu0 %v2130
      %v3693 = vpop.f32.mrf.mxu0
      %v3694 = vadd.f32 %v3605, %v3693
      %v3695 = vpop.f32.mrf.mxu0
      %v3696 = vadd.f32 %v3607, %v3695
      %3697 = vmatmul.bf16.gmra.mxu0 %v2131
      %v3698 = vpop.f32.mrf.mxu0
      %v3699 = vadd.f32 %v3610, %v3698
      %v3700 = vpop.f32.mrf.mxu0
      %v3701 = vadd.f32 %v3612, %v3700
      %3702 = vmatmul.bf16.gmra.mxu0 %v2132
      %v3703 = vpop.f32.mrf.mxu0
      %v3704 = vadd.f32 %v3615, %v3703
      %v3705 = vpop.f32.mrf.mxu0
      %v3706 = vadd.f32 %v3617, %v3705
      %3707 = vmatmul.bf16.gmra.mxu0 %v2133
      %v3708 = vpop.f32.mrf.mxu0
      %v3709 = vadd.f32 %v3620, %v3708
      %v3710 = vpop.f32.mrf.mxu0
      %v3711 = vadd.f32 %v3622, %v3710
      %3712 = vmatmul.bf16.gmra.mxu0 %v2134
      %v3713 = vpop.f32.mrf.mxu0
      %v3714 = vadd.f32 %v3625, %v3713
      %v3715 = vpop.f32.mrf.mxu0
      %v3716 = vadd.f32 %v3627, %v3715
      %3717 = vdwg.mxu0
      %3718 = vmatpush.bf16.msra.mxu0 %v3014
      %3719 = vmatpush.bf16.msra.mxu0 %v3013
      %3720 = vmatpush.bf16.msra.mxu0 %v3012
      %3721 = vmatpush.bf16.msra.mxu0 %v3011
      %3722 = vmatpush.bf16.msra.mxu0 %v3010
      %3723 = vmatpush.bf16.msra.mxu0 %v3009
      %3724 = vmatpush.bf16.msra.mxu0 %v3008
      %3725 = vmatpush.bf16.msra.mxu0 %v3007
      %3726 = vmatmul.bf16.gmra.mxu0 %v2210
      %v3727 = vpop.f32.mrf.mxu0
      %v3728 = vadd.f32 %v3639, %v3727
      %v3729 = vpop.f32.mrf.mxu0
      %v3730 = vadd.f32 %v3641, %v3729
      %3731 = vmatmul.bf16.gmra.mxu0 %v2222
      %v3732 = vpop.f32.mrf.mxu0
      %v3733 = vadd.f32 %v3644, %v3732
      %v3734 = vpop.f32.mrf.mxu0
      %v3735 = vadd.f32 %v3646, %v3734
      %3736 = vmatmul.bf16.gmra.mxu0 %v2234
      %v3737 = vpop.f32.mrf.mxu0
      %v3738 = vadd.f32 %v3649, %v3737
      %v3739 = vpop.f32.mrf.mxu0
      %v3740 = vadd.f32 %v3651, %v3739
      %3741 = vmatmul.bf16.gmra.mxu0 %v2246
      %v3742 = vpop.f32.mrf.mxu0
      %v3743 = vadd.f32 %v3654, %v3742
      %v3744 = vpop.f32.mrf.mxu0
      %v3745 = vadd.f32 %v3656, %v3744
      %3746 = vmatmul.bf16.gmra.mxu0 %v2258
      %v3747 = vpop.f32.mrf.mxu0
      %v3748 = vadd.f32 %v3659, %v3747
      %v3749 = vpop.f32.mrf.mxu0
      %v3750 = vadd.f32 %v3661, %v3749
      %3751 = vmatmul.bf16.gmra.mxu0 %v2270
      %v3752 = vpop.f32.mrf.mxu0
      %v3753 = vadd.f32 %v3664, %v3752
      %v3754 = vpop.f32.mrf.mxu0
      %v3755 = vadd.f32 %v3666, %v3754
      %3756 = vmatmul.bf16.gmra.mxu0 %v2282
      %v3757 = vpop.f32.mrf.mxu0
      %v3758 = vadd.f32 %v3669, %v3757
      %v3759 = vpop.f32.mrf.mxu0
      %v3760 = vadd.f32 %v3671, %v3759
      %3761 = vmatmul.bf16.gmra.mxu0 %v2294
      %v3762 = vpop.f32.mrf.mxu0
      %v3763 = vadd.f32 %v3674, %v3762
      %v3764 = vpop.f32.mrf.mxu0
      %v3765 = vadd.f32 %v3676, %v3764
      %3766 = vmatmul.bf16.gmra.mxu0 %v2306
      %v3767 = vpop.f32.mrf.mxu0
      %v3768 = vadd.f32 %v3679, %v3767
      %v3769 = vpop.f32.mrf.mxu0
      %v3770 = vadd.f32 %v3681, %v3769
      %3771 = vmatmul.bf16.gmra.mxu0 %v2318
      %v3772 = vpop.f32.mrf.mxu0
      %v3773 = vadd.f32 %v3684, %v3772
      %v3774 = vpop.f32.mrf.mxu0
      %v3775 = vadd.f32 %v3686, %v3774
      %3776 = vmatmul.bf16.gmra.mxu0 %v2330
      %v3777 = vpop.f32.mrf.mxu0
      %v3778 = vadd.f32 %v3689, %v3777
      %v3779 = vpop.f32.mrf.mxu0
      %v3780 = vadd.f32 %v3691, %v3779
      %3781 = vmatmul.bf16.gmra.mxu0 %v2342
      %v3782 = vpop.f32.mrf.mxu0
      %v3783 = vadd.f32 %v3694, %v3782
      %v3784 = vpop.f32.mrf.mxu0
      %v3785 = vadd.f32 %v3696, %v3784
      %3786 = vmatmul.bf16.gmra.mxu0 %v2354
      %v3787 = vpop.f32.mrf.mxu0
      %v3788 = vadd.f32 %v3699, %v3787
      %v3789 = vpop.f32.mrf.mxu0
      %v3790 = vadd.f32 %v3701, %v3789
      %3791 = vmatmul.bf16.gmra.mxu0 %v2366
      %v3792 = vpop.f32.mrf.mxu0
      %v3793 = vadd.f32 %v3704, %v3792
      %v3794 = vpop.f32.mrf.mxu0
      %v3795 = vadd.f32 %v3706, %v3794
      %3796 = vmatmul.bf16.gmra.mxu0 %v2378
      %v3797 = vpop.f32.mrf.mxu0
      %v3798 = vadd.f32 %v3709, %v3797
      %v3799 = vpop.f32.mrf.mxu0
      %v3800 = vadd.f32 %v3711, %v3799
      %3801 = vmatmul.bf16.gmra.mxu0 %v2390
      %v3802 = vpop.f32.mrf.mxu0
      %v3803 = vadd.f32 %v3714, %v3802
      %v3804 = vpop.f32.mrf.mxu0
      %v3805 = vadd.f32 %v3716, %v3804
      %3806 = vdwg.mxu0
      %3807 = vmatpush.bf16.msra.mxu0 %v3022
      %3808 = vmatpush.bf16.msra.mxu0 %v3021
      %3809 = vmatpush.bf16.msra.mxu0 %v3020
      %3810 = vmatpush.bf16.msra.mxu0 %v3019
      %3811 = vmatpush.bf16.msra.mxu0 %v3018
      %3812 = vmatpush.bf16.msra.mxu0 %v3017
      %3813 = vmatpush.bf16.msra.mxu0 %v3016
      %3814 = vmatpush.bf16.msra.mxu0 %v3015
      %3815 = vmatmul.bf16.gmra.mxu0 %v2457
      %v3816 = vpop.f32.mrf.mxu0
      %v3817 = vadd.f32 %v3728, %v3816
      %v3818 = vpop.f32.mrf.mxu0
      %v3819 = vadd.f32 %v3730, %v3818
      %3820 = vmatmul.bf16.gmra.mxu0 %v2460
      %v3821 = vpop.f32.mrf.mxu0
      %v3822 = vadd.f32 %v3733, %v3821
      %v3823 = vpop.f32.mrf.mxu0
      %v3824 = vadd.f32 %v3735, %v3823
      %3825 = vmatmul.bf16.gmra.mxu0 %v2463
      %v3826 = vpop.f32.mrf.mxu0
      %v3827 = vadd.f32 %v3738, %v3826
      %v3828 = vpop.f32.mrf.mxu0
      %v3829 = vadd.f32 %v3740, %v3828
      %3830 = vmatmul.bf16.gmra.mxu0 %v2466
      %v3831 = vpop.f32.mrf.mxu0
      %v3832 = vadd.f32 %v3743, %v3831
      %v3833 = vpop.f32.mrf.mxu0
      %v3834 = vadd.f32 %v3745, %v3833
      %3835 = vmatmul.bf16.gmra.mxu0 %v2469
      %v3836 = vpop.f32.mrf.mxu0
      %v3837 = vadd.f32 %v3748, %v3836
      %v3838 = vpop.f32.mrf.mxu0
      %v3839 = vadd.f32 %v3750, %v3838
      %3840 = vmatmul.bf16.gmra.mxu0 %v2472
      %v3841 = vpop.f32.mrf.mxu0
      %v3842 = vadd.f32 %v3753, %v3841
      %v3843 = vpop.f32.mrf.mxu0
      %v3844 = vadd.f32 %v3755, %v3843
      %3845 = vmatmul.bf16.gmra.mxu0 %v2475
      %v3846 = vpop.f32.mrf.mxu0
      %v3847 = vadd.f32 %v3758, %v3846
      %v3848 = vpop.f32.mrf.mxu0
      %v3849 = vadd.f32 %v3760, %v3848
      %3850 = vmatmul.bf16.gmra.mxu0 %v2478
      %v3851 = vpop.f32.mrf.mxu0
      %v3852 = vadd.f32 %v3763, %v3851
      %v3853 = vpop.f32.mrf.mxu0
      %v3854 = vadd.f32 %v3765, %v3853
      %3855 = vmatmul.bf16.gmra.mxu0 %v2481
      %v3856 = vpop.f32.mrf.mxu0
      %v3857 = vadd.f32 %v3768, %v3856
      %v3858 = vpop.f32.mrf.mxu0
      %v3859 = vadd.f32 %v3770, %v3858
      %3860 = vmatmul.bf16.gmra.mxu0 %v2484
      %v3861 = vpop.f32.mrf.mxu0
      %v3862 = vadd.f32 %v3773, %v3861
      %v3863 = vpop.f32.mrf.mxu0
      %v3864 = vadd.f32 %v3775, %v3863
      %3865 = vmatmul.bf16.gmra.mxu0 %v2487
      %v3866 = vpop.f32.mrf.mxu0
      %v3867 = vadd.f32 %v3778, %v3866
      %v3868 = vpop.f32.mrf.mxu0
      %v3869 = vadd.f32 %v3780, %v3868
      %3870 = vmatmul.bf16.gmra.mxu0 %v2490
      %v3871 = vpop.f32.mrf.mxu0
      %v3872 = vadd.f32 %v3783, %v3871
      %v3873 = vpop.f32.mrf.mxu0
      %v3874 = vadd.f32 %v3785, %v3873
      %3875 = vmatmul.bf16.gmra.mxu0 %v2493
      %v3876 = vpop.f32.mrf.mxu0
      %v3877 = vadd.f32 %v3788, %v3876
      %v3878 = vpop.f32.mrf.mxu0
      %v3879 = vadd.f32 %v3790, %v3878
      %3880 = vmatmul.bf16.gmra.mxu0 %v2496
      %v3881 = vpop.f32.mrf.mxu0
      %v3882 = vadd.f32 %v3793, %v3881
      %v3883 = vpop.f32.mrf.mxu0
      %v3884 = vadd.f32 %v3795, %v3883
      %3885 = vmatmul.bf16.gmra.mxu0 %v2499
      %v3886 = vpop.f32.mrf.mxu0
      %v3887 = vadd.f32 %v3798, %v3886
      %v3888 = vpop.f32.mrf.mxu0
      %v3889 = vadd.f32 %v3800, %v3888
      %3890 = vmatmul.bf16.gmra.mxu0 %v2502
      %v3891 = vpop.f32.mrf.mxu0
      %v3892 = vadd.f32 %v3803, %v3891
      %v3893 = vpop.f32.mrf.mxu0
      %v3894 = vadd.f32 %v3805, %v3893
      %3895 = vdwg.mxu0
      %v3896 = vpack.c.bf16 %v3817, %v3817
      %v3897 = vpack.c.bf16 %v3819, %v3819
      %v3898 = vpack.c.bf16 %v3822, %v3822
      %v3899 = vpack.c.bf16 %v3824, %v3824
      %v3900 = vpack.c.bf16 %v3827, %v3827
      %v3901 = vpack.c.bf16 %v3829, %v3829
      %v3902 = vpack.c.bf16 %v3832, %v3832
      %v3903 = vpack.c.bf16 %v3834, %v3834
      %v3904 = vpack.c.bf16 %v3837, %v3837
      %v3905 = vpack.c.bf16 %v3839, %v3839
      %v3906 = vpack.c.bf16 %v3842, %v3842
      %v3907 = vpack.c.bf16 %v3844, %v3844
      %v3908 = vpack.c.bf16 %v3847, %v3847
      %v3909 = vpack.c.bf16 %v3849, %v3849
      %v3910 = vpack.c.bf16 %v3852, %v3852
      %v3911 = vpack.c.bf16 %v3854, %v3854
      %v3912 = vpack.c.bf16 %v3857, %v3857
      %v3913 = vpack.c.bf16 %v3859, %v3859
      %v3914 = vpack.c.bf16 %v3862, %v3862
      %v3915 = vpack.c.bf16 %v3864, %v3864
      %v3916 = vpack.c.bf16 %v3867, %v3867
      %v3917 = vpack.c.bf16 %v3869, %v3869
      %v3918 = vpack.c.bf16 %v3872, %v3872
      %v3919 = vpack.c.bf16 %v3874, %v3874
      %v3920 = vpack.c.bf16 %v3877, %v3877
      %v3921 = vpack.c.bf16 %v3879, %v3879
      %v3922 = vpack.c.bf16 %v3882, %v3882
      %v3923 = vpack.c.bf16 %v3884, %v3884
      %v3924 = vpack.c.bf16 %v3887, %v3887
      %v3925 = vpack.c.bf16 %v3889, %v3889
      %v3926 = vpack.c.bf16 %v3892, %v3892
      %v3927 = vpack.c.bf16 %v3894, %v3894
      %3928 = vst [vmem:[%s231] sm:$0xf] %v3896
      %3929 = vst [vmem:[%s231 + $0x4] sm:$0xf] %v3897
      %3930 = vst [vmem:[%s231 + $0x8] sm:$0xf] %v3898
      %3931 = vst [vmem:[%s231 + $0xc] sm:$0xf] %v3899
      %3932 = vst [vmem:[%s231 + $0x10] sm:$0xf] %v3900
      %3933 = vst [vmem:[%s231 + $0x14] sm:$0xf] %v3901
      %3934 = vst [vmem:[%s231 + $0x18] sm:$0xf] %v3902
      %3935 = vst [vmem:[%s231 + $0x1c] sm:$0xf] %v3903
      %3936 = vst [vmem:[%s231 + $0x20] sm:$0xf] %v3904
      %3937 = vst [vmem:[%s231 + $0x24] sm:$0xf] %v3905
      %3938 = vst [vmem:[%s231 + $0x28] sm:$0xf] %v3906
      %3939 = vst [vmem:[%s231 + $0x2c] sm:$0xf] %v3907
      %3940 = vst [vmem:[%s231 + $0x30] sm:$0xf] %v3908
      %3941 = vst [vmem:[%s231 + $0x34] sm:$0xf] %v3909
      %3942 = vst [vmem:[%s231 + $0x38] sm:$0xf] %v3910
      %3943 = vst [vmem:[%s231 + $0x3c] sm:$0xf] %v3911
      %3944 = vst [vmem:[%s231 + $0x40] sm:$0xf] %v3912
      %3945 = vst [vmem:[%s231 + $0x44] sm:$0xf] %v3913
      %3946 = vst [vmem:[%s231 + $0x48] sm:$0xf] %v3914
      %3947 = vst [vmem:[%s231 + $0x4c] sm:$0xf] %v3915
      %3948 = vst [vmem:[%s231 + $0x50] sm:$0xf] %v3916
      %3949 = vst [vmem:[%s231 + $0x54] sm:$0xf] %v3917
      %3950 = vst [vmem:[%s231 + $0x58] sm:$0xf] %v3918
      %3951 = vst [vmem:[%s231 + $0x5c] sm:$0xf] %v3919
      %3952 = vst [vmem:[%s231 + $0x60] sm:$0xf] %v3920
      %3953 = vst [vmem:[%s231 + $0x64] sm:$0xf] %v3921
      %3954 = vst [vmem:[%s231 + $0x68] sm:$0xf] %v3922
      %3955 = vst [vmem:[%s231 + $0x6c] sm:$0xf] %v3923
      %3956 = vst [vmem:[%s231 + $0x70] sm:$0xf] %v3924
      %3957 = vst [vmem:[%s231 + $0x74] sm:$0xf] %v3925
      %3958 = vst [vmem:[%s231 + $0x78] sm:$0xf] %v3926
      %3959 = vst [vmem:[%s231 + $0x7c] sm:$0xf] %v3927
      %v3960 = vadd.f32 %v3817, %v3819
      %v3961 = vadd.f32 %v3960, %v3822
      %v3962 = vadd.f32 %v3961, %v3824
      %v3963 = vadd.f32 %v3962, %v3827
      %v3964 = vadd.f32 %v3963, %v3829
      %v3965 = vadd.f32 %v3964, %v3832
      %v3966 = vadd.f32 %v3965, %v3834
      %v3967 = vadd.f32 %v3966, %v3837
      %v3968 = vadd.f32 %v3967, %v3839
      %v3969 = vadd.f32 %v3968, %v3842
      %v3970 = vadd.f32 %v3969, %v3844
      %v3971 = vadd.f32 %v3970, %v3847
      %v3972 = vadd.f32 %v3971, %v3849
      %v3973 = vadd.f32 %v3972, %v3852
      %v3974 = vadd.f32 %v3973, %v3854
      %v3975 = vadd.f32 %v3974, %v3857
      %v3976 = vadd.f32 %v3975, %v3859
      %v3977 = vadd.f32 %v3976, %v3862
      %v3978 = vadd.f32 %v3977, %v3864
      %v3979 = vadd.f32 %v3978, %v3867
      %v3980 = vadd.f32 %v3979, %v3869
      %v3981 = vadd.f32 %v3980, %v3872
      %v3982 = vadd.f32 %v3981, %v3874
      %v3983 = vadd.f32 %v3982, %v3877
      %v3984 = vadd.f32 %v3983, %v3879
      %v3985 = vadd.f32 %v3984, %v3882
      %v3986 = vadd.f32 %v3985, %v3884
      %v3987 = vadd.f32 %v3986, %v3887
      %v3988 = vadd.f32 %v3987, %v3889
      %v3989 = vadd.f32 %v3988, %v3892
      %v3990 = vadd.f32 %v3989, %v3894
      %v3991 = vrot.slane %v3990, 4
      %v3992 = vadd.f32 %v3990, %v3991
      %v3993 = vrot.slane %v3992, 2
      %v3994 = vadd.f32 %v3992, %v3993
      %v3995 = vrot.slane %v3994, 1
      %v3996 = vadd.f32 %v3994, %v3995
      %v3997 = vmul.f32 %v3817, %v3817
      %v3998 = vmul.f32 %v3819, %v3819
      %v3999 = vmul.f32 %v3822, %v3822
      %v4000 = vmul.f32 %v3824, %v3824
      %v4001 = vmul.f32 %v3827, %v3827
      %v4002 = vmul.f32 %v3829, %v3829
      %v4003 = vmul.f32 %v3832, %v3832
      %v4004 = vmul.f32 %v3834, %v3834
      %v4005 = vmul.f32 %v3837, %v3837
      %v4006 = vmul.f32 %v3839, %v3839
      %v4007 = vmul.f32 %v3842, %v3842
      %v4008 = vmul.f32 %v3844, %v3844
      %v4009 = vmul.f32 %v3847, %v3847
      %v4010 = vmul.f32 %v3849, %v3849
      %v4011 = vmul.f32 %v3852, %v3852
      %v4012 = vmul.f32 %v3854, %v3854
      %v4013 = vmul.f32 %v3857, %v3857
      %v4014 = vmul.f32 %v3859, %v3859
      %v4015 = vmul.f32 %v3862, %v3862
      %v4016 = vmul.f32 %v3864, %v3864
      %v4017 = vmul.f32 %v3867, %v3867
      %v4018 = vmul.f32 %v3869, %v3869
      %v4019 = vmul.f32 %v3872, %v3872
      %v4020 = vmul.f32 %v3874, %v3874
      %v4021 = vmul.f32 %v3877, %v3877
      %v4022 = vmul.f32 %v3879, %v3879
      %v4023 = vmul.f32 %v3882, %v3882
      %v4024 = vmul.f32 %v3884, %v3884
      %v4025 = vmul.f32 %v3887, %v3887
      %v4026 = vmul.f32 %v3889, %v3889
      %v4027 = vmul.f32 %v3892, %v3892
      %v4028 = vmul.f32 %v3894, %v3894
      %v4029 = vadd.f32 %v3997, %v3998
      %v4030 = vadd.f32 %v4029, %v3999
      %v4031 = vadd.f32 %v4030, %v4000
      %v4032 = vadd.f32 %v4031, %v4001
      %v4033 = vadd.f32 %v4032, %v4002
      %v4034 = vadd.f32 %v4033, %v4003
      %v4035 = vadd.f32 %v4034, %v4004
      %v4036 = vadd.f32 %v4035, %v4005
      %v4037 = vadd.f32 %v4036, %v4006
      %v4038 = vadd.f32 %v4037, %v4007
      %v4039 = vadd.f32 %v4038, %v4008
      %v4040 = vadd.f32 %v4039, %v4009
      %v4041 = vadd.f32 %v4040, %v4010
      %v4042 = vadd.f32 %v4041, %v4011
      %v4043 = vadd.f32 %v4042, %v4012
      %v4044 = vadd.f32 %v4043, %v4013
      %v4045 = vadd.f32 %v4044, %v4014
      %v4046 = vadd.f32 %v4045, %v4015
      %v4047 = vadd.f32 %v4046, %v4016
      %v4048 = vadd.f32 %v4047, %v4017
      %v4049 = vadd.f32 %v4048, %v4018
      %v4050 = vadd.f32 %v4049, %v4019
      %v4051 = vadd.f32 %v4050, %v4020
      %v4052 = vadd.f32 %v4051, %v4021
      %v4053 = vadd.f32 %v4052, %v4022
      %v4054 = vadd.f32 %v4053, %v4023
      %v4055 = vadd.f32 %v4054, %v4024
      %v4056 = vadd.f32 %v4055, %v4025
      %v4057 = vadd.f32 %v4056, %v4026
      %v4058 = vadd.f32 %v4057, %v4027
      %v4059 = vadd.f32 %v4058, %v4028
      %v4060 = vrot.slane %v4059, 4
      %v4061 = vadd.f32 %v4059, %v4060
      %v4062 = vrot.slane %v4061, 2
      %v4063 = vadd.f32 %v4061, %v4062
      %v4064 = vrot.slane %v4063, 1
      %v4065 = vadd.f32 %v4063, %v4064
      %vm4066 = vcmask 1040384
      %v4067 = vsel %vm4066, %v3996, %v4065
      %4068 = vst [vmem:[%s235] sm:$0x3] %v4067
      %p4069 = scmp.lt.s32.totalorder %s17, 1
      %s4070 = scalar_select %p4069, %s17, 1
      %s4071 = smul.addr %s4070, 32
      %s4072 = smul.addr %s4071, 4
      %s4073 = scalar_lea.vmem %s4, %s4072
      %p4074 = scmp.lt.s32.totalorder %s17, 1
      %s4075 = scalar_select %p4074, %s17, 1
      %s4076 = smul.addr %s4075, 2
      %s4077 = scalar_lea.vmem %s5, %s4076
      // Predicated region
      $region37: #{basic_block_forward.5} parent=35 // pred_check
        %p4078 = pneg %p124
      $region38: #{basic_block_forward.5} parent=35 // pred_check_branch
        %4080 = sbr.rel (%p4078) target = $region40
      $region39: #{basic_block_forward.5} parent=35 // pred_region
        _
      $region40: #{basic_block_forward.5} parent=35 // pred_fallthru
        _
      // Predicated region
      $region41: #{basic_block_forward.5} parent=35 // pred_check
        %p4081 = pneg %p150
      $region42: #{basic_block_forward.5} parent=35 // pred_check_branch
        %4083 = sbr.rel (%p4081) target = $region44
      $region43: #{basic_block_forward.5} parent=35 // pred_region
        _
      $region44: #{basic_block_forward.5} parent=35 // pred_fallthru
        _
    $region36: #{basic_block_forward.5} parent=5 // pred_fallthru
      _
    %p4084 = scmp.le.s32.totalorder 2, %s12
    // Predicated region
    $region45: #{basic_block_forward.5} parent=5 // pred_check
      %p4085 = pneg %p4084
    $region46: #{basic_block_forward.5} parent=5 // pred_check_branch
      %4087 = sbr.rel (%p4085) target = $region48
    $region47: #{basic_block_forward.5} parent=5 // pred_region
      %s4088 = ssub.s32 %s12, 2
      // Predicated region
      $region49: #{basic_block_forward.5} parent=47 // pred_check
        %p4089 = pneg %p130
      $region50: #{basic_block_forward.5} parent=47 // pred_check_branch
        %4091 = sbr.rel (%p4089) target = $region52
      $region51: #{basic_block_forward.5} parent=47 // pred_region
        %p4092 = scmp.lt.s32.totalorder %s18, 1
        %s4093 = scalar_select %p4092, %s18, 1
        %s4094 = smul.addr %s4093, 32
        %s4095 = smul.addr %s4094, 4
        %s4096 = scalar_lea.vmem %s4, %s4095
      $region52: #{basic_block_forward.5} parent=47 // pred_fallthru
        _
      // Predicated region
      $region53: #{basic_block_forward.5} parent=47 // pred_check
        %p4097 = pneg %p156
      $region54: #{basic_block_forward.5} parent=47 // pred_check_branch
        %4099 = sbr.rel (%p4097) target = $region56
      $region55: #{basic_block_forward.5} parent=47 // pred_region
        %p4100 = scmp.lt.s32.totalorder %s18, 1
        %s4101 = scalar_select %p4100, %s18, 1
        %s4102 = smul.addr %s4101, 2
        %s4103 = scalar_lea.vmem %s5, %s4102
      $region56: #{basic_block_forward.5} parent=47 // pred_fallthru
        _
    $region48: #{basic_block_forward.5} parent=5 // pred_fallthru
      _
  $region6: #{basic_block_forward.5} parent=0 // loop_footer
    %s16 = sadd.s32 1, %s12
  $region7: #{basic_block_forward.5} parent=0 // loop_footer_branch
    %11 = sbr.rel target = $region3
  $region8: #{basic_block_forward.5} parent=0 // loop_exit
    _

</llo_original>
